<compile_context>
chip_gen: v7x
topology: tpu7x:2x2x1
jax: 0.10.0
libtpu: 0.0.40
codegen_flags: <defaults>
</compile_context>

<pallas_src>
import functools

import jax
import jax.numpy as jnp
from jax.experimental import pallas as pl
from jax.experimental.pallas import tpu as pltpu


_EPS = 1e-5          # nn.InstanceNorm2d default eps (affine=False)
_NEG_SLOPE = 0.2     # LeakyReLU slope
_LANE = 128          # lane width: pad Cout (and large K) to multiples of this


def _round_up(x, m):
    return -(-x // m) * m


@functools.lru_cache(maxsize=None)
def _tpu_vmem_capacity():
    try:
        return int(pltpu.get_tpu_info().vmem_capacity_bytes)
    except Exception:
        return 64 << 20


def _vmem_limit_bytes():
    """Scoped-VMEM budget (~3/4 of physical): ~96 MiB v5e/v6e, ~48 MiB v7x."""
    cap = max(_tpu_vmem_capacity(), 32 << 20)
    return int(min((cap * 3) // 4, 100 << 20))


def _max_tp():
    """Max output-spatial rows per grid step: 1024 on 128 MiB chips, 512 on 64 MiB."""
    return 1024 if _tpu_vmem_capacity() >= (96 << 20) else 512


# ----------------------------------------------------------------------------
# Kernels
# ----------------------------------------------------------------------------
def _conv_lrelu_kernel(x_ref, w_ref, b_ref, o_ref, *, apply_lrelu):
    """Plain conv-as-matmul tile (no InstanceNorm).  x:(1,TP,K) bf16,
    w:(K,Cpad) bf16, b:(1,Cpad) f32 -> o:(1,TP,Cpad) bf16."""
    y = jnp.dot(x_ref[0], w_ref[...], preferred_element_type=jnp.float32)
    y = y + b_ref[...]
    if apply_lrelu:
        y = jnp.where(y >= 0, y, _NEG_SLOPE * y)
    o_ref[0] = y.astype(o_ref.dtype)


def _conv_in_lrelu_kernel(x_ref, w_ref, b_ref, o_ref, sum_ref, sq_ref, *,
                          n_pt, tp, p_true, needs_mask, apply_lrelu):
    """Fused conv + InstanceNorm2d(affine=False) + LeakyReLU.

    Grid (B, Cout-tiles, P-tiles) with the P axis "arbitrary".  The output
    block (1, Ppad, TC) is VMEM-resident across the P axis: each step writes
    its raw conv tile (bf16) into it and accumulates per-channel sum / sumsq
    in f32 scratch; the last step normalizes the whole resident block in place
    (f32 math) and it is written back to HBM exactly once.
    """
    pt = pl.program_id(2)

    @pl.when(pt == 0)
    def _init():
        sum_ref[...] = jnp.zeros_like(sum_ref)
        sq_ref[...] = jnp.zeros_like(sq_ref)

    # MXU matmul, f32 accumulation; bias fused.
    y = jnp.dot(x_ref[0], w_ref[...], preferred_element_type=jnp.float32)
    y = y + b_ref[...]

    # Split InstanceNorm reduction.  Padded P rows only exist in the last
    # tile, so the iota/select masking is gated to that tile only.
    if needs_mask:
        @pl.when(pt != n_pt - 1)
        def _acc_full():
            sum_ref[...] += jnp.sum(y, axis=0, keepdims=True)
            sq_ref[...] += jnp.sum(y * y, axis=0, keepdims=True)

        @pl.when(pt == n_pt - 1)
        def _acc_masked():
            row = pt * tp + jax.lax.broadcasted_iota(jnp.int32, (tp, 1), 0)
            ym = jnp.where(row < p_true, y, 0.0)
            sum_ref[...] += jnp.sum(ym, axis=0, keepdims=True)
            sq_ref[...] += jnp.sum(ym * ym, axis=0, keepdims=True)
    else:
        sum_ref[...] += jnp.sum(y, axis=0, keepdims=True)
        sq_ref[...] += jnp.sum(y * y, axis=0, keepdims=True)

    # Stash the raw conv tile (bf16) into the VMEM-resident output block.
    start = pl.multiple_of(pt * tp, tp)
    o_ref[0, pl.ds(start, tp), :] = y.astype(o_ref.dtype)

    # Last P step: normalize + LeakyReLU the resident block, tile by tile
    # (bounds live vregs; f32 compute, bf16 storage).
    @pl.when(pt == n_pt - 1)
    def _finalize():
        inv_p = 1.0 / p_true
        mean = sum_ref[...] * inv_p
        # one-pass biased variance: E[y^2] - mean^2 (clamped for fp safety)
        var = jnp.maximum(sq_ref[...] * inv_p - mean * mean, 0.0)
        scale = jax.lax.rsqrt(var + _EPS)

        def body(t, carry):
            s = pl.multiple_of(t * tp, tp)
            v = o_ref[0, pl.ds(s, tp), :].astype(jnp.float32)
            v = (v - mean) * scale
            if apply_lrelu:
                v = jnp.where(v >= 0, v, _NEG_SLOPE * v)
            o_ref[0, pl.ds(s, tp), :] = v.astype(o_ref.dtype)
            return carry

        jax.lax.fori_loop(0, n_pt, body, 0)


# ----------------------------------------------------------------------------
# Layer wrapper: conv (+ bias) (+ InstanceNorm) (+ LeakyReLU)
# ----------------------------------------------------------------------------
def conv_layer(patches, w, b, *, use_in, use_lrelu, out_dtype=jnp.bfloat16):
    """patches: (B, P, K) bf16; w: (K, Cpad) bf16; b: (1, Cpad) f32.
    Returns (B, P, Cpad) out_dtype."""
    B, P, K = patches.shape
    Cpad = w.shape[1]

    tp = min(_max_tp(), _round_up(P, 8))
    p_pad = _round_up(P, tp)
    if p_pad != P:
        patches = jnp.pad(patches, ((0, 0), (0, p_pad - P), (0, 0)))
    n_pt = p_pad // tp
    needs_mask = p_pad != P
    vmem = _vmem_limit_bytes()

    if not use_in:
        kern = functools.partial(_conv_lrelu_kernel, apply_lrelu=use_lrelu)
        y = pl.pallas_call(
            kern,
            out_shape=jax.ShapeDtypeStruct((B, p_pad, Cpad), out_dtype),
            grid=(B, n_pt),
            in_specs=[
                pl.BlockSpec((1, tp, K), lambda bi, pi: (bi, pi, 0)),
                # constant index maps -> single-buffer the weight and bias
                pl.BlockSpec((K, Cpad), lambda bi, pi: (0, 0),
                             pipeline_mode=pl.Buffered(1)),
                pl.BlockSpec((1, Cpad), lambda bi, pi: (0, 0),
                             pipeline_mode=pl.Buffered(1)),
            ],
            out_specs=pl.BlockSpec((1, tp, Cpad), lambda bi, pi: (bi, pi, 0)),
            compiler_params=pltpu.CompilerParams(
                dimension_semantics=("parallel", "parallel"),
                vmem_limit_bytes=vmem),
        )(patches, w, b)
    else:
        # Cout tiling only at B == 1 (keeps both v7x TensorCores busy); with
        # B >= 2 the batch axis already feeds megacore and channel tiling
        # would re-read the (much larger) patch tensor n_ct times.
        tc = Cpad if (B >= 2 or Cpad <= 256) else 256
        n_ct = Cpad // tc
        kern = functools.partial(
            _conv_in_lrelu_kernel, n_pt=n_pt, tp=tp, p_true=P,
            needs_mask=needs_mask, apply_lrelu=use_lrelu)
        y = pl.pallas_call(
            kern,
            out_shape=jax.ShapeDtypeStruct((B, p_pad, Cpad), out_dtype),
            grid=(B, n_ct, n_pt),
            in_specs=[
                pl.BlockSpec((1, tp, K), lambda bi, ci, pi: (bi, pi, 0)),
                pl.BlockSpec((K, tc), lambda bi, ci, pi: (0, ci),
                             pipeline_mode=pl.Buffered(1)),
                pl.BlockSpec((1, tc), lambda bi, ci, pi: (0, ci),
                             pipeline_mode=pl.Buffered(1)),
            ],
            # Same block across the P ("arbitrary") axis -> VMEM-resident
            # accumulator; written back to HBM once per (sample, ch-tile).
            out_specs=pl.BlockSpec((1, p_pad, tc),
                                   lambda bi, ci, pi: (bi, 0, ci)),
            scratch_shapes=[pltpu.VMEM((1, tc), jnp.float32),
                            pltpu.VMEM((1, tc), jnp.float32)],
            compiler_params=pltpu.CompilerParams(
                dimension_semantics=("parallel", "parallel", "arbitrary"),
                vmem_limit_bytes=vmem),
        )(patches, w, b)

    if p_pad != P:
        y = y[:, :P, :]
    return y


# ----------------------------------------------------------------------------
# Glue: im2col (NHWC, trace-time Python loops only) and patch pooling
# ----------------------------------------------------------------------------
def _im2col_nhwc(x, k, stride, pad):
    """(B, H, W, C) -> (B, Ho*Wo, k*k*C) patches; K ordered (kh, kw, C)."""
    B, H, W, C = x.shape
    xp = jnp.pad(x, ((0, 0), (pad, pad), (pad, pad), (0, 0)))
    Ho = (H + 2 * pad - k) // stride + 1
    Wo = (W + 2 * pad - k) // stride + 1
    cols = []
    for i in range(k):
        for j in range(k):
            cols.append(
                xp[:, i:i + stride * Ho:stride, j:j + stride * Wo:stride, :])
    patches = jnp.stack(cols, axis=3)          # (B, Ho, Wo, k*k, C)
    return patches.reshape(B, Ho * Wo, k * k * C), Ho, Wo


def _mean_patch_nhwc(x, k, pad):
    """Average im2col patch over all stride-1 output positions without
    materializing the k*k-inflated patch matrix.  x: (B,H,W,C) -> (B, k*k*C)."""
    B, H, W, C = x.shape
    xp = jnp.pad(x.astype(jnp.float32),
                 ((0, 0), (pad, pad), (pad, pad), (0, 0)))
    Ho = H + 2 * pad - k + 1
    Wo = W + 2 * pad - k + 1
    cols = []
    for i in range(k):
        for j in range(k):
            cols.append(jnp.mean(xp[:, i:i + Ho, j:j + Wo, :], axis=(1, 2)))
    return jnp.stack(cols, axis=1).reshape(B, k * k * C)


# Static per-layer config: (cout, stride, use_instance_norm, use_leaky_relu)
_LAYERS = (
    (64, 2, False, True),
    (128, 2, True, True),
    (256, 2, True, True),
    (512, 1, True, True),
    (1, 1, False, False),
)


def init_params(key, input_nc):
    """Synthetic Conv2d(cin, cout, 4) params, pre-packed once for the kernels:
    (Cout, Cin, 4, 4) -> (kh, kw, Cin, Cout) -> (K, Cout).  Cout is padded to
    a lane multiple; K is left unpadded when it is < 128 (layer 0 bandwidth).
    Weights bf16, bias f32.  The final 1-channel conv stays unpadded f32 (it
    is applied as a tiny XLA matvec on the pooled patch)."""
    cins = [input_nc, 64, 128, 256, 512]
    params = []
    for i, (cin, (cout, _, _, _)) in enumerate(zip(cins, _LAYERS)):
        kw_, kb_ = jax.random.split(jax.random.fold_in(key, i))
        w = 0.05 * jax.random.normal(kw_, (cout, cin, 4, 4), dtype=jnp.float32)
        b = 0.02 * jax.random.normal(kb_, (cout,), dtype=jnp.float32)
        k_true = cin * 16
        wk = jnp.transpose(w, (2, 3, 1, 0)).reshape(k_true, cout)
        if i == len(_LAYERS) - 1:
            params.append((wk, b.reshape(1, cout)))   # (K, 1) f32, (1, 1) f32
            continue
        k_pad = k_true if k_true <= _LANE else _round_up(k_true, _LANE)
        c_pad = _round_up(cout, _LANE)
        wk = jnp.pad(wk, ((0, k_pad - k_true), (0, c_pad - cout)))
        wk = wk.astype(jnp.bfloat16)
        bk = jnp.pad(b, (0, c_pad - cout)).reshape(1, c_pad)
        params.append((wk, bk))
    return params


def discriminator_forward(x, params):
    """x: (B, C, H, W) f32 (PyTorch NCHW) -> (B, 1) f32."""
    B = x.shape[0]
    # One-time layout change: activations stay NHWC (lane-dense C) in bf16.
    h = jnp.transpose(x, (0, 2, 3, 1)).astype(jnp.bfloat16)

    for idx in range(4):
        cout, stride, use_in, use_lr = _LAYERS[idx]
        wk, bk = params[idx]
        patches, Ho, Wo = _im2col_nhwc(h, 4, stride, 1)
        k_pad = wk.shape[0]
        if k_pad != patches.shape[-1]:
            patches = jnp.pad(
                patches, ((0, 0), (0, 0), (0, k_pad - patches.shape[-1])))
        y = conv_layer(patches, wk, bk, use_in=use_in, use_lrelu=use_lr,
                       out_dtype=jnp.bfloat16)            # (B, P, Cpad)
        h = y[..., :cout].reshape(B, Ho, Wo, cout)

    # Final layer: Conv2d(512, 1, 4, padding=1) + global avg-pool of its output.
    # The pool covers the whole conv output and the conv is affine, so
    #   mean_p(W @ patch_p + b) == W @ mean_p(patch_p) + b.
    # M = 1, ~2 MFLOP -> plain XLA matvec (pallas_call overhead would dominate).
    w5, b5 = params[4]
    mp = _mean_patch_nhwc(h, 4, 1)                        # (B, 8192) f32
    return mp @ w5 + b5                                   # (B, 1) f32


if __name__ == "__main__":
    B, C, H, W = 2, 3, 32, 32   # 32x32 so the 5-conv stack leaves a 2x2 map
    kx, kp = jax.random.split(jax.random.PRNGKey(0))
    x = jax.random.normal(kx, (B, C, H, W), dtype=jnp.float32)
    params = init_params(kp, input_nc=C)

    fwd = jax.jit(discriminator_forward)
    out = jax.block_until_ready(fwd(x, params))

    assert out.shape == (B, 1), out.shape
    assert out.dtype == jnp.float32, out.dtype
    assert bool(jnp.all(jnp.isfinite(out)))
    print("KERNEL_OK")
</pallas_src>

<mosaic_0001>
module attributes {stable_mosaic.version = 11 : i64} {
  func.func @_conv_lrelu_kernel(%arg0: i32, %arg1: i32, %arg2: memref<1x256x48xbf16, #tpu.memory_space<vmem>>, %arg3: memref<48x128xbf16, #tpu.memory_space<vmem>>, %arg4: memref<1x128xf32, #tpu.memory_space<vmem>>, %arg5: memref<1x256x128xbf16, #tpu.memory_space<vmem>>) attributes {dimension_semantics = [#tpu.dimension_semantics<parallel>, #tpu.dimension_semantics<parallel>], iteration_bounds = array<i64: 2, 1>, scalar_prefetch = 0 : i64, scratch_operands = 0 : i64, tpu.core_type = #tpu.core_type<tc>, window_params = [{transform_indices = @transform_0, window_bounds = array<i64: 1, 256, 48>}, {pipeline_mode = #tpu.pipeline_mode<synchronous>, transform_indices = @transform_1, window_bounds = array<i64: 48, 128>}, {pipeline_mode = #tpu.pipeline_mode<synchronous>, transform_indices = @transform_2, window_bounds = array<i64: 1, 128>}, {transform_indices = @transform_3, window_bounds = array<i64: 1, 256, 128>}]} {
    %c0 = arith.constant 0 : index
    %c0_0 = arith.constant 0 : index
    %c0_1 = arith.constant 0 : index
    %0 = vector.load %arg2[%c0, %c0_0, %c0_1] : memref<1x256x48xbf16, #tpu.memory_space<vmem>>, vector<1x256x48xbf16>
    %1 = vector.shape_cast %0 : vector<1x256x48xbf16> to vector<256x48xbf16>
    %c0_2 = arith.constant 0 : index
    %c0_3 = arith.constant 0 : index
    %2 = vector.load %arg3[%c0_2, %c0_3] : memref<48x128xbf16, #tpu.memory_space<vmem>>, vector<48x128xbf16>
    %cst = arith.constant dense<0.000000e+00> : vector<256x128xf32>
    %3 = tpu.matmul %1, %2, %cst {dimension_numbers = #tpu.dot_dimension_numbers<[1], [0], [0], [1], [0, 0, 1, 1], [], []>} : vector<256x48xbf16>, vector<48x128xbf16>, vector<256x128xf32> -> vector<256x128xf32>
    %c0_4 = arith.constant 0 : index
    %c0_5 = arith.constant 0 : index
    %4 = vector.load %arg4[%c0_4, %c0_5] : memref<1x128xf32, #tpu.memory_space<vmem>>, vector<1x128xf32>
    %5 = vector.broadcast %4 : vector<1x128xf32> to vector<256x128xf32>
    %6 = arith.addf %3, %5 : vector<256x128xf32>
    %cst_6 = arith.constant 0.000000e+00 : f32
    %7 = vector.broadcast %cst_6 : f32 to vector<256x128xf32>
    %8 = arith.cmpf oge, %6, %7 : vector<256x128xf32>
    %cst_7 = arith.constant 2.000000e-01 : f32
    %9 = vector.broadcast %cst_7 : f32 to vector<256x128xf32>
    %10 = arith.mulf %9, %6 : vector<256x128xf32>
    %11 = arith.select %8, %6, %10 : vector<256x128xi1>, vector<256x128xf32>
    %12 = arith.truncf %11 : vector<256x128xf32> to vector<256x128xbf16>
    %c0_8 = arith.constant 0 : index
    %c0_9 = arith.constant 0 : index
    %c0_10 = arith.constant 0 : index
    %13 = vector.load %arg5[%c0_8, %c0_9, %c0_10] : memref<1x256x128xbf16, #tpu.memory_space<vmem>>, vector<1x256x128xbf16>
    %14 = vector.shape_cast %13 : vector<1x256x128xbf16> to vector<256x128xbf16>
    %15 = vector.shape_cast %12 : vector<256x128xbf16> to vector<1x256x128xbf16>
    tpu.vector_store %arg5[%c0_8, %c0_9, %c0_10], %15 {strides = array<i32>} : memref<1x256x128xbf16, #tpu.memory_space<vmem>>, vector<1x256x128xbf16>,
    return
  }
  func.func @transform_0(%arg0: i32, %arg1: i32) -> (i32, i32, i32) {
    %c0_i32 = arith.constant 0 : i32
    %c0_i32_0 = arith.constant 0 : i32
    return %arg0, %arg1, %c0_i32 : i32, i32, i32
  }
  func.func @transform_1(%arg0: i32, %arg1: i32) -> (i32, i32) {
    %c0_i32 = arith.constant 0 : i32
    %c0_i32_0 = arith.constant 0 : i32
    %c0_i32_1 = arith.constant 0 : i32
    return %c0_i32, %c0_i32_0 : i32, i32
  }
  func.func @transform_2(%arg0: i32, %arg1: i32) -> (i32, i32) {
    %c0_i32 = arith.constant 0 : i32
    %c0_i32_0 = arith.constant 0 : i32
    %c0_i32_1 = arith.constant 0 : i32
    return %c0_i32, %c0_i32_0 : i32, i32
  }
  func.func @transform_3(%arg0: i32, %arg1: i32) -> (i32, i32, i32) {
    %c0_i32 = arith.constant 0 : i32
    %c0_i32_0 = arith.constant 0 : i32
    return %arg0, %arg1, %c0_i32 : i32, i32, i32
  }
}

module attributes {stable_mosaic.version = 11 : i64} {
  func.func @_conv_in_lrelu_kernel(%arg0: i32, %arg1: i32, %arg2: i32, %arg3: memref<1x64x1024xbf16, #tpu.memory_space<vmem>>, %arg4: memref<1024x128xbf16, #tpu.memory_space<vmem>>, %arg5: memref<1x128xf32, #tpu.memory_space<vmem>>, %arg6: memref<1x64x128xbf16, #tpu.memory_space<vmem>>, %arg7: memref<1x128xf32, #tpu.memory_space<vmem>>, %arg8: memref<1x128xf32, #tpu.memory_space<vmem>>) attributes {dimension_semantics = [#tpu.dimension_semantics<parallel>, #tpu.dimension_semantics<parallel>, #tpu.dimension_semantics<arbitrary>], iteration_bounds = array<i64: 2, 1, 1>, scalar_prefetch = 0 : i64, scratch_operands = 2 : i64, tpu.core_type = #tpu.core_type<tc>, window_params = [{transform_indices = @transform_0, window_bounds = array<i64: 1, 64, 1024>}, {pipeline_mode = #tpu.pipeline_mode<synchronous>, transform_indices = @transform_1, window_bounds = array<i64: 1024, 128>}, {pipeline_mode = #tpu.pipeline_mode<synchronous>, transform_indices = @transform_2, window_bounds = array<i64: 1, 128>}, {transform_indices = @transform_3, window_bounds = array<i64: 1, 64, 128>}]} {
    %c0_i32 = arith.constant 0 : i32
    %0 = arith.cmpi eq, %arg2, %c0_i32 : i32
    %1 = arith.extui %0 : i1 to i32
    %c0_i32_0 = arith.constant 0 : i32
    %2 = arith.cmpi ne, %1, %c0_i32_0 : i32
    scf.if %2 {
      %cst_21 = arith.constant 0.000000e+00 : f32
      %31 = vector.broadcast %cst_21 : f32 to vector<1x128xf32>
      %c0_22 = arith.constant 0 : index
      %c0_23 = arith.constant 0 : index
      %32 = vector.load %arg7[%c0_22, %c0_23] : memref<1x128xf32, #tpu.memory_space<vmem>>, vector<1x128xf32>
      tpu.vector_store %arg7[%c0_22, %c0_23], %31 {strides = array<i32>} : memref<1x128xf32, #tpu.memory_space<vmem>>, vector<1x128xf32>,
      %cst_24 = arith.constant 0.000000e+00 : f32
      %33 = vector.broadcast %cst_24 : f32 to vector<1x128xf32>
      %c0_25 = arith.constant 0 : index
      %c0_26 = arith.constant 0 : index
      %34 = vector.load %arg8[%c0_25, %c0_26] : memref<1x128xf32, #tpu.memory_space<vmem>>, vector<1x128xf32>
      tpu.vector_store %arg8[%c0_25, %c0_26], %33 {strides = array<i32>} : memref<1x128xf32, #tpu.memory_space<vmem>>, vector<1x128xf32>,
    } else {
    }
    %c0 = arith.constant 0 : index
    %c0_1 = arith.constant 0 : index
    %c0_2 = arith.constant 0 : index
    %3 = vector.load %arg3[%c0, %c0_1, %c0_2] : memref<1x64x1024xbf16, #tpu.memory_space<vmem>>, vector<1x64x1024xbf16>
    %4 = vector.shape_cast %3 : vector<1x64x1024xbf16> to vector<64x1024xbf16>
    %c0_3 = arith.constant 0 : index
    %c0_4 = arith.constant 0 : index
    %5 = vector.load %arg4[%c0_3, %c0_4] : memref<1024x128xbf16, #tpu.memory_space<vmem>>, vector<1024x128xbf16>
    %cst = arith.constant dense<0.000000e+00> : vector<64x128xf32>
    %6 = tpu.matmul %4, %5, %cst {dimension_numbers = #tpu.dot_dimension_numbers<[1], [0], [0], [1], [0, 0, 1, 1], [], []>} : vector<64x1024xbf16>, vector<1024x128xbf16>, vector<64x128xf32> -> vector<64x128xf32>
    %c0_5 = arith.constant 0 : index
    %c0_6 = arith.constant 0 : index
    %7 = vector.load %arg5[%c0_5, %c0_6] : memref<1x128xf32, #tpu.memory_space<vmem>>, vector<1x128xf32>
    %8 = vector.broadcast %7 : vector<1x128xf32> to vector<64x128xf32>
    %9 = arith.addf %6, %8 : vector<64x128xf32>
    %c0_7 = arith.constant 0 : index
    %c0_8 = arith.constant 0 : index
    %10 = vector.load %arg7[%c0_7, %c0_8] : memref<1x128xf32, #tpu.memory_space<vmem>>, vector<1x128xf32>
    %cst_9 = arith.constant dense<0.000000e+00> : vector<128xf32>
    %11 = vector.multi_reduction <add>, %9, %cst_9 [0] : vector<64x128xf32> to vector<128xf32>
    %12 = vector.shape_cast %11 : vector<128xf32> to vector<1x128xf32>
    %13 = arith.addf %10, %12 : vector<1x128xf32>
    %c0_10 = arith.constant 0 : index
    %c0_11 = arith.constant 0 : index
    %14 = vector.load %arg7[%c0_10, %c0_11] : memref<1x128xf32, #tpu.memory_space<vmem>>, vector<1x128xf32>
    tpu.vector_store %arg7[%c0_10, %c0_11], %13 {strides = array<i32>} : memref<1x128xf32, #tpu.memory_space<vmem>>, vector<1x128xf32>,
    %c0_12 = arith.constant 0 : index
    %c0_13 = arith.constant 0 : index
    %15 = vector.load %arg8[%c0_12, %c0_13] : memref<1x128xf32, #tpu.memory_space<vmem>>, vector<1x128xf32>
    %16 = arith.mulf %9, %9 : vector<64x128xf32>
    %cst_14 = arith.constant dense<0.000000e+00> : vector<128xf32>
    %17 = vector.multi_reduction <add>, %16, %cst_14 [0] : vector<64x128xf32> to vector<128xf32>
    %18 = vector.shape_cast %17 : vector<128xf32> to vector<1x128xf32>
    %19 = arith.addf %15, %18 : vector<1x128xf32>
    %c0_15 = arith.constant 0 : index
    %c0_16 = arith.constant 0 : index
    %20 = vector.load %arg8[%c0_15, %c0_16] : memref<1x128xf32, #tpu.memory_space<vmem>>, vector<1x128xf32>
    tpu.vector_store %arg8[%c0_15, %c0_16], %19 {strides = array<i32>} : memref<1x128xf32, #tpu.memory_space<vmem>>, vector<1x128xf32>,
    %c64_i32 = arith.constant 64 : i32
    %21 = arith.muli %arg2, %c64_i32 : i32
    %22 = tpu.assume_multiple %21, 64 : i32
    %23 = arith.truncf %9 : vector<64x128xf32> to vector<64x128xbf16>
    %c0_17 = arith.constant 0 : index
    %24 = arith.index_cast %22 : i32 to index
    %c0_18 = arith.constant 0 : index
    %25 = vector.load %arg6[%c0_17, %24, %c0_18] : memref<1x64x128xbf16, #tpu.memory_space<vmem>>, vector<1x64x128xbf16>
    %26 = vector.shape_cast %25 : vector<1x64x128xbf16> to vector<64x128xbf16>
    %27 = vector.shape_cast %23 : vector<64x128xbf16> to vector<1x64x128xbf16>
    tpu.vector_store %arg6[%c0_17, %24, %c0_18], %27 {strides = array<i32>} : memref<1x64x128xbf16, #tpu.memory_space<vmem>>, vector<1x64x128xbf16>,
    %c0_i32_19 = arith.constant 0 : i32
    %28 = arith.cmpi eq, %arg2, %c0_i32_19 : i32
    %29 = arith.extui %28 : i1 to i32
    %c0_i32_20 = arith.constant 0 : i32
    %30 = arith.cmpi ne, %29, %c0_i32_20 : i32
    scf.if %30 {
      %c0_21 = arith.constant 0 : index
      %c0_22 = arith.constant 0 : index
      %31 = vector.load %arg7[%c0_21, %c0_22] : memref<1x128xf32, #tpu.memory_space<vmem>>, vector<1x128xf32>
      %cst_23 = arith.constant 1.562500e-02 : f32
      %32 = vector.broadcast %cst_23 : f32 to vector<1x128xf32>
      %33 = arith.mulf %31, %32 : vector<1x128xf32>
      %c0_24 = arith.constant 0 : index
      %c0_25 = arith.constant 0 : index
      %34 = vector.load %arg8[%c0_24, %c0_25] : memref<1x128xf32, #tpu.memory_space<vmem>>, vector<1x128xf32>
      %cst_26 = arith.constant 1.562500e-02 : f32
      %35 = vector.broadcast %cst_26 : f32 to vector<1x128xf32>
      %36 = arith.mulf %34, %35 : vector<1x128xf32>
      %37 = arith.mulf %33, %33 : vector<1x128xf32>
      %38 = arith.subf %36, %37 : vector<1x128xf32>
      %cst_27 = arith.constant 0.000000e+00 : f32
      %39 = vector.broadcast %cst_27 : f32 to vector<1x128xf32>
      %40 = arith.maximumf %38, %39 : vector<1x128xf32>
      %cst_28 = arith.constant 9.99999974E-6 : f32
      %41 = vector.broadcast %cst_28 : f32 to vector<1x128xf32>
      %42 = arith.addf %40, %41 : vector<1x128xf32>
      %43 = math.rsqrt %42 : vector<1x128xf32>
      %c0_i32_29 = arith.constant 0 : i32
      %c64_i32_30 = arith.constant 64 : i32
      %44 = arith.muli %c0_i32_29, %c64_i32_30 : i32
      %45 = tpu.assume_multiple %44, 64 : i32
      %c0_31 = arith.constant 0 : index
      %46 = arith.index_cast %45 : i32 to index
      %c0_32 = arith.constant 0 : index
      %47 = vector.load %arg6[%c0_31, %46, %c0_32] : memref<1x64x128xbf16, #tpu.memory_space<vmem>>, vector<1x64x128xbf16>
      %48 = vector.shape_cast %47 : vector<1x64x128xbf16> to vector<64x128xbf16>
      %49 = arith.extf %48 : vector<64x128xbf16> to vector<64x128xf32>
      %50 = vector.broadcast %33 : vector<1x128xf32> to vector<64x128xf32>
      %51 = arith.subf %49, %50 : vector<64x128xf32>
      %52 = vector.broadcast %43 : vector<1x128xf32> to vector<64x128xf32>
      %53 = arith.mulf %51, %52 : vector<64x128xf32>
      %cst_33 = arith.constant 0.000000e+00 : f32
      %54 = vector.broadcast %cst_33 : f32 to vector<64x128xf32>
      %55 = arith.cmpf oge, %53, %54 : vector<64x128xf32>
      %cst_34 = arith.constant 2.000000e-01 : f32
      %56 = vector.broadcast %cst_34 : f32 to vector<64x128xf32>
      %57 = arith.mulf %56, %53 : vector<64x128xf32>
      %58 = arith.select %55, %53, %57 : vector<64x128xi1>, vector<64x128xf32>
      %59 = arith.truncf %58 : vector<64x128xf32> to vector<64x128xbf16>
      %c0_35 = arith.constant 0 : index
      %60 = arith.index_cast %45 : i32 to index
      %c0_36 = arith.constant 0 : index
      %61 = vector.load %arg6[%c0_35, %60, %c0_36] : memref<1x64x128xbf16, #tpu.memory_space<vmem>>, vector<1x64x128xbf16>
      %62 = vector.shape_cast %61 : vector<1x64x128xbf16> to vector<64x128xbf16>
      %63 = vector.shape_cast %59 : vector<64x128xbf16> to vector<1x64x128xbf16>
      tpu.vector_store %arg6[%c0_35, %60, %c0_36], %63 {strides = array<i32>} : memref<1x64x128xbf16, #tpu.memory_space<vmem>>, vector<1x64x128xbf16>,
      %c1_i32 = arith.constant 1 : i32
    } else {
    }
    return
  }
  func.func @transform_0(%arg0: i32, %arg1: i32, %arg2: i32) -> (i32, i32, i32) {
    %c0_i32 = arith.constant 0 : i32
    %c0_i32_0 = arith.constant 0 : i32
    return %arg0, %arg2, %c0_i32 : i32, i32, i32
  }
  func.func @transform_1(%arg0: i32, %arg1: i32, %arg2: i32) -> (i32, i32) {
    %c0_i32 = arith.constant 0 : i32
    %c0_i32_0 = arith.constant 0 : i32
    return %c0_i32, %arg1 : i32, i32
  }
  func.func @transform_2(%arg0: i32, %arg1: i32, %arg2: i32) -> (i32, i32) {
    %c0_i32 = arith.constant 0 : i32
    %c0_i32_0 = arith.constant 0 : i32
    return %c0_i32, %arg1 : i32, i32
  }
  func.func @transform_3(%arg0: i32, %arg1: i32, %arg2: i32) -> (i32, i32, i32) {
    %c0_i32 = arith.constant 0 : i32
    %c0_i32_0 = arith.constant 0 : i32
    return %arg0, %c0_i32, %arg1 : i32, i32, i32
  }
}

module attributes {stable_mosaic.version = 11 : i64} {
  func.func @_conv_in_lrelu_kernel(%arg0: i32, %arg1: i32, %arg2: i32, %arg3: memref<1x16x2048xbf16, #tpu.memory_space<vmem>>, %arg4: memref<2048x256xbf16, #tpu.memory_space<vmem>>, %arg5: memref<1x256xf32, #tpu.memory_space<vmem>>, %arg6: memref<1x16x256xbf16, #tpu.memory_space<vmem>>, %arg7: memref<1x256xf32, #tpu.memory_space<vmem>>, %arg8: memref<1x256xf32, #tpu.memory_space<vmem>>) attributes {dimension_semantics = [#tpu.dimension_semantics<parallel>, #tpu.dimension_semantics<parallel>, #tpu.dimension_semantics<arbitrary>], iteration_bounds = array<i64: 2, 1, 1>, scalar_prefetch = 0 : i64, scratch_operands = 2 : i64, tpu.core_type = #tpu.core_type<tc>, window_params = [{transform_indices = @transform_0, window_bounds = array<i64: 1, 16, 2048>}, {pipeline_mode = #tpu.pipeline_mode<synchronous>, transform_indices = @transform_1, window_bounds = array<i64: 2048, 256>}, {pipeline_mode = #tpu.pipeline_mode<synchronous>, transform_indices = @transform_2, window_bounds = array<i64: 1, 256>}, {transform_indices = @transform_3, window_bounds = array<i64: 1, 16, 256>}]} {
    %c0_i32 = arith.constant 0 : i32
    %0 = arith.cmpi eq, %arg2, %c0_i32 : i32
    %1 = arith.extui %0 : i1 to i32
    %c0_i32_0 = arith.constant 0 : i32
    %2 = arith.cmpi ne, %1, %c0_i32_0 : i32
    scf.if %2 {
      %cst_21 = arith.constant 0.000000e+00 : f32
      %31 = vector.broadcast %cst_21 : f32 to vector<1x256xf32>
      %c0_22 = arith.constant 0 : index
      %c0_23 = arith.constant 0 : index
      %32 = vector.load %arg7[%c0_22, %c0_23] : memref<1x256xf32, #tpu.memory_space<vmem>>, vector<1x256xf32>
      tpu.vector_store %arg7[%c0_22, %c0_23], %31 {strides = array<i32>} : memref<1x256xf32, #tpu.memory_space<vmem>>, vector<1x256xf32>,
      %cst_24 = arith.constant 0.000000e+00 : f32
      %33 = vector.broadcast %cst_24 : f32 to vector<1x256xf32>
      %c0_25 = arith.constant 0 : index
      %c0_26 = arith.constant 0 : index
      %34 = vector.load %arg8[%c0_25, %c0_26] : memref<1x256xf32, #tpu.memory_space<vmem>>, vector<1x256xf32>
      tpu.vector_store %arg8[%c0_25, %c0_26], %33 {strides = array<i32>} : memref<1x256xf32, #tpu.memory_space<vmem>>, vector<1x256xf32>,
    } else {
    }
    %c0 = arith.constant 0 : index
    %c0_1 = arith.constant 0 : index
    %c0_2 = arith.constant 0 : index
    %3 = vector.load %arg3[%c0, %c0_1, %c0_2] : memref<1x16x2048xbf16, #tpu.memory_space<vmem>>, vector<1x16x2048xbf16>
    %4 = vector.shape_cast %3 : vector<1x16x2048xbf16> to vector<16x2048xbf16>
    %c0_3 = arith.constant 0 : index
    %c0_4 = arith.constant 0 : index
    %5 = vector.load %arg4[%c0_3, %c0_4] : memref<2048x256xbf16, #tpu.memory_space<vmem>>, vector<2048x256xbf16>
    %cst = arith.constant dense<0.000000e+00> : vector<16x256xf32>
    %6 = tpu.matmul %4, %5, %cst {dimension_numbers = #tpu.dot_dimension_numbers<[1], [0], [0], [1], [0, 0, 1, 1], [], []>} : vector<16x2048xbf16>, vector<2048x256xbf16>, vector<16x256xf32> -> vector<16x256xf32>
    %c0_5 = arith.constant 0 : index
    %c0_6 = arith.constant 0 : index
    %7 = vector.load %arg5[%c0_5, %c0_6] : memref<1x256xf32, #tpu.memory_space<vmem>>, vector<1x256xf32>
    %8 = vector.broadcast %7 : vector<1x256xf32> to vector<16x256xf32>
    %9 = arith.addf %6, %8 : vector<16x256xf32>
    %c0_7 = arith.constant 0 : index
    %c0_8 = arith.constant 0 : index
    %10 = vector.load %arg7[%c0_7, %c0_8] : memref<1x256xf32, #tpu.memory_space<vmem>>, vector<1x256xf32>
    %cst_9 = arith.constant dense<0.000000e+00> : vector<256xf32>
    %11 = vector.multi_reduction <add>, %9, %cst_9 [0] : vector<16x256xf32> to vector<256xf32>
    %12 = vector.shape_cast %11 : vector<256xf32> to vector<1x256xf32>
    %13 = arith.addf %10, %12 : vector<1x256xf32>
    %c0_10 = arith.constant 0 : index
    %c0_11 = arith.constant 0 : index
    %14 = vector.load %arg7[%c0_10, %c0_11] : memref<1x256xf32, #tpu.memory_space<vmem>>, vector<1x256xf32>
    tpu.vector_store %arg7[%c0_10, %c0_11], %13 {strides = array<i32>} : memref<1x256xf32, #tpu.memory_space<vmem>>, vector<1x256xf32>,
    %c0_12 = arith.constant 0 : index
    %c0_13 = arith.constant 0 : index
    %15 = vector.load %arg8[%c0_12, %c0_13] : memref<1x256xf32, #tpu.memory_space<vmem>>, vector<1x256xf32>
    %16 = arith.mulf %9, %9 : vector<16x256xf32>
    %cst_14 = arith.constant dense<0.000000e+00> : vector<256xf32>
    %17 = vector.multi_reduction <add>, %16, %cst_14 [0] : vector<16x256xf32> to vector<256xf32>
    %18 = vector.shape_cast %17 : vector<256xf32> to vector<1x256xf32>
    %19 = arith.addf %15, %18 : vector<1x256xf32>
    %c0_15 = arith.constant 0 : index
    %c0_16 = arith.constant 0 : index
    %20 = vector.load %arg8[%c0_15, %c0_16] : memref<1x256xf32, #tpu.memory_space<vmem>>, vector<1x256xf32>
    tpu.vector_store %arg8[%c0_15, %c0_16], %19 {strides = array<i32>} : memref<1x256xf32, #tpu.memory_space<vmem>>, vector<1x256xf32>,
    %c16_i32 = arith.constant 16 : i32
    %21 = arith.muli %arg2, %c16_i32 : i32
    %22 = tpu.assume_multiple %21, 16 : i32
    %23 = arith.truncf %9 : vector<16x256xf32> to vector<16x256xbf16>
    %c0_17 = arith.constant 0 : index
    %24 = arith.index_cast %22 : i32 to index
    %c0_18 = arith.constant 0 : index
    %25 = vector.load %arg6[%c0_17, %24, %c0_18] : memref<1x16x256xbf16, #tpu.memory_space<vmem>>, vector<1x16x256xbf16>
    %26 = vector.shape_cast %25 : vector<1x16x256xbf16> to vector<16x256xbf16>
    %27 = vector.shape_cast %23 : vector<16x256xbf16> to vector<1x16x256xbf16>
    tpu.vector_store %arg6[%c0_17, %24, %c0_18], %27 {strides = array<i32>} : memref<1x16x256xbf16, #tpu.memory_space<vmem>>, vector<1x16x256xbf16>,
    %c0_i32_19 = arith.constant 0 : i32
    %28 = arith.cmpi eq, %arg2, %c0_i32_19 : i32
    %29 = arith.extui %28 : i1 to i32
    %c0_i32_20 = arith.constant 0 : i32
    %30 = arith.cmpi ne, %29, %c0_i32_20 : i32
    scf.if %30 {
      %c0_21 = arith.constant 0 : index
      %c0_22 = arith.constant 0 : index
      %31 = vector.load %arg7[%c0_21, %c0_22] : memref<1x256xf32, #tpu.memory_space<vmem>>, vector<1x256xf32>
      %cst_23 = arith.constant 6.250000e-02 : f32
      %32 = vector.broadcast %cst_23 : f32 to vector<1x256xf32>
      %33 = arith.mulf %31, %32 : vector<1x256xf32>
      %c0_24 = arith.constant 0 : index
      %c0_25 = arith.constant 0 : index
      %34 = vector.load %arg8[%c0_24, %c0_25] : memref<1x256xf32, #tpu.memory_space<vmem>>, vector<1x256xf32>
      %cst_26 = arith.constant 6.250000e-02 : f32
      %35 = vector.broadcast %cst_26 : f32 to vector<1x256xf32>
      %36 = arith.mulf %34, %35 : vector<1x256xf32>
      %37 = arith.mulf %33, %33 : vector<1x256xf32>
      %38 = arith.subf %36, %37 : vector<1x256xf32>
      %cst_27 = arith.constant 0.000000e+00 : f32
      %39 = vector.broadcast %cst_27 : f32 to vector<1x256xf32>
      %40 = arith.maximumf %38, %39 : vector<1x256xf32>
      %cst_28 = arith.constant 9.99999974E-6 : f32
      %41 = vector.broadcast %cst_28 : f32 to vector<1x256xf32>
      %42 = arith.addf %40, %41 : vector<1x256xf32>
      %43 = math.rsqrt %42 : vector<1x256xf32>
      %c0_i32_29 = arith.constant 0 : i32
      %c16_i32_30 = arith.constant 16 : i32
      %44 = arith.muli %c0_i32_29, %c16_i32_30 : i32
      %45 = tpu.assume_multiple %44, 16 : i32
      %c0_31 = arith.constant 0 : index
      %46 = arith.index_cast %45 : i32 to index
      %c0_32 = arith.constant 0 : index
      %47 = vector.load %arg6[%c0_31, %46, %c0_32] : memref<1x16x256xbf16, #tpu.memory_space<vmem>>, vector<1x16x256xbf16>
      %48 = vector.shape_cast %47 : vector<1x16x256xbf16> to vector<16x256xbf16>
      %49 = arith.extf %48 : vector<16x256xbf16> to vector<16x256xf32>
      %50 = vector.broadcast %33 : vector<1x256xf32> to vector<16x256xf32>
      %51 = arith.subf %49, %50 : vector<16x256xf32>
      %52 = vector.broadcast %43 : vector<1x256xf32> to vector<16x256xf32>
      %53 = arith.mulf %51, %52 : vector<16x256xf32>
      %cst_33 = arith.constant 0.000000e+00 : f32
      %54 = vector.broadcast %cst_33 : f32 to vector<16x256xf32>
      %55 = arith.cmpf oge, %53, %54 : vector<16x256xf32>
      %cst_34 = arith.constant 2.000000e-01 : f32
      %56 = vector.broadcast %cst_34 : f32 to vector<16x256xf32>
      %57 = arith.mulf %56, %53 : vector<16x256xf32>
      %58 = arith.select %55, %53, %57 : vector<16x256xi1>, vector<16x256xf32>
      %59 = arith.truncf %58 : vector<16x256xf32> to vector<16x256xbf16>
      %c0_35 = arith.constant 0 : index
      %60 = arith.index_cast %45 : i32 to index
      %c0_36 = arith.constant 0 : index
      %61 = vector.load %arg6[%c0_35, %60, %c0_36] : memref<1x16x256xbf16, #tpu.memory_space<vmem>>, vector<1x16x256xbf16>
      %62 = vector.shape_cast %61 : vector<1x16x256xbf16> to vector<16x256xbf16>
      %63 = vector.shape_cast %59 : vector<16x256xbf16> to vector<1x16x256xbf16>
      tpu.vector_store %arg6[%c0_35, %60, %c0_36], %63 {strides = array<i32>} : memref<1x16x256xbf16, #tpu.memory_space<vmem>>, vector<1x16x256xbf16>,
      %c1_i32 = arith.constant 1 : i32
    } else {
    }
    return
  }
  func.func @transform_0(%arg0: i32, %arg1: i32, %arg2: i32) -> (i32, i32, i32) {
    %c0_i32 = arith.constant 0 : i32
    %c0_i32_0 = arith.constant 0 : i32
    return %arg0, %arg2, %c0_i32 : i32, i32, i32
  }
  func.func @transform_1(%arg0: i32, %arg1: i32, %arg2: i32) -> (i32, i32) {
    %c0_i32 = arith.constant 0 : i32
    %c0_i32_0 = arith.constant 0 : i32
    return %c0_i32, %arg1 : i32, i32
  }
  func.func @transform_2(%arg0: i32, %arg1: i32, %arg2: i32) -> (i32, i32) {
    %c0_i32 = arith.constant 0 : i32
    %c0_i32_0 = arith.constant 0 : i32
    return %c0_i32, %arg1 : i32, i32
  }
  func.func @transform_3(%arg0: i32, %arg1: i32, %arg2: i32) -> (i32, i32, i32) {
    %c0_i32 = arith.constant 0 : i32
    %c0_i32_0 = arith.constant 0 : i32
    return %arg0, %c0_i32, %arg1 : i32, i32, i32
  }
}

module attributes {stable_mosaic.version = 11 : i64} {
  func.func @_conv_in_lrelu_kernel(%arg0: i32, %arg1: i32, %arg2: i32, %arg3: memref<1x16x4096xbf16, #tpu.memory_space<vmem>>, %arg4: memref<4096x512xbf16, #tpu.memory_space<vmem>>, %arg5: memref<1x512xf32, #tpu.memory_space<vmem>>, %arg6: memref<1x16x512xbf16, #tpu.memory_space<vmem>>, %arg7: memref<1x512xf32, #tpu.memory_space<vmem>>, %arg8: memref<1x512xf32, #tpu.memory_space<vmem>>) attributes {dimension_semantics = [#tpu.dimension_semantics<parallel>, #tpu.dimension_semantics<parallel>, #tpu.dimension_semantics<arbitrary>], iteration_bounds = array<i64: 2, 1, 1>, scalar_prefetch = 0 : i64, scratch_operands = 2 : i64, tpu.core_type = #tpu.core_type<tc>, window_params = [{transform_indices = @transform_0, window_bounds = array<i64: 1, 16, 4096>}, {pipeline_mode = #tpu.pipeline_mode<synchronous>, transform_indices = @transform_1, window_bounds = array<i64: 4096, 512>}, {pipeline_mode = #tpu.pipeline_mode<synchronous>, transform_indices = @transform_2, window_bounds = array<i64: 1, 512>}, {transform_indices = @transform_3, window_bounds = array<i64: 1, 16, 512>}]} {
    %c0_i32 = arith.constant 0 : i32
    %0 = arith.cmpi eq, %arg2, %c0_i32 : i32
    %1 = arith.extui %0 : i1 to i32
    %c0_i32_0 = arith.constant 0 : i32
    %2 = arith.cmpi ne, %1, %c0_i32_0 : i32
    scf.if %2 {
      %cst_15 = arith.constant 0.000000e+00 : f32
      %26 = vector.broadcast %cst_15 : f32 to vector<1x512xf32>
      %c0_16 = arith.constant 0 : index
      %c0_17 = arith.constant 0 : index
      %27 = vector.load %arg7[%c0_16, %c0_17] : memref<1x512xf32, #tpu.memory_space<vmem>>, vector<1x512xf32>
      tpu.vector_store %arg7[%c0_16, %c0_17], %26 {strides = array<i32>} : memref<1x512xf32, #tpu.memory_space<vmem>>, vector<1x512xf32>,
      %cst_18 = arith.constant 0.000000e+00 : f32
      %28 = vector.broadcast %cst_18 : f32 to vector<1x512xf32>
      %c0_19 = arith.constant 0 : index
      %c0_20 = arith.constant 0 : index
      %29 = vector.load %arg8[%c0_19, %c0_20] : memref<1x512xf32, #tpu.memory_space<vmem>>, vector<1x512xf32>
      tpu.vector_store %arg8[%c0_19, %c0_20], %28 {strides = array<i32>} : memref<1x512xf32, #tpu.memory_space<vmem>>, vector<1x512xf32>,
    } else {
    }
    %c0 = arith.constant 0 : index
    %c0_1 = arith.constant 0 : index
    %c0_2 = arith.constant 0 : index
    %3 = vector.load %arg3[%c0, %c0_1, %c0_2] : memref<1x16x4096xbf16, #tpu.memory_space<vmem>>, vector<1x16x4096xbf16>
    %4 = vector.shape_cast %3 : vector<1x16x4096xbf16> to vector<16x4096xbf16>
    %c0_3 = arith.constant 0 : index
    %c0_4 = arith.constant 0 : index
    %5 = vector.load %arg4[%c0_3, %c0_4] : memref<4096x512xbf16, #tpu.memory_space<vmem>>, vector<4096x512xbf16>
    %cst = arith.constant dense<0.000000e+00> : vector<16x512xf32>
    %6 = tpu.matmul %4, %5, %cst {dimension_numbers = #tpu.dot_dimension_numbers<[1], [0], [0], [1], [0, 0, 1, 1], [], []>} : vector<16x4096xbf16>, vector<4096x512xbf16>, vector<16x512xf32> -> vector<16x512xf32>
    %c0_5 = arith.constant 0 : index
    %c0_6 = arith.constant 0 : index
    %7 = vector.load %arg5[%c0_5, %c0_6] : memref<1x512xf32, #tpu.memory_space<vmem>>, vector<1x512xf32>
    %8 = vector.broadcast %7 : vector<1x512xf32> to vector<16x512xf32>
    %9 = arith.addf %6, %8 : vector<16x512xf32>
    %c0_i32_7 = arith.constant 0 : i32
    %10 = arith.cmpi ne, %arg2, %c0_i32_7 : i32
    %11 = arith.extui %10 : i1 to i32
    %c0_i32_8 = arith.constant 0 : i32
    %12 = arith.cmpi ne, %11, %c0_i32_8 : i32
    scf.if %12 {
      %c0_15 = arith.constant 0 : index
      %c0_16 = arith.constant 0 : index
      %26 = vector.load %arg7[%c0_15, %c0_16] : memref<1x512xf32, #tpu.memory_space<vmem>>, vector<1x512xf32>
      %cst_17 = arith.constant dense<0.000000e+00> : vector<512xf32>
      %27 = vector.multi_reduction <add>, %9, %cst_17 [0] : vector<16x512xf32> to vector<512xf32>
      %28 = vector.shape_cast %27 : vector<512xf32> to vector<1x512xf32>
      %29 = arith.addf %26, %28 : vector<1x512xf32>
      %c0_18 = arith.constant 0 : index
      %c0_19 = arith.constant 0 : index
      %30 = vector.load %arg7[%c0_18, %c0_19] : memref<1x512xf32, #tpu.memory_space<vmem>>, vector<1x512xf32>
      tpu.vector_store %arg7[%c0_18, %c0_19], %29 {strides = array<i32>} : memref<1x512xf32, #tpu.memory_space<vmem>>, vector<1x512xf32>,
      %c0_20 = arith.constant 0 : index
      %c0_21 = arith.constant 0 : index
      %31 = vector.load %arg8[%c0_20, %c0_21] : memref<1x512xf32, #tpu.memory_space<vmem>>, vector<1x512xf32>
      %32 = arith.mulf %9, %9 : vector<16x512xf32>
      %cst_22 = arith.constant dense<0.000000e+00> : vector<512xf32>
      %33 = vector.multi_reduction <add>, %32, %cst_22 [0] : vector<16x512xf32> to vector<512xf32>
      %34 = vector.shape_cast %33 : vector<512xf32> to vector<1x512xf32>
      %35 = arith.addf %31, %34 : vector<1x512xf32>
      %c0_23 = arith.constant 0 : index
      %c0_24 = arith.constant 0 : index
      %36 = vector.load %arg8[%c0_23, %c0_24] : memref<1x512xf32, #tpu.memory_space<vmem>>, vector<1x512xf32>
      tpu.vector_store %arg8[%c0_23, %c0_24], %35 {strides = array<i32>} : memref<1x512xf32, #tpu.memory_space<vmem>>, vector<1x512xf32>,
    } else {
    }
    %c0_i32_9 = arith.constant 0 : i32
    %13 = arith.cmpi eq, %arg2, %c0_i32_9 : i32
    %14 = arith.extui %13 : i1 to i32
    %c0_i32_10 = arith.constant 0 : i32
    %15 = arith.cmpi ne, %14, %c0_i32_10 : i32
    scf.if %15 {
      %c16_i32_15 = arith.constant 16 : i32
      %26 = arith.muli %arg2, %c16_i32_15 : i32
      %27 = tpu.iota {dimensions = array<i32: 0>} : vector<16x1xi32>
      %28 = vector.broadcast %26 : i32 to vector<16x1xi32>
      %29 = arith.addi %28, %27 : vector<16x1xi32>
      %c9_i32 = arith.constant 9 : i32
      %30 = vector.broadcast %c9_i32 : i32 to vector<16x1xi32>
      %31 = arith.cmpi slt, %29, %30 : vector<16x1xi32>
      %cst_16 = arith.constant 0.000000e+00 : f32
      %32 = vector.shape_cast %31 : vector<16x1xi1> to vector<16x1xi1>
      %33 = vector.broadcast %32 : vector<16x1xi1> to vector<16x512xi1>
      %34 = vector.broadcast %cst_16 : f32 to vector<16x512xf32>
      %35 = arith.select %33, %9, %34 : vector<16x512xi1>, vector<16x512xf32>
      %c0_17 = arith.constant 0 : index
      %c0_18 = arith.constant 0 : index
      %36 = vector.load %arg7[%c0_17, %c0_18] : memref<1x512xf32, #tpu.memory_space<vmem>>, vector<1x512xf32>
      %cst_19 = arith.constant dense<0.000000e+00> : vector<512xf32>
      %37 = vector.multi_reduction <add>, %35, %cst_19 [0] : vector<16x512xf32> to vector<512xf32>
      %38 = vector.shape_cast %37 : vector<512xf32> to vector<1x512xf32>
      %39 = arith.addf %36, %38 : vector<1x512xf32>
      %c0_20 = arith.constant 0 : index
      %c0_21 = arith.constant 0 : index
      %40 = vector.load %arg7[%c0_20, %c0_21] : memref<1x512xf32, #tpu.memory_space<vmem>>, vector<1x512xf32>
      tpu.vector_store %arg7[%c0_20, %c0_21], %39 {strides = array<i32>} : memref<1x512xf32, #tpu.memory_space<vmem>>, vector<1x512xf32>,
      %c0_22 = arith.constant 0 : index
      %c0_23 = arith.constant 0 : index
      %41 = vector.load %arg8[%c0_22, %c0_23] : memref<1x512xf32, #tpu.memory_space<vmem>>, vector<1x512xf32>
      %42 = arith.mulf %35, %35 : vector<16x512xf32>
      %cst_24 = arith.constant dense<0.000000e+00> : vector<512xf32>
      %43 = vector.multi_reduction <add>, %42, %cst_24 [0] : vector<16x512xf32> to vector<512xf32>
      %44 = vector.shape_cast %43 : vector<512xf32> to vector<1x512xf32>
      %45 = arith.addf %41, %44 : vector<1x512xf32>
      %c0_25 = arith.constant 0 : index
      %c0_26 = arith.constant 0 : index
      %46 = vector.load %arg8[%c0_25, %c0_26] : memref<1x512xf32, #tpu.memory_space<vmem>>, vector<1x512xf32>
      tpu.vector_store %arg8[%c0_25, %c0_26], %45 {strides = array<i32>} : memref<1x512xf32, #tpu.memory_space<vmem>>, vector<1x512xf32>,
    } else {
    }
    %c16_i32 = arith.constant 16 : i32
    %16 = arith.muli %arg2, %c16_i32 : i32
    %17 = tpu.assume_multiple %16, 16 : i32
    %18 = arith.truncf %9 : vector<16x512xf32> to vector<16x512xbf16>
    %c0_11 = arith.constant 0 : index
    %19 = arith.index_cast %17 : i32 to index
    %c0_12 = arith.constant 0 : index
    %20 = vector.load %arg6[%c0_11, %19, %c0_12] : memref<1x16x512xbf16, #tpu.memory_space<vmem>>, vector<1x16x512xbf16>
    %21 = vector.shape_cast %20 : vector<1x16x512xbf16> to vector<16x512xbf16>
    %22 = vector.shape_cast %18 : vector<16x512xbf16> to vector<1x16x512xbf16>
    tpu.vector_store %arg6[%c0_11, %19, %c0_12], %22 {strides = array<i32>} : memref<1x16x512xbf16, #tpu.memory_space<vmem>>, vector<1x16x512xbf16>,
    %c0_i32_13 = arith.constant 0 : i32
    %23 = arith.cmpi eq, %arg2, %c0_i32_13 : i32
    %24 = arith.extui %23 : i1 to i32
    %c0_i32_14 = arith.constant 0 : i32
    %25 = arith.cmpi ne, %24, %c0_i32_14 : i32
    scf.if %25 {
      %c0_15 = arith.constant 0 : index
      %c0_16 = arith.constant 0 : index
      %26 = vector.load %arg7[%c0_15, %c0_16] : memref<1x512xf32, #tpu.memory_space<vmem>>, vector<1x512xf32>
      %cst_17 = arith.constant 0.111111112 : f32
      %27 = vector.broadcast %cst_17 : f32 to vector<1x512xf32>
      %28 = arith.mulf %26, %27 : vector<1x512xf32>
      %c0_18 = arith.constant 0 : index
      %c0_19 = arith.constant 0 : index
      %29 = vector.load %arg8[%c0_18, %c0_19] : memref<1x512xf32, #tpu.memory_space<vmem>>, vector<1x512xf32>
      %cst_20 = arith.constant 0.111111112 : f32
      %30 = vector.broadcast %cst_20 : f32 to vector<1x512xf32>
      %31 = arith.mulf %29, %30 : vector<1x512xf32>
      %32 = arith.mulf %28, %28 : vector<1x512xf32>
      %33 = arith.subf %31, %32 : vector<1x512xf32>
      %cst_21 = arith.constant 0.000000e+00 : f32
      %34 = vector.broadcast %cst_21 : f32 to vector<1x512xf32>
      %35 = arith.maximumf %33, %34 : vector<1x512xf32>
      %cst_22 = arith.constant 9.99999974E-6 : f32
      %36 = vector.broadcast %cst_22 : f32 to vector<1x512xf32>
      %37 = arith.addf %35, %36 : vector<1x512xf32>
      %38 = math.rsqrt %37 : vector<1x512xf32>
      %c0_i32_23 = arith.constant 0 : i32
      %c16_i32_24 = arith.constant 16 : i32
      %39 = arith.muli %c0_i32_23, %c16_i32_24 : i32
      %40 = tpu.assume_multiple %39, 16 : i32
      %c0_25 = arith.constant 0 : index
      %41 = arith.index_cast %40 : i32 to index
      %c0_26 = arith.constant 0 : index
      %42 = vector.load %arg6[%c0_25, %41, %c0_26] : memref<1x16x512xbf16, #tpu.memory_space<vmem>>, vector<1x16x512xbf16>
      %43 = vector.shape_cast %42 : vector<1x16x512xbf16> to vector<16x512xbf16>
      %44 = arith.extf %43 : vector<16x512xbf16> to vector<16x512xf32>
      %45 = vector.broadcast %28 : vector<1x512xf32> to vector<16x512xf32>
      %46 = arith.subf %44, %45 : vector<16x512xf32>
      %47 = vector.broadcast %38 : vector<1x512xf32> to vector<16x512xf32>
      %48 = arith.mulf %46, %47 : vector<16x512xf32>
      %cst_27 = arith.constant 0.000000e+00 : f32
      %49 = vector.broadcast %cst_27 : f32 to vector<16x512xf32>
      %50 = arith.cmpf oge, %48, %49 : vector<16x512xf32>
      %cst_28 = arith.constant 2.000000e-01 : f32
      %51 = vector.broadcast %cst_28 : f32 to vector<16x512xf32>
      %52 = arith.mulf %51, %48 : vector<16x512xf32>
      %53 = arith.select %50, %48, %52 : vector<16x512xi1>, vector<16x512xf32>
      %54 = arith.truncf %53 : vector<16x512xf32> to vector<16x512xbf16>
      %c0_29 = arith.constant 0 : index
      %55 = arith.index_cast %40 : i32 to index
      %c0_30 = arith.constant 0 : index
      %56 = vector.load %arg6[%c0_29, %55, %c0_30] : memref<1x16x512xbf16, #tpu.memory_space<vmem>>, vector<1x16x512xbf16>
      %57 = vector.shape_cast %56 : vector<1x16x512xbf16> to vector<16x512xbf16>
      %58 = vector.shape_cast %54 : vector<16x512xbf16> to vector<1x16x512xbf16>
      tpu.vector_store %arg6[%c0_29, %55, %c0_30], %58 {strides = array<i32>} : memref<1x16x512xbf16, #tpu.memory_space<vmem>>, vector<1x16x512xbf16>,
      %c1_i32 = arith.constant 1 : i32
    } else {
    }
    return
  }
  func.func @transform_0(%arg0: i32, %arg1: i32, %arg2: i32) -> (i32, i32, i32) {
    %c0_i32 = arith.constant 0 : i32
    %c0_i32_0 = arith.constant 0 : i32
    return %arg0, %arg2, %c0_i32 : i32, i32, i32
  }
  func.func @transform_1(%arg0: i32, %arg1: i32, %arg2: i32) -> (i32, i32) {
    %c0_i32 = arith.constant 0 : i32
    %c0_i32_0 = arith.constant 0 : i32
    return %c0_i32, %arg1 : i32, i32
  }
  func.func @transform_2(%arg0: i32, %arg1: i32, %arg2: i32) -> (i32, i32) {
    %c0_i32 = arith.constant 0 : i32
    %c0_i32_0 = arith.constant 0 : i32
    return %c0_i32, %arg1 : i32, i32
  }
  func.func @transform_3(%arg0: i32, %arg1: i32, %arg2: i32) -> (i32, i32, i32) {
    %c0_i32 = arith.constant 0 : i32
    %c0_i32_0 = arith.constant 0 : i32
    return %arg0, %c0_i32, %arg1 : i32, i32, i32
  }
}

</mosaic_0001>

<llo_original>
// kernel: discriminator_forward.4
$region0: #{discriminator_forward.4}
  #allocation0 [shape = 'u32[]', space=smem, size = 0x4, offset = 0x4, fixed_abs, tag = 'smem constant byte address 0x4 - core index']
  #allocation1 [shape = 'u32[144,128]{1,0:T(1,128)}', space=vmem, size = 0x12000, scoped, tag = 'internal scratch']
  %s0 = inlined_call_operand.vmem [shape: bf16[2,256,48], index: 0, kind: input, shape index: {}]
  %s1 = inlined_call_operand.hbm [shape: bf16[48,128], index: 1, kind: input, shape index: {}]
  %s2 = inlined_call_operand.hbm [shape: f32[1,128], index: 2, kind: input, shape index: {}]
  %s3 = inlined_call_operand.vmem [shape: bf16[2,256,128], index: 3, kind: output, shape index: {}]
  %s4 = sld [smem:[#allocation0]]
  $region53: #{discriminator_forward.4} parent=0
    _
  %s6 = ssub.s32 1, %s4
  %s7 = scalar_select 0, %s6, %s4
  $region1: #{discriminator_forward.4} parent=0
    #allocation2 [shape = 'u8[12288]{0}', space=vmem, size = 0x3000, scoped, tag = 'input window, operand 1, single buffered']
    #allocation3 [shape = 's32[2]{0}', space=sflag, size = 0x8, scoped, tag = 'scoped memory for discriminator_forward.4']
    #allocation4 [shape = 'u8[512]{0}', space=vmem, size = 0x400, scoped, tag = 'input window, operand 2, single buffered']
    #allocation5 [shape = 's32[1]{0}', space=sflag, size = 0x4, scoped, tag = 'scoped memory for discriminator_forward.4']
    %8 = vsyncpa [#allocation3], 0
    %9 = vsyncpa [#allocation5], 0
    loop: start=0, step=1, limit=4
    $region2: #{discriminator_forward.4} parent=1 // loop_pre_header
      _
    $region3: #{discriminator_forward.4} parent=1 // loop_header
      %s11 = sphi 0, %s15
      %p12 = scmp.ge.s32.totalorder %s11, 4
      %s18 = sphi 0, %s30
      %s19 = sphi 0, %s26
      %s20 = sphi 0, %s18
      %s21 = sphi 0, %s19
      %s22 = sphi 0, %s20
      %s23 = sphi 0, %s21
      %s35 = sphi 0, %s37
      %s38 = sphi 0, %s35
      %s39 = sphi 0, %s38
      %s55 = sphi 0, %s39
      %s59 = sphi 0, %s59
      %s61 = sphi 0, %s59
      %s62 = sphi 0, %s61
      %s76 = sphi 0, %s62
      %s80 = sphi 0, %s80
      %s82 = sphi 0, %s80
      %s83 = sphi 0, %s82
      %s97 = sphi 0, %s83
      %s105 = sphi 0, %s107
      %s108 = sphi 0, %s105
      %s109 = sphi 0, %s108
      %s125 = sphi 0, %s109
    $region4: #{discriminator_forward.4} parent=1 // loop_header_branch
      %14 = sbr.rel (%p12) target = $region8
    $region5: #{discriminator_forward.4} parent=1 // loop_body
      %s16 = ssub.s32 %s11, 1
      %s17 = ssub.s32 %s11, 2
      %s24 = sadd.s32 1, %s19
      %p25 = scmp.ge.s32.totalorder %s24, 1
      %s26 = scalar_select %p25, 0, %s24
      %s27 = sadd.s32 1, %s18
      %s28 = scalar_select %p25, %s27, %s18
      %p29 = scmp.ge.s32.totalorder %s28, 2
      %s30 = scalar_select %p29, 0, %s28
      %s31 = ssub.s32 %s18, %s30
      %s32 = ssub.s32 %s19, %s26
      %s33 = sor.u32 %s31, %s32
      %p34 = scmp.eq.s32.totalorder %s33, 0
      %s36 = sadd.s32 %s35, 1
      %s37 = scalar_select %p34, %s35, %s36
      %p40 = pneg %p34
      %p41 = scmp.eq.s32.totalorder %s11, 1
      %p42 = por %p40, %p41
      %p43 = scmp.ne.s32.totalorder %s35, %s38
      %p44 = scmp.eq.s32.totalorder %s11, 0
      %p45 = por %p43, %p44
      %p46 = scmp.ne.s32.totalorder %s35, %s38
      %p47 = scmp.eq.s32.totalorder %s16, 1
      %p48 = por %p46, %p47
      %p49 = scmp.ne.s32.totalorder %s38, %s39
      %p50 = scmp.eq.s32.totalorder %s16, 0
      %p51 = por %p49, %p50
      %p52 = scmp.ne.s32.totalorder %s38, %s39
      %p53 = scmp.eq.s32.totalorder %s17, 1
      %p54 = por %p52, %p53
      %p56 = scmp.ne.s32.totalorder %s39, %s55
      %p57 = scmp.eq.s32.totalorder %s17, 0
      %p58 = por %p56, %p57
      %s60 = sadd.s32 %s59, 1
      %p63 = scmp.eq.s32.totalorder %s11, 1
      %p64 = scmp.ne.s32.totalorder %s59, %s61
      %p65 = scmp.eq.s32.totalorder %s11, 0
      %p66 = por %p64, %p65
      %p67 = scmp.ne.s32.totalorder %s59, %s61
      %p68 = scmp.eq.s32.totalorder %s16, 1
      %p69 = por %p67, %p68
      %p70 = scmp.ne.s32.totalorder %s61, %s62
      %p71 = scmp.eq.s32.totalorder %s16, 0
      %p72 = por %p70, %p71
      %p73 = scmp.ne.s32.totalorder %s61, %s62
      %p74 = scmp.eq.s32.totalorder %s17, 1
      %p75 = por %p73, %p74
      %p77 = scmp.ne.s32.totalorder %s62, %s76
      %p78 = scmp.eq.s32.totalorder %s17, 0
      %p79 = por %p77, %p78
      %s81 = sadd.s32 %s80, 1
      %p84 = scmp.eq.s32.totalorder %s11, 1
      %p85 = scmp.ne.s32.totalorder %s80, %s82
      %p86 = scmp.eq.s32.totalorder %s11, 0
      %p87 = por %p85, %p86
      %p88 = scmp.ne.s32.totalorder %s80, %s82
      %p89 = scmp.eq.s32.totalorder %s16, 1
      %p90 = por %p88, %p89
      %p91 = scmp.ne.s32.totalorder %s82, %s83
      %p92 = scmp.eq.s32.totalorder %s16, 0
      %p93 = por %p91, %p92
      %p94 = scmp.ne.s32.totalorder %s82, %s83
      %p95 = scmp.eq.s32.totalorder %s17, 1
      %p96 = por %p94, %p95
      %p98 = scmp.ne.s32.totalorder %s83, %s97
      %p99 = scmp.eq.s32.totalorder %s17, 0
      %p100 = por %p98, %p99
      %s101 = ssub.s32 %s18, %s30
      %s102 = ssub.s32 %s19, %s26
      %s103 = sor.u32 %s101, %s102
      %p104 = scmp.eq.s32.totalorder %s103, 0
      %s106 = sadd.s32 %s105, 1
      %s107 = scalar_select %p104, %s105, %s106
      %p110 = pneg %p104
      %p111 = scmp.eq.s32.totalorder %s11, 1
      %p112 = por %p110, %p111
      %p113 = scmp.ne.s32.totalorder %s105, %s108
      %p114 = scmp.eq.s32.totalorder %s11, 0
      %p115 = por %p113, %p114
      %p116 = scmp.ne.s32.totalorder %s105, %s108
      %p117 = scmp.eq.s32.totalorder %s16, 1
      %p118 = por %p116, %p117
      %p119 = scmp.ne.s32.totalorder %s108, %s109
      %p120 = scmp.eq.s32.totalorder %s16, 0
      %p121 = por %p119, %p120
      %p122 = scmp.ne.s32.totalorder %s108, %s109
      %p123 = scmp.eq.s32.totalorder %s17, 1
      %p124 = por %p122, %p123
      %p126 = scmp.ne.s32.totalorder %s109, %s125
      %p127 = scmp.eq.s32.totalorder %s17, 0
      %p128 = por %p126, %p127
      %p129 = scmp.le.s32.totalorder 1, %s11
      %p130 = scmp.lt.s32.totalorder %s11, 3
      %p131 = pnand %p129, %p130
      %p132 = pneg %p131
      // Predicated region
      $region9: #{discriminator_forward.4} parent=5 // pred_check
        _
      $region10: #{discriminator_forward.4} parent=5 // pred_check_branch
        %134 = sbr.rel (%p131) target = $region12
      $region11: #{discriminator_forward.4} parent=5 // pred_region
        %s135 = ssub.s32 %s11, 1
        // Predicated region
        $region13: #{discriminator_forward.4} parent=11 // pred_check
          %p136 = pneg %p72
        $region14: #{discriminator_forward.4} parent=11 // pred_check_branch
          %138 = sbr.rel (%p136) target = $region16
        $region15: #{discriminator_forward.4} parent=11 // pred_region
          %s140 = ssub.s32 384, 384
          %141 = vsyncadd [#allocation3], %s140
          %s142 = sshll.u32 [#allocation2], 4
          %s143 = int_to_ptr.vmem [resolvable:$true] %s142
          %148 = dma.hbm_to_vmem [thread:$0]  %s1, 384, %s143, [#allocation3], 64, 64, 4
        $region16: #{discriminator_forward.4} parent=11 // pred_fallthru
          _
        // Predicated region
        $region17: #{discriminator_forward.4} parent=11 // pred_check
          %p149 = pneg %p93
        $region18: #{discriminator_forward.4} parent=11 // pred_check_branch
          %151 = sbr.rel (%p149) target = $region20
        $region19: #{discriminator_forward.4} parent=11 // pred_region
          %s153 = ssub.s32 16, 16
          %154 = vsyncadd [#allocation5], %s153
          %s156 = sshll.u32 [#allocation4], 4
          %s157 = int_to_ptr.vmem [resolvable:$true] %s156
          %159 = dma.hbm_to_vmem [thread:$0]  %s2, 16, %s157, [#allocation5]
        $region20: #{discriminator_forward.4} parent=11 // pred_fallthru
          _
      $region12: #{discriminator_forward.4} parent=5 // pred_fallthru
        _
      %p160 = scmp.lt.s32.totalorder %s11, 2
      // Predicated region
      $region21: #{discriminator_forward.4} parent=5 // pred_check
        %p161 = pneg %p160
      $region22: #{discriminator_forward.4} parent=5 // pred_check_branch
        %163 = sbr.rel (%p161) target = $region24
      $region23: #{discriminator_forward.4} parent=5 // pred_region
        // Predicated region
        $region25: #{discriminator_forward.4} parent=23 // pred_check
          %p164 = pneg %p45
        $region26: #{discriminator_forward.4} parent=23 // pred_check_branch
          %166 = sbr.rel (%p164) target = $region28
        $region27: #{discriminator_forward.4} parent=23 // pred_region
          %s167 = smul.u32 32, %s19
          %p168 = scmp.lt.s32.totalorder %s18, 1
          %s169 = scalar_select %p168, %s18, 1
          %p170 = scmp.lt.s32.totalorder %s167, 31
          %s171 = scalar_select %p170, %s167, 31
          %s172 = smul.addr %s169, 32
          %s173 = sadd.s32 %s171, %s172
          %s174 = smul.addr %s173, 4
          %s175 = scalar_lea.vmem %s0, %s174
          %s176 = smul.u32 32, %s19
        $region28: #{discriminator_forward.4} parent=23 // pred_fallthru
          _
      $region24: #{discriminator_forward.4} parent=5 // pred_fallthru
        _
      %p177 = scmp.le.s32.totalorder 1, %s11
      %p178 = scmp.lt.s32.totalorder %s11, 3
      %p179 = pnand %p177, %p178
      %p180 = pneg %p179
      // Predicated region
      $region29: #{discriminator_forward.4} parent=5 // pred_check
        _
      $region30: #{discriminator_forward.4} parent=5 // pred_check_branch
        %182 = sbr.rel (%p179) target = $region32
      $region31: #{discriminator_forward.4} parent=5 // pred_region
        %s183 = ssub.s32 %s11, 1
        // Predicated region
        $region33: #{discriminator_forward.4} parent=31 // pred_check
          %p184 = pneg %p72
        $region34: #{discriminator_forward.4} parent=31 // pred_check_branch
          %186 = sbr.rel (%p184) target = $region36
        $region35: #{discriminator_forward.4} parent=31 // pred_region
          %187 = dma.done [#allocation3], 384
        $region36: #{discriminator_forward.4} parent=31 // pred_fallthru
          _
        // Predicated region
        $region37: #{discriminator_forward.4} parent=31 // pred_check
          %p188 = pneg %p93
        $region38: #{discriminator_forward.4} parent=31 // pred_check_branch
          %190 = sbr.rel (%p188) target = $region40
        $region39: #{discriminator_forward.4} parent=31 // pred_region
          %191 = dma.done [#allocation5], 16
        $region40: #{discriminator_forward.4} parent=31 // pred_fallthru
          _
        %s192 = smul.u32 32, %s21
        %p193 = scmp.lt.s32.totalorder %s20, 1
        %s194 = scalar_select %p193, %s20, 1
        %p195 = scmp.lt.s32.totalorder %s192, 31
        %s196 = scalar_select %p195, %s192, 31
        %s197 = smul.addr %s194, 32
        %s198 = sadd.s32 %s196, %s197
        %s199 = smul.addr %s198, 4
        %s200 = scalar_lea.vmem %s0, %s199
        %p201 = pneg %p51
        %p202 = pneg %p48
        %p203 = pneg %p72
        %p204 = pneg %p69
        %p205 = pneg %p93
        %p206 = pneg %p90
        %p207 = pneg %p121
        %p208 = pneg %p118
        %s209 = smul.u32 32, %s21
        %p210 = scmp.lt.s32.totalorder %s20, 1
        %s211 = scalar_select %p210, %s20, 1
        %p212 = scmp.lt.s32.totalorder %s209, 31
        %s213 = scalar_select %p212, %s209, 31
        %s214 = smul.addr %s211, 32
        %s215 = sadd.s32 %s213, %s214
        %s216 = smul.addr %s215, 4
        %s217 = scalar_lea.vmem %s3, %s216
        %s218 = smul.u32 32, %s21
        %p219 = scmp.lt.s32.totalorder %s20, 1
        %s220 = scalar_select %p219, %s20, 1
        %p221 = scmp.lt.s32.totalorder %s218, 31
        %s222 = scalar_select %p221, %s218, 31
        %s223 = smul.addr %s220, 32
        %s224 = sadd.s32 %s222, %s223
        %s225 = smul.addr %s224, 4
        %s226 = scalar_lea.vmem %s0, %s225
        %s227 = smul.u32 32, %s21
        %s228 = smul.u32 32, %s21
        %p229 = scmp.lt.s32.totalorder %s20, 1
        %s230 = scalar_select %p229, %s20, 1
        %p231 = scmp.lt.s32.totalorder %s228, 31
        %s232 = scalar_select %p231, %s228, 31
        %s233 = smul.addr %s230, 32
        %s234 = sadd.s32 %s232, %s233
        %s235 = smul.addr %s234, 4
        %s236 = scalar_lea.vmem %s3, %s235
        %s237 = smul.u32 32, %s21
        %v239 = vld [vmem:[%s226] sm:$0xf]
        %v240 = vld [vmem:[%s226 + $0x4] sm:$0xf]
        %v241 = vld [vmem:[%s226 + $0x8] sm:$0xf]
        %v242 = vld [vmem:[%s226 + $0xc] sm:$0xf]
        %v243 = vld [vmem:[%s226 + $0x10] sm:$0xf]
        %v244 = vld [vmem:[%s226 + $0x14] sm:$0xf]
        %v245 = vld [vmem:[%s226 + $0x18] sm:$0xf]
        %v246 = vld [vmem:[%s226 + $0x1c] sm:$0xf]
        %v247 = vld [vmem:[%s226 + $0x20] sm:$0xf]
        %v248 = vld [vmem:[%s226 + $0x24] sm:$0xf]
        %v249 = vld [vmem:[%s226 + $0x28] sm:$0xf]
        %v250 = vld [vmem:[%s226 + $0x2c] sm:$0xf]
        %v251 = vld [vmem:[%s226 + $0x30] sm:$0xf]
        %v252 = vld [vmem:[%s226 + $0x34] sm:$0xf]
        %v253 = vld [vmem:[%s226 + $0x38] sm:$0xf]
        %v254 = vld [vmem:[%s226 + $0x3c] sm:$0xf]
        %v255 = vld [vmem:[%s226 + $0x40] sm:$0xf]
        %v256 = vld [vmem:[%s226 + $0x44] sm:$0xf]
        %v257 = vld [vmem:[%s226 + $0x48] sm:$0xf]
        %v258 = vld [vmem:[%s226 + $0x4c] sm:$0xf]
        %v259 = vld [vmem:[%s226 + $0x50] sm:$0xf]
        %v260 = vld [vmem:[%s226 + $0x54] sm:$0xf]
        %v261 = vld [vmem:[%s226 + $0x58] sm:$0xf]
        %v262 = vld [vmem:[%s226 + $0x5c] sm:$0xf]
        %v263 = vld [vmem:[%s226 + $0x60] sm:$0xf]
        %v264 = vld [vmem:[%s226 + $0x64] sm:$0xf]
        %v265 = vld [vmem:[%s226 + $0x68] sm:$0xf]
        %v266 = vld [vmem:[%s226 + $0x6c] sm:$0xf]
        %v267 = vld [vmem:[%s226 + $0x70] sm:$0xf]
        %v268 = vld [vmem:[%s226 + $0x74] sm:$0xf]
        %v269 = vld [vmem:[%s226 + $0x78] sm:$0xf]
        %v270 = vld [vmem:[%s226 + $0x7c] sm:$0xf]
        %v271 = vld [vmem:[#allocation2] sm:$0xf]
        %v272 = vld [vmem:[#allocation2 + $0x4] sm:$0xf]
        %v273 = vld [vmem:[#allocation2 + $0x8] sm:$0xf]
        %v274 = vld [vmem:[#allocation2 + $0xc] sm:$0xf]
        %v275 = vld [vmem:[#allocation2 + $0x10] sm:$0xf]
        %v276 = vld [vmem:[#allocation2 + $0x14] sm:$0xf]
        %v277 = vld [vmem:[#allocation4] sm:$0x1]
        %v279 = vlaneseq
        %v280 = vshrl.u32 %v279, 7
        %v281 = vsub.s32 0, %v280
        %v282 = vrot.slane %v277, %v281
        %v316 = vunpack.c.l.b16 %v239
        %v317 = vunpack.c.l.b16 %v240
        %v318 = vunpack.c.l.b16 %v241
        %v319 = vunpack.c.l.b16 %v242
        %v320 = vunpack.c.l.b16 %v243
        %v321 = vunpack.c.l.b16 %v244
        %v322 = vunpack.c.l.b16 %v245
        %v323 = vunpack.c.l.b16 %v246
        %v324 = vunpack.c.l.b16 %v247
        %v325 = vunpack.c.l.b16 %v248
        %v326 = vunpack.c.l.b16 %v249
        %v327 = vunpack.c.l.b16 %v250
        %v328 = vunpack.c.l.b16 %v251
        %v329 = vunpack.c.l.b16 %v252
        %v330 = vunpack.c.l.b16 %v253
        %v331 = vunpack.c.l.b16 %v254
        %v332 = vunpack.c.l.b16 %v255
        %v333 = vunpack.c.l.b16 %v256
        %v334 = vunpack.c.l.b16 %v257
        %v335 = vunpack.c.l.b16 %v258
        %v336 = vunpack.c.l.b16 %v259
        %v337 = vunpack.c.l.b16 %v260
        %v338 = vunpack.c.l.b16 %v261
        %v339 = vunpack.c.l.b16 %v262
        %v340 = vunpack.c.l.b16 %v263
        %v341 = vunpack.c.l.b16 %v264
        %v342 = vunpack.c.l.b16 %v265
        %v343 = vunpack.c.l.b16 %v266
        %v344 = vunpack.c.l.b16 %v267
        %v345 = vunpack.c.l.b16 %v268
        %v346 = vunpack.c.l.b16 %v269
        %v347 = vunpack.c.l.b16 %v270
        %v348 = vpack.c.b16 %v317, %v316
        %v349 = vpack.c.b16 %v319, %v318
        %v350 = vpack.c.b16 %v321, %v320
        %v351 = vpack.c.b16 %v323, %v322
        %v352 = vpack.c.b16 %v325, %v324
        %v353 = vpack.c.b16 %v327, %v326
        %v354 = vpack.c.b16 %v329, %v328
        %v355 = vpack.c.b16 %v331, %v330
        %v356 = vpack.c.b16 %v333, %v332
        %v357 = vpack.c.b16 %v335, %v334
        %v358 = vpack.c.b16 %v337, %v336
        %v359 = vpack.c.b16 %v339, %v338
        %v360 = vpack.c.b16 %v341, %v340
        %v361 = vpack.c.b16 %v343, %v342
        %v362 = vpack.c.b16 %v345, %v344
        %v363 = vpack.c.b16 %v347, %v346
        %v370 = vunpack.c.l.b16 %v271
        %v371 = vunpack.c.l.b16 %v272
        %v372 = vunpack.c.l.b16 %v273
        %v373 = vunpack.c.l.b16 %v274
        %v374 = vunpack.c.l.b16 %v275
        %v375 = vunpack.c.l.b16 %v276
        %v376 = vpack.c.b16 %v371, %v370
        %v377 = vpack.c.b16 %v373, %v372
        %v378 = vpack.c.b16 %v375, %v374
        %vm382 = vcmask 392192
        %v384 = vsel %vm382, %v348, 0
        %v387 = vsel %vm382, %v349, 0
        %v390 = vsel %vm382, %v350, 0
        %v393 = vsel %vm382, %v351, 0
        %v396 = vsel %vm382, %v352, 0
        %v399 = vsel %vm382, %v353, 0
        %v402 = vsel %vm382, %v354, 0
        %v405 = vsel %vm382, %v355, 0
        %v408 = vsel %vm382, %v356, 0
        %v411 = vsel %vm382, %v357, 0
        %v414 = vsel %vm382, %v358, 0
        %v417 = vsel %vm382, %v359, 0
        %v420 = vsel %vm382, %v360, 0
        %v423 = vsel %vm382, %v361, 0
        %v426 = vsel %vm382, %v362, 0
        %v429 = vsel %vm382, %v363, 0
        %431 = vmatprep.subr.bf16.mxu0 0
        %432 = vmatpush1.bf16.msra.mxu0 %v376
        %433 = vmatprep.subr.bf16.mxu0 0
        %434 = vmatpush1.bf16.msra.mxu0 %v377
        %435 = vmatprep.subr.bf16.mxu0 0
        %436 = vmatpush1.bf16.msra.mxu0 %v378
        %437 = vmatprep.subr.bf16.mxu0 0
        %438 = vmatpush1.bf16.msra.mxu0 0
        %439 = vmatprep.subr.bf16.mxu0 0
        %440 = vmatpush1.bf16.msra.mxu0 0
        %441 = vmatprep.subr.bf16.mxu0 0
        %442 = vmatpush1.bf16.msra.mxu0 0
        %443 = vmatprep.subr.bf16.mxu0 0
        %444 = vmatpush1.bf16.msra.mxu0 0
        %445 = vmatprep.subr.bf16.mxu0 0
        %446 = vmatpush1.bf16.msra.mxu0 0
        %447 = vmatprep.subr.bf16.mxu0 0
        %448 = vmatpush1.bf16.msra.mxu0 0
        %449 = vmatprep.subr.bf16.mxu0 0
        %450 = vmatpush1.bf16.msra.mxu0 0
        %451 = vmatprep.subr.bf16.mxu0 0
        %452 = vmatpush1.bf16.msra.mxu0 0
        %453 = vmatprep.subr.bf16.mxu0 0
        %454 = vmatpush1.bf16.msra.mxu0 0
        %455 = vmatprep.subr.bf16.mxu0 0
        %456 = vmatpush1.bf16.msra.mxu0 0
        %457 = vmatprep.subr.bf16.mxu0 0
        %458 = vmatpush1.bf16.msra.mxu0 0
        %459 = vmatprep.subr.bf16.mxu0 0
        %460 = vmatpush1.bf16.msra.mxu0 0
        %461 = vmatprep.subr.bf16.mxu0 0
        %462 = vmatpush1.bf16.msra.mxu0 0
        %463 = vmatprep.mubr.bf16.mxu0 0
        %464 = vmatmul.mubr.bf16.gmra.mrb[0].mxu0 %v384
        %v465 = vpop.f32.mrb[0].mxu0
        %v466 = vadd.f32 %v282, %v465
        %v467 = vpop.f32.mrb[0].mxu0
        %v468 = vpop.f32.mrb[0].mxu0
        %v469 = vadd.f32 %v282, %v468
        %v470 = vpop.f32.mrb[0].mxu0
        %471 = vmatprep.mubr.bf16.mxu0 0
        %472 = vmatmul.mubr.bf16.gmra.mrb[0].mxu0 %v387
        %v473 = vpop.f32.mrb[0].mxu0
        %v474 = vadd.f32 %v282, %v473
        %v475 = vpop.f32.mrb[0].mxu0
        %v476 = vpop.f32.mrb[0].mxu0
        %v477 = vadd.f32 %v282, %v476
        %v478 = vpop.f32.mrb[0].mxu0
        %479 = vmatprep.mubr.bf16.mxu0 0
        %480 = vmatmul.mubr.bf16.gmra.mrb[0].mxu0 %v390
        %v481 = vpop.f32.mrb[0].mxu0
        %v482 = vadd.f32 %v282, %v481
        %v483 = vpop.f32.mrb[0].mxu0
        %v484 = vpop.f32.mrb[0].mxu0
        %v485 = vadd.f32 %v282, %v484
        %v486 = vpop.f32.mrb[0].mxu0
        %487 = vmatprep.mubr.bf16.mxu0 0
        %488 = vmatmul.mubr.bf16.gmra.mrb[0].mxu0 %v393
        %v489 = vpop.f32.mrb[0].mxu0
        %v490 = vadd.f32 %v282, %v489
        %v491 = vpop.f32.mrb[0].mxu0
        %v492 = vpop.f32.mrb[0].mxu0
        %v493 = vadd.f32 %v282, %v492
        %v494 = vpop.f32.mrb[0].mxu0
        %495 = vmatprep.mubr.bf16.mxu0 0
        %496 = vmatmul.mubr.bf16.gmra.mrb[0].mxu0 %v396
        %v497 = vpop.f32.mrb[0].mxu0
        %v498 = vadd.f32 %v282, %v497
        %v499 = vpop.f32.mrb[0].mxu0
        %v500 = vpop.f32.mrb[0].mxu0
        %v501 = vadd.f32 %v282, %v500
        %v502 = vpop.f32.mrb[0].mxu0
        %503 = vmatprep.mubr.bf16.mxu0 0
        %504 = vmatmul.mubr.bf16.gmra.mrb[0].mxu0 %v399
        %v505 = vpop.f32.mrb[0].mxu0
        %v506 = vadd.f32 %v282, %v505
        %v507 = vpop.f32.mrb[0].mxu0
        %v508 = vpop.f32.mrb[0].mxu0
        %v509 = vadd.f32 %v282, %v508
        %v510 = vpop.f32.mrb[0].mxu0
        %511 = vmatprep.mubr.bf16.mxu0 0
        %512 = vmatmul.mubr.bf16.gmra.mrb[0].mxu0 %v402
        %v513 = vpop.f32.mrb[0].mxu0
        %v514 = vadd.f32 %v282, %v513
        %v515 = vpop.f32.mrb[0].mxu0
        %v516 = vpop.f32.mrb[0].mxu0
        %v517 = vadd.f32 %v282, %v516
        %v518 = vpop.f32.mrb[0].mxu0
        %519 = vmatprep.mubr.bf16.mxu0 0
        %520 = vmatmul.mubr.bf16.gmra.mrb[0].mxu0 %v405
        %v521 = vpop.f32.mrb[0].mxu0
        %v522 = vadd.f32 %v282, %v521
        %v523 = vpop.f32.mrb[0].mxu0
        %v524 = vpop.f32.mrb[0].mxu0
        %v525 = vadd.f32 %v282, %v524
        %v526 = vpop.f32.mrb[0].mxu0
        %527 = vmatprep.mubr.bf16.mxu0 0
        %528 = vmatmul.mubr.bf16.gmra.mrb[0].mxu0 %v408
        %v529 = vpop.f32.mrb[0].mxu0
        %v530 = vadd.f32 %v282, %v529
        %v531 = vpop.f32.mrb[0].mxu0
        %v532 = vpop.f32.mrb[0].mxu0
        %v533 = vadd.f32 %v282, %v532
        %v534 = vpop.f32.mrb[0].mxu0
        %535 = vmatprep.mubr.bf16.mxu0 0
        %536 = vmatmul.mubr.bf16.gmra.mrb[0].mxu0 %v411
        %v537 = vpop.f32.mrb[0].mxu0
        %v538 = vadd.f32 %v282, %v537
        %v539 = vpop.f32.mrb[0].mxu0
        %v540 = vpop.f32.mrb[0].mxu0
        %v541 = vadd.f32 %v282, %v540
        %v542 = vpop.f32.mrb[0].mxu0
        %543 = vmatprep.mubr.bf16.mxu0 0
        %544 = vmatmul.mubr.bf16.gmra.mrb[0].mxu0 %v414
        %v545 = vpop.f32.mrb[0].mxu0
        %v546 = vadd.f32 %v282, %v545
        %v547 = vpop.f32.mrb[0].mxu0
        %v548 = vpop.f32.mrb[0].mxu0
        %v549 = vadd.f32 %v282, %v548
        %v550 = vpop.f32.mrb[0].mxu0
        %551 = vmatprep.mubr.bf16.mxu0 0
        %552 = vmatmul.mubr.bf16.gmra.mrb[0].mxu0 %v417
        %v553 = vpop.f32.mrb[0].mxu0
        %v554 = vadd.f32 %v282, %v553
        %v555 = vpop.f32.mrb[0].mxu0
        %v556 = vpop.f32.mrb[0].mxu0
        %v557 = vadd.f32 %v282, %v556
        %v558 = vpop.f32.mrb[0].mxu0
        %559 = vmatprep.mubr.bf16.mxu0 0
        %560 = vmatmul.mubr.bf16.gmra.mrb[0].mxu0 %v420
        %v561 = vpop.f32.mrb[0].mxu0
        %v562 = vadd.f32 %v282, %v561
        %v563 = vpop.f32.mrb[0].mxu0
        %v564 = vpop.f32.mrb[0].mxu0
        %v565 = vadd.f32 %v282, %v564
        %v566 = vpop.f32.mrb[0].mxu0
        %567 = vmatprep.mubr.bf16.mxu0 0
        %568 = vmatmul.mubr.bf16.gmra.mrb[0].mxu0 %v423
        %v569 = vpop.f32.mrb[0].mxu0
        %v570 = vadd.f32 %v282, %v569
        %v571 = vpop.f32.mrb[0].mxu0
        %v572 = vpop.f32.mrb[0].mxu0
        %v573 = vadd.f32 %v282, %v572
        %v574 = vpop.f32.mrb[0].mxu0
        %575 = vmatprep.mubr.bf16.mxu0 0
        %576 = vmatmul.mubr.bf16.gmra.mrb[0].mxu0 %v426
        %v577 = vpop.f32.mrb[0].mxu0
        %v578 = vadd.f32 %v282, %v577
        %v579 = vpop.f32.mrb[0].mxu0
        %v580 = vpop.f32.mrb[0].mxu0
        %v581 = vadd.f32 %v282, %v580
        %v582 = vpop.f32.mrb[0].mxu0
        %583 = vmatprep.mubr.bf16.mxu0 0
        %584 = vmatmul.mubr.bf16.gmra.mrb[0].mxu0 %v429
        %v585 = vpop.f32.mrb[0].mxu0
        %v586 = vadd.f32 %v282, %v585
        %v587 = vpop.f32.mrb[0].mxu0
        %v588 = vpop.f32.mrb[0].mxu0
        %v589 = vadd.f32 %v282, %v588
        %v590 = vpop.f32.mrb[0].mxu0
        %591 = vdwg.mxu0
        %vm592 = vcmp.ge.f32.partialorder %v466, 0.0
        %vm593 = vcmp.ge.f32.partialorder %v469, 0.0
        %vm594 = vcmp.ge.f32.partialorder %v474, 0.0
        %vm595 = vcmp.ge.f32.partialorder %v477, 0.0
        %vm596 = vcmp.ge.f32.partialorder %v482, 0.0
        %vm597 = vcmp.ge.f32.partialorder %v485, 0.0
        %vm598 = vcmp.ge.f32.partialorder %v490, 0.0
        %vm599 = vcmp.ge.f32.partialorder %v493, 0.0
        %vm600 = vcmp.ge.f32.partialorder %v498, 0.0
        %vm601 = vcmp.ge.f32.partialorder %v501, 0.0
        %vm602 = vcmp.ge.f32.partialorder %v506, 0.0
        %vm603 = vcmp.ge.f32.partialorder %v509, 0.0
        %vm604 = vcmp.ge.f32.partialorder %v514, 0.0
        %vm605 = vcmp.ge.f32.partialorder %v517, 0.0
        %vm606 = vcmp.ge.f32.partialorder %v522, 0.0
        %vm607 = vcmp.ge.f32.partialorder %v525, 0.0
        %vm608 = vcmp.ge.f32.partialorder %v530, 0.0
        %vm609 = vcmp.ge.f32.partialorder %v533, 0.0
        %vm610 = vcmp.ge.f32.partialorder %v538, 0.0
        %vm611 = vcmp.ge.f32.partialorder %v541, 0.0
        %vm612 = vcmp.ge.f32.partialorder %v546, 0.0
        %vm613 = vcmp.ge.f32.partialorder %v549, 0.0
        %vm614 = vcmp.ge.f32.partialorder %v554, 0.0
        %vm615 = vcmp.ge.f32.partialorder %v557, 0.0
        %vm616 = vcmp.ge.f32.partialorder %v562, 0.0
        %vm617 = vcmp.ge.f32.partialorder %v565, 0.0
        %vm618 = vcmp.ge.f32.partialorder %v570, 0.0
        %vm619 = vcmp.ge.f32.partialorder %v573, 0.0
        %vm620 = vcmp.ge.f32.partialorder %v578, 0.0
        %vm621 = vcmp.ge.f32.partialorder %v581, 0.0
        %vm622 = vcmp.ge.f32.partialorder %v586, 0.0
        %vm623 = vcmp.ge.f32.partialorder %v589, 0.0
        %v624 = vmul.f32 %v466, 0.2
        %v625 = vmul.f32 %v469, 0.2
        %v626 = vmul.f32 %v474, 0.2
        %v627 = vmul.f32 %v477, 0.2
        %v628 = vmul.f32 %v482, 0.2
        %v629 = vmul.f32 %v485, 0.2
        %v630 = vmul.f32 %v490, 0.2
        %v631 = vmul.f32 %v493, 0.2
        %v632 = vmul.f32 %v498, 0.2
        %v633 = vmul.f32 %v501, 0.2
        %v634 = vmul.f32 %v506, 0.2
        %v635 = vmul.f32 %v509, 0.2
        %v636 = vmul.f32 %v514, 0.2
        %v637 = vmul.f32 %v517, 0.2
        %v638 = vmul.f32 %v522, 0.2
        %v639 = vmul.f32 %v525, 0.2
        %v640 = vmul.f32 %v530, 0.2
        %v641 = vmul.f32 %v533, 0.2
        %v642 = vmul.f32 %v538, 0.2
        %v643 = vmul.f32 %v541, 0.2
        %v644 = vmul.f32 %v546, 0.2
        %v645 = vmul.f32 %v549, 0.2
        %v646 = vmul.f32 %v554, 0.2
        %v647 = vmul.f32 %v557, 0.2
        %v648 = vmul.f32 %v562, 0.2
        %v649 = vmul.f32 %v565, 0.2
        %v650 = vmul.f32 %v570, 0.2
        %v651 = vmul.f32 %v573, 0.2
        %v652 = vmul.f32 %v578, 0.2
        %v653 = vmul.f32 %v581, 0.2
        %v654 = vmul.f32 %v586, 0.2
        %v655 = vmul.f32 %v589, 0.2
        %v656 = vsel %vm592, %v466, %v624
        %v657 = vsel %vm593, %v469, %v625
        %v658 = vsel %vm594, %v474, %v626
        %v659 = vsel %vm595, %v477, %v627
        %v660 = vsel %vm596, %v482, %v628
        %v661 = vsel %vm597, %v485, %v629
        %v662 = vsel %vm598, %v490, %v630
        %v663 = vsel %vm599, %v493, %v631
        %v664 = vsel %vm600, %v498, %v632
        %v665 = vsel %vm601, %v501, %v633
        %v666 = vsel %vm602, %v506, %v634
        %v667 = vsel %vm603, %v509, %v635
        %v668 = vsel %vm604, %v514, %v636
        %v669 = vsel %vm605, %v517, %v637
        %v670 = vsel %vm606, %v522, %v638
        %v671 = vsel %vm607, %v525, %v639
        %v672 = vsel %vm608, %v530, %v640
        %v673 = vsel %vm609, %v533, %v641
        %v674 = vsel %vm610, %v538, %v642
        %v675 = vsel %vm611, %v541, %v643
        %v676 = vsel %vm612, %v546, %v644
        %v677 = vsel %vm613, %v549, %v645
        %v678 = vsel %vm614, %v554, %v646
        %v679 = vsel %vm615, %v557, %v647
        %v680 = vsel %vm616, %v562, %v648
        %v681 = vsel %vm617, %v565, %v649
        %v682 = vsel %vm618, %v570, %v650
        %v683 = vsel %vm619, %v573, %v651
        %v684 = vsel %vm620, %v578, %v652
        %v685 = vsel %vm621, %v581, %v653
        %v686 = vsel %vm622, %v586, %v654
        %v687 = vsel %vm623, %v589, %v655
        %v688 = vpack.c.bf16 %v657, %v656
        %v689 = vpack.c.bf16 %v659, %v658
        %v690 = vpack.c.bf16 %v661, %v660
        %v691 = vpack.c.bf16 %v663, %v662
        %v692 = vpack.c.bf16 %v665, %v664
        %v693 = vpack.c.bf16 %v667, %v666
        %v694 = vpack.c.bf16 %v669, %v668
        %v695 = vpack.c.bf16 %v671, %v670
        %v696 = vpack.c.bf16 %v673, %v672
        %v697 = vpack.c.bf16 %v675, %v674
        %v698 = vpack.c.bf16 %v677, %v676
        %v699 = vpack.c.bf16 %v679, %v678
        %v700 = vpack.c.bf16 %v681, %v680
        %v701 = vpack.c.bf16 %v683, %v682
        %v702 = vpack.c.bf16 %v685, %v684
        %v703 = vpack.c.bf16 %v687, %v686
        %v720 = vunpack.c.l.b16 %v688
        %v721 = vunpack.c.h.b16 %v688
        %v722 = vunpack.c.l.b16 %v689
        %v723 = vunpack.c.h.b16 %v689
        %v724 = vunpack.c.l.b16 %v690
        %v725 = vunpack.c.h.b16 %v690
        %v726 = vunpack.c.l.b16 %v691
        %v727 = vunpack.c.h.b16 %v691
        %v728 = vunpack.c.l.b16 %v692
        %v729 = vunpack.c.h.b16 %v692
        %v730 = vunpack.c.l.b16 %v693
        %v731 = vunpack.c.h.b16 %v693
        %v732 = vunpack.c.l.b16 %v694
        %v733 = vunpack.c.h.b16 %v694
        %v734 = vunpack.c.l.b16 %v695
        %v735 = vunpack.c.h.b16 %v695
        %v736 = vunpack.c.l.b16 %v696
        %v737 = vunpack.c.h.b16 %v696
        %v738 = vunpack.c.l.b16 %v697
        %v739 = vunpack.c.h.b16 %v697
        %v740 = vunpack.c.l.b16 %v698
        %v741 = vunpack.c.h.b16 %v698
        %v742 = vunpack.c.l.b16 %v699
        %v743 = vunpack.c.h.b16 %v699
        %v744 = vunpack.c.l.b16 %v700
        %v745 = vunpack.c.h.b16 %v700
        %v746 = vunpack.c.l.b16 %v701
        %v747 = vunpack.c.h.b16 %v701
        %v748 = vunpack.c.l.b16 %v702
        %v749 = vunpack.c.h.b16 %v702
        %v750 = vunpack.c.l.b16 %v703
        %v751 = vunpack.c.h.b16 %v703
        %v752 = vpack.c.b16 %v720, %v720
        %v753 = vpack.c.b16 %v721, %v721
        %v754 = vpack.c.b16 %v722, %v722
        %v755 = vpack.c.b16 %v723, %v723
        %v756 = vpack.c.b16 %v724, %v724
        %v757 = vpack.c.b16 %v725, %v725
        %v758 = vpack.c.b16 %v726, %v726
        %v759 = vpack.c.b16 %v727, %v727
        %v760 = vpack.c.b16 %v728, %v728
        %v761 = vpack.c.b16 %v729, %v729
        %v762 = vpack.c.b16 %v730, %v730
        %v763 = vpack.c.b16 %v731, %v731
        %v764 = vpack.c.b16 %v732, %v732
        %v765 = vpack.c.b16 %v733, %v733
        %v766 = vpack.c.b16 %v734, %v734
        %v767 = vpack.c.b16 %v735, %v735
        %v768 = vpack.c.b16 %v736, %v736
        %v769 = vpack.c.b16 %v737, %v737
        %v770 = vpack.c.b16 %v738, %v738
        %v771 = vpack.c.b16 %v739, %v739
        %v772 = vpack.c.b16 %v740, %v740
        %v773 = vpack.c.b16 %v741, %v741
        %v774 = vpack.c.b16 %v742, %v742
        %v775 = vpack.c.b16 %v743, %v743
        %v776 = vpack.c.b16 %v744, %v744
        %v777 = vpack.c.b16 %v745, %v745
        %v778 = vpack.c.b16 %v746, %v746
        %v779 = vpack.c.b16 %v747, %v747
        %v780 = vpack.c.b16 %v748, %v748
        %v781 = vpack.c.b16 %v749, %v749
        %v782 = vpack.c.b16 %v750, %v750
        %v783 = vpack.c.b16 %v751, %v751
        %816 = vst [vmem:[%s236] sm:$0xf] %v752
        %817 = vst [vmem:[%s236 + $0x4] sm:$0xf] %v753
        %818 = vst [vmem:[%s236 + $0x8] sm:$0xf] %v754
        %819 = vst [vmem:[%s236 + $0xc] sm:$0xf] %v755
        %820 = vst [vmem:[%s236 + $0x10] sm:$0xf] %v756
        %821 = vst [vmem:[%s236 + $0x14] sm:$0xf] %v757
        %822 = vst [vmem:[%s236 + $0x18] sm:$0xf] %v758
        %823 = vst [vmem:[%s236 + $0x1c] sm:$0xf] %v759
        %824 = vst [vmem:[%s236 + $0x20] sm:$0xf] %v760
        %825 = vst [vmem:[%s236 + $0x24] sm:$0xf] %v761
        %826 = vst [vmem:[%s236 + $0x28] sm:$0xf] %v762
        %827 = vst [vmem:[%s236 + $0x2c] sm:$0xf] %v763
        %828 = vst [vmem:[%s236 + $0x30] sm:$0xf] %v764
        %829 = vst [vmem:[%s236 + $0x34] sm:$0xf] %v765
        %830 = vst [vmem:[%s236 + $0x38] sm:$0xf] %v766
        %831 = vst [vmem:[%s236 + $0x3c] sm:$0xf] %v767
        %832 = vst [vmem:[%s236 + $0x40] sm:$0xf] %v768
        %833 = vst [vmem:[%s236 + $0x44] sm:$0xf] %v769
        %834 = vst [vmem:[%s236 + $0x48] sm:$0xf] %v770
        %835 = vst [vmem:[%s236 + $0x4c] sm:$0xf] %v771
        %836 = vst [vmem:[%s236 + $0x50] sm:$0xf] %v772
        %837 = vst [vmem:[%s236 + $0x54] sm:$0xf] %v773
        %838 = vst [vmem:[%s236 + $0x58] sm:$0xf] %v774
        %839 = vst [vmem:[%s236 + $0x5c] sm:$0xf] %v775
        %840 = vst [vmem:[%s236 + $0x60] sm:$0xf] %v776
        %841 = vst [vmem:[%s236 + $0x64] sm:$0xf] %v777
        %842 = vst [vmem:[%s236 + $0x68] sm:$0xf] %v778
        %843 = vst [vmem:[%s236 + $0x6c] sm:$0xf] %v779
        %844 = vst [vmem:[%s236 + $0x70] sm:$0xf] %v780
        %845 = vst [vmem:[%s236 + $0x74] sm:$0xf] %v781
        %846 = vst [vmem:[%s236 + $0x78] sm:$0xf] %v782
        %847 = vst [vmem:[%s236 + $0x7c] sm:$0xf] %v783
        %s848 = smul.u32 32, %s21
        %p849 = scmp.lt.s32.totalorder %s20, 1
        %s850 = scalar_select %p849, %s20, 1
        %p851 = scmp.lt.s32.totalorder %s848, 31
        %s852 = scalar_select %p851, %s848, 31
        %s853 = smul.addr %s850, 32
        %s854 = sadd.s32 %s852, %s853
        %s855 = smul.addr %s854, 4
        %s856 = scalar_lea.vmem %s3, %s855
        // Predicated region
        $region41: #{discriminator_forward.4} parent=31 // pred_check
          %p857 = pneg %p118
        $region42: #{discriminator_forward.4} parent=31 // pred_check_branch
          %859 = sbr.rel (%p857) target = $region44
        $region43: #{discriminator_forward.4} parent=31 // pred_region
          %s860 = smul.u32 32, %s21
        $region44: #{discriminator_forward.4} parent=31 // pred_fallthru
          _
      $region32: #{discriminator_forward.4} parent=5 // pred_fallthru
        _
      %p861 = scmp.le.s32.totalorder 2, %s11
      // Predicated region
      $region45: #{discriminator_forward.4} parent=5 // pred_check
        %p862 = pneg %p861
      $region46: #{discriminator_forward.4} parent=5 // pred_check_branch
        %864 = sbr.rel (%p862) target = $region48
      $region47: #{discriminator_forward.4} parent=5 // pred_region
        %s865 = ssub.s32 %s11, 2
        // Predicated region
        $region49: #{discriminator_forward.4} parent=47 // pred_check
          %p866 = pneg %p124
        $region50: #{discriminator_forward.4} parent=47 // pred_check_branch
          %868 = sbr.rel (%p866) target = $region52
        $region51: #{discriminator_forward.4} parent=47 // pred_region
          %s869 = smul.u32 32, %s23
          %p870 = scmp.lt.s32.totalorder %s22, 1
          %s871 = scalar_select %p870, %s22, 1
          %p872 = scmp.lt.s32.totalorder %s869, 31
          %s873 = scalar_select %p872, %s869, 31
          %s874 = smul.addr %s871, 32
          %s875 = sadd.s32 %s873, %s874
          %s876 = smul.addr %s875, 4
          %s877 = scalar_lea.vmem %s3, %s876
        $region52: #{discriminator_forward.4} parent=47 // pred_fallthru
          _
      $region48: #{discriminator_forward.4} parent=5 // pred_fallthru
        _
    $region6: #{discriminator_forward.4} parent=1 // loop_footer
      %s15 = sadd.s32 1, %s11
    $region7: #{discriminator_forward.4} parent=1 // loop_footer_branch
      %10 = sbr.rel target = $region3
    $region8: #{discriminator_forward.4} parent=1 // loop_exit
      _
    %878 = vsyncpa [#allocation3], 1
    %s879 = scalar_lea.sflag [#allocation3], 1
    %880 = vsyncpa %s879, 1
    %881 = vsyncpa [#allocation5], 1

// kernel: discriminator_forward.5
$region0: #{discriminator_forward.5}
  #allocation0 [shape = 'u32[]', space=smem, size = 0x4, offset = 0x4, fixed_abs, tag = 'smem constant byte address 0x4 - core index']
  #allocation1 [shape = 'u32[144,128]{1,0:T(1,128)}', space=vmem, size = 0x12000, scoped, tag = 'internal scratch']
  #allocation2 [shape = 'f32[1,128]{1,0:T(1,128)}', space=vmem, size = 0x200, scoped, tag = 'scratch operand']
  #allocation3 [shape = 'f32[1,128]{1,0:T(1,128)}', space=vmem, size = 0x200, scoped, tag = 'scratch operand']
  %s0 = inlined_call_operand.vmem [shape: bf16[2,64,1024], index: 0, kind: input, shape index: {}]
  %s1 = inlined_call_operand.vmem [shape: bf16[1024,128], index: 1, kind: input, shape index: {}]
  %s2 = inlined_call_operand.vmem [shape: f32[1,128], index: 2, kind: input, shape index: {}]
  %s3 = inlined_call_operand.vmem [shape: bf16[2,64,128], index: 3, kind: output, shape index: {}]
  %s4 = sld [smem:[#allocation0]]
  $region53: #{discriminator_forward.5} parent=0
    _
  %s6 = ssub.s32 1, %s4
  %s7 = scalar_select 0, %s6, %s4
  loop: start=0, step=1, limit=4
  $region2: #{discriminator_forward.5} parent=0 // loop_pre_header
    _
  $region3: #{discriminator_forward.5} parent=0 // loop_header
    %s9 = sphi 0, %s13
    %p10 = scmp.ge.s32.totalorder %s9, 4
    %s16 = sphi 0, %s35
    %s17 = sphi 0, %s31
    %s18 = sphi 0, %s27
    %s19 = sphi 0, %s16
    %s20 = sphi 0, %s17
    %s21 = sphi 0, %s18
    %s22 = sphi 0, %s19
    %s23 = sphi 0, %s20
    %s24 = sphi 0, %s21
    %s40 = sphi 0, %s42
    %s43 = sphi 0, %s40
    %s44 = sphi 0, %s43
    %s60 = sphi 0, %s44
    %s66 = sphi 0, %s68
    %s69 = sphi 0, %s66
    %s70 = sphi 0, %s69
    %s86 = sphi 0, %s70
    %s92 = sphi 0, %s94
    %s95 = sphi 0, %s92
    %s96 = sphi 0, %s95
    %s112 = sphi 0, %s96
    %s120 = sphi 0, %s122
    %s123 = sphi 0, %s120
    %s124 = sphi 0, %s123
    %s140 = sphi 0, %s124
  $region4: #{discriminator_forward.5} parent=0 // loop_header_branch
    %12 = sbr.rel (%p10) target = $region8
  $region5: #{discriminator_forward.5} parent=0 // loop_body
    %s14 = ssub.s32 %s9, 1
    %s15 = ssub.s32 %s9, 2
    %s25 = sadd.s32 1, %s18
    %p26 = scmp.ge.s32.totalorder %s25, 1
    %s27 = scalar_select %p26, 0, %s25
    %s28 = sadd.s32 1, %s17
    %s29 = scalar_select %p26, %s28, %s17
    %p30 = scmp.ge.s32.totalorder %s29, 1
    %s31 = scalar_select %p30, 0, %s29
    %s32 = sadd.s32 1, %s16
    %s33 = scalar_select %p30, %s32, %s16
    %p34 = scmp.ge.s32.totalorder %s33, 2
    %s35 = scalar_select %p34, 0, %s33
    %s36 = ssub.s32 %s16, %s35
    %s37 = ssub.s32 %s18, %s27
    %s38 = sor.u32 %s36, %s37
    %p39 = scmp.eq.s32.totalorder %s38, 0
    %s41 = sadd.s32 %s40, 1
    %s42 = scalar_select %p39, %s40, %s41
    %p45 = pneg %p39
    %p46 = scmp.eq.s32.totalorder %s9, 1
    %p47 = por %p45, %p46
    %p48 = scmp.ne.s32.totalorder %s40, %s43
    %p49 = scmp.eq.s32.totalorder %s9, 0
    %p50 = por %p48, %p49
    %p51 = scmp.ne.s32.totalorder %s40, %s43
    %p52 = scmp.eq.s32.totalorder %s14, 1
    %p53 = por %p51, %p52
    %p54 = scmp.ne.s32.totalorder %s43, %s44
    %p55 = scmp.eq.s32.totalorder %s14, 0
    %p56 = por %p54, %p55
    %p57 = scmp.ne.s32.totalorder %s43, %s44
    %p58 = scmp.eq.s32.totalorder %s15, 1
    %p59 = por %p57, %p58
    %p61 = scmp.ne.s32.totalorder %s44, %s60
    %p62 = scmp.eq.s32.totalorder %s15, 0
    %p63 = por %p61, %p62
    %s64 = ssub.s32 %s17, %s31
    %p65 = scmp.eq.s32.totalorder %s64, 0
    %s67 = sadd.s32 %s66, 1
    %s68 = scalar_select %p65, %s66, %s67
    %p71 = pneg %p65
    %p72 = scmp.eq.s32.totalorder %s9, 1
    %p73 = por %p71, %p72
    %p74 = scmp.ne.s32.totalorder %s66, %s69
    %p75 = scmp.eq.s32.totalorder %s9, 0
    %p76 = por %p74, %p75
    %p77 = scmp.ne.s32.totalorder %s66, %s69
    %p78 = scmp.eq.s32.totalorder %s14, 1
    %p79 = por %p77, %p78
    %p80 = scmp.ne.s32.totalorder %s69, %s70
    %p81 = scmp.eq.s32.totalorder %s14, 0
    %p82 = por %p80, %p81
    %p83 = scmp.ne.s32.totalorder %s69, %s70
    %p84 = scmp.eq.s32.totalorder %s15, 1
    %p85 = por %p83, %p84
    %p87 = scmp.ne.s32.totalorder %s70, %s86
    %p88 = scmp.eq.s32.totalorder %s15, 0
    %p89 = por %p87, %p88
    %s90 = ssub.s32 %s17, %s31
    %p91 = scmp.eq.s32.totalorder %s90, 0
    %s93 = sadd.s32 %s92, 1
    %s94 = scalar_select %p91, %s92, %s93
    %p97 = pneg %p91
    %p98 = scmp.eq.s32.totalorder %s9, 1
    %p99 = por %p97, %p98
    %p100 = scmp.ne.s32.totalorder %s92, %s95
    %p101 = scmp.eq.s32.totalorder %s9, 0
    %p102 = por %p100, %p101
    %p103 = scmp.ne.s32.totalorder %s92, %s95
    %p104 = scmp.eq.s32.totalorder %s14, 1
    %p105 = por %p103, %p104
    %p106 = scmp.ne.s32.totalorder %s95, %s96
    %p107 = scmp.eq.s32.totalorder %s14, 0
    %p108 = por %p106, %p107
    %p109 = scmp.ne.s32.totalorder %s95, %s96
    %p110 = scmp.eq.s32.totalorder %s15, 1
    %p111 = por %p109, %p110
    %p113 = scmp.ne.s32.totalorder %s96, %s112
    %p114 = scmp.eq.s32.totalorder %s15, 0
    %p115 = por %p113, %p114
    %s116 = ssub.s32 %s16, %s35
    %s117 = ssub.s32 %s17, %s31
    %s118 = sor.u32 %s116, %s117
    %p119 = scmp.eq.s32.totalorder %s118, 0
    %s121 = sadd.s32 %s120, 1
    %s122 = scalar_select %p119, %s120, %s121
    %p125 = pneg %p119
    %p126 = scmp.eq.s32.totalorder %s9, 1
    %p127 = por %p125, %p126
    %p128 = scmp.ne.s32.totalorder %s120, %s123
    %p129 = scmp.eq.s32.totalorder %s9, 0
    %p130 = por %p128, %p129
    %p131 = scmp.ne.s32.totalorder %s120, %s123
    %p132 = scmp.eq.s32.totalorder %s14, 1
    %p133 = por %p131, %p132
    %p134 = scmp.ne.s32.totalorder %s123, %s124
    %p135 = scmp.eq.s32.totalorder %s14, 0
    %p136 = por %p134, %p135
    %p137 = scmp.ne.s32.totalorder %s123, %s124
    %p138 = scmp.eq.s32.totalorder %s15, 1
    %p139 = por %p137, %p138
    %p141 = scmp.ne.s32.totalorder %s124, %s140
    %p142 = scmp.eq.s32.totalorder %s15, 0
    %p143 = por %p141, %p142
    %p144 = scmp.le.s32.totalorder 1, %s9
    %p145 = scmp.lt.s32.totalorder %s9, 3
    %p146 = pnand %p144, %p145
    %p147 = pneg %p146
    // Predicated region
    $region9: #{discriminator_forward.5} parent=5 // pred_check
      _
    $region10: #{discriminator_forward.5} parent=5 // pred_check_branch
      %149 = sbr.rel (%p146) target = $region12
    $region11: #{discriminator_forward.5} parent=5 // pred_region
      %s150 = ssub.s32 %s9, 1
      // Predicated region
      $region13: #{discriminator_forward.5} parent=11 // pred_check
        %p151 = pneg %p82
      $region14: #{discriminator_forward.5} parent=11 // pred_check_branch
        %153 = sbr.rel (%p151) target = $region16
      $region15: #{discriminator_forward.5} parent=11 // pred_region
        %p154 = scmp.lt.s32.totalorder %s20, 0
        %s155 = scalar_select %p154, %s20, 0
        %s156 = smul.addr %s155, 4
        %s157 = scalar_lea.vmem %s1, %s156
      $region16: #{discriminator_forward.5} parent=11 // pred_fallthru
        _
      // Predicated region
      $region17: #{discriminator_forward.5} parent=11 // pred_check
        %p158 = pneg %p108
      $region18: #{discriminator_forward.5} parent=11 // pred_check_branch
        %160 = sbr.rel (%p158) target = $region20
      $region19: #{discriminator_forward.5} parent=11 // pred_region
        %p161 = scmp.lt.s32.totalorder %s20, 0
        %s162 = scalar_select %p161, %s20, 0
        %s163 = scalar_lea.vmem %s2, %s162
      $region20: #{discriminator_forward.5} parent=11 // pred_fallthru
        _
    $region12: #{discriminator_forward.5} parent=5 // pred_fallthru
      _
    %p164 = scmp.lt.s32.totalorder %s9, 2
    // Predicated region
    $region21: #{discriminator_forward.5} parent=5 // pred_check
      %p165 = pneg %p164
    $region22: #{discriminator_forward.5} parent=5 // pred_check_branch
      %167 = sbr.rel (%p165) target = $region24
    $region23: #{discriminator_forward.5} parent=5 // pred_region
      // Predicated region
      $region25: #{discriminator_forward.5} parent=23 // pred_check
        %p168 = pneg %p50
      $region26: #{discriminator_forward.5} parent=23 // pred_check_branch
        %170 = sbr.rel (%p168) target = $region28
      $region27: #{discriminator_forward.5} parent=23 // pred_region
        %s171 = smul.u32 8, %s18
        %p172 = scmp.lt.s32.totalorder %s16, 1
        %s173 = scalar_select %p172, %s16, 1
        %p174 = scmp.lt.s32.totalorder %s171, 7
        %s175 = scalar_select %p174, %s171, 7
        %s176 = smul.addr %s175, 8
        %s177 = smul.addr %s173, 64
        %s178 = sadd.s32 %s176, %s177
        %s179 = smul.addr %s178, 4
        %s180 = scalar_lea.vmem %s0, %s179
        %s181 = smul.u32 8, %s18
      $region28: #{discriminator_forward.5} parent=23 // pred_fallthru
        _
    $region24: #{discriminator_forward.5} parent=5 // pred_fallthru
      _
    %p182 = scmp.le.s32.totalorder 1, %s9
    %p183 = scmp.lt.s32.totalorder %s9, 3
    %p184 = pnand %p182, %p183
    %p185 = pneg %p184
    // Predicated region
    $region29: #{discriminator_forward.5} parent=5 // pred_check
      _
    $region30: #{discriminator_forward.5} parent=5 // pred_check_branch
      %187 = sbr.rel (%p184) target = $region32
    $region31: #{discriminator_forward.5} parent=5 // pred_region
      %s188 = ssub.s32 %s9, 1
      %s189 = smul.u32 8, %s21
      %p190 = scmp.lt.s32.totalorder %s19, 1
      %s191 = scalar_select %p190, %s19, 1
      %p192 = scmp.lt.s32.totalorder %s189, 7
      %s193 = scalar_select %p192, %s189, 7
      %s194 = smul.addr %s193, 8
      %s195 = smul.addr %s191, 64
      %s196 = sadd.s32 %s194, %s195
      %s197 = smul.addr %s196, 4
      %s198 = scalar_lea.vmem %s0, %s197
      %p199 = pneg %p56
      %p200 = pneg %p53
      %p201 = scmp.lt.s32.totalorder %s20, 0
      %s202 = scalar_select %p201, %s20, 0
      %s203 = smul.addr %s202, 4
      %s204 = scalar_lea.vmem %s1, %s203
      %p205 = pneg %p82
      %p206 = pneg %p79
      %p207 = scmp.lt.s32.totalorder %s20, 0
      %s208 = scalar_select %p207, %s20, 0
      %s209 = scalar_lea.vmem %s2, %s208
      %p210 = pneg %p108
      %p211 = pneg %p105
      %p212 = pneg %p136
      %p213 = pneg %p133
      %p214 = scmp.lt.s32.totalorder %s19, 1
      %s215 = scalar_select %p214, %s19, 1
      %p216 = scmp.lt.s32.totalorder %s20, 0
      %s217 = scalar_select %p216, %s20, 0
      %s218 = smul.addr %s215, 8
      %s219 = sadd.s32 %s217, %s218
      %s220 = smul.addr %s219, 4
      %s221 = scalar_lea.vmem %s3, %s220
      %s222 = smul.u32 8, %s21
      %p223 = scmp.lt.s32.totalorder %s19, 1
      %s224 = scalar_select %p223, %s19, 1
      %p225 = scmp.lt.s32.totalorder %s222, 7
      %s226 = scalar_select %p225, %s222, 7
      %s227 = smul.addr %s226, 8
      %s228 = smul.addr %s224, 64
      %s229 = sadd.s32 %s227, %s228
      %s230 = smul.addr %s229, 4
      %s231 = scalar_lea.vmem %s0, %s230
      %s232 = smul.u32 8, %s21
      %p233 = scmp.lt.s32.totalorder %s20, 0
      %s234 = scalar_select %p233, %s20, 0
      %s235 = smul.addr %s234, 4
      %s236 = scalar_lea.vmem %s1, %s235
      %p237 = scmp.lt.s32.totalorder %s20, 0
      %s238 = scalar_select %p237, %s20, 0
      %s239 = scalar_lea.vmem %s2, %s238
      %p240 = scmp.lt.s32.totalorder %s19, 1
      %s241 = scalar_select %p240, %s19, 1
      %p242 = scmp.lt.s32.totalorder %s20, 0
      %s243 = scalar_select %p242, %s20, 0
      %s244 = smul.addr %s241, 8
      %s245 = sadd.s32 %s243, %s244
      %s246 = smul.addr %s245, 4
      %s247 = scalar_lea.vmem %s3, %s246
      %p249 = scmp.eq.s32.totalorder %s21, 0
      // Predicated region
      $region33: #{discriminator_forward.5} parent=31 // pred_check
        %p250 = pneg %p249
      $region34: #{discriminator_forward.5} parent=31 // pred_check_branch
        %252 = sbr.rel (%p250) target = $region36
      $region35: #{discriminator_forward.5} parent=31 // pred_region
        %253 = vst [vmem:[#allocation2] sm:$0x1] 0.0
        %254 = vst [vmem:[#allocation3] sm:$0x1] 0.0
      $region36: #{discriminator_forward.5} parent=31 // pred_fallthru
        _
      %v255 = vld [vmem:[%s231] sm:$0xff]
      %v256 = vld [vmem:[%s231 + $0x8] sm:$0xff]
      %v257 = vld [vmem:[%s231 + $0x10] sm:$0xff]
      %v258 = vld [vmem:[%s231 + $0x18] sm:$0xff]
      %v259 = vld [vmem:[%s231 + $0x20] sm:$0xff]
      %v260 = vld [vmem:[%s231 + $0x28] sm:$0xff]
      %v261 = vld [vmem:[%s231 + $0x30] sm:$0xff]
      %v262 = vld [vmem:[%s231 + $0x38] sm:$0xff]
      %v263 = vld [vmem:[%s231 + $0x40] sm:$0xff]
      %v264 = vld [vmem:[%s231 + $0x48] sm:$0xff]
      %v265 = vld [vmem:[%s231 + $0x50] sm:$0xff]
      %v266 = vld [vmem:[%s231 + $0x58] sm:$0xff]
      %v267 = vld [vmem:[%s231 + $0x60] sm:$0xff]
      %v268 = vld [vmem:[%s231 + $0x68] sm:$0xff]
      %v269 = vld [vmem:[%s231 + $0x70] sm:$0xff]
      %v270 = vld [vmem:[%s231 + $0x78] sm:$0xff]
      %v271 = vld [vmem:[%s231 + $0x80] sm:$0xff]
      %v272 = vld [vmem:[%s231 + $0x88] sm:$0xff]
      %v273 = vld [vmem:[%s231 + $0x90] sm:$0xff]
      %v274 = vld [vmem:[%s231 + $0x98] sm:$0xff]
      %v275 = vld [vmem:[%s231 + $0xa0] sm:$0xff]
      %v276 = vld [vmem:[%s231 + $0xa8] sm:$0xff]
      %v277 = vld [vmem:[%s231 + $0xb0] sm:$0xff]
      %v278 = vld [vmem:[%s231 + $0xb8] sm:$0xff]
      %v279 = vld [vmem:[%s231 + $0xc0] sm:$0xff]
      %v280 = vld [vmem:[%s231 + $0xc8] sm:$0xff]
      %v281 = vld [vmem:[%s231 + $0xd0] sm:$0xff]
      %v282 = vld [vmem:[%s231 + $0xd8] sm:$0xff]
      %v283 = vld [vmem:[%s231 + $0xe0] sm:$0xff]
      %v284 = vld [vmem:[%s231 + $0xe8] sm:$0xff]
      %v285 = vld [vmem:[%s231 + $0xf0] sm:$0xff]
      %v286 = vld [vmem:[%s231 + $0xf8] sm:$0xff]
      %v287 = vld [vmem:[%s236] sm:$0xf]
      %v288 = vld [vmem:[%s236 + $0x4] sm:$0xf]
      %v289 = vld [vmem:[%s236 + $0x8] sm:$0xf]
      %v290 = vld [vmem:[%s236 + $0xc] sm:$0xf]
      %v291 = vld [vmem:[%s236 + $0x10] sm:$0xf]
      %v292 = vld [vmem:[%s236 + $0x14] sm:$0xf]
      %v293 = vld [vmem:[%s236 + $0x18] sm:$0xf]
      %v294 = vld [vmem:[%s236 + $0x1c] sm:$0xf]
      %v295 = vld [vmem:[%s236 + $0x20] sm:$0xf]
      %v296 = vld [vmem:[%s236 + $0x24] sm:$0xf]
      %v297 = vld [vmem:[%s236 + $0x28] sm:$0xf]
      %v298 = vld [vmem:[%s236 + $0x2c] sm:$0xf]
      %v299 = vld [vmem:[%s236 + $0x30] sm:$0xf]
      %v300 = vld [vmem:[%s236 + $0x34] sm:$0xf]
      %v301 = vld [vmem:[%s236 + $0x38] sm:$0xf]
      %v302 = vld [vmem:[%s236 + $0x3c] sm:$0xf]
      %v303 = vld [vmem:[%s236 + $0x40] sm:$0xf]
      %v304 = vld [vmem:[%s236 + $0x44] sm:$0xf]
      %v305 = vld [vmem:[%s236 + $0x48] sm:$0xf]
      %v306 = vld [vmem:[%s236 + $0x4c] sm:$0xf]
      %v307 = vld [vmem:[%s236 + $0x50] sm:$0xf]
      %v308 = vld [vmem:[%s236 + $0x54] sm:$0xf]
      %v309 = vld [vmem:[%s236 + $0x58] sm:$0xf]
      %v310 = vld [vmem:[%s236 + $0x5c] sm:$0xf]
      %v311 = vld [vmem:[%s236 + $0x60] sm:$0xf]
      %v312 = vld [vmem:[%s236 + $0x64] sm:$0xf]
      %v313 = vld [vmem:[%s236 + $0x68] sm:$0xf]
      %v314 = vld [vmem:[%s236 + $0x6c] sm:$0xf]
      %v315 = vld [vmem:[%s236 + $0x70] sm:$0xf]
      %v316 = vld [vmem:[%s236 + $0x74] sm:$0xf]
      %v317 = vld [vmem:[%s236 + $0x78] sm:$0xf]
      %v318 = vld [vmem:[%s236 + $0x7c] sm:$0xf]
      %v319 = vld [vmem:[%s236 + $0x80] sm:$0xf]
      %v320 = vld [vmem:[%s236 + $0x84] sm:$0xf]
      %v321 = vld [vmem:[%s236 + $0x88] sm:$0xf]
      %v322 = vld [vmem:[%s236 + $0x8c] sm:$0xf]
      %v323 = vld [vmem:[%s236 + $0x90] sm:$0xf]
      %v324 = vld [vmem:[%s236 + $0x94] sm:$0xf]
      %v325 = vld [vmem:[%s236 + $0x98] sm:$0xf]
      %v326 = vld [vmem:[%s236 + $0x9c] sm:$0xf]
      %v327 = vld [vmem:[%s236 + $0xa0] sm:$0xf]
      %v328 = vld [vmem:[%s236 + $0xa4] sm:$0xf]
      %v329 = vld [vmem:[%s236 + $0xa8] sm:$0xf]
      %v330 = vld [vmem:[%s236 + $0xac] sm:$0xf]
      %v331 = vld [vmem:[%s236 + $0xb0] sm:$0xf]
      %v332 = vld [vmem:[%s236 + $0xb4] sm:$0xf]
      %v333 = vld [vmem:[%s236 + $0xb8] sm:$0xf]
      %v334 = vld [vmem:[%s236 + $0xbc] sm:$0xf]
      %v335 = vld [vmem:[%s236 + $0xc0] sm:$0xf]
      %v336 = vld [vmem:[%s236 + $0xc4] sm:$0xf]
      %v337 = vld [vmem:[%s236 + $0xc8] sm:$0xf]
      %v338 = vld [vmem:[%s236 + $0xcc] sm:$0xf]
      %v339 = vld [vmem:[%s236 + $0xd0] sm:$0xf]
      %v340 = vld [vmem:[%s236 + $0xd4] sm:$0xf]
      %v341 = vld [vmem:[%s236 + $0xd8] sm:$0xf]
      %v342 = vld [vmem:[%s236 + $0xdc] sm:$0xf]
      %v343 = vld [vmem:[%s236 + $0xe0] sm:$0xf]
      %v344 = vld [vmem:[%s236 + $0xe4] sm:$0xf]
      %v345 = vld [vmem:[%s236 + $0xe8] sm:$0xf]
      %v346 = vld [vmem:[%s236 + $0xec] sm:$0xf]
      %v347 = vld [vmem:[%s236 + $0xf0] sm:$0xf]
      %v348 = vld [vmem:[%s236 + $0xf4] sm:$0xf]
      %v349 = vld [vmem:[%s236 + $0xf8] sm:$0xf]
      %v350 = vld [vmem:[%s236 + $0xfc] sm:$0xf]
      %v351 = vld [vmem:[%s236 + $0x100] sm:$0xf]
      %v352 = vld [vmem:[%s236 + $0x104] sm:$0xf]
      %v353 = vld [vmem:[%s236 + $0x108] sm:$0xf]
      %v354 = vld [vmem:[%s236 + $0x10c] sm:$0xf]
      %v355 = vld [vmem:[%s236 + $0x110] sm:$0xf]
      %v356 = vld [vmem:[%s236 + $0x114] sm:$0xf]
      %v357 = vld [vmem:[%s236 + $0x118] sm:$0xf]
      %v358 = vld [vmem:[%s236 + $0x11c] sm:$0xf]
      %v359 = vld [vmem:[%s236 + $0x120] sm:$0xf]
      %v360 = vld [vmem:[%s236 + $0x124] sm:$0xf]
      %v361 = vld [vmem:[%s236 + $0x128] sm:$0xf]
      %v362 = vld [vmem:[%s236 + $0x12c] sm:$0xf]
      %v363 = vld [vmem:[%s236 + $0x130] sm:$0xf]
      %v364 = vld [vmem:[%s236 + $0x134] sm:$0xf]
      %v365 = vld [vmem:[%s236 + $0x138] sm:$0xf]
      %v366 = vld [vmem:[%s236 + $0x13c] sm:$0xf]
      %v367 = vld [vmem:[%s236 + $0x140] sm:$0xf]
      %v368 = vld [vmem:[%s236 + $0x144] sm:$0xf]
      %v369 = vld [vmem:[%s236 + $0x148] sm:$0xf]
      %v370 = vld [vmem:[%s236 + $0x14c] sm:$0xf]
      %v371 = vld [vmem:[%s236 + $0x150] sm:$0xf]
      %v372 = vld [vmem:[%s236 + $0x154] sm:$0xf]
      %v373 = vld [vmem:[%s236 + $0x158] sm:$0xf]
      %v374 = vld [vmem:[%s236 + $0x15c] sm:$0xf]
      %v375 = vld [vmem:[%s236 + $0x160] sm:$0xf]
      %v376 = vld [vmem:[%s236 + $0x164] sm:$0xf]
      %v377 = vld [vmem:[%s236 + $0x168] sm:$0xf]
      %v378 = vld [vmem:[%s236 + $0x16c] sm:$0xf]
      %v379 = vld [vmem:[%s236 + $0x170] sm:$0xf]
      %v380 = vld [vmem:[%s236 + $0x174] sm:$0xf]
      %v381 = vld [vmem:[%s236 + $0x178] sm:$0xf]
      %v382 = vld [vmem:[%s236 + $0x17c] sm:$0xf]
      %v383 = vld [vmem:[%s236 + $0x180] sm:$0xf]
      %v384 = vld [vmem:[%s236 + $0x184] sm:$0xf]
      %v385 = vld [vmem:[%s236 + $0x188] sm:$0xf]
      %v386 = vld [vmem:[%s236 + $0x18c] sm:$0xf]
      %v387 = vld [vmem:[%s236 + $0x190] sm:$0xf]
      %v388 = vld [vmem:[%s236 + $0x194] sm:$0xf]
      %v389 = vld [vmem:[%s236 + $0x198] sm:$0xf]
      %v390 = vld [vmem:[%s236 + $0x19c] sm:$0xf]
      %v391 = vld [vmem:[%s236 + $0x1a0] sm:$0xf]
      %v392 = vld [vmem:[%s236 + $0x1a4] sm:$0xf]
      %v393 = vld [vmem:[%s236 + $0x1a8] sm:$0xf]
      %v394 = vld [vmem:[%s236 + $0x1ac] sm:$0xf]
      %v395 = vld [vmem:[%s236 + $0x1b0] sm:$0xf]
      %v396 = vld [vmem:[%s236 + $0x1b4] sm:$0xf]
      %v397 = vld [vmem:[%s236 + $0x1b8] sm:$0xf]
      %v398 = vld [vmem:[%s236 + $0x1bc] sm:$0xf]
      %v399 = vld [vmem:[%s236 + $0x1c0] sm:$0xf]
      %v400 = vld [vmem:[%s236 + $0x1c4] sm:$0xf]
      %v401 = vld [vmem:[%s236 + $0x1c8] sm:$0xf]
      %v402 = vld [vmem:[%s236 + $0x1cc] sm:$0xf]
      %v403 = vld [vmem:[%s236 + $0x1d0] sm:$0xf]
      %v404 = vld [vmem:[%s236 + $0x1d4] sm:$0xf]
      %v405 = vld [vmem:[%s236 + $0x1d8] sm:$0xf]
      %v406 = vld [vmem:[%s236 + $0x1dc] sm:$0xf]
      %v407 = vld [vmem:[%s236 + $0x1e0] sm:$0xf]
      %v408 = vld [vmem:[%s236 + $0x1e4] sm:$0xf]
      %v409 = vld [vmem:[%s236 + $0x1e8] sm:$0xf]
      %v410 = vld [vmem:[%s236 + $0x1ec] sm:$0xf]
      %v411 = vld [vmem:[%s236 + $0x1f0] sm:$0xf]
      %v412 = vld [vmem:[%s236 + $0x1f4] sm:$0xf]
      %v413 = vld [vmem:[%s236 + $0x1f8] sm:$0xf]
      %v414 = vld [vmem:[%s236 + $0x1fc] sm:$0xf]
      %v415 = vld [vmem:[%s239] sm:$0x1]
      %v417 = vlaneseq
      %v418 = vshrl.u32 %v417, 7
      %v419 = vsub.s32 0, %v418
      %v420 = vrot.slane %v415, %v419
      %v454 = vunpack.c.l.b16 %v255
      %v455 = vunpack.c.h.b16 %v255
      %v456 = vunpack.c.l.b16 %v256
      %v457 = vunpack.c.h.b16 %v256
      %v458 = vunpack.c.l.b16 %v257
      %v459 = vunpack.c.h.b16 %v257
      %v460 = vunpack.c.l.b16 %v258
      %v461 = vunpack.c.h.b16 %v258
      %v462 = vunpack.c.l.b16 %v259
      %v463 = vunpack.c.h.b16 %v259
      %v464 = vunpack.c.l.b16 %v260
      %v465 = vunpack.c.h.b16 %v260
      %v466 = vunpack.c.l.b16 %v261
      %v467 = vunpack.c.h.b16 %v261
      %v468 = vunpack.c.l.b16 %v262
      %v469 = vunpack.c.h.b16 %v262
      %v470 = vunpack.c.l.b16 %v263
      %v471 = vunpack.c.h.b16 %v263
      %v472 = vunpack.c.l.b16 %v264
      %v473 = vunpack.c.h.b16 %v264
      %v474 = vunpack.c.l.b16 %v265
      %v475 = vunpack.c.h.b16 %v265
      %v476 = vunpack.c.l.b16 %v266
      %v477 = vunpack.c.h.b16 %v266
      %v478 = vunpack.c.l.b16 %v267
      %v479 = vunpack.c.h.b16 %v267
      %v480 = vunpack.c.l.b16 %v268
      %v481 = vunpack.c.h.b16 %v268
      %v482 = vunpack.c.l.b16 %v269
      %v483 = vunpack.c.h.b16 %v269
      %v484 = vunpack.c.l.b16 %v270
      %v485 = vunpack.c.h.b16 %v270
      %v486 = vunpack.c.l.b16 %v271
      %v487 = vunpack.c.h.b16 %v271
      %v488 = vunpack.c.l.b16 %v272
      %v489 = vunpack.c.h.b16 %v272
      %v490 = vunpack.c.l.b16 %v273
      %v491 = vunpack.c.h.b16 %v273
      %v492 = vunpack.c.l.b16 %v274
      %v493 = vunpack.c.h.b16 %v274
      %v494 = vunpack.c.l.b16 %v275
      %v495 = vunpack.c.h.b16 %v275
      %v496 = vunpack.c.l.b16 %v276
      %v497 = vunpack.c.h.b16 %v276
      %v498 = vunpack.c.l.b16 %v277
      %v499 = vunpack.c.h.b16 %v277
      %v500 = vunpack.c.l.b16 %v278
      %v501 = vunpack.c.h.b16 %v278
      %v502 = vunpack.c.l.b16 %v279
      %v503 = vunpack.c.h.b16 %v279
      %v504 = vunpack.c.l.b16 %v280
      %v505 = vunpack.c.h.b16 %v280
      %v506 = vunpack.c.l.b16 %v281
      %v507 = vunpack.c.h.b16 %v281
      %v508 = vunpack.c.l.b16 %v282
      %v509 = vunpack.c.h.b16 %v282
      %v510 = vunpack.c.l.b16 %v283
      %v511 = vunpack.c.h.b16 %v283
      %v512 = vunpack.c.l.b16 %v284
      %v513 = vunpack.c.h.b16 %v284
      %v514 = vunpack.c.l.b16 %v285
      %v515 = vunpack.c.h.b16 %v285
      %v516 = vunpack.c.l.b16 %v286
      %v517 = vunpack.c.h.b16 %v286
      %v518 = vpack.c.b16 %v462, %v454
      %v519 = vpack.c.b16 %v463, %v455
      %v520 = vpack.c.b16 %v464, %v456
      %v521 = vpack.c.b16 %v465, %v457
      %v522 = vpack.c.b16 %v466, %v458
      %v523 = vpack.c.b16 %v467, %v459
      %v524 = vpack.c.b16 %v468, %v460
      %v525 = vpack.c.b16 %v469, %v461
      %v526 = vpack.c.b16 %v478, %v470
      %v527 = vpack.c.b16 %v479, %v471
      %v528 = vpack.c.b16 %v480, %v472
      %v529 = vpack.c.b16 %v481, %v473
      %v530 = vpack.c.b16 %v482, %v474
      %v531 = vpack.c.b16 %v483, %v475
      %v532 = vpack.c.b16 %v484, %v476
      %v533 = vpack.c.b16 %v485, %v477
      %v534 = vpack.c.b16 %v494, %v486
      %v535 = vpack.c.b16 %v495, %v487
      %v536 = vpack.c.b16 %v496, %v488
      %v537 = vpack.c.b16 %v497, %v489
      %v538 = vpack.c.b16 %v498, %v490
      %v539 = vpack.c.b16 %v499, %v491
      %v540 = vpack.c.b16 %v500, %v492
      %v541 = vpack.c.b16 %v501, %v493
      %v542 = vpack.c.b16 %v510, %v502
      %v543 = vpack.c.b16 %v511, %v503
      %v544 = vpack.c.b16 %v512, %v504
      %v545 = vpack.c.b16 %v513, %v505
      %v546 = vpack.c.b16 %v514, %v506
      %v547 = vpack.c.b16 %v515, %v507
      %v548 = vpack.c.b16 %v516, %v508
      %v549 = vpack.c.b16 %v517, %v509
      %v710 = vunpack.c.l.b16 %v287
      %v711 = vunpack.c.l.b16 %v288
      %v712 = vunpack.c.l.b16 %v289
      %v713 = vunpack.c.l.b16 %v290
      %v714 = vunpack.c.l.b16 %v291
      %v715 = vunpack.c.l.b16 %v292
      %v716 = vunpack.c.l.b16 %v293
      %v717 = vunpack.c.l.b16 %v294
      %v718 = vunpack.c.l.b16 %v295
      %v719 = vunpack.c.l.b16 %v296
      %v720 = vunpack.c.l.b16 %v297
      %v721 = vunpack.c.l.b16 %v298
      %v722 = vunpack.c.l.b16 %v299
      %v723 = vunpack.c.l.b16 %v300
      %v724 = vunpack.c.l.b16 %v301
      %v725 = vunpack.c.l.b16 %v302
      %v726 = vunpack.c.l.b16 %v303
      %v727 = vunpack.c.l.b16 %v304
      %v728 = vunpack.c.l.b16 %v305
      %v729 = vunpack.c.l.b16 %v306
      %v730 = vunpack.c.l.b16 %v307
      %v731 = vunpack.c.l.b16 %v308
      %v732 = vunpack.c.l.b16 %v309
      %v733 = vunpack.c.l.b16 %v310
      %v734 = vunpack.c.l.b16 %v311
      %v735 = vunpack.c.l.b16 %v312
      %v736 = vunpack.c.l.b16 %v313
      %v737 = vunpack.c.l.b16 %v314
      %v738 = vunpack.c.l.b16 %v315
      %v739 = vunpack.c.l.b16 %v316
      %v740 = vunpack.c.l.b16 %v317
      %v741 = vunpack.c.l.b16 %v318
      %v742 = vunpack.c.l.b16 %v319
      %v743 = vunpack.c.l.b16 %v320
      %v744 = vunpack.c.l.b16 %v321
      %v745 = vunpack.c.l.b16 %v322
      %v746 = vunpack.c.l.b16 %v323
      %v747 = vunpack.c.l.b16 %v324
      %v748 = vunpack.c.l.b16 %v325
      %v749 = vunpack.c.l.b16 %v326
      %v750 = vunpack.c.l.b16 %v327
      %v751 = vunpack.c.l.b16 %v328
      %v752 = vunpack.c.l.b16 %v329
      %v753 = vunpack.c.l.b16 %v330
      %v754 = vunpack.c.l.b16 %v331
      %v755 = vunpack.c.l.b16 %v332
      %v756 = vunpack.c.l.b16 %v333
      %v757 = vunpack.c.l.b16 %v334
      %v758 = vunpack.c.l.b16 %v335
      %v759 = vunpack.c.l.b16 %v336
      %v760 = vunpack.c.l.b16 %v337
      %v761 = vunpack.c.l.b16 %v338
      %v762 = vunpack.c.l.b16 %v339
      %v763 = vunpack.c.l.b16 %v340
      %v764 = vunpack.c.l.b16 %v341
      %v765 = vunpack.c.l.b16 %v342
      %v766 = vunpack.c.l.b16 %v343
      %v767 = vunpack.c.l.b16 %v344
      %v768 = vunpack.c.l.b16 %v345
      %v769 = vunpack.c.l.b16 %v346
      %v770 = vunpack.c.l.b16 %v347
      %v771 = vunpack.c.l.b16 %v348
      %v772 = vunpack.c.l.b16 %v349
      %v773 = vunpack.c.l.b16 %v350
      %v774 = vunpack.c.l.b16 %v351
      %v775 = vunpack.c.l.b16 %v352
      %v776 = vunpack.c.l.b16 %v353
      %v777 = vunpack.c.l.b16 %v354
      %v778 = vunpack.c.l.b16 %v355
      %v779 = vunpack.c.l.b16 %v356
      %v780 = vunpack.c.l.b16 %v357
      %v781 = vunpack.c.l.b16 %v358
      %v782 = vunpack.c.l.b16 %v359
      %v783 = vunpack.c.l.b16 %v360
      %v784 = vunpack.c.l.b16 %v361
      %v785 = vunpack.c.l.b16 %v362
      %v786 = vunpack.c.l.b16 %v363
      %v787 = vunpack.c.l.b16 %v364
      %v788 = vunpack.c.l.b16 %v365
      %v789 = vunpack.c.l.b16 %v366
      %v790 = vunpack.c.l.b16 %v367
      %v791 = vunpack.c.l.b16 %v368
      %v792 = vunpack.c.l.b16 %v369
      %v793 = vunpack.c.l.b16 %v370
      %v794 = vunpack.c.l.b16 %v371
      %v795 = vunpack.c.l.b16 %v372
      %v796 = vunpack.c.l.b16 %v373
      %v797 = vunpack.c.l.b16 %v374
      %v798 = vunpack.c.l.b16 %v375
      %v799 = vunpack.c.l.b16 %v376
      %v800 = vunpack.c.l.b16 %v377
      %v801 = vunpack.c.l.b16 %v378
      %v802 = vunpack.c.l.b16 %v379
      %v803 = vunpack.c.l.b16 %v380
      %v804 = vunpack.c.l.b16 %v381
      %v805 = vunpack.c.l.b16 %v382
      %v806 = vunpack.c.l.b16 %v383
      %v807 = vunpack.c.l.b16 %v384
      %v808 = vunpack.c.l.b16 %v385
      %v809 = vunpack.c.l.b16 %v386
      %v810 = vunpack.c.l.b16 %v387
      %v811 = vunpack.c.l.b16 %v388
      %v812 = vunpack.c.l.b16 %v389
      %v813 = vunpack.c.l.b16 %v390
      %v814 = vunpack.c.l.b16 %v391
      %v815 = vunpack.c.l.b16 %v392
      %v816 = vunpack.c.l.b16 %v393
      %v817 = vunpack.c.l.b16 %v394
      %v818 = vunpack.c.l.b16 %v395
      %v819 = vunpack.c.l.b16 %v396
      %v820 = vunpack.c.l.b16 %v397
      %v821 = vunpack.c.l.b16 %v398
      %v822 = vunpack.c.l.b16 %v399
      %v823 = vunpack.c.l.b16 %v400
      %v824 = vunpack.c.l.b16 %v401
      %v825 = vunpack.c.l.b16 %v402
      %v826 = vunpack.c.l.b16 %v403
      %v827 = vunpack.c.l.b16 %v404
      %v828 = vunpack.c.l.b16 %v405
      %v829 = vunpack.c.l.b16 %v406
      %v830 = vunpack.c.l.b16 %v407
      %v831 = vunpack.c.l.b16 %v408
      %v832 = vunpack.c.l.b16 %v409
      %v833 = vunpack.c.l.b16 %v410
      %v834 = vunpack.c.l.b16 %v411
      %v835 = vunpack.c.l.b16 %v412
      %v836 = vunpack.c.l.b16 %v413
      %v837 = vunpack.c.l.b16 %v414
      %v838 = vpack.c.b16 %v711, %v710
      %v839 = vpack.c.b16 %v713, %v712
      %v840 = vpack.c.b16 %v715, %v714
      %v841 = vpack.c.b16 %v717, %v716
      %v842 = vpack.c.b16 %v719, %v718
      %v843 = vpack.c.b16 %v721, %v720
      %v844 = vpack.c.b16 %v723, %v722
      %v845 = vpack.c.b16 %v725, %v724
      %v846 = vpack.c.b16 %v727, %v726
      %v847 = vpack.c.b16 %v729, %v728
      %v848 = vpack.c.b16 %v731, %v730
      %v849 = vpack.c.b16 %v733, %v732
      %v850 = vpack.c.b16 %v735, %v734
      %v851 = vpack.c.b16 %v737, %v736
      %v852 = vpack.c.b16 %v739, %v738
      %v853 = vpack.c.b16 %v741, %v740
      %v854 = vpack.c.b16 %v743, %v742
      %v855 = vpack.c.b16 %v745, %v744
      %v856 = vpack.c.b16 %v747, %v746
      %v857 = vpack.c.b16 %v749, %v748
      %v858 = vpack.c.b16 %v751, %v750
      %v859 = vpack.c.b16 %v753, %v752
      %v860 = vpack.c.b16 %v755, %v754
      %v861 = vpack.c.b16 %v757, %v756
      %v862 = vpack.c.b16 %v759, %v758
      %v863 = vpack.c.b16 %v761, %v760
      %v864 = vpack.c.b16 %v763, %v762
      %v865 = vpack.c.b16 %v765, %v764
      %v866 = vpack.c.b16 %v767, %v766
      %v867 = vpack.c.b16 %v769, %v768
      %v868 = vpack.c.b16 %v771, %v770
      %v869 = vpack.c.b16 %v773, %v772
      %v870 = vpack.c.b16 %v775, %v774
      %v871 = vpack.c.b16 %v777, %v776
      %v872 = vpack.c.b16 %v779, %v778
      %v873 = vpack.c.b16 %v781, %v780
      %v874 = vpack.c.b16 %v783, %v782
      %v875 = vpack.c.b16 %v785, %v784
      %v876 = vpack.c.b16 %v787, %v786
      %v877 = vpack.c.b16 %v789, %v788
      %v878 = vpack.c.b16 %v791, %v790
      %v879 = vpack.c.b16 %v793, %v792
      %v880 = vpack.c.b16 %v795, %v794
      %v881 = vpack.c.b16 %v797, %v796
      %v882 = vpack.c.b16 %v799, %v798
      %v883 = vpack.c.b16 %v801, %v800
      %v884 = vpack.c.b16 %v803, %v802
      %v885 = vpack.c.b16 %v805, %v804
      %v886 = vpack.c.b16 %v807, %v806
      %v887 = vpack.c.b16 %v809, %v808
      %v888 = vpack.c.b16 %v811, %v810
      %v889 = vpack.c.b16 %v813, %v812
      %v890 = vpack.c.b16 %v815, %v814
      %v891 = vpack.c.b16 %v817, %v816
      %v892 = vpack.c.b16 %v819, %v818
      %v893 = vpack.c.b16 %v821, %v820
      %v894 = vpack.c.b16 %v823, %v822
      %v895 = vpack.c.b16 %v825, %v824
      %v896 = vpack.c.b16 %v827, %v826
      %v897 = vpack.c.b16 %v829, %v828
      %v898 = vpack.c.b16 %v831, %v830
      %v899 = vpack.c.b16 %v833, %v832
      %v900 = vpack.c.b16 %v835, %v834
      %v901 = vpack.c.b16 %v837, %v836
      %966 = vmatprep.subr.bf16.mxu0 0
      %967 = vmatpush1.bf16.msra.mxu0 %v838
      %968 = vmatprep.subr.bf16.mxu0 0
      %969 = vmatpush1.bf16.msra.mxu0 %v839
      %970 = vmatprep.subr.bf16.mxu0 0
      %971 = vmatpush1.bf16.msra.mxu0 %v840
      %972 = vmatprep.subr.bf16.mxu0 0
      %973 = vmatpush1.bf16.msra.mxu0 %v841
      %974 = vmatprep.subr.bf16.mxu0 0
      %975 = vmatpush1.bf16.msra.mxu0 %v842
      %976 = vmatprep.subr.bf16.mxu0 0
      %977 = vmatpush1.bf16.msra.mxu0 %v843
      %978 = vmatprep.subr.bf16.mxu0 0
      %979 = vmatpush1.bf16.msra.mxu0 %v844
      %980 = vmatprep.subr.bf16.mxu0 0
      %981 = vmatpush1.bf16.msra.mxu0 %v845
      %982 = vmatprep.subr.bf16.mxu0 0
      %983 = vmatpush1.bf16.msra.mxu0 %v846
      %984 = vmatprep.subr.bf16.mxu0 0
      %985 = vmatpush1.bf16.msra.mxu0 %v847
      %986 = vmatprep.subr.bf16.mxu0 0
      %987 = vmatpush1.bf16.msra.mxu0 %v848
      %988 = vmatprep.subr.bf16.mxu0 0
      %989 = vmatpush1.bf16.msra.mxu0 %v849
      %990 = vmatprep.subr.bf16.mxu0 0
      %991 = vmatpush1.bf16.msra.mxu0 %v850
      %992 = vmatprep.subr.bf16.mxu0 0
      %993 = vmatpush1.bf16.msra.mxu0 %v851
      %994 = vmatprep.subr.bf16.mxu0 0
      %995 = vmatpush1.bf16.msra.mxu0 %v852
      %996 = vmatprep.subr.bf16.mxu0 0
      %997 = vmatpush1.bf16.msra.mxu0 %v853
      %998 = vmatprep.mubr.bf16.mxu0 %v519
      %999 = vmatmul.mubr.bf16.gmra.mrb[0].mxu0 %v518
      %v1000 = vpop.f32.mrb[0].mxu0
      %v1001 = vadd.f32 %v420, %v1000
      %v1002 = vpop.f32.mrb[0].mxu0
      %v1003 = vpop.f32.mrb[0].mxu0
      %v1004 = vadd.f32 %v420, %v1003
      %v1005 = vpop.f32.mrb[0].mxu0
      %1006 = vmatprep.mubr.bf16.mxu0 %v527
      %1007 = vmatmul.mubr.bf16.gmra.mrb[0].mxu0 %v526
      %v1008 = vpop.f32.mrb[0].mxu0
      %v1009 = vadd.f32 %v420, %v1008
      %v1010 = vpop.f32.mrb[0].mxu0
      %v1011 = vpop.f32.mrb[0].mxu0
      %v1012 = vadd.f32 %v420, %v1011
      %v1013 = vpop.f32.mrb[0].mxu0
      %1014 = vmatprep.mubr.bf16.mxu0 %v535
      %1015 = vmatmul.mubr.bf16.gmra.mrb[0].mxu0 %v534
      %v1016 = vpop.f32.mrb[0].mxu0
      %v1017 = vadd.f32 %v420, %v1016
      %v1018 = vpop.f32.mrb[0].mxu0
      %v1019 = vpop.f32.mrb[0].mxu0
      %v1020 = vadd.f32 %v420, %v1019
      %v1021 = vpop.f32.mrb[0].mxu0
      %1022 = vmatprep.mubr.bf16.mxu0 %v543
      %1023 = vmatmul.mubr.bf16.gmra.mrb[0].mxu0 %v542
      %v1024 = vpop.f32.mrb[0].mxu0
      %v1025 = vadd.f32 %v420, %v1024
      %v1026 = vpop.f32.mrb[0].mxu0
      %v1027 = vpop.f32.mrb[0].mxu0
      %v1028 = vadd.f32 %v420, %v1027
      %v1029 = vpop.f32.mrb[0].mxu0
      %1030 = vdwg.mxu0
      %1031 = vmatprep.subr.bf16.mxu0 0
      %1032 = vmatpush1.bf16.msra.mxu0 %v854
      %1033 = vmatprep.subr.bf16.mxu0 0
      %1034 = vmatpush1.bf16.msra.mxu0 %v855
      %1035 = vmatprep.subr.bf16.mxu0 0
      %1036 = vmatpush1.bf16.msra.mxu0 %v856
      %1037 = vmatprep.subr.bf16.mxu0 0
      %1038 = vmatpush1.bf16.msra.mxu0 %v857
      %1039 = vmatprep.subr.bf16.mxu0 0
      %1040 = vmatpush1.bf16.msra.mxu0 %v858
      %1041 = vmatprep.subr.bf16.mxu0 0
      %1042 = vmatpush1.bf16.msra.mxu0 %v859
      %1043 = vmatprep.subr.bf16.mxu0 0
      %1044 = vmatpush1.bf16.msra.mxu0 %v860
      %1045 = vmatprep.subr.bf16.mxu0 0
      %1046 = vmatpush1.bf16.msra.mxu0 %v861
      %1047 = vmatprep.subr.bf16.mxu0 0
      %1048 = vmatpush1.bf16.msra.mxu0 %v862
      %1049 = vmatprep.subr.bf16.mxu0 0
      %1050 = vmatpush1.bf16.msra.mxu0 %v863
      %1051 = vmatprep.subr.bf16.mxu0 0
      %1052 = vmatpush1.bf16.msra.mxu0 %v864
      %1053 = vmatprep.subr.bf16.mxu0 0
      %1054 = vmatpush1.bf16.msra.mxu0 %v865
      %1055 = vmatprep.subr.bf16.mxu0 0
      %1056 = vmatpush1.bf16.msra.mxu0 %v866
      %1057 = vmatprep.subr.bf16.mxu0 0
      %1058 = vmatpush1.bf16.msra.mxu0 %v867
      %1059 = vmatprep.subr.bf16.mxu0 0
      %1060 = vmatpush1.bf16.msra.mxu0 %v868
      %1061 = vmatprep.subr.bf16.mxu0 0
      %1062 = vmatpush1.bf16.msra.mxu0 %v869
      %1063 = vmatprep.mubr.bf16.mxu0 %v521
      %1064 = vmatmul.mubr.bf16.gmra.mrb[0].mxu0 %v520
      %v1065 = vpop.f32.mrb[0].mxu0
      %v1066 = vadd.f32 %v1001, %v1065
      %v1067 = vpop.f32.mrb[0].mxu0
      %v1068 = vpop.f32.mrb[0].mxu0
      %v1069 = vadd.f32 %v1004, %v1068
      %v1070 = vpop.f32.mrb[0].mxu0
      %1071 = vmatprep.mubr.bf16.mxu0 %v529
      %1072 = vmatmul.mubr.bf16.gmra.mrb[0].mxu0 %v528
      %v1073 = vpop.f32.mrb[0].mxu0
      %v1074 = vadd.f32 %v1009, %v1073
      %v1075 = vpop.f32.mrb[0].mxu0
      %v1076 = vpop.f32.mrb[0].mxu0
      %v1077 = vadd.f32 %v1012, %v1076
      %v1078 = vpop.f32.mrb[0].mxu0
      %1079 = vmatprep.mubr.bf16.mxu0 %v537
      %1080 = vmatmul.mubr.bf16.gmra.mrb[0].mxu0 %v536
      %v1081 = vpop.f32.mrb[0].mxu0
      %v1082 = vadd.f32 %v1017, %v1081
      %v1083 = vpop.f32.mrb[0].mxu0
      %v1084 = vpop.f32.mrb[0].mxu0
      %v1085 = vadd.f32 %v1020, %v1084
      %v1086 = vpop.f32.mrb[0].mxu0
      %1087 = vmatprep.mubr.bf16.mxu0 %v545
      %1088 = vmatmul.mubr.bf16.gmra.mrb[0].mxu0 %v544
      %v1089 = vpop.f32.mrb[0].mxu0
      %v1090 = vadd.f32 %v1025, %v1089
      %v1091 = vpop.f32.mrb[0].mxu0
      %v1092 = vpop.f32.mrb[0].mxu0
      %v1093 = vadd.f32 %v1028, %v1092
      %v1094 = vpop.f32.mrb[0].mxu0
      %1095 = vdwg.mxu0
      %1096 = vmatprep.subr.bf16.mxu0 0
      %1097 = vmatpush1.bf16.msra.mxu0 %v870
      %1098 = vmatprep.subr.bf16.mxu0 0
      %1099 = vmatpush1.bf16.msra.mxu0 %v871
      %1100 = vmatprep.subr.bf16.mxu0 0
      %1101 = vmatpush1.bf16.msra.mxu0 %v872
      %1102 = vmatprep.subr.bf16.mxu0 0
      %1103 = vmatpush1.bf16.msra.mxu0 %v873
      %1104 = vmatprep.subr.bf16.mxu0 0
      %1105 = vmatpush1.bf16.msra.mxu0 %v874
      %1106 = vmatprep.subr.bf16.mxu0 0
      %1107 = vmatpush1.bf16.msra.mxu0 %v875
      %1108 = vmatprep.subr.bf16.mxu0 0
      %1109 = vmatpush1.bf16.msra.mxu0 %v876
      %1110 = vmatprep.subr.bf16.mxu0 0
      %1111 = vmatpush1.bf16.msra.mxu0 %v877
      %1112 = vmatprep.subr.bf16.mxu0 0
      %1113 = vmatpush1.bf16.msra.mxu0 %v878
      %1114 = vmatprep.subr.bf16.mxu0 0
      %1115 = vmatpush1.bf16.msra.mxu0 %v879
      %1116 = vmatprep.subr.bf16.mxu0 0
      %1117 = vmatpush1.bf16.msra.mxu0 %v880
      %1118 = vmatprep.subr.bf16.mxu0 0
      %1119 = vmatpush1.bf16.msra.mxu0 %v881
      %1120 = vmatprep.subr.bf16.mxu0 0
      %1121 = vmatpush1.bf16.msra.mxu0 %v882
      %1122 = vmatprep.subr.bf16.mxu0 0
      %1123 = vmatpush1.bf16.msra.mxu0 %v883
      %1124 = vmatprep.subr.bf16.mxu0 0
      %1125 = vmatpush1.bf16.msra.mxu0 %v884
      %1126 = vmatprep.subr.bf16.mxu0 0
      %1127 = vmatpush1.bf16.msra.mxu0 %v885
      %1128 = vmatprep.mubr.bf16.mxu0 %v523
      %1129 = vmatmul.mubr.bf16.gmra.mrb[0].mxu0 %v522
      %v1130 = vpop.f32.mrb[0].mxu0
      %v1131 = vadd.f32 %v1066, %v1130
      %v1132 = vpop.f32.mrb[0].mxu0
      %v1133 = vpop.f32.mrb[0].mxu0
      %v1134 = vadd.f32 %v1069, %v1133
      %v1135 = vpop.f32.mrb[0].mxu0
      %1136 = vmatprep.mubr.bf16.mxu0 %v531
      %1137 = vmatmul.mubr.bf16.gmra.mrb[0].mxu0 %v530
      %v1138 = vpop.f32.mrb[0].mxu0
      %v1139 = vadd.f32 %v1074, %v1138
      %v1140 = vpop.f32.mrb[0].mxu0
      %v1141 = vpop.f32.mrb[0].mxu0
      %v1142 = vadd.f32 %v1077, %v1141
      %v1143 = vpop.f32.mrb[0].mxu0
      %1144 = vmatprep.mubr.bf16.mxu0 %v539
      %1145 = vmatmul.mubr.bf16.gmra.mrb[0].mxu0 %v538
      %v1146 = vpop.f32.mrb[0].mxu0
      %v1147 = vadd.f32 %v1082, %v1146
      %v1148 = vpop.f32.mrb[0].mxu0
      %v1149 = vpop.f32.mrb[0].mxu0
      %v1150 = vadd.f32 %v1085, %v1149
      %v1151 = vpop.f32.mrb[0].mxu0
      %1152 = vmatprep.mubr.bf16.mxu0 %v547
      %1153 = vmatmul.mubr.bf16.gmra.mrb[0].mxu0 %v546
      %v1154 = vpop.f32.mrb[0].mxu0
      %v1155 = vadd.f32 %v1090, %v1154
      %v1156 = vpop.f32.mrb[0].mxu0
      %v1157 = vpop.f32.mrb[0].mxu0
      %v1158 = vadd.f32 %v1093, %v1157
      %v1159 = vpop.f32.mrb[0].mxu0
      %1160 = vdwg.mxu0
      %1161 = vmatprep.subr.bf16.mxu0 0
      %1162 = vmatpush1.bf16.msra.mxu0 %v886
      %1163 = vmatprep.subr.bf16.mxu0 0
      %1164 = vmatpush1.bf16.msra.mxu0 %v887
      %1165 = vmatprep.subr.bf16.mxu0 0
      %1166 = vmatpush1.bf16.msra.mxu0 %v888
      %1167 = vmatprep.subr.bf16.mxu0 0
      %1168 = vmatpush1.bf16.msra.mxu0 %v889
      %1169 = vmatprep.subr.bf16.mxu0 0
      %1170 = vmatpush1.bf16.msra.mxu0 %v890
      %1171 = vmatprep.subr.bf16.mxu0 0
      %1172 = vmatpush1.bf16.msra.mxu0 %v891
      %1173 = vmatprep.subr.bf16.mxu0 0
      %1174 = vmatpush1.bf16.msra.mxu0 %v892
      %1175 = vmatprep.subr.bf16.mxu0 0
      %1176 = vmatpush1.bf16.msra.mxu0 %v893
      %1177 = vmatprep.subr.bf16.mxu0 0
      %1178 = vmatpush1.bf16.msra.mxu0 %v894
      %1179 = vmatprep.subr.bf16.mxu0 0
      %1180 = vmatpush1.bf16.msra.mxu0 %v895
      %1181 = vmatprep.subr.bf16.mxu0 0
      %1182 = vmatpush1.bf16.msra.mxu0 %v896
      %1183 = vmatprep.subr.bf16.mxu0 0
      %1184 = vmatpush1.bf16.msra.mxu0 %v897
      %1185 = vmatprep.subr.bf16.mxu0 0
      %1186 = vmatpush1.bf16.msra.mxu0 %v898
      %1187 = vmatprep.subr.bf16.mxu0 0
      %1188 = vmatpush1.bf16.msra.mxu0 %v899
      %1189 = vmatprep.subr.bf16.mxu0 0
      %1190 = vmatpush1.bf16.msra.mxu0 %v900
      %1191 = vmatprep.subr.bf16.mxu0 0
      %1192 = vmatpush1.bf16.msra.mxu0 %v901
      %1193 = vmatprep.mubr.bf16.mxu0 %v525
      %1194 = vmatmul.mubr.bf16.gmra.mrb[0].mxu0 %v524
      %v1195 = vpop.f32.mrb[0].mxu0
      %v1196 = vadd.f32 %v1131, %v1195
      %v1197 = vpop.f32.mrb[0].mxu0
      %v1198 = vpop.f32.mrb[0].mxu0
      %v1199 = vadd.f32 %v1134, %v1198
      %v1200 = vpop.f32.mrb[0].mxu0
      %1201 = vmatprep.mubr.bf16.mxu0 %v533
      %1202 = vmatmul.mubr.bf16.gmra.mrb[0].mxu0 %v532
      %v1203 = vpop.f32.mrb[0].mxu0
      %v1204 = vadd.f32 %v1139, %v1203
      %v1205 = vpop.f32.mrb[0].mxu0
      %v1206 = vpop.f32.mrb[0].mxu0
      %v1207 = vadd.f32 %v1142, %v1206
      %v1208 = vpop.f32.mrb[0].mxu0
      %1209 = vmatprep.mubr.bf16.mxu0 %v541
      %1210 = vmatmul.mubr.bf16.gmra.mrb[0].mxu0 %v540
      %v1211 = vpop.f32.mrb[0].mxu0
      %v1212 = vadd.f32 %v1147, %v1211
      %v1213 = vpop.f32.mrb[0].mxu0
      %v1214 = vpop.f32.mrb[0].mxu0
      %v1215 = vadd.f32 %v1150, %v1214
      %v1216 = vpop.f32.mrb[0].mxu0
      %1217 = vmatprep.mubr.bf16.mxu0 %v549
      %1218 = vmatmul.mubr.bf16.gmra.mrb[0].mxu0 %v548
      %v1219 = vpop.f32.mrb[0].mxu0
      %v1220 = vadd.f32 %v1155, %v1219
      %v1221 = vpop.f32.mrb[0].mxu0
      %v1222 = vpop.f32.mrb[0].mxu0
      %v1223 = vadd.f32 %v1158, %v1222
      %v1224 = vpop.f32.mrb[0].mxu0
      %1225 = vdwg.mxu0
      %v1226 = vld [vmem:[#allocation2] sm:$0x1]
      %v1227 = vadd.f32 %v1196, %v1199
      %v1228 = vadd.f32 %v1227, %v1204
      %v1229 = vadd.f32 %v1228, %v1207
      %v1230 = vadd.f32 %v1229, %v1212
      %v1231 = vadd.f32 %v1230, %v1215
      %v1232 = vadd.f32 %v1231, %v1220
      %v1233 = vadd.f32 %v1232, %v1223
      %v1234 = vrot.slane %v1233, 4
      %v1235 = vadd.f32 %v1233, %v1234
      %v1236 = vrot.slane %v1235, 2
      %v1237 = vadd.f32 %v1235, %v1236
      %v1238 = vrot.slane %v1237, 1
      %v1239 = vadd.f32 %v1237, %v1238
      %v1240 = vadd.f32 %v1226, %v1239
      %1241 = vst [vmem:[#allocation2] sm:$0x1] %v1240
      %v1242 = vld [vmem:[#allocation3] sm:$0x1]
      %v1243 = vmul.f32 %v1196, %v1196
      %v1244 = vmul.f32 %v1199, %v1199
      %v1245 = vmul.f32 %v1204, %v1204
      %v1246 = vmul.f32 %v1207, %v1207
      %v1247 = vmul.f32 %v1212, %v1212
      %v1248 = vmul.f32 %v1215, %v1215
      %v1249 = vmul.f32 %v1220, %v1220
      %v1250 = vmul.f32 %v1223, %v1223
      %v1251 = vadd.f32 %v1243, %v1244
      %v1252 = vadd.f32 %v1251, %v1245
      %v1253 = vadd.f32 %v1252, %v1246
      %v1254 = vadd.f32 %v1253, %v1247
      %v1255 = vadd.f32 %v1254, %v1248
      %v1256 = vadd.f32 %v1255, %v1249
      %v1257 = vadd.f32 %v1256, %v1250
      %v1258 = vrot.slane %v1257, 4
      %v1259 = vadd.f32 %v1257, %v1258
      %v1260 = vrot.slane %v1259, 2
      %v1261 = vadd.f32 %v1259, %v1260
      %v1262 = vrot.slane %v1261, 1
      %v1263 = vadd.f32 %v1261, %v1262
      %v1264 = vadd.f32 %v1242, %v1263
      %1265 = vst [vmem:[#allocation3] sm:$0x1] %v1264
      %s1266 = smul.u32 %s21, 64
      %v1267 = vpack.c.bf16 %v1199, %v1196
      %v1268 = vpack.c.bf16 %v1207, %v1204
      %v1269 = vpack.c.bf16 %v1215, %v1212
      %v1270 = vpack.c.bf16 %v1223, %v1220
      %v1275 = vunpack.c.l.b16 %v1267
      %v1276 = vunpack.c.h.b16 %v1267
      %v1277 = vunpack.c.l.b16 %v1268
      %v1278 = vunpack.c.h.b16 %v1268
      %v1279 = vunpack.c.l.b16 %v1269
      %v1280 = vunpack.c.h.b16 %v1269
      %v1281 = vunpack.c.l.b16 %v1270
      %v1282 = vunpack.c.h.b16 %v1270
      %v1283 = vpack.c.b16 %v1275, %v1275
      %v1284 = vpack.c.b16 %v1276, %v1276
      %v1285 = vpack.c.b16 %v1277, %v1277
      %v1286 = vpack.c.b16 %v1278, %v1278
      %v1287 = vpack.c.b16 %v1279, %v1279
      %v1288 = vpack.c.b16 %v1280, %v1280
      %v1289 = vpack.c.b16 %v1281, %v1281
      %v1290 = vpack.c.b16 %v1282, %v1282
      %s1299 = sshra.s32 %s1266, 3
      %s1300 = sand.u32 %s1266, 7
      %s1301 = smul.addr %s1299, 4
      %s1302 = scalar_lea.vmem %s247, %s1301
      %1303 = vst [vmem:[%s1302] sm:$0xf] %v1283
      %1304 = vst [vmem:[%s1302 + $0x4] sm:$0xf] %v1284
      %1305 = vst [vmem:[%s1302 + $0x8] sm:$0xf] %v1285
      %1306 = vst [vmem:[%s1302 + $0xc] sm:$0xf] %v1286
      %1307 = vst [vmem:[%s1302 + $0x10] sm:$0xf] %v1287
      %1308 = vst [vmem:[%s1302 + $0x14] sm:$0xf] %v1288
      %1309 = vst [vmem:[%s1302 + $0x18] sm:$0xf] %v1289
      %1310 = vst [vmem:[%s1302 + $0x1c] sm:$0xf] %v1290
      // Predicated region
      $region37: #{discriminator_forward.5} parent=31 // pred_check
        %p1311 = pneg %p249
      $region38: #{discriminator_forward.5} parent=31 // pred_check_branch
        %1313 = sbr.rel (%p1311) target = $region40
      $region39: #{discriminator_forward.5} parent=31 // pred_region
        %v1314 = vld [vmem:[#allocation2] sm:$0x1]
        %v1315 = vmul.f32 %v1314, 0.015625
        %v1316 = vld [vmem:[#allocation3] sm:$0x1]
        %v1317 = vmul.f32 %v1316, 0.015625
        %v1318 = vmul.f32 %v1315, %v1315
        %v1319 = vsub.f32 %v1317, %v1318
        %v1320 = vmax.f32 %v1319, 0.0
        %v1321 = vadd.f32 %v1320, 1e-05
        %v1322 = vrsqrt.pop %v1321
        %v1323 = vld [vmem:[%s247] sm:$0xf]
        %v1324 = vld [vmem:[%s247 + $0x4] sm:$0xf]
        %v1325 = vld [vmem:[%s247 + $0x8] sm:$0xf]
        %v1326 = vld [vmem:[%s247 + $0xc] sm:$0xf]
        %v1327 = vld [vmem:[%s247 + $0x10] sm:$0xf]
        %v1328 = vld [vmem:[%s247 + $0x14] sm:$0xf]
        %v1329 = vld [vmem:[%s247 + $0x18] sm:$0xf]
        %v1330 = vld [vmem:[%s247 + $0x1c] sm:$0xf]
        %v1331 = vunpack.c.l.bf16 %v1323
        %v1332 = vunpack.c.l.bf16 %v1324
        %v1333 = vunpack.c.l.bf16 %v1325
        %v1334 = vunpack.c.l.bf16 %v1326
        %v1335 = vunpack.c.l.bf16 %v1327
        %v1336 = vunpack.c.l.bf16 %v1328
        %v1337 = vunpack.c.l.bf16 %v1329
        %v1338 = vunpack.c.l.bf16 %v1330
        %v1340 = vlaneseq
        %v1341 = vshrl.u32 %v1340, 7
        %v1342 = vsub.s32 0, %v1341
        %v1343 = vrot.slane %v1315, %v1342
        %v1345 = vsub.f32 %v1331, %v1343
        %v1346 = vsub.f32 %v1332, %v1343
        %v1347 = vsub.f32 %v1333, %v1343
        %v1348 = vsub.f32 %v1334, %v1343
        %v1349 = vsub.f32 %v1335, %v1343
        %v1350 = vsub.f32 %v1336, %v1343
        %v1351 = vsub.f32 %v1337, %v1343
        %v1352 = vsub.f32 %v1338, %v1343
        %v1354 = vlaneseq
        %v1355 = vshrl.u32 %v1354, 7
        %v1356 = vsub.s32 0, %v1355
        %v1357 = vrot.slane %v1322, %v1356
        %v1359 = vmul.f32 %v1345, %v1357
        %v1360 = vmul.f32 %v1346, %v1357
        %v1361 = vmul.f32 %v1347, %v1357
        %v1362 = vmul.f32 %v1348, %v1357
        %v1363 = vmul.f32 %v1349, %v1357
        %v1364 = vmul.f32 %v1350, %v1357
        %v1365 = vmul.f32 %v1351, %v1357
        %v1366 = vmul.f32 %v1352, %v1357
        %vm1367 = vcmp.ge.f32.partialorder %v1359, 0.0
        %vm1368 = vcmp.ge.f32.partialorder %v1360, 0.0
        %vm1369 = vcmp.ge.f32.partialorder %v1361, 0.0
        %vm1370 = vcmp.ge.f32.partialorder %v1362, 0.0
        %vm1371 = vcmp.ge.f32.partialorder %v1363, 0.0
        %vm1372 = vcmp.ge.f32.partialorder %v1364, 0.0
        %vm1373 = vcmp.ge.f32.partialorder %v1365, 0.0
        %vm1374 = vcmp.ge.f32.partialorder %v1366, 0.0
        %v1375 = vmul.f32 %v1359, 0.2
        %v1376 = vmul.f32 %v1360, 0.2
        %v1377 = vmul.f32 %v1361, 0.2
        %v1378 = vmul.f32 %v1362, 0.2
        %v1379 = vmul.f32 %v1363, 0.2
        %v1380 = vmul.f32 %v1364, 0.2
        %v1381 = vmul.f32 %v1365, 0.2
        %v1382 = vmul.f32 %v1366, 0.2
        %v1383 = vsel %vm1367, %v1359, %v1375
        %v1384 = vsel %vm1368, %v1360, %v1376
        %v1385 = vsel %vm1369, %v1361, %v1377
        %v1386 = vsel %vm1370, %v1362, %v1378
        %v1387 = vsel %vm1371, %v1363, %v1379
        %v1388 = vsel %vm1372, %v1364, %v1380
        %v1389 = vsel %vm1373, %v1365, %v1381
        %v1390 = vsel %vm1374, %v1366, %v1382
        %v1391 = vpack.c.bf16 %v1384, %v1383
        %v1392 = vpack.c.bf16 %v1386, %v1385
        %v1393 = vpack.c.bf16 %v1388, %v1387
        %v1394 = vpack.c.bf16 %v1390, %v1389
        %v1399 = vunpack.c.l.b16 %v1391
        %v1400 = vunpack.c.h.b16 %v1391
        %v1401 = vunpack.c.l.b16 %v1392
        %v1402 = vunpack.c.h.b16 %v1392
        %v1403 = vunpack.c.l.b16 %v1393
        %v1404 = vunpack.c.h.b16 %v1393
        %v1405 = vunpack.c.l.b16 %v1394
        %v1406 = vunpack.c.h.b16 %v1394
        %v1407 = vpack.c.b16 %v1399, %v1399
        %v1408 = vpack.c.b16 %v1400, %v1400
        %v1409 = vpack.c.b16 %v1401, %v1401
        %v1410 = vpack.c.b16 %v1402, %v1402
        %v1411 = vpack.c.b16 %v1403, %v1403
        %v1412 = vpack.c.b16 %v1404, %v1404
        %v1413 = vpack.c.b16 %v1405, %v1405
        %v1414 = vpack.c.b16 %v1406, %v1406
        %1423 = vst [vmem:[%s247] sm:$0xf] %v1407
        %1424 = vst [vmem:[%s247 + $0x4] sm:$0xf] %v1408
        %1425 = vst [vmem:[%s247 + $0x8] sm:$0xf] %v1409
        %1426 = vst [vmem:[%s247 + $0xc] sm:$0xf] %v1410
        %1427 = vst [vmem:[%s247 + $0x10] sm:$0xf] %v1411
        %1428 = vst [vmem:[%s247 + $0x14] sm:$0xf] %v1412
        %1429 = vst [vmem:[%s247 + $0x18] sm:$0xf] %v1413
        %1430 = vst [vmem:[%s247 + $0x1c] sm:$0xf] %v1414
      $region40: #{discriminator_forward.5} parent=31 // pred_fallthru
        _
      %p1431 = scmp.lt.s32.totalorder %s19, 1
      %s1432 = scalar_select %p1431, %s19, 1
      %p1433 = scmp.lt.s32.totalorder %s20, 0
      %s1434 = scalar_select %p1433, %s20, 0
      %s1435 = smul.addr %s1432, 8
      %s1436 = sadd.s32 %s1434, %s1435
      %s1437 = smul.addr %s1436, 4
      %s1438 = scalar_lea.vmem %s3, %s1437
      // Predicated region
      $region41: #{discriminator_forward.5} parent=31 // pred_check
        %p1439 = pneg %p133
      $region42: #{discriminator_forward.5} parent=31 // pred_check_branch
        %1441 = sbr.rel (%p1439) target = $region44
      $region43: #{discriminator_forward.5} parent=31 // pred_region
        _
      $region44: #{discriminator_forward.5} parent=31 // pred_fallthru
        _
    $region32: #{discriminator_forward.5} parent=5 // pred_fallthru
      _
    %p1442 = scmp.le.s32.totalorder 2, %s9
    // Predicated region
    $region45: #{discriminator_forward.5} parent=5 // pred_check
      %p1443 = pneg %p1442
    $region46: #{discriminator_forward.5} parent=5 // pred_check_branch
      %1445 = sbr.rel (%p1443) target = $region48
    $region47: #{discriminator_forward.5} parent=5 // pred_region
      %s1446 = ssub.s32 %s9, 2
      // Predicated region
      $region49: #{discriminator_forward.5} parent=47 // pred_check
        %p1447 = pneg %p139
      $region50: #{discriminator_forward.5} parent=47 // pred_check_branch
        %1449 = sbr.rel (%p1447) target = $region52
      $region51: #{discriminator_forward.5} parent=47 // pred_region
        %p1450 = scmp.lt.s32.totalorder %s22, 1
        %s1451 = scalar_select %p1450, %s22, 1
        %p1452 = scmp.lt.s32.totalorder %s23, 0
        %s1453 = scalar_select %p1452, %s23, 0
        %s1454 = smul.addr %s1451, 8
        %s1455 = sadd.s32 %s1453, %s1454
        %s1456 = smul.addr %s1455, 4
        %s1457 = scalar_lea.vmem %s3, %s1456
      $region52: #{discriminator_forward.5} parent=47 // pred_fallthru
        _
    $region48: #{discriminator_forward.5} parent=5 // pred_fallthru
      _
  $region6: #{discriminator_forward.5} parent=0 // loop_footer
    %s13 = sadd.s32 1, %s9
  $region7: #{discriminator_forward.5} parent=0 // loop_footer_branch
    %8 = sbr.rel target = $region3
  $region8: #{discriminator_forward.5} parent=0 // loop_exit
    _

// kernel: discriminator_forward.6
$region0: #{discriminator_forward.6}
  #allocation0 [shape = 'u32[]', space=smem, size = 0x4, offset = 0x4, fixed_abs, tag = 'smem constant byte address 0x4 - core index']
  #allocation1 [shape = 'u32[144,128]{1,0:T(1,128)}', space=vmem, size = 0x12000, scoped, tag = 'internal scratch']
  #allocation2 [shape = 'f32[1,256]{1,0:T(1,128)}', space=vmem, size = 0x400, scoped, tag = 'scratch operand']
  #allocation3 [shape = 'f32[1,256]{1,0:T(1,128)}', space=vmem, size = 0x400, scoped, tag = 'scratch operand']
  %s0 = inlined_call_operand.vmem [shape: bf16[2,16,2048], index: 0, kind: input, shape index: {}]
  %s1 = inlined_call_operand.vmem [shape: bf16[2048,256], index: 1, kind: input, shape index: {}]
  %s2 = inlined_call_operand.vmem [shape: f32[1,256], index: 2, kind: input, shape index: {}]
  %s3 = inlined_call_operand.vmem [shape: bf16[2,16,256], index: 3, kind: output, shape index: {}]
  %s4 = sld [smem:[#allocation0]]
  $region53: #{discriminator_forward.6} parent=0
    _
  %s6 = ssub.s32 1, %s4
  %s7 = scalar_select 0, %s6, %s4
  loop: start=0, step=1, limit=4
  $region2: #{discriminator_forward.6} parent=0 // loop_pre_header
    _
  $region3: #{discriminator_forward.6} parent=0 // loop_header
    %s9 = sphi 0, %s13
    %p10 = scmp.ge.s32.totalorder %s9, 4
    %s16 = sphi 0, %s35
    %s17 = sphi 0, %s31
    %s18 = sphi 0, %s27
    %s19 = sphi 0, %s16
    %s20 = sphi 0, %s17
    %s21 = sphi 0, %s18
    %s22 = sphi 0, %s19
    %s23 = sphi 0, %s20
    %s24 = sphi 0, %s21
    %s40 = sphi 0, %s42
    %s43 = sphi 0, %s40
    %s44 = sphi 0, %s43
    %s60 = sphi 0, %s44
    %s66 = sphi 0, %s68
    %s69 = sphi 0, %s66
    %s70 = sphi 0, %s69
    %s86 = sphi 0, %s70
    %s92 = sphi 0, %s94
    %s95 = sphi 0, %s92
    %s96 = sphi 0, %s95
    %s112 = sphi 0, %s96
    %s120 = sphi 0, %s122
    %s123 = sphi 0, %s120
    %s124 = sphi 0, %s123
    %s140 = sphi 0, %s124
  $region4: #{discriminator_forward.6} parent=0 // loop_header_branch
    %12 = sbr.rel (%p10) target = $region8
  $region5: #{discriminator_forward.6} parent=0 // loop_body
    %s14 = ssub.s32 %s9, 1
    %s15 = ssub.s32 %s9, 2
    %s25 = sadd.s32 1, %s18
    %p26 = scmp.ge.s32.totalorder %s25, 1
    %s27 = scalar_select %p26, 0, %s25
    %s28 = sadd.s32 1, %s17
    %s29 = scalar_select %p26, %s28, %s17
    %p30 = scmp.ge.s32.totalorder %s29, 1
    %s31 = scalar_select %p30, 0, %s29
    %s32 = sadd.s32 1, %s16
    %s33 = scalar_select %p30, %s32, %s16
    %p34 = scmp.ge.s32.totalorder %s33, 2
    %s35 = scalar_select %p34, 0, %s33
    %s36 = ssub.s32 %s16, %s35
    %s37 = ssub.s32 %s18, %s27
    %s38 = sor.u32 %s36, %s37
    %p39 = scmp.eq.s32.totalorder %s38, 0
    %s41 = sadd.s32 %s40, 1
    %s42 = scalar_select %p39, %s40, %s41
    %p45 = pneg %p39
    %p46 = scmp.eq.s32.totalorder %s9, 1
    %p47 = por %p45, %p46
    %p48 = scmp.ne.s32.totalorder %s40, %s43
    %p49 = scmp.eq.s32.totalorder %s9, 0
    %p50 = por %p48, %p49
    %p51 = scmp.ne.s32.totalorder %s40, %s43
    %p52 = scmp.eq.s32.totalorder %s14, 1
    %p53 = por %p51, %p52
    %p54 = scmp.ne.s32.totalorder %s43, %s44
    %p55 = scmp.eq.s32.totalorder %s14, 0
    %p56 = por %p54, %p55
    %p57 = scmp.ne.s32.totalorder %s43, %s44
    %p58 = scmp.eq.s32.totalorder %s15, 1
    %p59 = por %p57, %p58
    %p61 = scmp.ne.s32.totalorder %s44, %s60
    %p62 = scmp.eq.s32.totalorder %s15, 0
    %p63 = por %p61, %p62
    %s64 = ssub.s32 %s17, %s31
    %p65 = scmp.eq.s32.totalorder %s64, 0
    %s67 = sadd.s32 %s66, 1
    %s68 = scalar_select %p65, %s66, %s67
    %p71 = pneg %p65
    %p72 = scmp.eq.s32.totalorder %s9, 1
    %p73 = por %p71, %p72
    %p74 = scmp.ne.s32.totalorder %s66, %s69
    %p75 = scmp.eq.s32.totalorder %s9, 0
    %p76 = por %p74, %p75
    %p77 = scmp.ne.s32.totalorder %s66, %s69
    %p78 = scmp.eq.s32.totalorder %s14, 1
    %p79 = por %p77, %p78
    %p80 = scmp.ne.s32.totalorder %s69, %s70
    %p81 = scmp.eq.s32.totalorder %s14, 0
    %p82 = por %p80, %p81
    %p83 = scmp.ne.s32.totalorder %s69, %s70
    %p84 = scmp.eq.s32.totalorder %s15, 1
    %p85 = por %p83, %p84
    %p87 = scmp.ne.s32.totalorder %s70, %s86
    %p88 = scmp.eq.s32.totalorder %s15, 0
    %p89 = por %p87, %p88
    %s90 = ssub.s32 %s17, %s31
    %p91 = scmp.eq.s32.totalorder %s90, 0
    %s93 = sadd.s32 %s92, 1
    %s94 = scalar_select %p91, %s92, %s93
    %p97 = pneg %p91
    %p98 = scmp.eq.s32.totalorder %s9, 1
    %p99 = por %p97, %p98
    %p100 = scmp.ne.s32.totalorder %s92, %s95
    %p101 = scmp.eq.s32.totalorder %s9, 0
    %p102 = por %p100, %p101
    %p103 = scmp.ne.s32.totalorder %s92, %s95
    %p104 = scmp.eq.s32.totalorder %s14, 1
    %p105 = por %p103, %p104
    %p106 = scmp.ne.s32.totalorder %s95, %s96
    %p107 = scmp.eq.s32.totalorder %s14, 0
    %p108 = por %p106, %p107
    %p109 = scmp.ne.s32.totalorder %s95, %s96
    %p110 = scmp.eq.s32.totalorder %s15, 1
    %p111 = por %p109, %p110
    %p113 = scmp.ne.s32.totalorder %s96, %s112
    %p114 = scmp.eq.s32.totalorder %s15, 0
    %p115 = por %p113, %p114
    %s116 = ssub.s32 %s16, %s35
    %s117 = ssub.s32 %s17, %s31
    %s118 = sor.u32 %s116, %s117
    %p119 = scmp.eq.s32.totalorder %s118, 0
    %s121 = sadd.s32 %s120, 1
    %s122 = scalar_select %p119, %s120, %s121
    %p125 = pneg %p119
    %p126 = scmp.eq.s32.totalorder %s9, 1
    %p127 = por %p125, %p126
    %p128 = scmp.ne.s32.totalorder %s120, %s123
    %p129 = scmp.eq.s32.totalorder %s9, 0
    %p130 = por %p128, %p129
    %p131 = scmp.ne.s32.totalorder %s120, %s123
    %p132 = scmp.eq.s32.totalorder %s14, 1
    %p133 = por %p131, %p132
    %p134 = scmp.ne.s32.totalorder %s123, %s124
    %p135 = scmp.eq.s32.totalorder %s14, 0
    %p136 = por %p134, %p135
    %p137 = scmp.ne.s32.totalorder %s123, %s124
    %p138 = scmp.eq.s32.totalorder %s15, 1
    %p139 = por %p137, %p138
    %p141 = scmp.ne.s32.totalorder %s124, %s140
    %p142 = scmp.eq.s32.totalorder %s15, 0
    %p143 = por %p141, %p142
    %p144 = scmp.le.s32.totalorder 1, %s9
    %p145 = scmp.lt.s32.totalorder %s9, 3
    %p146 = pnand %p144, %p145
    %p147 = pneg %p146
    // Predicated region
    $region9: #{discriminator_forward.6} parent=5 // pred_check
      _
    $region10: #{discriminator_forward.6} parent=5 // pred_check_branch
      %149 = sbr.rel (%p146) target = $region12
    $region11: #{discriminator_forward.6} parent=5 // pred_region
      %s150 = ssub.s32 %s9, 1
      // Predicated region
      $region13: #{discriminator_forward.6} parent=11 // pred_check
        %p151 = pneg %p82
      $region14: #{discriminator_forward.6} parent=11 // pred_check_branch
        %153 = sbr.rel (%p151) target = $region16
      $region15: #{discriminator_forward.6} parent=11 // pred_region
        %s154 = smul.u32 2, %s20
        %p155 = scmp.lt.s32.totalorder %s154, 1
        %s156 = scalar_select %p155, %s154, 1
        %s157 = smul.addr %s156, 4
        %s158 = scalar_lea.vmem %s1, %s157
        %s159 = smul.u32 2, %s20
      $region16: #{discriminator_forward.6} parent=11 // pred_fallthru
        _
      // Predicated region
      $region17: #{discriminator_forward.6} parent=11 // pred_check
        %p160 = pneg %p108
      $region18: #{discriminator_forward.6} parent=11 // pred_check_branch
        %162 = sbr.rel (%p160) target = $region20
      $region19: #{discriminator_forward.6} parent=11 // pred_region
        %s163 = smul.u32 2, %s20
        %p164 = scmp.lt.s32.totalorder %s163, 1
        %s165 = scalar_select %p164, %s163, 1
        %s166 = scalar_lea.vmem %s2, %s165
        %s167 = smul.u32 2, %s20
      $region20: #{discriminator_forward.6} parent=11 // pred_fallthru
        _
    $region12: #{discriminator_forward.6} parent=5 // pred_fallthru
      _
    %p168 = scmp.lt.s32.totalorder %s9, 2
    // Predicated region
    $region21: #{discriminator_forward.6} parent=5 // pred_check
      %p169 = pneg %p168
    $region22: #{discriminator_forward.6} parent=5 // pred_check_branch
      %171 = sbr.rel (%p169) target = $region24
    $region23: #{discriminator_forward.6} parent=5 // pred_region
      // Predicated region
      $region25: #{discriminator_forward.6} parent=23 // pred_check
        %p172 = pneg %p50
      $region26: #{discriminator_forward.6} parent=23 // pred_check_branch
        %174 = sbr.rel (%p172) target = $region28
      $region27: #{discriminator_forward.6} parent=23 // pred_region
        %s175 = smul.u32 2, %s18
        %p176 = scmp.lt.s32.totalorder %s16, 1
        %s177 = scalar_select %p176, %s16, 1
        %p178 = scmp.lt.s32.totalorder %s175, 1
        %s179 = scalar_select %p178, %s175, 1
        %s180 = smul.addr %s179, 16
        %s181 = smul.addr %s177, 32
        %s182 = sadd.s32 %s180, %s181
        %s183 = smul.addr %s182, 4
        %s184 = scalar_lea.vmem %s0, %s183
        %s185 = smul.u32 2, %s18
      $region28: #{discriminator_forward.6} parent=23 // pred_fallthru
        _
    $region24: #{discriminator_forward.6} parent=5 // pred_fallthru
      _
    %p186 = scmp.le.s32.totalorder 1, %s9
    %p187 = scmp.lt.s32.totalorder %s9, 3
    %p188 = pnand %p186, %p187
    %p189 = pneg %p188
    // Predicated region
    $region29: #{discriminator_forward.6} parent=5 // pred_check
      _
    $region30: #{discriminator_forward.6} parent=5 // pred_check_branch
      %191 = sbr.rel (%p188) target = $region32
    $region31: #{discriminator_forward.6} parent=5 // pred_region
      %s192 = ssub.s32 %s9, 1
      %s193 = smul.u32 2, %s21
      %p194 = scmp.lt.s32.totalorder %s19, 1
      %s195 = scalar_select %p194, %s19, 1
      %p196 = scmp.lt.s32.totalorder %s193, 1
      %s197 = scalar_select %p196, %s193, 1
      %s198 = smul.addr %s197, 16
      %s199 = smul.addr %s195, 32
      %s200 = sadd.s32 %s198, %s199
      %s201 = smul.addr %s200, 4
      %s202 = scalar_lea.vmem %s0, %s201
      %p203 = pneg %p56
      %p204 = pneg %p53
      %s205 = smul.u32 2, %s20
      %p206 = scmp.lt.s32.totalorder %s205, 1
      %s207 = scalar_select %p206, %s205, 1
      %s208 = smul.addr %s207, 4
      %s209 = scalar_lea.vmem %s1, %s208
      %p210 = pneg %p82
      %p211 = pneg %p79
      %s212 = smul.u32 2, %s20
      %p213 = scmp.lt.s32.totalorder %s212, 1
      %s214 = scalar_select %p213, %s212, 1
      %s215 = scalar_lea.vmem %s2, %s214
      %p216 = pneg %p108
      %p217 = pneg %p105
      %p218 = pneg %p136
      %p219 = pneg %p133
      %s220 = smul.u32 2, %s20
      %p221 = scmp.lt.s32.totalorder %s19, 1
      %s222 = scalar_select %p221, %s19, 1
      %p223 = scmp.lt.s32.totalorder %s220, 1
      %s224 = scalar_select %p223, %s220, 1
      %s225 = smul.addr %s222, 4
      %s226 = sadd.s32 %s224, %s225
      %s227 = smul.addr %s226, 4
      %s228 = scalar_lea.vmem %s3, %s227
      %s229 = smul.u32 2, %s21
      %p230 = scmp.lt.s32.totalorder %s19, 1
      %s231 = scalar_select %p230, %s19, 1
      %p232 = scmp.lt.s32.totalorder %s229, 1
      %s233 = scalar_select %p232, %s229, 1
      %s234 = smul.addr %s233, 16
      %s235 = smul.addr %s231, 32
      %s236 = sadd.s32 %s234, %s235
      %s237 = smul.addr %s236, 4
      %s238 = scalar_lea.vmem %s0, %s237
      %s239 = smul.u32 2, %s21
      %s240 = smul.u32 2, %s20
      %p241 = scmp.lt.s32.totalorder %s240, 1
      %s242 = scalar_select %p241, %s240, 1
      %s243 = smul.addr %s242, 4
      %s244 = scalar_lea.vmem %s1, %s243
      %s245 = smul.u32 2, %s20
      %s246 = smul.u32 2, %s20
      %p247 = scmp.lt.s32.totalorder %s246, 1
      %s248 = scalar_select %p247, %s246, 1
      %s249 = scalar_lea.vmem %s2, %s248
      %s250 = smul.u32 2, %s20
      %s251 = smul.u32 2, %s20
      %p252 = scmp.lt.s32.totalorder %s19, 1
      %s253 = scalar_select %p252, %s19, 1
      %p254 = scmp.lt.s32.totalorder %s251, 1
      %s255 = scalar_select %p254, %s251, 1
      %s256 = smul.addr %s253, 4
      %s257 = sadd.s32 %s255, %s256
      %s258 = smul.addr %s257, 4
      %s259 = scalar_lea.vmem %s3, %s258
      %s260 = smul.u32 2, %s20
      %p261 = scmp.eq.s32.totalorder %s21, 0
      // Predicated region
      $region33: #{discriminator_forward.6} parent=31 // pred_check
        %p262 = pneg %p261
      $region34: #{discriminator_forward.6} parent=31 // pred_check_branch
        %264 = sbr.rel (%p262) target = $region36
      $region35: #{discriminator_forward.6} parent=31 // pred_region
        %v265 = vlaneseq
        %vm266 = vcmp.ge.s32.totalorder %v265, 0
        %vm267 = vcmp.lt.s32.totalorder %v265, 256
        %vm268 = vmand %vm266, %vm267
        %269 = vst.msk [vmem:[#allocation2] sm:$0x3] %vm268, 0.0
        %270 = vst.msk [vmem:[#allocation3] sm:$0x3] %vm268, 0.0
      $region36: #{discriminator_forward.6} parent=31 // pred_fallthru
        _
      %v271 = vld [vmem:[%s238] sm:$0xff]
      %v272 = vld [vmem:[%s238 + $0x8] sm:$0xff]
      %v273 = vld [vmem:[%s238 + $0x10] sm:$0xff]
      %v274 = vld [vmem:[%s238 + $0x18] sm:$0xff]
      %v275 = vld [vmem:[%s238 + $0x20] sm:$0xff]
      %v276 = vld [vmem:[%s238 + $0x28] sm:$0xff]
      %v277 = vld [vmem:[%s238 + $0x30] sm:$0xff]
      %v278 = vld [vmem:[%s238 + $0x38] sm:$0xff]
      %v279 = vld [vmem:[%s238 + $0x40] sm:$0xff]
      %v280 = vld [vmem:[%s238 + $0x48] sm:$0xff]
      %v281 = vld [vmem:[%s238 + $0x50] sm:$0xff]
      %v282 = vld [vmem:[%s238 + $0x58] sm:$0xff]
      %v283 = vld [vmem:[%s238 + $0x60] sm:$0xff]
      %v284 = vld [vmem:[%s238 + $0x68] sm:$0xff]
      %v285 = vld [vmem:[%s238 + $0x70] sm:$0xff]
      %v286 = vld [vmem:[%s238 + $0x78] sm:$0xff]
      %v287 = vld [vmem:[%s244] sm:$0xff]
      %v288 = vld [vmem:[%s244 + $0x8] sm:$0xff]
      %v289 = vld [vmem:[%s244 + $0x10] sm:$0xff]
      %v290 = vld [vmem:[%s244 + $0x18] sm:$0xff]
      %v291 = vld [vmem:[%s244 + $0x20] sm:$0xff]
      %v292 = vld [vmem:[%s244 + $0x28] sm:$0xff]
      %v293 = vld [vmem:[%s244 + $0x30] sm:$0xff]
      %v294 = vld [vmem:[%s244 + $0x38] sm:$0xff]
      %v295 = vld [vmem:[%s244 + $0x40] sm:$0xff]
      %v296 = vld [vmem:[%s244 + $0x48] sm:$0xff]
      %v297 = vld [vmem:[%s244 + $0x50] sm:$0xff]
      %v298 = vld [vmem:[%s244 + $0x58] sm:$0xff]
      %v299 = vld [vmem:[%s244 + $0x60] sm:$0xff]
      %v300 = vld [vmem:[%s244 + $0x68] sm:$0xff]
      %v301 = vld [vmem:[%s244 + $0x70] sm:$0xff]
      %v302 = vld [vmem:[%s244 + $0x78] sm:$0xff]
      %v303 = vld [vmem:[%s244 + $0x80] sm:$0xff]
      %v304 = vld [vmem:[%s244 + $0x88] sm:$0xff]
      %v305 = vld [vmem:[%s244 + $0x90] sm:$0xff]
      %v306 = vld [vmem:[%s244 + $0x98] sm:$0xff]
      %v307 = vld [vmem:[%s244 + $0xa0] sm:$0xff]
      %v308 = vld [vmem:[%s244 + $0xa8] sm:$0xff]
      %v309 = vld [vmem:[%s244 + $0xb0] sm:$0xff]
      %v310 = vld [vmem:[%s244 + $0xb8] sm:$0xff]
      %v311 = vld [vmem:[%s244 + $0xc0] sm:$0xff]
      %v312 = vld [vmem:[%s244 + $0xc8] sm:$0xff]
      %v313 = vld [vmem:[%s244 + $0xd0] sm:$0xff]
      %v314 = vld [vmem:[%s244 + $0xd8] sm:$0xff]
      %v315 = vld [vmem:[%s244 + $0xe0] sm:$0xff]
      %v316 = vld [vmem:[%s244 + $0xe8] sm:$0xff]
      %v317 = vld [vmem:[%s244 + $0xf0] sm:$0xff]
      %v318 = vld [vmem:[%s244 + $0xf8] sm:$0xff]
      %v319 = vld [vmem:[%s244 + $0x100] sm:$0xff]
      %v320 = vld [vmem:[%s244 + $0x108] sm:$0xff]
      %v321 = vld [vmem:[%s244 + $0x110] sm:$0xff]
      %v322 = vld [vmem:[%s244 + $0x118] sm:$0xff]
      %v323 = vld [vmem:[%s244 + $0x120] sm:$0xff]
      %v324 = vld [vmem:[%s244 + $0x128] sm:$0xff]
      %v325 = vld [vmem:[%s244 + $0x130] sm:$0xff]
      %v326 = vld [vmem:[%s244 + $0x138] sm:$0xff]
      %v327 = vld [vmem:[%s244 + $0x140] sm:$0xff]
      %v328 = vld [vmem:[%s244 + $0x148] sm:$0xff]
      %v329 = vld [vmem:[%s244 + $0x150] sm:$0xff]
      %v330 = vld [vmem:[%s244 + $0x158] sm:$0xff]
      %v331 = vld [vmem:[%s244 + $0x160] sm:$0xff]
      %v332 = vld [vmem:[%s244 + $0x168] sm:$0xff]
      %v333 = vld [vmem:[%s244 + $0x170] sm:$0xff]
      %v334 = vld [vmem:[%s244 + $0x178] sm:$0xff]
      %v335 = vld [vmem:[%s244 + $0x180] sm:$0xff]
      %v336 = vld [vmem:[%s244 + $0x188] sm:$0xff]
      %v337 = vld [vmem:[%s244 + $0x190] sm:$0xff]
      %v338 = vld [vmem:[%s244 + $0x198] sm:$0xff]
      %v339 = vld [vmem:[%s244 + $0x1a0] sm:$0xff]
      %v340 = vld [vmem:[%s244 + $0x1a8] sm:$0xff]
      %v341 = vld [vmem:[%s244 + $0x1b0] sm:$0xff]
      %v342 = vld [vmem:[%s244 + $0x1b8] sm:$0xff]
      %v343 = vld [vmem:[%s244 + $0x1c0] sm:$0xff]
      %v344 = vld [vmem:[%s244 + $0x1c8] sm:$0xff]
      %v345 = vld [vmem:[%s244 + $0x1d0] sm:$0xff]
      %v346 = vld [vmem:[%s244 + $0x1d8] sm:$0xff]
      %v347 = vld [vmem:[%s244 + $0x1e0] sm:$0xff]
      %v348 = vld [vmem:[%s244 + $0x1e8] sm:$0xff]
      %v349 = vld [vmem:[%s244 + $0x1f0] sm:$0xff]
      %v350 = vld [vmem:[%s244 + $0x1f8] sm:$0xff]
      %v351 = vld [vmem:[%s244 + $0x200] sm:$0xff]
      %v352 = vld [vmem:[%s244 + $0x208] sm:$0xff]
      %v353 = vld [vmem:[%s244 + $0x210] sm:$0xff]
      %v354 = vld [vmem:[%s244 + $0x218] sm:$0xff]
      %v355 = vld [vmem:[%s244 + $0x220] sm:$0xff]
      %v356 = vld [vmem:[%s244 + $0x228] sm:$0xff]
      %v357 = vld [vmem:[%s244 + $0x230] sm:$0xff]
      %v358 = vld [vmem:[%s244 + $0x238] sm:$0xff]
      %v359 = vld [vmem:[%s244 + $0x240] sm:$0xff]
      %v360 = vld [vmem:[%s244 + $0x248] sm:$0xff]
      %v361 = vld [vmem:[%s244 + $0x250] sm:$0xff]
      %v362 = vld [vmem:[%s244 + $0x258] sm:$0xff]
      %v363 = vld [vmem:[%s244 + $0x260] sm:$0xff]
      %v364 = vld [vmem:[%s244 + $0x268] sm:$0xff]
      %v365 = vld [vmem:[%s244 + $0x270] sm:$0xff]
      %v366 = vld [vmem:[%s244 + $0x278] sm:$0xff]
      %v367 = vld [vmem:[%s244 + $0x280] sm:$0xff]
      %v368 = vld [vmem:[%s244 + $0x288] sm:$0xff]
      %v369 = vld [vmem:[%s244 + $0x290] sm:$0xff]
      %v370 = vld [vmem:[%s244 + $0x298] sm:$0xff]
      %v371 = vld [vmem:[%s244 + $0x2a0] sm:$0xff]
      %v372 = vld [vmem:[%s244 + $0x2a8] sm:$0xff]
      %v373 = vld [vmem:[%s244 + $0x2b0] sm:$0xff]
      %v374 = vld [vmem:[%s244 + $0x2b8] sm:$0xff]
      %v375 = vld [vmem:[%s244 + $0x2c0] sm:$0xff]
      %v376 = vld [vmem:[%s244 + $0x2c8] sm:$0xff]
      %v377 = vld [vmem:[%s244 + $0x2d0] sm:$0xff]
      %v378 = vld [vmem:[%s244 + $0x2d8] sm:$0xff]
      %v379 = vld [vmem:[%s244 + $0x2e0] sm:$0xff]
      %v380 = vld [vmem:[%s244 + $0x2e8] sm:$0xff]
      %v381 = vld [vmem:[%s244 + $0x2f0] sm:$0xff]
      %v382 = vld [vmem:[%s244 + $0x2f8] sm:$0xff]
      %v383 = vld [vmem:[%s244 + $0x300] sm:$0xff]
      %v384 = vld [vmem:[%s244 + $0x308] sm:$0xff]
      %v385 = vld [vmem:[%s244 + $0x310] sm:$0xff]
      %v386 = vld [vmem:[%s244 + $0x318] sm:$0xff]
      %v387 = vld [vmem:[%s244 + $0x320] sm:$0xff]
      %v388 = vld [vmem:[%s244 + $0x328] sm:$0xff]
      %v389 = vld [vmem:[%s244 + $0x330] sm:$0xff]
      %v390 = vld [vmem:[%s244 + $0x338] sm:$0xff]
      %v391 = vld [vmem:[%s244 + $0x340] sm:$0xff]
      %v392 = vld [vmem:[%s244 + $0x348] sm:$0xff]
      %v393 = vld [vmem:[%s244 + $0x350] sm:$0xff]
      %v394 = vld [vmem:[%s244 + $0x358] sm:$0xff]
      %v395 = vld [vmem:[%s244 + $0x360] sm:$0xff]
      %v396 = vld [vmem:[%s244 + $0x368] sm:$0xff]
      %v397 = vld [vmem:[%s244 + $0x370] sm:$0xff]
      %v398 = vld [vmem:[%s244 + $0x378] sm:$0xff]
      %v399 = vld [vmem:[%s244 + $0x380] sm:$0xff]
      %v400 = vld [vmem:[%s244 + $0x388] sm:$0xff]
      %v401 = vld [vmem:[%s244 + $0x390] sm:$0xff]
      %v402 = vld [vmem:[%s244 + $0x398] sm:$0xff]
      %v403 = vld [vmem:[%s244 + $0x3a0] sm:$0xff]
      %v404 = vld [vmem:[%s244 + $0x3a8] sm:$0xff]
      %v405 = vld [vmem:[%s244 + $0x3b0] sm:$0xff]
      %v406 = vld [vmem:[%s244 + $0x3b8] sm:$0xff]
      %v407 = vld [vmem:[%s244 + $0x3c0] sm:$0xff]
      %v408 = vld [vmem:[%s244 + $0x3c8] sm:$0xff]
      %v409 = vld [vmem:[%s244 + $0x3d0] sm:$0xff]
      %v410 = vld [vmem:[%s244 + $0x3d8] sm:$0xff]
      %v411 = vld [vmem:[%s244 + $0x3e0] sm:$0xff]
      %v412 = vld [vmem:[%s244 + $0x3e8] sm:$0xff]
      %v413 = vld [vmem:[%s244 + $0x3f0] sm:$0xff]
      %v414 = vld [vmem:[%s244 + $0x3f8] sm:$0xff]
      %v415 = vld [vmem:[%s244 + $0x400] sm:$0xff]
      %v416 = vld [vmem:[%s244 + $0x408] sm:$0xff]
      %v417 = vld [vmem:[%s244 + $0x410] sm:$0xff]
      %v418 = vld [vmem:[%s244 + $0x418] sm:$0xff]
      %v419 = vld [vmem:[%s244 + $0x420] sm:$0xff]
      %v420 = vld [vmem:[%s244 + $0x428] sm:$0xff]
      %v421 = vld [vmem:[%s244 + $0x430] sm:$0xff]
      %v422 = vld [vmem:[%s244 + $0x438] sm:$0xff]
      %v423 = vld [vmem:[%s244 + $0x440] sm:$0xff]
      %v424 = vld [vmem:[%s244 + $0x448] sm:$0xff]
      %v425 = vld [vmem:[%s244 + $0x450] sm:$0xff]
      %v426 = vld [vmem:[%s244 + $0x458] sm:$0xff]
      %v427 = vld [vmem:[%s244 + $0x460] sm:$0xff]
      %v428 = vld [vmem:[%s244 + $0x468] sm:$0xff]
      %v429 = vld [vmem:[%s244 + $0x470] sm:$0xff]
      %v430 = vld [vmem:[%s244 + $0x478] sm:$0xff]
      %v431 = vld [vmem:[%s244 + $0x480] sm:$0xff]
      %v432 = vld [vmem:[%s244 + $0x488] sm:$0xff]
      %v433 = vld [vmem:[%s244 + $0x490] sm:$0xff]
      %v434 = vld [vmem:[%s244 + $0x498] sm:$0xff]
      %v435 = vld [vmem:[%s244 + $0x4a0] sm:$0xff]
      %v436 = vld [vmem:[%s244 + $0x4a8] sm:$0xff]
      %v437 = vld [vmem:[%s244 + $0x4b0] sm:$0xff]
      %v438 = vld [vmem:[%s244 + $0x4b8] sm:$0xff]
      %v439 = vld [vmem:[%s244 + $0x4c0] sm:$0xff]
      %v440 = vld [vmem:[%s244 + $0x4c8] sm:$0xff]
      %v441 = vld [vmem:[%s244 + $0x4d0] sm:$0xff]
      %v442 = vld [vmem:[%s244 + $0x4d8] sm:$0xff]
      %v443 = vld [vmem:[%s244 + $0x4e0] sm:$0xff]
      %v444 = vld [vmem:[%s244 + $0x4e8] sm:$0xff]
      %v445 = vld [vmem:[%s244 + $0x4f0] sm:$0xff]
      %v446 = vld [vmem:[%s244 + $0x4f8] sm:$0xff]
      %v447 = vld [vmem:[%s244 + $0x500] sm:$0xff]
      %v448 = vld [vmem:[%s244 + $0x508] sm:$0xff]
      %v449 = vld [vmem:[%s244 + $0x510] sm:$0xff]
      %v450 = vld [vmem:[%s244 + $0x518] sm:$0xff]
      %v451 = vld [vmem:[%s244 + $0x520] sm:$0xff]
      %v452 = vld [vmem:[%s244 + $0x528] sm:$0xff]
      %v453 = vld [vmem:[%s244 + $0x530] sm:$0xff]
      %v454 = vld [vmem:[%s244 + $0x538] sm:$0xff]
      %v455 = vld [vmem:[%s244 + $0x540] sm:$0xff]
      %v456 = vld [vmem:[%s244 + $0x548] sm:$0xff]
      %v457 = vld [vmem:[%s244 + $0x550] sm:$0xff]
      %v458 = vld [vmem:[%s244 + $0x558] sm:$0xff]
      %v459 = vld [vmem:[%s244 + $0x560] sm:$0xff]
      %v460 = vld [vmem:[%s244 + $0x568] sm:$0xff]
      %v461 = vld [vmem:[%s244 + $0x570] sm:$0xff]
      %v462 = vld [vmem:[%s244 + $0x578] sm:$0xff]
      %v463 = vld [vmem:[%s244 + $0x580] sm:$0xff]
      %v464 = vld [vmem:[%s244 + $0x588] sm:$0xff]
      %v465 = vld [vmem:[%s244 + $0x590] sm:$0xff]
      %v466 = vld [vmem:[%s244 + $0x598] sm:$0xff]
      %v467 = vld [vmem:[%s244 + $0x5a0] sm:$0xff]
      %v468 = vld [vmem:[%s244 + $0x5a8] sm:$0xff]
      %v469 = vld [vmem:[%s244 + $0x5b0] sm:$0xff]
      %v470 = vld [vmem:[%s244 + $0x5b8] sm:$0xff]
      %v471 = vld [vmem:[%s244 + $0x5c0] sm:$0xff]
      %v472 = vld [vmem:[%s244 + $0x5c8] sm:$0xff]
      %v473 = vld [vmem:[%s244 + $0x5d0] sm:$0xff]
      %v474 = vld [vmem:[%s244 + $0x5d8] sm:$0xff]
      %v475 = vld [vmem:[%s244 + $0x5e0] sm:$0xff]
      %v476 = vld [vmem:[%s244 + $0x5e8] sm:$0xff]
      %v477 = vld [vmem:[%s244 + $0x5f0] sm:$0xff]
      %v478 = vld [vmem:[%s244 + $0x5f8] sm:$0xff]
      %v479 = vld [vmem:[%s244 + $0x600] sm:$0xff]
      %v480 = vld [vmem:[%s244 + $0x608] sm:$0xff]
      %v481 = vld [vmem:[%s244 + $0x610] sm:$0xff]
      %v482 = vld [vmem:[%s244 + $0x618] sm:$0xff]
      %v483 = vld [vmem:[%s244 + $0x620] sm:$0xff]
      %v484 = vld [vmem:[%s244 + $0x628] sm:$0xff]
      %v485 = vld [vmem:[%s244 + $0x630] sm:$0xff]
      %v486 = vld [vmem:[%s244 + $0x638] sm:$0xff]
      %v487 = vld [vmem:[%s244 + $0x640] sm:$0xff]
      %v488 = vld [vmem:[%s244 + $0x648] sm:$0xff]
      %v489 = vld [vmem:[%s244 + $0x650] sm:$0xff]
      %v490 = vld [vmem:[%s244 + $0x658] sm:$0xff]
      %v491 = vld [vmem:[%s244 + $0x660] sm:$0xff]
      %v492 = vld [vmem:[%s244 + $0x668] sm:$0xff]
      %v493 = vld [vmem:[%s244 + $0x670] sm:$0xff]
      %v494 = vld [vmem:[%s244 + $0x678] sm:$0xff]
      %v495 = vld [vmem:[%s244 + $0x680] sm:$0xff]
      %v496 = vld [vmem:[%s244 + $0x688] sm:$0xff]
      %v497 = vld [vmem:[%s244 + $0x690] sm:$0xff]
      %v498 = vld [vmem:[%s244 + $0x698] sm:$0xff]
      %v499 = vld [vmem:[%s244 + $0x6a0] sm:$0xff]
      %v500 = vld [vmem:[%s244 + $0x6a8] sm:$0xff]
      %v501 = vld [vmem:[%s244 + $0x6b0] sm:$0xff]
      %v502 = vld [vmem:[%s244 + $0x6b8] sm:$0xff]
      %v503 = vld [vmem:[%s244 + $0x6c0] sm:$0xff]
      %v504 = vld [vmem:[%s244 + $0x6c8] sm:$0xff]
      %v505 = vld [vmem:[%s244 + $0x6d0] sm:$0xff]
      %v506 = vld [vmem:[%s244 + $0x6d8] sm:$0xff]
      %v507 = vld [vmem:[%s244 + $0x6e0] sm:$0xff]
      %v508 = vld [vmem:[%s244 + $0x6e8] sm:$0xff]
      %v509 = vld [vmem:[%s244 + $0x6f0] sm:$0xff]
      %v510 = vld [vmem:[%s244 + $0x6f8] sm:$0xff]
      %v511 = vld [vmem:[%s244 + $0x700] sm:$0xff]
      %v512 = vld [vmem:[%s244 + $0x708] sm:$0xff]
      %v513 = vld [vmem:[%s244 + $0x710] sm:$0xff]
      %v514 = vld [vmem:[%s244 + $0x718] sm:$0xff]
      %v515 = vld [vmem:[%s244 + $0x720] sm:$0xff]
      %v516 = vld [vmem:[%s244 + $0x728] sm:$0xff]
      %v517 = vld [vmem:[%s244 + $0x730] sm:$0xff]
      %v518 = vld [vmem:[%s244 + $0x738] sm:$0xff]
      %v519 = vld [vmem:[%s244 + $0x740] sm:$0xff]
      %v520 = vld [vmem:[%s244 + $0x748] sm:$0xff]
      %v521 = vld [vmem:[%s244 + $0x750] sm:$0xff]
      %v522 = vld [vmem:[%s244 + $0x758] sm:$0xff]
      %v523 = vld [vmem:[%s244 + $0x760] sm:$0xff]
      %v524 = vld [vmem:[%s244 + $0x768] sm:$0xff]
      %v525 = vld [vmem:[%s244 + $0x770] sm:$0xff]
      %v526 = vld [vmem:[%s244 + $0x778] sm:$0xff]
      %v527 = vld [vmem:[%s244 + $0x780] sm:$0xff]
      %v528 = vld [vmem:[%s244 + $0x788] sm:$0xff]
      %v529 = vld [vmem:[%s244 + $0x790] sm:$0xff]
      %v530 = vld [vmem:[%s244 + $0x798] sm:$0xff]
      %v531 = vld [vmem:[%s244 + $0x7a0] sm:$0xff]
      %v532 = vld [vmem:[%s244 + $0x7a8] sm:$0xff]
      %v533 = vld [vmem:[%s244 + $0x7b0] sm:$0xff]
      %v534 = vld [vmem:[%s244 + $0x7b8] sm:$0xff]
      %v535 = vld [vmem:[%s244 + $0x7c0] sm:$0xff]
      %v536 = vld [vmem:[%s244 + $0x7c8] sm:$0xff]
      %v537 = vld [vmem:[%s244 + $0x7d0] sm:$0xff]
      %v538 = vld [vmem:[%s244 + $0x7d8] sm:$0xff]
      %v539 = vld [vmem:[%s244 + $0x7e0] sm:$0xff]
      %v540 = vld [vmem:[%s244 + $0x7e8] sm:$0xff]
      %v541 = vld [vmem:[%s244 + $0x7f0] sm:$0xff]
      %v542 = vld [vmem:[%s244 + $0x7f8] sm:$0xff]
      %v543 = vld [vmem:[%s249] sm:$0x3]
      %v545 = vlaneseq
      %v546 = vshrl.u32 %v545, 7
      %v547 = vsub.s32 0, %v546
      %v548 = vrot.slane %v543, %v547
      %v549 = vlaneseq
      %v550 = vshrl.u32 %v549, 7
      %v551 = vsub.s32 1, %v550
      %v552 = vrot.slane %v543, %v551
      %v571 = vunpack.c.l.b16 %v271
      %v572 = vunpack.c.h.b16 %v271
      %v573 = vunpack.c.l.b16 %v272
      %v574 = vunpack.c.h.b16 %v272
      %v575 = vunpack.c.l.b16 %v273
      %v576 = vunpack.c.h.b16 %v273
      %v577 = vunpack.c.l.b16 %v274
      %v578 = vunpack.c.h.b16 %v274
      %v579 = vunpack.c.l.b16 %v275
      %v580 = vunpack.c.h.b16 %v275
      %v581 = vunpack.c.l.b16 %v276
      %v582 = vunpack.c.h.b16 %v276
      %v583 = vunpack.c.l.b16 %v277
      %v584 = vunpack.c.h.b16 %v277
      %v585 = vunpack.c.l.b16 %v278
      %v586 = vunpack.c.h.b16 %v278
      %v587 = vunpack.c.l.b16 %v279
      %v588 = vunpack.c.h.b16 %v279
      %v589 = vunpack.c.l.b16 %v280
      %v590 = vunpack.c.h.b16 %v280
      %v591 = vunpack.c.l.b16 %v281
      %v592 = vunpack.c.h.b16 %v281
      %v593 = vunpack.c.l.b16 %v282
      %v594 = vunpack.c.h.b16 %v282
      %v595 = vunpack.c.l.b16 %v283
      %v596 = vunpack.c.h.b16 %v283
      %v597 = vunpack.c.l.b16 %v284
      %v598 = vunpack.c.h.b16 %v284
      %v599 = vunpack.c.l.b16 %v285
      %v600 = vunpack.c.h.b16 %v285
      %v601 = vunpack.c.l.b16 %v286
      %v602 = vunpack.c.h.b16 %v286
      %v603 = vpack.c.b16 %v587, %v571
      %v604 = vpack.c.b16 %v588, %v572
      %v605 = vpack.c.b16 %v589, %v573
      %v606 = vpack.c.b16 %v590, %v574
      %v607 = vpack.c.b16 %v591, %v575
      %v608 = vpack.c.b16 %v592, %v576
      %v609 = vpack.c.b16 %v593, %v577
      %v610 = vpack.c.b16 %v594, %v578
      %v611 = vpack.c.b16 %v595, %v579
      %v612 = vpack.c.b16 %v596, %v580
      %v613 = vpack.c.b16 %v597, %v581
      %v614 = vpack.c.b16 %v598, %v582
      %v615 = vpack.c.b16 %v599, %v583
      %v616 = vpack.c.b16 %v600, %v584
      %v617 = vpack.c.b16 %v601, %v585
      %v618 = vpack.c.b16 %v602, %v586
      %v891 = vunpack.c.l.b16 %v287
      %v892 = vunpack.c.h.b16 %v287
      %v893 = vunpack.c.l.b16 %v288
      %v894 = vunpack.c.h.b16 %v288
      %v895 = vunpack.c.l.b16 %v289
      %v896 = vunpack.c.h.b16 %v289
      %v897 = vunpack.c.l.b16 %v290
      %v898 = vunpack.c.h.b16 %v290
      %v899 = vunpack.c.l.b16 %v291
      %v900 = vunpack.c.h.b16 %v291
      %v901 = vunpack.c.l.b16 %v292
      %v902 = vunpack.c.h.b16 %v292
      %v903 = vunpack.c.l.b16 %v293
      %v904 = vunpack.c.h.b16 %v293
      %v905 = vunpack.c.l.b16 %v294
      %v906 = vunpack.c.h.b16 %v294
      %v907 = vunpack.c.l.b16 %v295
      %v908 = vunpack.c.h.b16 %v295
      %v909 = vunpack.c.l.b16 %v296
      %v910 = vunpack.c.h.b16 %v296
      %v911 = vunpack.c.l.b16 %v297
      %v912 = vunpack.c.h.b16 %v297
      %v913 = vunpack.c.l.b16 %v298
      %v914 = vunpack.c.h.b16 %v298
      %v915 = vunpack.c.l.b16 %v299
      %v916 = vunpack.c.h.b16 %v299
      %v917 = vunpack.c.l.b16 %v300
      %v918 = vunpack.c.h.b16 %v300
      %v919 = vunpack.c.l.b16 %v301
      %v920 = vunpack.c.h.b16 %v301
      %v921 = vunpack.c.l.b16 %v302
      %v922 = vunpack.c.h.b16 %v302
      %v923 = vunpack.c.l.b16 %v303
      %v924 = vunpack.c.h.b16 %v303
      %v925 = vunpack.c.l.b16 %v304
      %v926 = vunpack.c.h.b16 %v304
      %v927 = vunpack.c.l.b16 %v305
      %v928 = vunpack.c.h.b16 %v305
      %v929 = vunpack.c.l.b16 %v306
      %v930 = vunpack.c.h.b16 %v306
      %v931 = vunpack.c.l.b16 %v307
      %v932 = vunpack.c.h.b16 %v307
      %v933 = vunpack.c.l.b16 %v308
      %v934 = vunpack.c.h.b16 %v308
      %v935 = vunpack.c.l.b16 %v309
      %v936 = vunpack.c.h.b16 %v309
      %v937 = vunpack.c.l.b16 %v310
      %v938 = vunpack.c.h.b16 %v310
      %v939 = vunpack.c.l.b16 %v311
      %v940 = vunpack.c.h.b16 %v311
      %v941 = vunpack.c.l.b16 %v312
      %v942 = vunpack.c.h.b16 %v312
      %v943 = vunpack.c.l.b16 %v313
      %v944 = vunpack.c.h.b16 %v313
      %v945 = vunpack.c.l.b16 %v314
      %v946 = vunpack.c.h.b16 %v314
      %v947 = vunpack.c.l.b16 %v315
      %v948 = vunpack.c.h.b16 %v315
      %v949 = vunpack.c.l.b16 %v316
      %v950 = vunpack.c.h.b16 %v316
      %v951 = vunpack.c.l.b16 %v317
      %v952 = vunpack.c.h.b16 %v317
      %v953 = vunpack.c.l.b16 %v318
      %v954 = vunpack.c.h.b16 %v318
      %v955 = vunpack.c.l.b16 %v319
      %v956 = vunpack.c.h.b16 %v319
      %v957 = vunpack.c.l.b16 %v320
      %v958 = vunpack.c.h.b16 %v320
      %v959 = vunpack.c.l.b16 %v321
      %v960 = vunpack.c.h.b16 %v321
      %v961 = vunpack.c.l.b16 %v322
      %v962 = vunpack.c.h.b16 %v322
      %v963 = vunpack.c.l.b16 %v323
      %v964 = vunpack.c.h.b16 %v323
      %v965 = vunpack.c.l.b16 %v324
      %v966 = vunpack.c.h.b16 %v324
      %v967 = vunpack.c.l.b16 %v325
      %v968 = vunpack.c.h.b16 %v325
      %v969 = vunpack.c.l.b16 %v326
      %v970 = vunpack.c.h.b16 %v326
      %v971 = vunpack.c.l.b16 %v327
      %v972 = vunpack.c.h.b16 %v327
      %v973 = vunpack.c.l.b16 %v328
      %v974 = vunpack.c.h.b16 %v328
      %v975 = vunpack.c.l.b16 %v329
      %v976 = vunpack.c.h.b16 %v329
      %v977 = vunpack.c.l.b16 %v330
      %v978 = vunpack.c.h.b16 %v330
      %v979 = vunpack.c.l.b16 %v331
      %v980 = vunpack.c.h.b16 %v331
      %v981 = vunpack.c.l.b16 %v332
      %v982 = vunpack.c.h.b16 %v332
      %v983 = vunpack.c.l.b16 %v333
      %v984 = vunpack.c.h.b16 %v333
      %v985 = vunpack.c.l.b16 %v334
      %v986 = vunpack.c.h.b16 %v334
      %v987 = vunpack.c.l.b16 %v335
      %v988 = vunpack.c.h.b16 %v335
      %v989 = vunpack.c.l.b16 %v336
      %v990 = vunpack.c.h.b16 %v336
      %v991 = vunpack.c.l.b16 %v337
      %v992 = vunpack.c.h.b16 %v337
      %v993 = vunpack.c.l.b16 %v338
      %v994 = vunpack.c.h.b16 %v338
      %v995 = vunpack.c.l.b16 %v339
      %v996 = vunpack.c.h.b16 %v339
      %v997 = vunpack.c.l.b16 %v340
      %v998 = vunpack.c.h.b16 %v340
      %v999 = vunpack.c.l.b16 %v341
      %v1000 = vunpack.c.h.b16 %v341
      %v1001 = vunpack.c.l.b16 %v342
      %v1002 = vunpack.c.h.b16 %v342
      %v1003 = vunpack.c.l.b16 %v343
      %v1004 = vunpack.c.h.b16 %v343
      %v1005 = vunpack.c.l.b16 %v344
      %v1006 = vunpack.c.h.b16 %v344
      %v1007 = vunpack.c.l.b16 %v345
      %v1008 = vunpack.c.h.b16 %v345
      %v1009 = vunpack.c.l.b16 %v346
      %v1010 = vunpack.c.h.b16 %v346
      %v1011 = vunpack.c.l.b16 %v347
      %v1012 = vunpack.c.h.b16 %v347
      %v1013 = vunpack.c.l.b16 %v348
      %v1014 = vunpack.c.h.b16 %v348
      %v1015 = vunpack.c.l.b16 %v349
      %v1016 = vunpack.c.h.b16 %v349
      %v1017 = vunpack.c.l.b16 %v350
      %v1018 = vunpack.c.h.b16 %v350
      %v1019 = vunpack.c.l.b16 %v351
      %v1020 = vunpack.c.h.b16 %v351
      %v1021 = vunpack.c.l.b16 %v352
      %v1022 = vunpack.c.h.b16 %v352
      %v1023 = vunpack.c.l.b16 %v353
      %v1024 = vunpack.c.h.b16 %v353
      %v1025 = vunpack.c.l.b16 %v354
      %v1026 = vunpack.c.h.b16 %v354
      %v1027 = vunpack.c.l.b16 %v355
      %v1028 = vunpack.c.h.b16 %v355
      %v1029 = vunpack.c.l.b16 %v356
      %v1030 = vunpack.c.h.b16 %v356
      %v1031 = vunpack.c.l.b16 %v357
      %v1032 = vunpack.c.h.b16 %v357
      %v1033 = vunpack.c.l.b16 %v358
      %v1034 = vunpack.c.h.b16 %v358
      %v1035 = vunpack.c.l.b16 %v359
      %v1036 = vunpack.c.h.b16 %v359
      %v1037 = vunpack.c.l.b16 %v360
      %v1038 = vunpack.c.h.b16 %v360
      %v1039 = vunpack.c.l.b16 %v361
      %v1040 = vunpack.c.h.b16 %v361
      %v1041 = vunpack.c.l.b16 %v362
      %v1042 = vunpack.c.h.b16 %v362
      %v1043 = vunpack.c.l.b16 %v363
      %v1044 = vunpack.c.h.b16 %v363
      %v1045 = vunpack.c.l.b16 %v364
      %v1046 = vunpack.c.h.b16 %v364
      %v1047 = vunpack.c.l.b16 %v365
      %v1048 = vunpack.c.h.b16 %v365
      %v1049 = vunpack.c.l.b16 %v366
      %v1050 = vunpack.c.h.b16 %v366
      %v1051 = vunpack.c.l.b16 %v367
      %v1052 = vunpack.c.h.b16 %v367
      %v1053 = vunpack.c.l.b16 %v368
      %v1054 = vunpack.c.h.b16 %v368
      %v1055 = vunpack.c.l.b16 %v369
      %v1056 = vunpack.c.h.b16 %v369
      %v1057 = vunpack.c.l.b16 %v370
      %v1058 = vunpack.c.h.b16 %v370
      %v1059 = vunpack.c.l.b16 %v371
      %v1060 = vunpack.c.h.b16 %v371
      %v1061 = vunpack.c.l.b16 %v372
      %v1062 = vunpack.c.h.b16 %v372
      %v1063 = vunpack.c.l.b16 %v373
      %v1064 = vunpack.c.h.b16 %v373
      %v1065 = vunpack.c.l.b16 %v374
      %v1066 = vunpack.c.h.b16 %v374
      %v1067 = vunpack.c.l.b16 %v375
      %v1068 = vunpack.c.h.b16 %v375
      %v1069 = vunpack.c.l.b16 %v376
      %v1070 = vunpack.c.h.b16 %v376
      %v1071 = vunpack.c.l.b16 %v377
      %v1072 = vunpack.c.h.b16 %v377
      %v1073 = vunpack.c.l.b16 %v378
      %v1074 = vunpack.c.h.b16 %v378
      %v1075 = vunpack.c.l.b16 %v379
      %v1076 = vunpack.c.h.b16 %v379
      %v1077 = vunpack.c.l.b16 %v380
      %v1078 = vunpack.c.h.b16 %v380
      %v1079 = vunpack.c.l.b16 %v381
      %v1080 = vunpack.c.h.b16 %v381
      %v1081 = vunpack.c.l.b16 %v382
      %v1082 = vunpack.c.h.b16 %v382
      %v1083 = vunpack.c.l.b16 %v383
      %v1084 = vunpack.c.h.b16 %v383
      %v1085 = vunpack.c.l.b16 %v384
      %v1086 = vunpack.c.h.b16 %v384
      %v1087 = vunpack.c.l.b16 %v385
      %v1088 = vunpack.c.h.b16 %v385
      %v1089 = vunpack.c.l.b16 %v386
      %v1090 = vunpack.c.h.b16 %v386
      %v1091 = vunpack.c.l.b16 %v387
      %v1092 = vunpack.c.h.b16 %v387
      %v1093 = vunpack.c.l.b16 %v388
      %v1094 = vunpack.c.h.b16 %v388
      %v1095 = vunpack.c.l.b16 %v389
      %v1096 = vunpack.c.h.b16 %v389
      %v1097 = vunpack.c.l.b16 %v390
      %v1098 = vunpack.c.h.b16 %v390
      %v1099 = vunpack.c.l.b16 %v391
      %v1100 = vunpack.c.h.b16 %v391
      %v1101 = vunpack.c.l.b16 %v392
      %v1102 = vunpack.c.h.b16 %v392
      %v1103 = vunpack.c.l.b16 %v393
      %v1104 = vunpack.c.h.b16 %v393
      %v1105 = vunpack.c.l.b16 %v394
      %v1106 = vunpack.c.h.b16 %v394
      %v1107 = vunpack.c.l.b16 %v395
      %v1108 = vunpack.c.h.b16 %v395
      %v1109 = vunpack.c.l.b16 %v396
      %v1110 = vunpack.c.h.b16 %v396
      %v1111 = vunpack.c.l.b16 %v397
      %v1112 = vunpack.c.h.b16 %v397
      %v1113 = vunpack.c.l.b16 %v398
      %v1114 = vunpack.c.h.b16 %v398
      %v1115 = vunpack.c.l.b16 %v399
      %v1116 = vunpack.c.h.b16 %v399
      %v1117 = vunpack.c.l.b16 %v400
      %v1118 = vunpack.c.h.b16 %v400
      %v1119 = vunpack.c.l.b16 %v401
      %v1120 = vunpack.c.h.b16 %v401
      %v1121 = vunpack.c.l.b16 %v402
      %v1122 = vunpack.c.h.b16 %v402
      %v1123 = vunpack.c.l.b16 %v403
      %v1124 = vunpack.c.h.b16 %v403
      %v1125 = vunpack.c.l.b16 %v404
      %v1126 = vunpack.c.h.b16 %v404
      %v1127 = vunpack.c.l.b16 %v405
      %v1128 = vunpack.c.h.b16 %v405
      %v1129 = vunpack.c.l.b16 %v406
      %v1130 = vunpack.c.h.b16 %v406
      %v1131 = vunpack.c.l.b16 %v407
      %v1132 = vunpack.c.h.b16 %v407
      %v1133 = vunpack.c.l.b16 %v408
      %v1134 = vunpack.c.h.b16 %v408
      %v1135 = vunpack.c.l.b16 %v409
      %v1136 = vunpack.c.h.b16 %v409
      %v1137 = vunpack.c.l.b16 %v410
      %v1138 = vunpack.c.h.b16 %v410
      %v1139 = vunpack.c.l.b16 %v411
      %v1140 = vunpack.c.h.b16 %v411
      %v1141 = vunpack.c.l.b16 %v412
      %v1142 = vunpack.c.h.b16 %v412
      %v1143 = vunpack.c.l.b16 %v413
      %v1144 = vunpack.c.h.b16 %v413
      %v1145 = vunpack.c.l.b16 %v414
      %v1146 = vunpack.c.h.b16 %v414
      %v1147 = vunpack.c.l.b16 %v415
      %v1148 = vunpack.c.h.b16 %v415
      %v1149 = vunpack.c.l.b16 %v416
      %v1150 = vunpack.c.h.b16 %v416
      %v1151 = vunpack.c.l.b16 %v417
      %v1152 = vunpack.c.h.b16 %v417
      %v1153 = vunpack.c.l.b16 %v418
      %v1154 = vunpack.c.h.b16 %v418
      %v1155 = vunpack.c.l.b16 %v419
      %v1156 = vunpack.c.h.b16 %v419
      %v1157 = vunpack.c.l.b16 %v420
      %v1158 = vunpack.c.h.b16 %v420
      %v1159 = vunpack.c.l.b16 %v421
      %v1160 = vunpack.c.h.b16 %v421
      %v1161 = vunpack.c.l.b16 %v422
      %v1162 = vunpack.c.h.b16 %v422
      %v1163 = vunpack.c.l.b16 %v423
      %v1164 = vunpack.c.h.b16 %v423
      %v1165 = vunpack.c.l.b16 %v424
      %v1166 = vunpack.c.h.b16 %v424
      %v1167 = vunpack.c.l.b16 %v425
      %v1168 = vunpack.c.h.b16 %v425
      %v1169 = vunpack.c.l.b16 %v426
      %v1170 = vunpack.c.h.b16 %v426
      %v1171 = vunpack.c.l.b16 %v427
      %v1172 = vunpack.c.h.b16 %v427
      %v1173 = vunpack.c.l.b16 %v428
      %v1174 = vunpack.c.h.b16 %v428
      %v1175 = vunpack.c.l.b16 %v429
      %v1176 = vunpack.c.h.b16 %v429
      %v1177 = vunpack.c.l.b16 %v430
      %v1178 = vunpack.c.h.b16 %v430
      %v1179 = vunpack.c.l.b16 %v431
      %v1180 = vunpack.c.h.b16 %v431
      %v1181 = vunpack.c.l.b16 %v432
      %v1182 = vunpack.c.h.b16 %v432
      %v1183 = vunpack.c.l.b16 %v433
      %v1184 = vunpack.c.h.b16 %v433
      %v1185 = vunpack.c.l.b16 %v434
      %v1186 = vunpack.c.h.b16 %v434
      %v1187 = vunpack.c.l.b16 %v435
      %v1188 = vunpack.c.h.b16 %v435
      %v1189 = vunpack.c.l.b16 %v436
      %v1190 = vunpack.c.h.b16 %v436
      %v1191 = vunpack.c.l.b16 %v437
      %v1192 = vunpack.c.h.b16 %v437
      %v1193 = vunpack.c.l.b16 %v438
      %v1194 = vunpack.c.h.b16 %v438
      %v1195 = vunpack.c.l.b16 %v439
      %v1196 = vunpack.c.h.b16 %v439
      %v1197 = vunpack.c.l.b16 %v440
      %v1198 = vunpack.c.h.b16 %v440
      %v1199 = vunpack.c.l.b16 %v441
      %v1200 = vunpack.c.h.b16 %v441
      %v1201 = vunpack.c.l.b16 %v442
      %v1202 = vunpack.c.h.b16 %v442
      %v1203 = vunpack.c.l.b16 %v443
      %v1204 = vunpack.c.h.b16 %v443
      %v1205 = vunpack.c.l.b16 %v444
      %v1206 = vunpack.c.h.b16 %v444
      %v1207 = vunpack.c.l.b16 %v445
      %v1208 = vunpack.c.h.b16 %v445
      %v1209 = vunpack.c.l.b16 %v446
      %v1210 = vunpack.c.h.b16 %v446
      %v1211 = vunpack.c.l.b16 %v447
      %v1212 = vunpack.c.h.b16 %v447
      %v1213 = vunpack.c.l.b16 %v448
      %v1214 = vunpack.c.h.b16 %v448
      %v1215 = vunpack.c.l.b16 %v449
      %v1216 = vunpack.c.h.b16 %v449
      %v1217 = vunpack.c.l.b16 %v450
      %v1218 = vunpack.c.h.b16 %v450
      %v1219 = vunpack.c.l.b16 %v451
      %v1220 = vunpack.c.h.b16 %v451
      %v1221 = vunpack.c.l.b16 %v452
      %v1222 = vunpack.c.h.b16 %v452
      %v1223 = vunpack.c.l.b16 %v453
      %v1224 = vunpack.c.h.b16 %v453
      %v1225 = vunpack.c.l.b16 %v454
      %v1226 = vunpack.c.h.b16 %v454
      %v1227 = vunpack.c.l.b16 %v455
      %v1228 = vunpack.c.h.b16 %v455
      %v1229 = vunpack.c.l.b16 %v456
      %v1230 = vunpack.c.h.b16 %v456
      %v1231 = vunpack.c.l.b16 %v457
      %v1232 = vunpack.c.h.b16 %v457
      %v1233 = vunpack.c.l.b16 %v458
      %v1234 = vunpack.c.h.b16 %v458
      %v1235 = vunpack.c.l.b16 %v459
      %v1236 = vunpack.c.h.b16 %v459
      %v1237 = vunpack.c.l.b16 %v460
      %v1238 = vunpack.c.h.b16 %v460
      %v1239 = vunpack.c.l.b16 %v461
      %v1240 = vunpack.c.h.b16 %v461
      %v1241 = vunpack.c.l.b16 %v462
      %v1242 = vunpack.c.h.b16 %v462
      %v1243 = vunpack.c.l.b16 %v463
      %v1244 = vunpack.c.h.b16 %v463
      %v1245 = vunpack.c.l.b16 %v464
      %v1246 = vunpack.c.h.b16 %v464
      %v1247 = vunpack.c.l.b16 %v465
      %v1248 = vunpack.c.h.b16 %v465
      %v1249 = vunpack.c.l.b16 %v466
      %v1250 = vunpack.c.h.b16 %v466
      %v1251 = vunpack.c.l.b16 %v467
      %v1252 = vunpack.c.h.b16 %v467
      %v1253 = vunpack.c.l.b16 %v468
      %v1254 = vunpack.c.h.b16 %v468
      %v1255 = vunpack.c.l.b16 %v469
      %v1256 = vunpack.c.h.b16 %v469
      %v1257 = vunpack.c.l.b16 %v470
      %v1258 = vunpack.c.h.b16 %v470
      %v1259 = vunpack.c.l.b16 %v471
      %v1260 = vunpack.c.h.b16 %v471
      %v1261 = vunpack.c.l.b16 %v472
      %v1262 = vunpack.c.h.b16 %v472
      %v1263 = vunpack.c.l.b16 %v473
      %v1264 = vunpack.c.h.b16 %v473
      %v1265 = vunpack.c.l.b16 %v474
      %v1266 = vunpack.c.h.b16 %v474
      %v1267 = vunpack.c.l.b16 %v475
      %v1268 = vunpack.c.h.b16 %v475
      %v1269 = vunpack.c.l.b16 %v476
      %v1270 = vunpack.c.h.b16 %v476
      %v1271 = vunpack.c.l.b16 %v477
      %v1272 = vunpack.c.h.b16 %v477
      %v1273 = vunpack.c.l.b16 %v478
      %v1274 = vunpack.c.h.b16 %v478
      %v1275 = vunpack.c.l.b16 %v479
      %v1276 = vunpack.c.h.b16 %v479
      %v1277 = vunpack.c.l.b16 %v480
      %v1278 = vunpack.c.h.b16 %v480
      %v1279 = vunpack.c.l.b16 %v481
      %v1280 = vunpack.c.h.b16 %v481
      %v1281 = vunpack.c.l.b16 %v482
      %v1282 = vunpack.c.h.b16 %v482
      %v1283 = vunpack.c.l.b16 %v483
      %v1284 = vunpack.c.h.b16 %v483
      %v1285 = vunpack.c.l.b16 %v484
      %v1286 = vunpack.c.h.b16 %v484
      %v1287 = vunpack.c.l.b16 %v485
      %v1288 = vunpack.c.h.b16 %v485
      %v1289 = vunpack.c.l.b16 %v486
      %v1290 = vunpack.c.h.b16 %v486
      %v1291 = vunpack.c.l.b16 %v487
      %v1292 = vunpack.c.h.b16 %v487
      %v1293 = vunpack.c.l.b16 %v488
      %v1294 = vunpack.c.h.b16 %v488
      %v1295 = vunpack.c.l.b16 %v489
      %v1296 = vunpack.c.h.b16 %v489
      %v1297 = vunpack.c.l.b16 %v490
      %v1298 = vunpack.c.h.b16 %v490
      %v1299 = vunpack.c.l.b16 %v491
      %v1300 = vunpack.c.h.b16 %v491
      %v1301 = vunpack.c.l.b16 %v492
      %v1302 = vunpack.c.h.b16 %v492
      %v1303 = vunpack.c.l.b16 %v493
      %v1304 = vunpack.c.h.b16 %v493
      %v1305 = vunpack.c.l.b16 %v494
      %v1306 = vunpack.c.h.b16 %v494
      %v1307 = vunpack.c.l.b16 %v495
      %v1308 = vunpack.c.h.b16 %v495
      %v1309 = vunpack.c.l.b16 %v496
      %v1310 = vunpack.c.h.b16 %v496
      %v1311 = vunpack.c.l.b16 %v497
      %v1312 = vunpack.c.h.b16 %v497
      %v1313 = vunpack.c.l.b16 %v498
      %v1314 = vunpack.c.h.b16 %v498
      %v1315 = vunpack.c.l.b16 %v499
      %v1316 = vunpack.c.h.b16 %v499
      %v1317 = vunpack.c.l.b16 %v500
      %v1318 = vunpack.c.h.b16 %v500
      %v1319 = vunpack.c.l.b16 %v501
      %v1320 = vunpack.c.h.b16 %v501
      %v1321 = vunpack.c.l.b16 %v502
      %v1322 = vunpack.c.h.b16 %v502
      %v1323 = vunpack.c.l.b16 %v503
      %v1324 = vunpack.c.h.b16 %v503
      %v1325 = vunpack.c.l.b16 %v504
      %v1326 = vunpack.c.h.b16 %v504
      %v1327 = vunpack.c.l.b16 %v505
      %v1328 = vunpack.c.h.b16 %v505
      %v1329 = vunpack.c.l.b16 %v506
      %v1330 = vunpack.c.h.b16 %v506
      %v1331 = vunpack.c.l.b16 %v507
      %v1332 = vunpack.c.h.b16 %v507
      %v1333 = vunpack.c.l.b16 %v508
      %v1334 = vunpack.c.h.b16 %v508
      %v1335 = vunpack.c.l.b16 %v509
      %v1336 = vunpack.c.h.b16 %v509
      %v1337 = vunpack.c.l.b16 %v510
      %v1338 = vunpack.c.h.b16 %v510
      %v1339 = vunpack.c.l.b16 %v511
      %v1340 = vunpack.c.h.b16 %v511
      %v1341 = vunpack.c.l.b16 %v512
      %v1342 = vunpack.c.h.b16 %v512
      %v1343 = vunpack.c.l.b16 %v513
      %v1344 = vunpack.c.h.b16 %v513
      %v1345 = vunpack.c.l.b16 %v514
      %v1346 = vunpack.c.h.b16 %v514
      %v1347 = vunpack.c.l.b16 %v515
      %v1348 = vunpack.c.h.b16 %v515
      %v1349 = vunpack.c.l.b16 %v516
      %v1350 = vunpack.c.h.b16 %v516
      %v1351 = vunpack.c.l.b16 %v517
      %v1352 = vunpack.c.h.b16 %v517
      %v1353 = vunpack.c.l.b16 %v518
      %v1354 = vunpack.c.h.b16 %v518
      %v1355 = vunpack.c.l.b16 %v519
      %v1356 = vunpack.c.h.b16 %v519
      %v1357 = vunpack.c.l.b16 %v520
      %v1358 = vunpack.c.h.b16 %v520
      %v1359 = vunpack.c.l.b16 %v521
      %v1360 = vunpack.c.h.b16 %v521
      %v1361 = vunpack.c.l.b16 %v522
      %v1362 = vunpack.c.h.b16 %v522
      %v1363 = vunpack.c.l.b16 %v523
      %v1364 = vunpack.c.h.b16 %v523
      %v1365 = vunpack.c.l.b16 %v524
      %v1366 = vunpack.c.h.b16 %v524
      %v1367 = vunpack.c.l.b16 %v525
      %v1368 = vunpack.c.h.b16 %v525
      %v1369 = vunpack.c.l.b16 %v526
      %v1370 = vunpack.c.h.b16 %v526
      %v1371 = vunpack.c.l.b16 %v527
      %v1372 = vunpack.c.h.b16 %v527
      %v1373 = vunpack.c.l.b16 %v528
      %v1374 = vunpack.c.h.b16 %v528
      %v1375 = vunpack.c.l.b16 %v529
      %v1376 = vunpack.c.h.b16 %v529
      %v1377 = vunpack.c.l.b16 %v530
      %v1378 = vunpack.c.h.b16 %v530
      %v1379 = vunpack.c.l.b16 %v531
      %v1380 = vunpack.c.h.b16 %v531
      %v1381 = vunpack.c.l.b16 %v532
      %v1382 = vunpack.c.h.b16 %v532
      %v1383 = vunpack.c.l.b16 %v533
      %v1384 = vunpack.c.h.b16 %v533
      %v1385 = vunpack.c.l.b16 %v534
      %v1386 = vunpack.c.h.b16 %v534
      %v1387 = vunpack.c.l.b16 %v535
      %v1388 = vunpack.c.h.b16 %v535
      %v1389 = vunpack.c.l.b16 %v536
      %v1390 = vunpack.c.h.b16 %v536
      %v1391 = vunpack.c.l.b16 %v537
      %v1392 = vunpack.c.h.b16 %v537
      %v1393 = vunpack.c.l.b16 %v538
      %v1394 = vunpack.c.h.b16 %v538
      %v1395 = vunpack.c.l.b16 %v539
      %v1396 = vunpack.c.h.b16 %v539
      %v1397 = vunpack.c.l.b16 %v540
      %v1398 = vunpack.c.h.b16 %v540
      %v1399 = vunpack.c.l.b16 %v541
      %v1400 = vunpack.c.h.b16 %v541
      %v1401 = vunpack.c.l.b16 %v542
      %v1402 = vunpack.c.h.b16 %v542
      %v1403 = vpack.c.b16 %v893, %v891
      %v1404 = vpack.c.b16 %v894, %v892
      %v1405 = vpack.c.b16 %v897, %v895
      %v1406 = vpack.c.b16 %v898, %v896
      %v1407 = vpack.c.b16 %v901, %v899
      %v1408 = vpack.c.b16 %v902, %v900
      %v1409 = vpack.c.b16 %v905, %v903
      %v1410 = vpack.c.b16 %v906, %v904
      %v1411 = vpack.c.b16 %v909, %v907
      %v1412 = vpack.c.b16 %v910, %v908
      %v1413 = vpack.c.b16 %v913, %v911
      %v1414 = vpack.c.b16 %v914, %v912
      %v1415 = vpack.c.b16 %v917, %v915
      %v1416 = vpack.c.b16 %v918, %v916
      %v1417 = vpack.c.b16 %v921, %v919
      %v1418 = vpack.c.b16 %v922, %v920
      %v1419 = vpack.c.b16 %v925, %v923
      %v1420 = vpack.c.b16 %v926, %v924
      %v1421 = vpack.c.b16 %v929, %v927
      %v1422 = vpack.c.b16 %v930, %v928
      %v1423 = vpack.c.b16 %v933, %v931
      %v1424 = vpack.c.b16 %v934, %v932
      %v1425 = vpack.c.b16 %v937, %v935
      %v1426 = vpack.c.b16 %v938, %v936
      %v1427 = vpack.c.b16 %v941, %v939
      %v1428 = vpack.c.b16 %v942, %v940
      %v1429 = vpack.c.b16 %v945, %v943
      %v1430 = vpack.c.b16 %v946, %v944
      %v1431 = vpack.c.b16 %v949, %v947
      %v1432 = vpack.c.b16 %v950, %v948
      %v1433 = vpack.c.b16 %v953, %v951
      %v1434 = vpack.c.b16 %v954, %v952
      %v1435 = vpack.c.b16 %v957, %v955
      %v1436 = vpack.c.b16 %v958, %v956
      %v1437 = vpack.c.b16 %v961, %v959
      %v1438 = vpack.c.b16 %v962, %v960
      %v1439 = vpack.c.b16 %v965, %v963
      %v1440 = vpack.c.b16 %v966, %v964
      %v1441 = vpack.c.b16 %v969, %v967
      %v1442 = vpack.c.b16 %v970, %v968
      %v1443 = vpack.c.b16 %v973, %v971
      %v1444 = vpack.c.b16 %v974, %v972
      %v1445 = vpack.c.b16 %v977, %v975
      %v1446 = vpack.c.b16 %v978, %v976
      %v1447 = vpack.c.b16 %v981, %v979
      %v1448 = vpack.c.b16 %v982, %v980
      %v1449 = vpack.c.b16 %v985, %v983
      %v1450 = vpack.c.b16 %v986, %v984
      %v1451 = vpack.c.b16 %v989, %v987
      %v1452 = vpack.c.b16 %v990, %v988
      %v1453 = vpack.c.b16 %v993, %v991
      %v1454 = vpack.c.b16 %v994, %v992
      %v1455 = vpack.c.b16 %v997, %v995
      %v1456 = vpack.c.b16 %v998, %v996
      %v1457 = vpack.c.b16 %v1001, %v999
      %v1458 = vpack.c.b16 %v1002, %v1000
      %v1459 = vpack.c.b16 %v1005, %v1003
      %v1460 = vpack.c.b16 %v1006, %v1004
      %v1461 = vpack.c.b16 %v1009, %v1007
      %v1462 = vpack.c.b16 %v1010, %v1008
      %v1463 = vpack.c.b16 %v1013, %v1011
      %v1464 = vpack.c.b16 %v1014, %v1012
      %v1465 = vpack.c.b16 %v1017, %v1015
      %v1466 = vpack.c.b16 %v1018, %v1016
      %v1467 = vpack.c.b16 %v1021, %v1019
      %v1468 = vpack.c.b16 %v1022, %v1020
      %v1469 = vpack.c.b16 %v1025, %v1023
      %v1470 = vpack.c.b16 %v1026, %v1024
      %v1471 = vpack.c.b16 %v1029, %v1027
      %v1472 = vpack.c.b16 %v1030, %v1028
      %v1473 = vpack.c.b16 %v1033, %v1031
      %v1474 = vpack.c.b16 %v1034, %v1032
      %v1475 = vpack.c.b16 %v1037, %v1035
      %v1476 = vpack.c.b16 %v1038, %v1036
      %v1477 = vpack.c.b16 %v1041, %v1039
      %v1478 = vpack.c.b16 %v1042, %v1040
      %v1479 = vpack.c.b16 %v1045, %v1043
      %v1480 = vpack.c.b16 %v1046, %v1044
      %v1481 = vpack.c.b16 %v1049, %v1047
      %v1482 = vpack.c.b16 %v1050, %v1048
      %v1483 = vpack.c.b16 %v1053, %v1051
      %v1484 = vpack.c.b16 %v1054, %v1052
      %v1485 = vpack.c.b16 %v1057, %v1055
      %v1486 = vpack.c.b16 %v1058, %v1056
      %v1487 = vpack.c.b16 %v1061, %v1059
      %v1488 = vpack.c.b16 %v1062, %v1060
      %v1489 = vpack.c.b16 %v1065, %v1063
      %v1490 = vpack.c.b16 %v1066, %v1064
      %v1491 = vpack.c.b16 %v1069, %v1067
      %v1492 = vpack.c.b16 %v1070, %v1068
      %v1493 = vpack.c.b16 %v1073, %v1071
      %v1494 = vpack.c.b16 %v1074, %v1072
      %v1495 = vpack.c.b16 %v1077, %v1075
      %v1496 = vpack.c.b16 %v1078, %v1076
      %v1497 = vpack.c.b16 %v1081, %v1079
      %v1498 = vpack.c.b16 %v1082, %v1080
      %v1499 = vpack.c.b16 %v1085, %v1083
      %v1500 = vpack.c.b16 %v1086, %v1084
      %v1501 = vpack.c.b16 %v1089, %v1087
      %v1502 = vpack.c.b16 %v1090, %v1088
      %v1503 = vpack.c.b16 %v1093, %v1091
      %v1504 = vpack.c.b16 %v1094, %v1092
      %v1505 = vpack.c.b16 %v1097, %v1095
      %v1506 = vpack.c.b16 %v1098, %v1096
      %v1507 = vpack.c.b16 %v1101, %v1099
      %v1508 = vpack.c.b16 %v1102, %v1100
      %v1509 = vpack.c.b16 %v1105, %v1103
      %v1510 = vpack.c.b16 %v1106, %v1104
      %v1511 = vpack.c.b16 %v1109, %v1107
      %v1512 = vpack.c.b16 %v1110, %v1108
      %v1513 = vpack.c.b16 %v1113, %v1111
      %v1514 = vpack.c.b16 %v1114, %v1112
      %v1515 = vpack.c.b16 %v1117, %v1115
      %v1516 = vpack.c.b16 %v1118, %v1116
      %v1517 = vpack.c.b16 %v1121, %v1119
      %v1518 = vpack.c.b16 %v1122, %v1120
      %v1519 = vpack.c.b16 %v1125, %v1123
      %v1520 = vpack.c.b16 %v1126, %v1124
      %v1521 = vpack.c.b16 %v1129, %v1127
      %v1522 = vpack.c.b16 %v1130, %v1128
      %v1523 = vpack.c.b16 %v1133, %v1131
      %v1524 = vpack.c.b16 %v1134, %v1132
      %v1525 = vpack.c.b16 %v1137, %v1135
      %v1526 = vpack.c.b16 %v1138, %v1136
      %v1527 = vpack.c.b16 %v1141, %v1139
      %v1528 = vpack.c.b16 %v1142, %v1140
      %v1529 = vpack.c.b16 %v1145, %v1143
      %v1530 = vpack.c.b16 %v1146, %v1144
      %v1531 = vpack.c.b16 %v1149, %v1147
      %v1532 = vpack.c.b16 %v1150, %v1148
      %v1533 = vpack.c.b16 %v1153, %v1151
      %v1534 = vpack.c.b16 %v1154, %v1152
      %v1535 = vpack.c.b16 %v1157, %v1155
      %v1536 = vpack.c.b16 %v1158, %v1156
      %v1537 = vpack.c.b16 %v1161, %v1159
      %v1538 = vpack.c.b16 %v1162, %v1160
      %v1539 = vpack.c.b16 %v1165, %v1163
      %v1540 = vpack.c.b16 %v1166, %v1164
      %v1541 = vpack.c.b16 %v1169, %v1167
      %v1542 = vpack.c.b16 %v1170, %v1168
      %v1543 = vpack.c.b16 %v1173, %v1171
      %v1544 = vpack.c.b16 %v1174, %v1172
      %v1545 = vpack.c.b16 %v1177, %v1175
      %v1546 = vpack.c.b16 %v1178, %v1176
      %v1547 = vpack.c.b16 %v1181, %v1179
      %v1548 = vpack.c.b16 %v1182, %v1180
      %v1549 = vpack.c.b16 %v1185, %v1183
      %v1550 = vpack.c.b16 %v1186, %v1184
      %v1551 = vpack.c.b16 %v1189, %v1187
      %v1552 = vpack.c.b16 %v1190, %v1188
      %v1553 = vpack.c.b16 %v1193, %v1191
      %v1554 = vpack.c.b16 %v1194, %v1192
      %v1555 = vpack.c.b16 %v1197, %v1195
      %v1556 = vpack.c.b16 %v1198, %v1196
      %v1557 = vpack.c.b16 %v1201, %v1199
      %v1558 = vpack.c.b16 %v1202, %v1200
      %v1559 = vpack.c.b16 %v1205, %v1203
      %v1560 = vpack.c.b16 %v1206, %v1204
      %v1561 = vpack.c.b16 %v1209, %v1207
      %v1562 = vpack.c.b16 %v1210, %v1208
      %v1563 = vpack.c.b16 %v1213, %v1211
      %v1564 = vpack.c.b16 %v1214, %v1212
      %v1565 = vpack.c.b16 %v1217, %v1215
      %v1566 = vpack.c.b16 %v1218, %v1216
      %v1567 = vpack.c.b16 %v1221, %v1219
      %v1568 = vpack.c.b16 %v1222, %v1220
      %v1569 = vpack.c.b16 %v1225, %v1223
      %v1570 = vpack.c.b16 %v1226, %v1224
      %v1571 = vpack.c.b16 %v1229, %v1227
      %v1572 = vpack.c.b16 %v1230, %v1228
      %v1573 = vpack.c.b16 %v1233, %v1231
      %v1574 = vpack.c.b16 %v1234, %v1232
      %v1575 = vpack.c.b16 %v1237, %v1235
      %v1576 = vpack.c.b16 %v1238, %v1236
      %v1577 = vpack.c.b16 %v1241, %v1239
      %v1578 = vpack.c.b16 %v1242, %v1240
      %v1579 = vpack.c.b16 %v1245, %v1243
      %v1580 = vpack.c.b16 %v1246, %v1244
      %v1581 = vpack.c.b16 %v1249, %v1247
      %v1582 = vpack.c.b16 %v1250, %v1248
      %v1583 = vpack.c.b16 %v1253, %v1251
      %v1584 = vpack.c.b16 %v1254, %v1252
      %v1585 = vpack.c.b16 %v1257, %v1255
      %v1586 = vpack.c.b16 %v1258, %v1256
      %v1587 = vpack.c.b16 %v1261, %v1259
      %v1588 = vpack.c.b16 %v1262, %v1260
      %v1589 = vpack.c.b16 %v1265, %v1263
      %v1590 = vpack.c.b16 %v1266, %v1264
      %v1591 = vpack.c.b16 %v1269, %v1267
      %v1592 = vpack.c.b16 %v1270, %v1268
      %v1593 = vpack.c.b16 %v1273, %v1271
      %v1594 = vpack.c.b16 %v1274, %v1272
      %v1595 = vpack.c.b16 %v1277, %v1275
      %v1596 = vpack.c.b16 %v1278, %v1276
      %v1597 = vpack.c.b16 %v1281, %v1279
      %v1598 = vpack.c.b16 %v1282, %v1280
      %v1599 = vpack.c.b16 %v1285, %v1283
      %v1600 = vpack.c.b16 %v1286, %v1284
      %v1601 = vpack.c.b16 %v1289, %v1287
      %v1602 = vpack.c.b16 %v1290, %v1288
      %v1603 = vpack.c.b16 %v1293, %v1291
      %v1604 = vpack.c.b16 %v1294, %v1292
      %v1605 = vpack.c.b16 %v1297, %v1295
      %v1606 = vpack.c.b16 %v1298, %v1296
      %v1607 = vpack.c.b16 %v1301, %v1299
      %v1608 = vpack.c.b16 %v1302, %v1300
      %v1609 = vpack.c.b16 %v1305, %v1303
      %v1610 = vpack.c.b16 %v1306, %v1304
      %v1611 = vpack.c.b16 %v1309, %v1307
      %v1612 = vpack.c.b16 %v1310, %v1308
      %v1613 = vpack.c.b16 %v1313, %v1311
      %v1614 = vpack.c.b16 %v1314, %v1312
      %v1615 = vpack.c.b16 %v1317, %v1315
      %v1616 = vpack.c.b16 %v1318, %v1316
      %v1617 = vpack.c.b16 %v1321, %v1319
      %v1618 = vpack.c.b16 %v1322, %v1320
      %v1619 = vpack.c.b16 %v1325, %v1323
      %v1620 = vpack.c.b16 %v1326, %v1324
      %v1621 = vpack.c.b16 %v1329, %v1327
      %v1622 = vpack.c.b16 %v1330, %v1328
      %v1623 = vpack.c.b16 %v1333, %v1331
      %v1624 = vpack.c.b16 %v1334, %v1332
      %v1625 = vpack.c.b16 %v1337, %v1335
      %v1626 = vpack.c.b16 %v1338, %v1336
      %v1627 = vpack.c.b16 %v1341, %v1339
      %v1628 = vpack.c.b16 %v1342, %v1340
      %v1629 = vpack.c.b16 %v1345, %v1343
      %v1630 = vpack.c.b16 %v1346, %v1344
      %v1631 = vpack.c.b16 %v1349, %v1347
      %v1632 = vpack.c.b16 %v1350, %v1348
      %v1633 = vpack.c.b16 %v1353, %v1351
      %v1634 = vpack.c.b16 %v1354, %v1352
      %v1635 = vpack.c.b16 %v1357, %v1355
      %v1636 = vpack.c.b16 %v1358, %v1356
      %v1637 = vpack.c.b16 %v1361, %v1359
      %v1638 = vpack.c.b16 %v1362, %v1360
      %v1639 = vpack.c.b16 %v1365, %v1363
      %v1640 = vpack.c.b16 %v1366, %v1364
      %v1641 = vpack.c.b16 %v1369, %v1367
      %v1642 = vpack.c.b16 %v1370, %v1368
      %v1643 = vpack.c.b16 %v1373, %v1371
      %v1644 = vpack.c.b16 %v1374, %v1372
      %v1645 = vpack.c.b16 %v1377, %v1375
      %v1646 = vpack.c.b16 %v1378, %v1376
      %v1647 = vpack.c.b16 %v1381, %v1379
      %v1648 = vpack.c.b16 %v1382, %v1380
      %v1649 = vpack.c.b16 %v1385, %v1383
      %v1650 = vpack.c.b16 %v1386, %v1384
      %v1651 = vpack.c.b16 %v1389, %v1387
      %v1652 = vpack.c.b16 %v1390, %v1388
      %v1653 = vpack.c.b16 %v1393, %v1391
      %v1654 = vpack.c.b16 %v1394, %v1392
      %v1655 = vpack.c.b16 %v1397, %v1395
      %v1656 = vpack.c.b16 %v1398, %v1396
      %v1657 = vpack.c.b16 %v1401, %v1399
      %v1658 = vpack.c.b16 %v1402, %v1400
      %1915 = vmatprep.subr.bf16.mxu0 %v1404
      %1916 = vmatpush1.bf16.msra.mxu0 %v1403
      %1917 = vmatprep.subr.bf16.mxu0 %v1406
      %1918 = vmatpush1.bf16.msra.mxu0 %v1405
      %1919 = vmatprep.subr.bf16.mxu0 %v1408
      %1920 = vmatpush1.bf16.msra.mxu0 %v1407
      %1921 = vmatprep.subr.bf16.mxu0 %v1410
      %1922 = vmatpush1.bf16.msra.mxu0 %v1409
      %1923 = vmatprep.subr.bf16.mxu0 %v1412
      %1924 = vmatpush1.bf16.msra.mxu0 %v1411
      %1925 = vmatprep.subr.bf16.mxu0 %v1414
      %1926 = vmatpush1.bf16.msra.mxu0 %v1413
      %1927 = vmatprep.subr.bf16.mxu0 %v1416
      %1928 = vmatpush1.bf16.msra.mxu0 %v1415
      %1929 = vmatprep.subr.bf16.mxu0 %v1418
      %1930 = vmatpush1.bf16.msra.mxu0 %v1417
      %1931 = vmatprep.subr.bf16.mxu0 %v1420
      %1932 = vmatpush1.bf16.msra.mxu0 %v1419
      %1933 = vmatprep.subr.bf16.mxu0 %v1422
      %1934 = vmatpush1.bf16.msra.mxu0 %v1421
      %1935 = vmatprep.subr.bf16.mxu0 %v1424
      %1936 = vmatpush1.bf16.msra.mxu0 %v1423
      %1937 = vmatprep.subr.bf16.mxu0 %v1426
      %1938 = vmatpush1.bf16.msra.mxu0 %v1425
      %1939 = vmatprep.subr.bf16.mxu0 %v1428
      %1940 = vmatpush1.bf16.msra.mxu0 %v1427
      %1941 = vmatprep.subr.bf16.mxu0 %v1430
      %1942 = vmatpush1.bf16.msra.mxu0 %v1429
      %1943 = vmatprep.subr.bf16.mxu0 %v1432
      %1944 = vmatpush1.bf16.msra.mxu0 %v1431
      %1945 = vmatprep.subr.bf16.mxu0 %v1434
      %1946 = vmatpush1.bf16.msra.mxu0 %v1433
      %1947 = vmatprep.mubr.bf16.mxu0 %v604
      %1948 = vmatmul.mubr.bf16.gmra.mrb[0].mxu0 %v603
      %v1949 = vpop.f32.mrb[0].mxu0
      %v1950 = vadd.f32 %v548, %v1949
      %v1951 = vpop.f32.mrb[0].mxu0
      %v1952 = vadd.f32 %v552, %v1951
      %v1953 = vpop.f32.mrb[0].mxu0
      %v1954 = vadd.f32 %v548, %v1953
      %v1955 = vpop.f32.mrb[0].mxu0
      %v1956 = vadd.f32 %v552, %v1955
      %1957 = vdwg.mxu0
      %1958 = vmatprep.subr.bf16.mxu0 %v1436
      %1959 = vmatpush1.bf16.msra.mxu0 %v1435
      %1960 = vmatprep.subr.bf16.mxu0 %v1438
      %1961 = vmatpush1.bf16.msra.mxu0 %v1437
      %1962 = vmatprep.subr.bf16.mxu0 %v1440
      %1963 = vmatpush1.bf16.msra.mxu0 %v1439
      %1964 = vmatprep.subr.bf16.mxu0 %v1442
      %1965 = vmatpush1.bf16.msra.mxu0 %v1441
      %1966 = vmatprep.subr.bf16.mxu0 %v1444
      %1967 = vmatpush1.bf16.msra.mxu0 %v1443
      %1968 = vmatprep.subr.bf16.mxu0 %v1446
      %1969 = vmatpush1.bf16.msra.mxu0 %v1445
      %1970 = vmatprep.subr.bf16.mxu0 %v1448
      %1971 = vmatpush1.bf16.msra.mxu0 %v1447
      %1972 = vmatprep.subr.bf16.mxu0 %v1450
      %1973 = vmatpush1.bf16.msra.mxu0 %v1449
      %1974 = vmatprep.subr.bf16.mxu0 %v1452
      %1975 = vmatpush1.bf16.msra.mxu0 %v1451
      %1976 = vmatprep.subr.bf16.mxu0 %v1454
      %1977 = vmatpush1.bf16.msra.mxu0 %v1453
      %1978 = vmatprep.subr.bf16.mxu0 %v1456
      %1979 = vmatpush1.bf16.msra.mxu0 %v1455
      %1980 = vmatprep.subr.bf16.mxu0 %v1458
      %1981 = vmatpush1.bf16.msra.mxu0 %v1457
      %1982 = vmatprep.subr.bf16.mxu0 %v1460
      %1983 = vmatpush1.bf16.msra.mxu0 %v1459
      %1984 = vmatprep.subr.bf16.mxu0 %v1462
      %1985 = vmatpush1.bf16.msra.mxu0 %v1461
      %1986 = vmatprep.subr.bf16.mxu0 %v1464
      %1987 = vmatpush1.bf16.msra.mxu0 %v1463
      %1988 = vmatprep.subr.bf16.mxu0 %v1466
      %1989 = vmatpush1.bf16.msra.mxu0 %v1465
      %1990 = vmatprep.mubr.bf16.mxu0 %v606
      %1991 = vmatmul.mubr.bf16.gmra.mrb[0].mxu0 %v605
      %v1992 = vpop.f32.mrb[0].mxu0
      %v1993 = vadd.f32 %v1950, %v1992
      %v1994 = vpop.f32.mrb[0].mxu0
      %v1995 = vadd.f32 %v1952, %v1994
      %v1996 = vpop.f32.mrb[0].mxu0
      %v1997 = vadd.f32 %v1954, %v1996
      %v1998 = vpop.f32.mrb[0].mxu0
      %v1999 = vadd.f32 %v1956, %v1998
      %2000 = vdwg.mxu0
      %2001 = vmatprep.subr.bf16.mxu0 %v1468
      %2002 = vmatpush1.bf16.msra.mxu0 %v1467
      %2003 = vmatprep.subr.bf16.mxu0 %v1470
      %2004 = vmatpush1.bf16.msra.mxu0 %v1469
      %2005 = vmatprep.subr.bf16.mxu0 %v1472
      %2006 = vmatpush1.bf16.msra.mxu0 %v1471
      %2007 = vmatprep.subr.bf16.mxu0 %v1474
      %2008 = vmatpush1.bf16.msra.mxu0 %v1473
      %2009 = vmatprep.subr.bf16.mxu0 %v1476
      %2010 = vmatpush1.bf16.msra.mxu0 %v1475
      %2011 = vmatprep.subr.bf16.mxu0 %v1478
      %2012 = vmatpush1.bf16.msra.mxu0 %v1477
      %2013 = vmatprep.subr.bf16.mxu0 %v1480
      %2014 = vmatpush1.bf16.msra.mxu0 %v1479
      %2015 = vmatprep.subr.bf16.mxu0 %v1482
      %2016 = vmatpush1.bf16.msra.mxu0 %v1481
      %2017 = vmatprep.subr.bf16.mxu0 %v1484
      %2018 = vmatpush1.bf16.msra.mxu0 %v1483
      %2019 = vmatprep.subr.bf16.mxu0 %v1486
      %2020 = vmatpush1.bf16.msra.mxu0 %v1485
      %2021 = vmatprep.subr.bf16.mxu0 %v1488
      %2022 = vmatpush1.bf16.msra.mxu0 %v1487
      %2023 = vmatprep.subr.bf16.mxu0 %v1490
      %2024 = vmatpush1.bf16.msra.mxu0 %v1489
      %2025 = vmatprep.subr.bf16.mxu0 %v1492
      %2026 = vmatpush1.bf16.msra.mxu0 %v1491
      %2027 = vmatprep.subr.bf16.mxu0 %v1494
      %2028 = vmatpush1.bf16.msra.mxu0 %v1493
      %2029 = vmatprep.subr.bf16.mxu0 %v1496
      %2030 = vmatpush1.bf16.msra.mxu0 %v1495
      %2031 = vmatprep.subr.bf16.mxu0 %v1498
      %2032 = vmatpush1.bf16.msra.mxu0 %v1497
      %2033 = vmatprep.mubr.bf16.mxu0 %v608
      %2034 = vmatmul.mubr.bf16.gmra.mrb[0].mxu0 %v607
      %v2035 = vpop.f32.mrb[0].mxu0
      %v2036 = vadd.f32 %v1993, %v2035
      %v2037 = vpop.f32.mrb[0].mxu0
      %v2038 = vadd.f32 %v1995, %v2037
      %v2039 = vpop.f32.mrb[0].mxu0
      %v2040 = vadd.f32 %v1997, %v2039
      %v2041 = vpop.f32.mrb[0].mxu0
      %v2042 = vadd.f32 %v1999, %v2041
      %2043 = vdwg.mxu0
      %2044 = vmatprep.subr.bf16.mxu0 %v1500
      %2045 = vmatpush1.bf16.msra.mxu0 %v1499
      %2046 = vmatprep.subr.bf16.mxu0 %v1502
      %2047 = vmatpush1.bf16.msra.mxu0 %v1501
      %2048 = vmatprep.subr.bf16.mxu0 %v1504
      %2049 = vmatpush1.bf16.msra.mxu0 %v1503
      %2050 = vmatprep.subr.bf16.mxu0 %v1506
      %2051 = vmatpush1.bf16.msra.mxu0 %v1505
      %2052 = vmatprep.subr.bf16.mxu0 %v1508
      %2053 = vmatpush1.bf16.msra.mxu0 %v1507
      %2054 = vmatprep.subr.bf16.mxu0 %v1510
      %2055 = vmatpush1.bf16.msra.mxu0 %v1509
      %2056 = vmatprep.subr.bf16.mxu0 %v1512
      %2057 = vmatpush1.bf16.msra.mxu0 %v1511
      %2058 = vmatprep.subr.bf16.mxu0 %v1514
      %2059 = vmatpush1.bf16.msra.mxu0 %v1513
      %2060 = vmatprep.subr.bf16.mxu0 %v1516
      %2061 = vmatpush1.bf16.msra.mxu0 %v1515
      %2062 = vmatprep.subr.bf16.mxu0 %v1518
      %2063 = vmatpush1.bf16.msra.mxu0 %v1517
      %2064 = vmatprep.subr.bf16.mxu0 %v1520
      %2065 = vmatpush1.bf16.msra.mxu0 %v1519
      %2066 = vmatprep.subr.bf16.mxu0 %v1522
      %2067 = vmatpush1.bf16.msra.mxu0 %v1521
      %2068 = vmatprep.subr.bf16.mxu0 %v1524
      %2069 = vmatpush1.bf16.msra.mxu0 %v1523
      %2070 = vmatprep.subr.bf16.mxu0 %v1526
      %2071 = vmatpush1.bf16.msra.mxu0 %v1525
      %2072 = vmatprep.subr.bf16.mxu0 %v1528
      %2073 = vmatpush1.bf16.msra.mxu0 %v1527
      %2074 = vmatprep.subr.bf16.mxu0 %v1530
      %2075 = vmatpush1.bf16.msra.mxu0 %v1529
      %2076 = vmatprep.mubr.bf16.mxu0 %v610
      %2077 = vmatmul.mubr.bf16.gmra.mrb[0].mxu0 %v609
      %v2078 = vpop.f32.mrb[0].mxu0
      %v2079 = vadd.f32 %v2036, %v2078
      %v2080 = vpop.f32.mrb[0].mxu0
      %v2081 = vadd.f32 %v2038, %v2080
      %v2082 = vpop.f32.mrb[0].mxu0
      %v2083 = vadd.f32 %v2040, %v2082
      %v2084 = vpop.f32.mrb[0].mxu0
      %v2085 = vadd.f32 %v2042, %v2084
      %2086 = vdwg.mxu0
      %2087 = vmatprep.subr.bf16.mxu0 %v1532
      %2088 = vmatpush1.bf16.msra.mxu0 %v1531
      %2089 = vmatprep.subr.bf16.mxu0 %v1534
      %2090 = vmatpush1.bf16.msra.mxu0 %v1533
      %2091 = vmatprep.subr.bf16.mxu0 %v1536
      %2092 = vmatpush1.bf16.msra.mxu0 %v1535
      %2093 = vmatprep.subr.bf16.mxu0 %v1538
      %2094 = vmatpush1.bf16.msra.mxu0 %v1537
      %2095 = vmatprep.subr.bf16.mxu0 %v1540
      %2096 = vmatpush1.bf16.msra.mxu0 %v1539
      %2097 = vmatprep.subr.bf16.mxu0 %v1542
      %2098 = vmatpush1.bf16.msra.mxu0 %v1541
      %2099 = vmatprep.subr.bf16.mxu0 %v1544
      %2100 = vmatpush1.bf16.msra.mxu0 %v1543
      %2101 = vmatprep.subr.bf16.mxu0 %v1546
      %2102 = vmatpush1.bf16.msra.mxu0 %v1545
      %2103 = vmatprep.subr.bf16.mxu0 %v1548
      %2104 = vmatpush1.bf16.msra.mxu0 %v1547
      %2105 = vmatprep.subr.bf16.mxu0 %v1550
      %2106 = vmatpush1.bf16.msra.mxu0 %v1549
      %2107 = vmatprep.subr.bf16.mxu0 %v1552
      %2108 = vmatpush1.bf16.msra.mxu0 %v1551
      %2109 = vmatprep.subr.bf16.mxu0 %v1554
      %2110 = vmatpush1.bf16.msra.mxu0 %v1553
      %2111 = vmatprep.subr.bf16.mxu0 %v1556
      %2112 = vmatpush1.bf16.msra.mxu0 %v1555
      %2113 = vmatprep.subr.bf16.mxu0 %v1558
      %2114 = vmatpush1.bf16.msra.mxu0 %v1557
      %2115 = vmatprep.subr.bf16.mxu0 %v1560
      %2116 = vmatpush1.bf16.msra.mxu0 %v1559
      %2117 = vmatprep.subr.bf16.mxu0 %v1562
      %2118 = vmatpush1.bf16.msra.mxu0 %v1561
      %2119 = vmatprep.mubr.bf16.mxu0 %v612
      %2120 = vmatmul.mubr.bf16.gmra.mrb[0].mxu0 %v611
      %v2121 = vpop.f32.mrb[0].mxu0
      %v2122 = vadd.f32 %v2079, %v2121
      %v2123 = vpop.f32.mrb[0].mxu0
      %v2124 = vadd.f32 %v2081, %v2123
      %v2125 = vpop.f32.mrb[0].mxu0
      %v2126 = vadd.f32 %v2083, %v2125
      %v2127 = vpop.f32.mrb[0].mxu0
      %v2128 = vadd.f32 %v2085, %v2127
      %2129 = vdwg.mxu0
      %2130 = vmatprep.subr.bf16.mxu0 %v1564
      %2131 = vmatpush1.bf16.msra.mxu0 %v1563
      %2132 = vmatprep.subr.bf16.mxu0 %v1566
      %2133 = vmatpush1.bf16.msra.mxu0 %v1565
      %2134 = vmatprep.subr.bf16.mxu0 %v1568
      %2135 = vmatpush1.bf16.msra.mxu0 %v1567
      %2136 = vmatprep.subr.bf16.mxu0 %v1570
      %2137 = vmatpush1.bf16.msra.mxu0 %v1569
      %2138 = vmatprep.subr.bf16.mxu0 %v1572
      %2139 = vmatpush1.bf16.msra.mxu0 %v1571
      %2140 = vmatprep.subr.bf16.mxu0 %v1574
      %2141 = vmatpush1.bf16.msra.mxu0 %v1573
      %2142 = vmatprep.subr.bf16.mxu0 %v1576
      %2143 = vmatpush1.bf16.msra.mxu0 %v1575
      %2144 = vmatprep.subr.bf16.mxu0 %v1578
      %2145 = vmatpush1.bf16.msra.mxu0 %v1577
      %2146 = vmatprep.subr.bf16.mxu0 %v1580
      %2147 = vmatpush1.bf16.msra.mxu0 %v1579
      %2148 = vmatprep.subr.bf16.mxu0 %v1582
      %2149 = vmatpush1.bf16.msra.mxu0 %v1581
      %2150 = vmatprep.subr.bf16.mxu0 %v1584
      %2151 = vmatpush1.bf16.msra.mxu0 %v1583
      %2152 = vmatprep.subr.bf16.mxu0 %v1586
      %2153 = vmatpush1.bf16.msra.mxu0 %v1585
      %2154 = vmatprep.subr.bf16.mxu0 %v1588
      %2155 = vmatpush1.bf16.msra.mxu0 %v1587
      %2156 = vmatprep.subr.bf16.mxu0 %v1590
      %2157 = vmatpush1.bf16.msra.mxu0 %v1589
      %2158 = vmatprep.subr.bf16.mxu0 %v1592
      %2159 = vmatpush1.bf16.msra.mxu0 %v1591
      %2160 = vmatprep.subr.bf16.mxu0 %v1594
      %2161 = vmatpush1.bf16.msra.mxu0 %v1593
      %2162 = vmatprep.mubr.bf16.mxu0 %v614
      %2163 = vmatmul.mubr.bf16.gmra.mrb[0].mxu0 %v613
      %v2164 = vpop.f32.mrb[0].mxu0
      %v2165 = vadd.f32 %v2122, %v2164
      %v2166 = vpop.f32.mrb[0].mxu0
      %v2167 = vadd.f32 %v2124, %v2166
      %v2168 = vpop.f32.mrb[0].mxu0
      %v2169 = vadd.f32 %v2126, %v2168
      %v2170 = vpop.f32.mrb[0].mxu0
      %v2171 = vadd.f32 %v2128, %v2170
      %2172 = vdwg.mxu0
      %2173 = vmatprep.subr.bf16.mxu0 %v1596
      %2174 = vmatpush1.bf16.msra.mxu0 %v1595
      %2175 = vmatprep.subr.bf16.mxu0 %v1598
      %2176 = vmatpush1.bf16.msra.mxu0 %v1597
      %2177 = vmatprep.subr.bf16.mxu0 %v1600
      %2178 = vmatpush1.bf16.msra.mxu0 %v1599
      %2179 = vmatprep.subr.bf16.mxu0 %v1602
      %2180 = vmatpush1.bf16.msra.mxu0 %v1601
      %2181 = vmatprep.subr.bf16.mxu0 %v1604
      %2182 = vmatpush1.bf16.msra.mxu0 %v1603
      %2183 = vmatprep.subr.bf16.mxu0 %v1606
      %2184 = vmatpush1.bf16.msra.mxu0 %v1605
      %2185 = vmatprep.subr.bf16.mxu0 %v1608
      %2186 = vmatpush1.bf16.msra.mxu0 %v1607
      %2187 = vmatprep.subr.bf16.mxu0 %v1610
      %2188 = vmatpush1.bf16.msra.mxu0 %v1609
      %2189 = vmatprep.subr.bf16.mxu0 %v1612
      %2190 = vmatpush1.bf16.msra.mxu0 %v1611
      %2191 = vmatprep.subr.bf16.mxu0 %v1614
      %2192 = vmatpush1.bf16.msra.mxu0 %v1613
      %2193 = vmatprep.subr.bf16.mxu0 %v1616
      %2194 = vmatpush1.bf16.msra.mxu0 %v1615
      %2195 = vmatprep.subr.bf16.mxu0 %v1618
      %2196 = vmatpush1.bf16.msra.mxu0 %v1617
      %2197 = vmatprep.subr.bf16.mxu0 %v1620
      %2198 = vmatpush1.bf16.msra.mxu0 %v1619
      %2199 = vmatprep.subr.bf16.mxu0 %v1622
      %2200 = vmatpush1.bf16.msra.mxu0 %v1621
      %2201 = vmatprep.subr.bf16.mxu0 %v1624
      %2202 = vmatpush1.bf16.msra.mxu0 %v1623
      %2203 = vmatprep.subr.bf16.mxu0 %v1626
      %2204 = vmatpush1.bf16.msra.mxu0 %v1625
      %2205 = vmatprep.mubr.bf16.mxu0 %v616
      %2206 = vmatmul.mubr.bf16.gmra.mrb[0].mxu0 %v615
      %v2207 = vpop.f32.mrb[0].mxu0
      %v2208 = vadd.f32 %v2165, %v2207
      %v2209 = vpop.f32.mrb[0].mxu0
      %v2210 = vadd.f32 %v2167, %v2209
      %v2211 = vpop.f32.mrb[0].mxu0
      %v2212 = vadd.f32 %v2169, %v2211
      %v2213 = vpop.f32.mrb[0].mxu0
      %v2214 = vadd.f32 %v2171, %v2213
      %2215 = vdwg.mxu0
      %2216 = vmatprep.subr.bf16.mxu0 %v1628
      %2217 = vmatpush1.bf16.msra.mxu0 %v1627
      %2218 = vmatprep.subr.bf16.mxu0 %v1630
      %2219 = vmatpush1.bf16.msra.mxu0 %v1629
      %2220 = vmatprep.subr.bf16.mxu0 %v1632
      %2221 = vmatpush1.bf16.msra.mxu0 %v1631
      %2222 = vmatprep.subr.bf16.mxu0 %v1634
      %2223 = vmatpush1.bf16.msra.mxu0 %v1633
      %2224 = vmatprep.subr.bf16.mxu0 %v1636
      %2225 = vmatpush1.bf16.msra.mxu0 %v1635
      %2226 = vmatprep.subr.bf16.mxu0 %v1638
      %2227 = vmatpush1.bf16.msra.mxu0 %v1637
      %2228 = vmatprep.subr.bf16.mxu0 %v1640
      %2229 = vmatpush1.bf16.msra.mxu0 %v1639
      %2230 = vmatprep.subr.bf16.mxu0 %v1642
      %2231 = vmatpush1.bf16.msra.mxu0 %v1641
      %2232 = vmatprep.subr.bf16.mxu0 %v1644
      %2233 = vmatpush1.bf16.msra.mxu0 %v1643
      %2234 = vmatprep.subr.bf16.mxu0 %v1646
      %2235 = vmatpush1.bf16.msra.mxu0 %v1645
      %2236 = vmatprep.subr.bf16.mxu0 %v1648
      %2237 = vmatpush1.bf16.msra.mxu0 %v1647
      %2238 = vmatprep.subr.bf16.mxu0 %v1650
      %2239 = vmatpush1.bf16.msra.mxu0 %v1649
      %2240 = vmatprep.subr.bf16.mxu0 %v1652
      %2241 = vmatpush1.bf16.msra.mxu0 %v1651
      %2242 = vmatprep.subr.bf16.mxu0 %v1654
      %2243 = vmatpush1.bf16.msra.mxu0 %v1653
      %2244 = vmatprep.subr.bf16.mxu0 %v1656
      %2245 = vmatpush1.bf16.msra.mxu0 %v1655
      %2246 = vmatprep.subr.bf16.mxu0 %v1658
      %2247 = vmatpush1.bf16.msra.mxu0 %v1657
      %2248 = vmatprep.mubr.bf16.mxu0 %v618
      %2249 = vmatmul.mubr.bf16.gmra.mrb[0].mxu0 %v617
      %v2250 = vpop.f32.mrb[0].mxu0
      %v2251 = vadd.f32 %v2208, %v2250
      %v2252 = vpop.f32.mrb[0].mxu0
      %v2253 = vadd.f32 %v2210, %v2252
      %v2254 = vpop.f32.mrb[0].mxu0
      %v2255 = vadd.f32 %v2212, %v2254
      %v2256 = vpop.f32.mrb[0].mxu0
      %v2257 = vadd.f32 %v2214, %v2256
      %2258 = vdwg.mxu0
      %v2259 = vld [vmem:[#allocation2] sm:$0x3]
      %v2260 = vadd.f32 %v2251, %v2255
      %v2261 = vrot.slane %v2260, 4
      %v2262 = vadd.f32 %v2260, %v2261
      %v2263 = vrot.slane %v2262, 2
      %v2264 = vadd.f32 %v2262, %v2263
      %v2265 = vrot.slane %v2264, 1
      %v2266 = vadd.f32 %v2264, %v2265
      %v2267 = vadd.f32 %v2253, %v2257
      %v2268 = vrot.slane %v2267, 4
      %v2269 = vadd.f32 %v2267, %v2268
      %v2270 = vrot.slane %v2269, 2
      %v2271 = vadd.f32 %v2269, %v2270
      %v2272 = vrot.slane %v2271, 1
      %v2273 = vadd.f32 %v2271, %v2272
      %v2276 = vcombine.low %v2266, %v2273
      %v2278 = vunpack.c.l.s4 1966171168
      %v2279 = vunpack.c.0.s8 %v2278
      %v2280 = vlaneseq
      %v2281 = vshrl.u32 %v2280, 7
      %v2282 = vsub.s32 %v2279, %v2281
      %v2283 = vrot.slane %v2276, %v2282
      %v2285 = vunpack.c.l.s4 1966171168
      %v2286 = vunpack.c.0.s8 %v2285
      %v2287 = vlaneseq
      %v2288 = vshrl.u32 %v2287, 7
      %v2289 = vsub.s32 %v2286, %v2288
      %v2290 = vrot.slane %v2283, %v2289
      %v2292 = vadd.f32 %v2259, %v2290
      %v2293 = vlaneseq
      %vm2294 = vcmp.ge.s32.totalorder %v2293, 0
      %vm2295 = vcmp.lt.s32.totalorder %v2293, 256
      %vm2296 = vmand %vm2294, %vm2295
      %2297 = vst.msk [vmem:[#allocation2] sm:$0x3] %vm2296, %v2292
      %v2298 = vld [vmem:[#allocation3] sm:$0x3]
      %v2299 = vmul.f32 %v2251, %v2251
      %v2300 = vmul.f32 %v2253, %v2253
      %v2301 = vmul.f32 %v2255, %v2255
      %v2302 = vmul.f32 %v2257, %v2257
      %v2303 = vadd.f32 %v2299, %v2301
      %v2304 = vrot.slane %v2303, 4
      %v2305 = vadd.f32 %v2303, %v2304
      %v2306 = vrot.slane %v2305, 2
      %v2307 = vadd.f32 %v2305, %v2306
      %v2308 = vrot.slane %v2307, 1
      %v2309 = vadd.f32 %v2307, %v2308
      %v2310 = vadd.f32 %v2300, %v2302
      %v2311 = vrot.slane %v2310, 4
      %v2312 = vadd.f32 %v2310, %v2311
      %v2313 = vrot.slane %v2312, 2
      %v2314 = vadd.f32 %v2312, %v2313
      %v2315 = vrot.slane %v2314, 1
      %v2316 = vadd.f32 %v2314, %v2315
      %v2319 = vcombine.low %v2309, %v2316
      %v2321 = vunpack.c.l.s4 1966171168
      %v2322 = vunpack.c.0.s8 %v2321
      %v2323 = vlaneseq
      %v2324 = vshrl.u32 %v2323, 7
      %v2325 = vsub.s32 %v2322, %v2324
      %v2326 = vrot.slane %v2319, %v2325
      %v2328 = vunpack.c.l.s4 1966171168
      %v2329 = vunpack.c.0.s8 %v2328
      %v2330 = vlaneseq
      %v2331 = vshrl.u32 %v2330, 7
      %v2332 = vsub.s32 %v2329, %v2331
      %v2333 = vrot.slane %v2326, %v2332
      %v2335 = vadd.f32 %v2298, %v2333
      %2336 = vst.msk [vmem:[#allocation3] sm:$0x3] %vm2296, %v2335
      %s2337 = smul.u32 %s21, 16
      %v2338 = vpack.c.bf16 %v2255, %v2251
      %v2339 = vpack.c.bf16 %v2257, %v2253
      %v2342 = vunpack.c.l.b16 %v2338
      %v2343 = vunpack.c.l.b16 %v2339
      %v2344 = vunpack.c.h.b16 %v2338
      %v2345 = vunpack.c.h.b16 %v2339
      %v2346 = vpack.c.b16 %v2343, %v2342
      %v2347 = vpack.c.b16 %v2345, %v2344
      %s2350 = sshra.s32 %s2337, 3
      %s2351 = sand.u32 %s2337, 7
      %s2352 = smul.u32 %s2350, 2
      %s2353 = smul.addr %s2352, 4
      %s2354 = scalar_lea.vmem %s259, %s2353
      %2355 = vst [vmem:[%s2354] sm:$0xff] %v2346
      %2356 = vst [vmem:[%s2354 + $0x8] sm:$0xff] %v2347
      // Predicated region
      $region37: #{discriminator_forward.6} parent=31 // pred_check
        %p2357 = pneg %p261
      $region38: #{discriminator_forward.6} parent=31 // pred_check_branch
        %2359 = sbr.rel (%p2357) target = $region40
      $region39: #{discriminator_forward.6} parent=31 // pred_region
        %v2360 = vld [vmem:[#allocation2] sm:$0x3]
        %v2361 = vmul.f32 %v2360, 0.0625
        %v2362 = vld [vmem:[#allocation3] sm:$0x3]
        %v2363 = vmul.f32 %v2362, 0.0625
        %v2364 = vmul.f32 %v2361, %v2361
        %v2365 = vsub.f32 %v2363, %v2364
        %v2366 = vmax.f32 %v2365, 0.0
        %v2367 = vadd.f32 %v2366, 1e-05
        %v2368 = vrsqrt.pop %v2367
        %s2369 = smul.u32 0, 2
        %s2370 = smul.addr %s2369, 4
        %s2371 = scalar_lea.vmem %s259, %s2370
        %v2372 = vld [vmem:[%s2371] sm:$0xff]
        %v2373 = vld [vmem:[%s2371 + $0x8] sm:$0xff]
        %v2374 = vunpack.c.l.bf16 %v2372
        %v2375 = vunpack.c.h.bf16 %v2372
        %v2376 = vunpack.c.l.bf16 %v2373
        %v2377 = vunpack.c.h.bf16 %v2373
        %v2379 = vlaneseq
        %v2380 = vshrl.u32 %v2379, 7
        %v2381 = vsub.s32 0, %v2380
        %v2382 = vrot.slane %v2361, %v2381
        %v2383 = vlaneseq
        %v2384 = vshrl.u32 %v2383, 7
        %v2385 = vsub.s32 1, %v2384
        %v2386 = vrot.slane %v2361, %v2385
        %v2389 = vsub.f32 %v2374, %v2382
        %v2390 = vsub.f32 %v2375, %v2386
        %v2391 = vsub.f32 %v2376, %v2382
        %v2392 = vsub.f32 %v2377, %v2386
        %v2394 = vlaneseq
        %v2395 = vshrl.u32 %v2394, 7
        %v2396 = vsub.s32 0, %v2395
        %v2397 = vrot.slane %v2368, %v2396
        %v2398 = vlaneseq
        %v2399 = vshrl.u32 %v2398, 7
        %v2400 = vsub.s32 1, %v2399
        %v2401 = vrot.slane %v2368, %v2400
        %v2404 = vmul.f32 %v2389, %v2397
        %v2405 = vmul.f32 %v2390, %v2401
        %v2406 = vmul.f32 %v2391, %v2397
        %v2407 = vmul.f32 %v2392, %v2401
        %vm2408 = vcmp.ge.f32.partialorder %v2404, 0.0
        %vm2409 = vcmp.ge.f32.partialorder %v2405, 0.0
        %vm2410 = vcmp.ge.f32.partialorder %v2406, 0.0
        %vm2411 = vcmp.ge.f32.partialorder %v2407, 0.0
        %v2412 = vmul.f32 %v2404, 0.2
        %v2413 = vmul.f32 %v2405, 0.2
        %v2414 = vmul.f32 %v2406, 0.2
        %v2415 = vmul.f32 %v2407, 0.2
        %v2416 = vsel %vm2408, %v2404, %v2412
        %v2417 = vsel %vm2409, %v2405, %v2413
        %v2418 = vsel %vm2410, %v2406, %v2414
        %v2419 = vsel %vm2411, %v2407, %v2415
        %v2420 = vpack.c.bf16 %v2418, %v2416
        %v2421 = vpack.c.bf16 %v2419, %v2417
        %v2424 = vunpack.c.l.b16 %v2420
        %v2425 = vunpack.c.l.b16 %v2421
        %v2426 = vunpack.c.h.b16 %v2420
        %v2427 = vunpack.c.h.b16 %v2421
        %v2428 = vpack.c.b16 %v2425, %v2424
        %v2429 = vpack.c.b16 %v2427, %v2426
        %2432 = vst [vmem:[%s2371] sm:$0xff] %v2428
        %2433 = vst [vmem:[%s2371 + $0x8] sm:$0xff] %v2429
      $region40: #{discriminator_forward.6} parent=31 // pred_fallthru
        _
      %s2434 = smul.u32 2, %s20
      %p2435 = scmp.lt.s32.totalorder %s19, 1
      %s2436 = scalar_select %p2435, %s19, 1
      %p2437 = scmp.lt.s32.totalorder %s2434, 1
      %s2438 = scalar_select %p2437, %s2434, 1
      %s2439 = smul.addr %s2436, 4
      %s2440 = sadd.s32 %s2438, %s2439
      %s2441 = smul.addr %s2440, 4
      %s2442 = scalar_lea.vmem %s3, %s2441
      // Predicated region
      $region41: #{discriminator_forward.6} parent=31 // pred_check
        %p2443 = pneg %p133
      $region42: #{discriminator_forward.6} parent=31 // pred_check_branch
        %2445 = sbr.rel (%p2443) target = $region44
      $region43: #{discriminator_forward.6} parent=31 // pred_region
        %s2446 = smul.u32 2, %s20
      $region44: #{discriminator_forward.6} parent=31 // pred_fallthru
        _
    $region32: #{discriminator_forward.6} parent=5 // pred_fallthru
      _
    %p2447 = scmp.le.s32.totalorder 2, %s9
    // Predicated region
    $region45: #{discriminator_forward.6} parent=5 // pred_check
      %p2448 = pneg %p2447
    $region46: #{discriminator_forward.6} parent=5 // pred_check_branch
      %2450 = sbr.rel (%p2448) target = $region48
    $region47: #{discriminator_forward.6} parent=5 // pred_region
      %s2451 = ssub.s32 %s9, 2
      // Predicated region
      $region49: #{discriminator_forward.6} parent=47 // pred_check
        %p2452 = pneg %p139
      $region50: #{discriminator_forward.6} parent=47 // pred_check_branch
        %2454 = sbr.rel (%p2452) target = $region52
      $region51: #{discriminator_forward.6} parent=47 // pred_region
        %s2455 = smul.u32 2, %s23
        %p2456 = scmp.lt.s32.totalorder %s22, 1
        %s2457 = scalar_select %p2456, %s22, 1
        %p2458 = scmp.lt.s32.totalorder %s2455, 1
        %s2459 = scalar_select %p2458, %s2455, 1
        %s2460 = smul.addr %s2457, 4
        %s2461 = sadd.s32 %s2459, %s2460
        %s2462 = smul.addr %s2461, 4
        %s2463 = scalar_lea.vmem %s3, %s2462
      $region52: #{discriminator_forward.6} parent=47 // pred_fallthru
        _
    $region48: #{discriminator_forward.6} parent=5 // pred_fallthru
      _
  $region6: #{discriminator_forward.6} parent=0 // loop_footer
    %s13 = sadd.s32 1, %s9
  $region7: #{discriminator_forward.6} parent=0 // loop_footer_branch
    %8 = sbr.rel target = $region3
  $region8: #{discriminator_forward.6} parent=0 // loop_exit
    _

// kernel: discriminator_forward.7
$region0: #{discriminator_forward.7}
  #allocation0 [shape = 'u32[]', space=smem, size = 0x4, offset = 0x4, fixed_abs, tag = 'smem constant byte address 0x4 - core index']
  #allocation1 [shape = 'u32[144,128]{1,0:T(1,128)}', space=vmem, size = 0x12000, scoped, tag = 'internal scratch']
  #allocation2 [shape = 'f32[1,512]{1,0:T(1,128)}', space=vmem, size = 0x800, scoped, tag = 'scratch operand']
  #allocation3 [shape = 'f32[1,512]{1,0:T(1,128)}', space=vmem, size = 0x800, scoped, tag = 'scratch operand']
  %s0 = inlined_call_operand.vmem [shape: bf16[2,16,4096], index: 0, kind: input, shape index: {}]
  %s1 = inlined_call_operand.vmem [shape: bf16[4096,512], index: 1, kind: input, shape index: {}]
  %s2 = inlined_call_operand.vmem [shape: f32[1,512], index: 2, kind: input, shape index: {}]
  %s3 = inlined_call_operand.vmem [shape: bf16[2,16,512], index: 3, kind: output, shape index: {}]
  %s4 = sld [smem:[#allocation0]]
  $region61: #{discriminator_forward.7} parent=0
    _
  %s6 = ssub.s32 1, %s4
  %s7 = scalar_select 0, %s6, %s4
  loop: start=0, step=1, limit=4
  $region2: #{discriminator_forward.7} parent=0 // loop_pre_header
    _
  $region3: #{discriminator_forward.7} parent=0 // loop_header
    %s9 = sphi 0, %s13
    %p10 = scmp.ge.s32.totalorder %s9, 4
    %s16 = sphi 0, %s35
    %s17 = sphi 0, %s31
    %s18 = sphi 0, %s27
    %s19 = sphi 0, %s16
    %s20 = sphi 0, %s17
    %s21 = sphi 0, %s18
    %s22 = sphi 0, %s19
    %s23 = sphi 0, %s20
    %s24 = sphi 0, %s21
    %s40 = sphi 0, %s42
    %s43 = sphi 0, %s40
    %s44 = sphi 0, %s43
    %s60 = sphi 0, %s44
    %s66 = sphi 0, %s68
    %s69 = sphi 0, %s66
    %s70 = sphi 0, %s69
    %s86 = sphi 0, %s70
    %s92 = sphi 0, %s94
    %s95 = sphi 0, %s92
    %s96 = sphi 0, %s95
    %s112 = sphi 0, %s96
    %s120 = sphi 0, %s122
    %s123 = sphi 0, %s120
    %s124 = sphi 0, %s123
    %s140 = sphi 0, %s124
  $region4: #{discriminator_forward.7} parent=0 // loop_header_branch
    %12 = sbr.rel (%p10) target = $region8
  $region5: #{discriminator_forward.7} parent=0 // loop_body
    %s14 = ssub.s32 %s9, 1
    %s15 = ssub.s32 %s9, 2
    %s25 = sadd.s32 1, %s18
    %p26 = scmp.ge.s32.totalorder %s25, 1
    %s27 = scalar_select %p26, 0, %s25
    %s28 = sadd.s32 1, %s17
    %s29 = scalar_select %p26, %s28, %s17
    %p30 = scmp.ge.s32.totalorder %s29, 1
    %s31 = scalar_select %p30, 0, %s29
    %s32 = sadd.s32 1, %s16
    %s33 = scalar_select %p30, %s32, %s16
    %p34 = scmp.ge.s32.totalorder %s33, 2
    %s35 = scalar_select %p34, 0, %s33
    %s36 = ssub.s32 %s16, %s35
    %s37 = ssub.s32 %s18, %s27
    %s38 = sor.u32 %s36, %s37
    %p39 = scmp.eq.s32.totalorder %s38, 0
    %s41 = sadd.s32 %s40, 1
    %s42 = scalar_select %p39, %s40, %s41
    %p45 = pneg %p39
    %p46 = scmp.eq.s32.totalorder %s9, 1
    %p47 = por %p45, %p46
    %p48 = scmp.ne.s32.totalorder %s40, %s43
    %p49 = scmp.eq.s32.totalorder %s9, 0
    %p50 = por %p48, %p49
    %p51 = scmp.ne.s32.totalorder %s40, %s43
    %p52 = scmp.eq.s32.totalorder %s14, 1
    %p53 = por %p51, %p52
    %p54 = scmp.ne.s32.totalorder %s43, %s44
    %p55 = scmp.eq.s32.totalorder %s14, 0
    %p56 = por %p54, %p55
    %p57 = scmp.ne.s32.totalorder %s43, %s44
    %p58 = scmp.eq.s32.totalorder %s15, 1
    %p59 = por %p57, %p58
    %p61 = scmp.ne.s32.totalorder %s44, %s60
    %p62 = scmp.eq.s32.totalorder %s15, 0
    %p63 = por %p61, %p62
    %s64 = ssub.s32 %s17, %s31
    %p65 = scmp.eq.s32.totalorder %s64, 0
    %s67 = sadd.s32 %s66, 1
    %s68 = scalar_select %p65, %s66, %s67
    %p71 = pneg %p65
    %p72 = scmp.eq.s32.totalorder %s9, 1
    %p73 = por %p71, %p72
    %p74 = scmp.ne.s32.totalorder %s66, %s69
    %p75 = scmp.eq.s32.totalorder %s9, 0
    %p76 = por %p74, %p75
    %p77 = scmp.ne.s32.totalorder %s66, %s69
    %p78 = scmp.eq.s32.totalorder %s14, 1
    %p79 = por %p77, %p78
    %p80 = scmp.ne.s32.totalorder %s69, %s70
    %p81 = scmp.eq.s32.totalorder %s14, 0
    %p82 = por %p80, %p81
    %p83 = scmp.ne.s32.totalorder %s69, %s70
    %p84 = scmp.eq.s32.totalorder %s15, 1
    %p85 = por %p83, %p84
    %p87 = scmp.ne.s32.totalorder %s70, %s86
    %p88 = scmp.eq.s32.totalorder %s15, 0
    %p89 = por %p87, %p88
    %s90 = ssub.s32 %s17, %s31
    %p91 = scmp.eq.s32.totalorder %s90, 0
    %s93 = sadd.s32 %s92, 1
    %s94 = scalar_select %p91, %s92, %s93
    %p97 = pneg %p91
    %p98 = scmp.eq.s32.totalorder %s9, 1
    %p99 = por %p97, %p98
    %p100 = scmp.ne.s32.totalorder %s92, %s95
    %p101 = scmp.eq.s32.totalorder %s9, 0
    %p102 = por %p100, %p101
    %p103 = scmp.ne.s32.totalorder %s92, %s95
    %p104 = scmp.eq.s32.totalorder %s14, 1
    %p105 = por %p103, %p104
    %p106 = scmp.ne.s32.totalorder %s95, %s96
    %p107 = scmp.eq.s32.totalorder %s14, 0
    %p108 = por %p106, %p107
    %p109 = scmp.ne.s32.totalorder %s95, %s96
    %p110 = scmp.eq.s32.totalorder %s15, 1
    %p111 = por %p109, %p110
    %p113 = scmp.ne.s32.totalorder %s96, %s112
    %p114 = scmp.eq.s32.totalorder %s15, 0
    %p115 = por %p113, %p114
    %s116 = ssub.s32 %s16, %s35
    %s117 = ssub.s32 %s17, %s31
    %s118 = sor.u32 %s116, %s117
    %p119 = scmp.eq.s32.totalorder %s118, 0
    %s121 = sadd.s32 %s120, 1
    %s122 = scalar_select %p119, %s120, %s121
    %p125 = pneg %p119
    %p126 = scmp.eq.s32.totalorder %s9, 1
    %p127 = por %p125, %p126
    %p128 = scmp.ne.s32.totalorder %s120, %s123
    %p129 = scmp.eq.s32.totalorder %s9, 0
    %p130 = por %p128, %p129
    %p131 = scmp.ne.s32.totalorder %s120, %s123
    %p132 = scmp.eq.s32.totalorder %s14, 1
    %p133 = por %p131, %p132
    %p134 = scmp.ne.s32.totalorder %s123, %s124
    %p135 = scmp.eq.s32.totalorder %s14, 0
    %p136 = por %p134, %p135
    %p137 = scmp.ne.s32.totalorder %s123, %s124
    %p138 = scmp.eq.s32.totalorder %s15, 1
    %p139 = por %p137, %p138
    %p141 = scmp.ne.s32.totalorder %s124, %s140
    %p142 = scmp.eq.s32.totalorder %s15, 0
    %p143 = por %p141, %p142
    %p144 = scmp.le.s32.totalorder 1, %s9
    %p145 = scmp.lt.s32.totalorder %s9, 3
    %p146 = pnand %p144, %p145
    %p147 = pneg %p146
    // Predicated region
    $region9: #{discriminator_forward.7} parent=5 // pred_check
      _
    $region10: #{discriminator_forward.7} parent=5 // pred_check_branch
      %149 = sbr.rel (%p146) target = $region12
    $region11: #{discriminator_forward.7} parent=5 // pred_region
      %s150 = ssub.s32 %s9, 1
      // Predicated region
      $region13: #{discriminator_forward.7} parent=11 // pred_check
        %p151 = pneg %p82
      $region14: #{discriminator_forward.7} parent=11 // pred_check_branch
        %153 = sbr.rel (%p151) target = $region16
      $region15: #{discriminator_forward.7} parent=11 // pred_region
        %s154 = smul.u32 4, %s20
        %p155 = scmp.lt.s32.totalorder %s154, 3
        %s156 = scalar_select %p155, %s154, 3
        %s157 = smul.addr %s156, 4
        %s158 = scalar_lea.vmem %s1, %s157
        %s159 = smul.u32 4, %s20
      $region16: #{discriminator_forward.7} parent=11 // pred_fallthru
        _
      // Predicated region
      $region17: #{discriminator_forward.7} parent=11 // pred_check
        %p160 = pneg %p108
      $region18: #{discriminator_forward.7} parent=11 // pred_check_branch
        %162 = sbr.rel (%p160) target = $region20
      $region19: #{discriminator_forward.7} parent=11 // pred_region
        %s163 = smul.u32 4, %s20
        %p164 = scmp.lt.s32.totalorder %s163, 3
        %s165 = scalar_select %p164, %s163, 3
        %s166 = scalar_lea.vmem %s2, %s165
        %s167 = smul.u32 4, %s20
      $region20: #{discriminator_forward.7} parent=11 // pred_fallthru
        _
    $region12: #{discriminator_forward.7} parent=5 // pred_fallthru
      _
    %p168 = scmp.lt.s32.totalorder %s9, 2
    // Predicated region
    $region21: #{discriminator_forward.7} parent=5 // pred_check
      %p169 = pneg %p168
    $region22: #{discriminator_forward.7} parent=5 // pred_check_branch
      %171 = sbr.rel (%p169) target = $region24
    $region23: #{discriminator_forward.7} parent=5 // pred_region
      // Predicated region
      $region25: #{discriminator_forward.7} parent=23 // pred_check
        %p172 = pneg %p50
      $region26: #{discriminator_forward.7} parent=23 // pred_check_branch
        %174 = sbr.rel (%p172) target = $region28
      $region27: #{discriminator_forward.7} parent=23 // pred_region
        %s175 = smul.u32 2, %s18
        %p176 = scmp.lt.s32.totalorder %s16, 1
        %s177 = scalar_select %p176, %s16, 1
        %p178 = scmp.lt.s32.totalorder %s175, 1
        %s179 = scalar_select %p178, %s175, 1
        %s180 = smul.addr %s179, 32
        %s181 = smul.addr %s177, 64
        %s182 = sadd.s32 %s180, %s181
        %s183 = smul.addr %s182, 4
        %s184 = scalar_lea.vmem %s0, %s183
        %s185 = smul.u32 2, %s18
      $region28: #{discriminator_forward.7} parent=23 // pred_fallthru
        _
    $region24: #{discriminator_forward.7} parent=5 // pred_fallthru
      _
    %p186 = scmp.le.s32.totalorder 1, %s9
    %p187 = scmp.lt.s32.totalorder %s9, 3
    %p188 = pnand %p186, %p187
    %p189 = pneg %p188
    // Predicated region
    $region29: #{discriminator_forward.7} parent=5 // pred_check
      _
    $region30: #{discriminator_forward.7} parent=5 // pred_check_branch
      %191 = sbr.rel (%p188) target = $region32
    $region31: #{discriminator_forward.7} parent=5 // pred_region
      %s192 = ssub.s32 %s9, 1
      %s193 = smul.u32 2, %s21
      %p194 = scmp.lt.s32.totalorder %s19, 1
      %s195 = scalar_select %p194, %s19, 1
      %p196 = scmp.lt.s32.totalorder %s193, 1
      %s197 = scalar_select %p196, %s193, 1
      %s198 = smul.addr %s197, 32
      %s199 = smul.addr %s195, 64
      %s200 = sadd.s32 %s198, %s199
      %s201 = smul.addr %s200, 4
      %s202 = scalar_lea.vmem %s0, %s201
      %p203 = pneg %p56
      %p204 = pneg %p53
      %s205 = smul.u32 4, %s20
      %p206 = scmp.lt.s32.totalorder %s205, 3
      %s207 = scalar_select %p206, %s205, 3
      %s208 = smul.addr %s207, 4
      %s209 = scalar_lea.vmem %s1, %s208
      %p210 = pneg %p82
      %p211 = pneg %p79
      %s212 = smul.u32 4, %s20
      %p213 = scmp.lt.s32.totalorder %s212, 3
      %s214 = scalar_select %p213, %s212, 3
      %s215 = scalar_lea.vmem %s2, %s214
      %p216 = pneg %p108
      %p217 = pneg %p105
      %p218 = pneg %p136
      %p219 = pneg %p133
      %s220 = smul.u32 4, %s20
      %p221 = scmp.lt.s32.totalorder %s19, 1
      %s222 = scalar_select %p221, %s19, 1
      %p223 = scmp.lt.s32.totalorder %s220, 3
      %s224 = scalar_select %p223, %s220, 3
      %s225 = smul.addr %s222, 8
      %s226 = sadd.s32 %s224, %s225
      %s227 = smul.addr %s226, 4
      %s228 = scalar_lea.vmem %s3, %s227
      %s229 = smul.u32 2, %s21
      %p230 = scmp.lt.s32.totalorder %s19, 1
      %s231 = scalar_select %p230, %s19, 1
      %p232 = scmp.lt.s32.totalorder %s229, 1
      %s233 = scalar_select %p232, %s229, 1
      %s234 = smul.addr %s233, 32
      %s235 = smul.addr %s231, 64
      %s236 = sadd.s32 %s234, %s235
      %s237 = smul.addr %s236, 4
      %s238 = scalar_lea.vmem %s0, %s237
      %s239 = smul.u32 2, %s21
      %s240 = smul.u32 4, %s20
      %p241 = scmp.lt.s32.totalorder %s240, 3
      %s242 = scalar_select %p241, %s240, 3
      %s243 = smul.addr %s242, 4
      %s244 = scalar_lea.vmem %s1, %s243
      %s245 = smul.u32 4, %s20
      %s246 = smul.u32 4, %s20
      %p247 = scmp.lt.s32.totalorder %s246, 3
      %s248 = scalar_select %p247, %s246, 3
      %s249 = scalar_lea.vmem %s2, %s248
      %s250 = smul.u32 4, %s20
      %s251 = smul.u32 4, %s20
      %p252 = scmp.lt.s32.totalorder %s19, 1
      %s253 = scalar_select %p252, %s19, 1
      %p254 = scmp.lt.s32.totalorder %s251, 3
      %s255 = scalar_select %p254, %s251, 3
      %s256 = smul.addr %s253, 8
      %s257 = sadd.s32 %s255, %s256
      %s258 = smul.addr %s257, 4
      %s259 = scalar_lea.vmem %s3, %s258
      %s260 = smul.u32 4, %s20
      %p261 = scmp.eq.s32.totalorder %s21, 0
      // Predicated region
      $region33: #{discriminator_forward.7} parent=31 // pred_check
        %p262 = pneg %p261
      $region34: #{discriminator_forward.7} parent=31 // pred_check_branch
        %264 = sbr.rel (%p262) target = $region36
      $region35: #{discriminator_forward.7} parent=31 // pred_region
        %v265 = vlaneseq
        %vm266 = vcmp.ge.s32.totalorder %v265, 0
        %vm267 = vcmp.lt.s32.totalorder %v265, 512
        %vm268 = vmand %vm266, %vm267
        %269 = vst.msk [vmem:[#allocation2] sm:$0xf] %vm268, 0.0
        %270 = vst.msk [vmem:[#allocation3] sm:$0xf] %vm268, 0.0
      $region36: #{discriminator_forward.7} parent=31 // pred_fallthru
        _
      %v271 = vld [vmem:[%s238] sm:$0xff]
      %v272 = vld [vmem:[%s238 + $0x8] sm:$0xff]
      %v273 = vld [vmem:[%s238 + $0x10] sm:$0xff]
      %v274 = vld [vmem:[%s238 + $0x18] sm:$0xff]
      %v275 = vld [vmem:[%s238 + $0x20] sm:$0xff]
      %v276 = vld [vmem:[%s238 + $0x28] sm:$0xff]
      %v277 = vld [vmem:[%s238 + $0x30] sm:$0xff]
      %v278 = vld [vmem:[%s238 + $0x38] sm:$0xff]
      %v279 = vld [vmem:[%s238 + $0x40] sm:$0xff]
      %v280 = vld [vmem:[%s238 + $0x48] sm:$0xff]
      %v281 = vld [vmem:[%s238 + $0x50] sm:$0xff]
      %v282 = vld [vmem:[%s238 + $0x58] sm:$0xff]
      %v283 = vld [vmem:[%s238 + $0x60] sm:$0xff]
      %v284 = vld [vmem:[%s238 + $0x68] sm:$0xff]
      %v285 = vld [vmem:[%s238 + $0x70] sm:$0xff]
      %v286 = vld [vmem:[%s238 + $0x78] sm:$0xff]
      %v287 = vld [vmem:[%s238 + $0x80] sm:$0xff]
      %v288 = vld [vmem:[%s238 + $0x88] sm:$0xff]
      %v289 = vld [vmem:[%s238 + $0x90] sm:$0xff]
      %v290 = vld [vmem:[%s238 + $0x98] sm:$0xff]
      %v291 = vld [vmem:[%s238 + $0xa0] sm:$0xff]
      %v292 = vld [vmem:[%s238 + $0xa8] sm:$0xff]
      %v293 = vld [vmem:[%s238 + $0xb0] sm:$0xff]
      %v294 = vld [vmem:[%s238 + $0xb8] sm:$0xff]
      %v295 = vld [vmem:[%s238 + $0xc0] sm:$0xff]
      %v296 = vld [vmem:[%s238 + $0xc8] sm:$0xff]
      %v297 = vld [vmem:[%s238 + $0xd0] sm:$0xff]
      %v298 = vld [vmem:[%s238 + $0xd8] sm:$0xff]
      %v299 = vld [vmem:[%s238 + $0xe0] sm:$0xff]
      %v300 = vld [vmem:[%s238 + $0xe8] sm:$0xff]
      %v301 = vld [vmem:[%s238 + $0xf0] sm:$0xff]
      %v302 = vld [vmem:[%s238 + $0xf8] sm:$0xff]
      %v303 = vld [vmem:[%s244] sm:$0xff]
      %v304 = vld [vmem:[%s244 + $0x8] sm:$0xff]
      %v305 = vld [vmem:[%s244 + $0x10] sm:$0xff]
      %v306 = vld [vmem:[%s244 + $0x18] sm:$0xff]
      %v307 = vld [vmem:[%s244 + $0x20] sm:$0xff]
      %v308 = vld [vmem:[%s244 + $0x28] sm:$0xff]
      %v309 = vld [vmem:[%s244 + $0x30] sm:$0xff]
      %v310 = vld [vmem:[%s244 + $0x38] sm:$0xff]
      %v311 = vld [vmem:[%s244 + $0x40] sm:$0xff]
      %v312 = vld [vmem:[%s244 + $0x48] sm:$0xff]
      %v313 = vld [vmem:[%s244 + $0x50] sm:$0xff]
      %v314 = vld [vmem:[%s244 + $0x58] sm:$0xff]
      %v315 = vld [vmem:[%s244 + $0x60] sm:$0xff]
      %v316 = vld [vmem:[%s244 + $0x68] sm:$0xff]
      %v317 = vld [vmem:[%s244 + $0x70] sm:$0xff]
      %v318 = vld [vmem:[%s244 + $0x78] sm:$0xff]
      %v319 = vld [vmem:[%s244 + $0x80] sm:$0xff]
      %v320 = vld [vmem:[%s244 + $0x88] sm:$0xff]
      %v321 = vld [vmem:[%s244 + $0x90] sm:$0xff]
      %v322 = vld [vmem:[%s244 + $0x98] sm:$0xff]
      %v323 = vld [vmem:[%s244 + $0xa0] sm:$0xff]
      %v324 = vld [vmem:[%s244 + $0xa8] sm:$0xff]
      %v325 = vld [vmem:[%s244 + $0xb0] sm:$0xff]
      %v326 = vld [vmem:[%s244 + $0xb8] sm:$0xff]
      %v327 = vld [vmem:[%s244 + $0xc0] sm:$0xff]
      %v328 = vld [vmem:[%s244 + $0xc8] sm:$0xff]
      %v329 = vld [vmem:[%s244 + $0xd0] sm:$0xff]
      %v330 = vld [vmem:[%s244 + $0xd8] sm:$0xff]
      %v331 = vld [vmem:[%s244 + $0xe0] sm:$0xff]
      %v332 = vld [vmem:[%s244 + $0xe8] sm:$0xff]
      %v333 = vld [vmem:[%s244 + $0xf0] sm:$0xff]
      %v334 = vld [vmem:[%s244 + $0xf8] sm:$0xff]
      %v335 = vld [vmem:[%s244 + $0x100] sm:$0xff]
      %v336 = vld [vmem:[%s244 + $0x108] sm:$0xff]
      %v337 = vld [vmem:[%s244 + $0x110] sm:$0xff]
      %v338 = vld [vmem:[%s244 + $0x118] sm:$0xff]
      %v339 = vld [vmem:[%s244 + $0x120] sm:$0xff]
      %v340 = vld [vmem:[%s244 + $0x128] sm:$0xff]
      %v341 = vld [vmem:[%s244 + $0x130] sm:$0xff]
      %v342 = vld [vmem:[%s244 + $0x138] sm:$0xff]
      %v343 = vld [vmem:[%s244 + $0x140] sm:$0xff]
      %v344 = vld [vmem:[%s244 + $0x148] sm:$0xff]
      %v345 = vld [vmem:[%s244 + $0x150] sm:$0xff]
      %v346 = vld [vmem:[%s244 + $0x158] sm:$0xff]
      %v347 = vld [vmem:[%s244 + $0x160] sm:$0xff]
      %v348 = vld [vmem:[%s244 + $0x168] sm:$0xff]
      %v349 = vld [vmem:[%s244 + $0x170] sm:$0xff]
      %v350 = vld [vmem:[%s244 + $0x178] sm:$0xff]
      %v351 = vld [vmem:[%s244 + $0x180] sm:$0xff]
      %v352 = vld [vmem:[%s244 + $0x188] sm:$0xff]
      %v353 = vld [vmem:[%s244 + $0x190] sm:$0xff]
      %v354 = vld [vmem:[%s244 + $0x198] sm:$0xff]
      %v355 = vld [vmem:[%s244 + $0x1a0] sm:$0xff]
      %v356 = vld [vmem:[%s244 + $0x1a8] sm:$0xff]
      %v357 = vld [vmem:[%s244 + $0x1b0] sm:$0xff]
      %v358 = vld [vmem:[%s244 + $0x1b8] sm:$0xff]
      %v359 = vld [vmem:[%s244 + $0x1c0] sm:$0xff]
      %v360 = vld [vmem:[%s244 + $0x1c8] sm:$0xff]
      %v361 = vld [vmem:[%s244 + $0x1d0] sm:$0xff]
      %v362 = vld [vmem:[%s244 + $0x1d8] sm:$0xff]
      %v363 = vld [vmem:[%s244 + $0x1e0] sm:$0xff]
      %v364 = vld [vmem:[%s244 + $0x1e8] sm:$0xff]
      %v365 = vld [vmem:[%s244 + $0x1f0] sm:$0xff]
      %v366 = vld [vmem:[%s244 + $0x1f8] sm:$0xff]
      %v367 = vld [vmem:[%s244 + $0x200] sm:$0xff]
      %v368 = vld [vmem:[%s244 + $0x208] sm:$0xff]
      %v369 = vld [vmem:[%s244 + $0x210] sm:$0xff]
      %v370 = vld [vmem:[%s244 + $0x218] sm:$0xff]
      %v371 = vld [vmem:[%s244 + $0x220] sm:$0xff]
      %v372 = vld [vmem:[%s244 + $0x228] sm:$0xff]
      %v373 = vld [vmem:[%s244 + $0x230] sm:$0xff]
      %v374 = vld [vmem:[%s244 + $0x238] sm:$0xff]
      %v375 = vld [vmem:[%s244 + $0x240] sm:$0xff]
      %v376 = vld [vmem:[%s244 + $0x248] sm:$0xff]
      %v377 = vld [vmem:[%s244 + $0x250] sm:$0xff]
      %v378 = vld [vmem:[%s244 + $0x258] sm:$0xff]
      %v379 = vld [vmem:[%s244 + $0x260] sm:$0xff]
      %v380 = vld [vmem:[%s244 + $0x268] sm:$0xff]
      %v381 = vld [vmem:[%s244 + $0x270] sm:$0xff]
      %v382 = vld [vmem:[%s244 + $0x278] sm:$0xff]
      %v383 = vld [vmem:[%s244 + $0x280] sm:$0xff]
      %v384 = vld [vmem:[%s244 + $0x288] sm:$0xff]
      %v385 = vld [vmem:[%s244 + $0x290] sm:$0xff]
      %v386 = vld [vmem:[%s244 + $0x298] sm:$0xff]
      %v387 = vld [vmem:[%s244 + $0x2a0] sm:$0xff]
      %v388 = vld [vmem:[%s244 + $0x2a8] sm:$0xff]
      %v389 = vld [vmem:[%s244 + $0x2b0] sm:$0xff]
      %v390 = vld [vmem:[%s244 + $0x2b8] sm:$0xff]
      %v391 = vld [vmem:[%s244 + $0x2c0] sm:$0xff]
      %v392 = vld [vmem:[%s244 + $0x2c8] sm:$0xff]
      %v393 = vld [vmem:[%s244 + $0x2d0] sm:$0xff]
      %v394 = vld [vmem:[%s244 + $0x2d8] sm:$0xff]
      %v395 = vld [vmem:[%s244 + $0x2e0] sm:$0xff]
      %v396 = vld [vmem:[%s244 + $0x2e8] sm:$0xff]
      %v397 = vld [vmem:[%s244 + $0x2f0] sm:$0xff]
      %v398 = vld [vmem:[%s244 + $0x2f8] sm:$0xff]
      %v399 = vld [vmem:[%s244 + $0x300] sm:$0xff]
      %v400 = vld [vmem:[%s244 + $0x308] sm:$0xff]
      %v401 = vld [vmem:[%s244 + $0x310] sm:$0xff]
      %v402 = vld [vmem:[%s244 + $0x318] sm:$0xff]
      %v403 = vld [vmem:[%s244 + $0x320] sm:$0xff]
      %v404 = vld [vmem:[%s244 + $0x328] sm:$0xff]
      %v405 = vld [vmem:[%s244 + $0x330] sm:$0xff]
      %v406 = vld [vmem:[%s244 + $0x338] sm:$0xff]
      %v407 = vld [vmem:[%s244 + $0x340] sm:$0xff]
      %v408 = vld [vmem:[%s244 + $0x348] sm:$0xff]
      %v409 = vld [vmem:[%s244 + $0x350] sm:$0xff]
      %v410 = vld [vmem:[%s244 + $0x358] sm:$0xff]
      %v411 = vld [vmem:[%s244 + $0x360] sm:$0xff]
      %v412 = vld [vmem:[%s244 + $0x368] sm:$0xff]
      %v413 = vld [vmem:[%s244 + $0x370] sm:$0xff]
      %v414 = vld [vmem:[%s244 + $0x378] sm:$0xff]
      %v415 = vld [vmem:[%s244 + $0x380] sm:$0xff]
      %v416 = vld [vmem:[%s244 + $0x388] sm:$0xff]
      %v417 = vld [vmem:[%s244 + $0x390] sm:$0xff]
      %v418 = vld [vmem:[%s244 + $0x398] sm:$0xff]
      %v419 = vld [vmem:[%s244 + $0x3a0] sm:$0xff]
      %v420 = vld [vmem:[%s244 + $0x3a8] sm:$0xff]
      %v421 = vld [vmem:[%s244 + $0x3b0] sm:$0xff]
      %v422 = vld [vmem:[%s244 + $0x3b8] sm:$0xff]
      %v423 = vld [vmem:[%s244 + $0x3c0] sm:$0xff]
      %v424 = vld [vmem:[%s244 + $0x3c8] sm:$0xff]
      %v425 = vld [vmem:[%s244 + $0x3d0] sm:$0xff]
      %v426 = vld [vmem:[%s244 + $0x3d8] sm:$0xff]
      %v427 = vld [vmem:[%s244 + $0x3e0] sm:$0xff]
      %v428 = vld [vmem:[%s244 + $0x3e8] sm:$0xff]
      %v429 = vld [vmem:[%s244 + $0x3f0] sm:$0xff]
      %v430 = vld [vmem:[%s244 + $0x3f8] sm:$0xff]
      %v431 = vld [vmem:[%s244 + $0x400] sm:$0xff]
      %v432 = vld [vmem:[%s244 + $0x408] sm:$0xff]
      %v433 = vld [vmem:[%s244 + $0x410] sm:$0xff]
      %v434 = vld [vmem:[%s244 + $0x418] sm:$0xff]
      %v435 = vld [vmem:[%s244 + $0x420] sm:$0xff]
      %v436 = vld [vmem:[%s244 + $0x428] sm:$0xff]
      %v437 = vld [vmem:[%s244 + $0x430] sm:$0xff]
      %v438 = vld [vmem:[%s244 + $0x438] sm:$0xff]
      %v439 = vld [vmem:[%s244 + $0x440] sm:$0xff]
      %v440 = vld [vmem:[%s244 + $0x448] sm:$0xff]
      %v441 = vld [vmem:[%s244 + $0x450] sm:$0xff]
      %v442 = vld [vmem:[%s244 + $0x458] sm:$0xff]
      %v443 = vld [vmem:[%s244 + $0x460] sm:$0xff]
      %v444 = vld [vmem:[%s244 + $0x468] sm:$0xff]
      %v445 = vld [vmem:[%s244 + $0x470] sm:$0xff]
      %v446 = vld [vmem:[%s244 + $0x478] sm:$0xff]
      %v447 = vld [vmem:[%s244 + $0x480] sm:$0xff]
      %v448 = vld [vmem:[%s244 + $0x488] sm:$0xff]
      %v449 = vld [vmem:[%s244 + $0x490] sm:$0xff]
      %v450 = vld [vmem:[%s244 + $0x498] sm:$0xff]
      %v451 = vld [vmem:[%s244 + $0x4a0] sm:$0xff]
      %v452 = vld [vmem:[%s244 + $0x4a8] sm:$0xff]
      %v453 = vld [vmem:[%s244 + $0x4b0] sm:$0xff]
      %v454 = vld [vmem:[%s244 + $0x4b8] sm:$0xff]
      %v455 = vld [vmem:[%s244 + $0x4c0] sm:$0xff]
      %v456 = vld [vmem:[%s244 + $0x4c8] sm:$0xff]
      %v457 = vld [vmem:[%s244 + $0x4d0] sm:$0xff]
      %v458 = vld [vmem:[%s244 + $0x4d8] sm:$0xff]
      %v459 = vld [vmem:[%s244 + $0x4e0] sm:$0xff]
      %v460 = vld [vmem:[%s244 + $0x4e8] sm:$0xff]
      %v461 = vld [vmem:[%s244 + $0x4f0] sm:$0xff]
      %v462 = vld [vmem:[%s244 + $0x4f8] sm:$0xff]
      %v463 = vld [vmem:[%s244 + $0x500] sm:$0xff]
      %v464 = vld [vmem:[%s244 + $0x508] sm:$0xff]
      %v465 = vld [vmem:[%s244 + $0x510] sm:$0xff]
      %v466 = vld [vmem:[%s244 + $0x518] sm:$0xff]
      %v467 = vld [vmem:[%s244 + $0x520] sm:$0xff]
      %v468 = vld [vmem:[%s244 + $0x528] sm:$0xff]
      %v469 = vld [vmem:[%s244 + $0x530] sm:$0xff]
      %v470 = vld [vmem:[%s244 + $0x538] sm:$0xff]
      %v471 = vld [vmem:[%s244 + $0x540] sm:$0xff]
      %v472 = vld [vmem:[%s244 + $0x548] sm:$0xff]
      %v473 = vld [vmem:[%s244 + $0x550] sm:$0xff]
      %v474 = vld [vmem:[%s244 + $0x558] sm:$0xff]
      %v475 = vld [vmem:[%s244 + $0x560] sm:$0xff]
      %v476 = vld [vmem:[%s244 + $0x568] sm:$0xff]
      %v477 = vld [vmem:[%s244 + $0x570] sm:$0xff]
      %v478 = vld [vmem:[%s244 + $0x578] sm:$0xff]
      %v479 = vld [vmem:[%s244 + $0x580] sm:$0xff]
      %v480 = vld [vmem:[%s244 + $0x588] sm:$0xff]
      %v481 = vld [vmem:[%s244 + $0x590] sm:$0xff]
      %v482 = vld [vmem:[%s244 + $0x598] sm:$0xff]
      %v483 = vld [vmem:[%s244 + $0x5a0] sm:$0xff]
      %v484 = vld [vmem:[%s244 + $0x5a8] sm:$0xff]
      %v485 = vld [vmem:[%s244 + $0x5b0] sm:$0xff]
      %v486 = vld [vmem:[%s244 + $0x5b8] sm:$0xff]
      %v487 = vld [vmem:[%s244 + $0x5c0] sm:$0xff]
      %v488 = vld [vmem:[%s244 + $0x5c8] sm:$0xff]
      %v489 = vld [vmem:[%s244 + $0x5d0] sm:$0xff]
      %v490 = vld [vmem:[%s244 + $0x5d8] sm:$0xff]
      %v491 = vld [vmem:[%s244 + $0x5e0] sm:$0xff]
      %v492 = vld [vmem:[%s244 + $0x5e8] sm:$0xff]
      %v493 = vld [vmem:[%s244 + $0x5f0] sm:$0xff]
      %v494 = vld [vmem:[%s244 + $0x5f8] sm:$0xff]
      %v495 = vld [vmem:[%s244 + $0x600] sm:$0xff]
      %v496 = vld [vmem:[%s244 + $0x608] sm:$0xff]
      %v497 = vld [vmem:[%s244 + $0x610] sm:$0xff]
      %v498 = vld [vmem:[%s244 + $0x618] sm:$0xff]
      %v499 = vld [vmem:[%s244 + $0x620] sm:$0xff]
      %v500 = vld [vmem:[%s244 + $0x628] sm:$0xff]
      %v501 = vld [vmem:[%s244 + $0x630] sm:$0xff]
      %v502 = vld [vmem:[%s244 + $0x638] sm:$0xff]
      %v503 = vld [vmem:[%s244 + $0x640] sm:$0xff]
      %v504 = vld [vmem:[%s244 + $0x648] sm:$0xff]
      %v505 = vld [vmem:[%s244 + $0x650] sm:$0xff]
      %v506 = vld [vmem:[%s244 + $0x658] sm:$0xff]
      %v507 = vld [vmem:[%s244 + $0x660] sm:$0xff]
      %v508 = vld [vmem:[%s244 + $0x668] sm:$0xff]
      %v509 = vld [vmem:[%s244 + $0x670] sm:$0xff]
      %v510 = vld [vmem:[%s244 + $0x678] sm:$0xff]
      %v511 = vld [vmem:[%s244 + $0x680] sm:$0xff]
      %v512 = vld [vmem:[%s244 + $0x688] sm:$0xff]
      %v513 = vld [vmem:[%s244 + $0x690] sm:$0xff]
      %v514 = vld [vmem:[%s244 + $0x698] sm:$0xff]
      %v515 = vld [vmem:[%s244 + $0x6a0] sm:$0xff]
      %v516 = vld [vmem:[%s244 + $0x6a8] sm:$0xff]
      %v517 = vld [vmem:[%s244 + $0x6b0] sm:$0xff]
      %v518 = vld [vmem:[%s244 + $0x6b8] sm:$0xff]
      %v519 = vld [vmem:[%s244 + $0x6c0] sm:$0xff]
      %v520 = vld [vmem:[%s244 + $0x6c8] sm:$0xff]
      %v521 = vld [vmem:[%s244 + $0x6d0] sm:$0xff]
      %v522 = vld [vmem:[%s244 + $0x6d8] sm:$0xff]
      %v523 = vld [vmem:[%s244 + $0x6e0] sm:$0xff]
      %v524 = vld [vmem:[%s244 + $0x6e8] sm:$0xff]
      %v525 = vld [vmem:[%s244 + $0x6f0] sm:$0xff]
      %v526 = vld [vmem:[%s244 + $0x6f8] sm:$0xff]
      %v527 = vld [vmem:[%s244 + $0x700] sm:$0xff]
      %v528 = vld [vmem:[%s244 + $0x708] sm:$0xff]
      %v529 = vld [vmem:[%s244 + $0x710] sm:$0xff]
      %v530 = vld [vmem:[%s244 + $0x718] sm:$0xff]
      %v531 = vld [vmem:[%s244 + $0x720] sm:$0xff]
      %v532 = vld [vmem:[%s244 + $0x728] sm:$0xff]
      %v533 = vld [vmem:[%s244 + $0x730] sm:$0xff]
      %v534 = vld [vmem:[%s244 + $0x738] sm:$0xff]
      %v535 = vld [vmem:[%s244 + $0x740] sm:$0xff]
      %v536 = vld [vmem:[%s244 + $0x748] sm:$0xff]
      %v537 = vld [vmem:[%s244 + $0x750] sm:$0xff]
      %v538 = vld [vmem:[%s244 + $0x758] sm:$0xff]
      %v539 = vld [vmem:[%s244 + $0x760] sm:$0xff]
      %v540 = vld [vmem:[%s244 + $0x768] sm:$0xff]
      %v541 = vld [vmem:[%s244 + $0x770] sm:$0xff]
      %v542 = vld [vmem:[%s244 + $0x778] sm:$0xff]
      %v543 = vld [vmem:[%s244 + $0x780] sm:$0xff]
      %v544 = vld [vmem:[%s244 + $0x788] sm:$0xff]
      %v545 = vld [vmem:[%s244 + $0x790] sm:$0xff]
      %v546 = vld [vmem:[%s244 + $0x798] sm:$0xff]
      %v547 = vld [vmem:[%s244 + $0x7a0] sm:$0xff]
      %v548 = vld [vmem:[%s244 + $0x7a8] sm:$0xff]
      %v549 = vld [vmem:[%s244 + $0x7b0] sm:$0xff]
      %v550 = vld [vmem:[%s244 + $0x7b8] sm:$0xff]
      %v551 = vld [vmem:[%s244 + $0x7c0] sm:$0xff]
      %v552 = vld [vmem:[%s244 + $0x7c8] sm:$0xff]
      %v553 = vld [vmem:[%s244 + $0x7d0] sm:$0xff]
      %v554 = vld [vmem:[%s244 + $0x7d8] sm:$0xff]
      %v555 = vld [vmem:[%s244 + $0x7e0] sm:$0xff]
      %v556 = vld [vmem:[%s244 + $0x7e8] sm:$0xff]
      %v557 = vld [vmem:[%s244 + $0x7f0] sm:$0xff]
      %v558 = vld [vmem:[%s244 + $0x7f8] sm:$0xff]
      %v559 = vld [vmem:[%s244 + $0x800] sm:$0xff]
      %v560 = vld [vmem:[%s244 + $0x808] sm:$0xff]
      %v561 = vld [vmem:[%s244 + $0x810] sm:$0xff]
      %v562 = vld [vmem:[%s244 + $0x818] sm:$0xff]
      %v563 = vld [vmem:[%s244 + $0x820] sm:$0xff]
      %v564 = vld [vmem:[%s244 + $0x828] sm:$0xff]
      %v565 = vld [vmem:[%s244 + $0x830] sm:$0xff]
      %v566 = vld [vmem:[%s244 + $0x838] sm:$0xff]
      %v567 = vld [vmem:[%s244 + $0x840] sm:$0xff]
      %v568 = vld [vmem:[%s244 + $0x848] sm:$0xff]
      %v569 = vld [vmem:[%s244 + $0x850] sm:$0xff]
      %v570 = vld [vmem:[%s244 + $0x858] sm:$0xff]
      %v571 = vld [vmem:[%s244 + $0x860] sm:$0xff]
      %v572 = vld [vmem:[%s244 + $0x868] sm:$0xff]
      %v573 = vld [vmem:[%s244 + $0x870] sm:$0xff]
      %v574 = vld [vmem:[%s244 + $0x878] sm:$0xff]
      %v575 = vld [vmem:[%s244 + $0x880] sm:$0xff]
      %v576 = vld [vmem:[%s244 + $0x888] sm:$0xff]
      %v577 = vld [vmem:[%s244 + $0x890] sm:$0xff]
      %v578 = vld [vmem:[%s244 + $0x898] sm:$0xff]
      %v579 = vld [vmem:[%s244 + $0x8a0] sm:$0xff]
      %v580 = vld [vmem:[%s244 + $0x8a8] sm:$0xff]
      %v581 = vld [vmem:[%s244 + $0x8b0] sm:$0xff]
      %v582 = vld [vmem:[%s244 + $0x8b8] sm:$0xff]
      %v583 = vld [vmem:[%s244 + $0x8c0] sm:$0xff]
      %v584 = vld [vmem:[%s244 + $0x8c8] sm:$0xff]
      %v585 = vld [vmem:[%s244 + $0x8d0] sm:$0xff]
      %v586 = vld [vmem:[%s244 + $0x8d8] sm:$0xff]
      %v587 = vld [vmem:[%s244 + $0x8e0] sm:$0xff]
      %v588 = vld [vmem:[%s244 + $0x8e8] sm:$0xff]
      %v589 = vld [vmem:[%s244 + $0x8f0] sm:$0xff]
      %v590 = vld [vmem:[%s244 + $0x8f8] sm:$0xff]
      %v591 = vld [vmem:[%s244 + $0x900] sm:$0xff]
      %v592 = vld [vmem:[%s244 + $0x908] sm:$0xff]
      %v593 = vld [vmem:[%s244 + $0x910] sm:$0xff]
      %v594 = vld [vmem:[%s244 + $0x918] sm:$0xff]
      %v595 = vld [vmem:[%s244 + $0x920] sm:$0xff]
      %v596 = vld [vmem:[%s244 + $0x928] sm:$0xff]
      %v597 = vld [vmem:[%s244 + $0x930] sm:$0xff]
      %v598 = vld [vmem:[%s244 + $0x938] sm:$0xff]
      %v599 = vld [vmem:[%s244 + $0x940] sm:$0xff]
      %v600 = vld [vmem:[%s244 + $0x948] sm:$0xff]
      %v601 = vld [vmem:[%s244 + $0x950] sm:$0xff]
      %v602 = vld [vmem:[%s244 + $0x958] sm:$0xff]
      %v603 = vld [vmem:[%s244 + $0x960] sm:$0xff]
      %v604 = vld [vmem:[%s244 + $0x968] sm:$0xff]
      %v605 = vld [vmem:[%s244 + $0x970] sm:$0xff]
      %v606 = vld [vmem:[%s244 + $0x978] sm:$0xff]
      %v607 = vld [vmem:[%s244 + $0x980] sm:$0xff]
      %v608 = vld [vmem:[%s244 + $0x988] sm:$0xff]
      %v609 = vld [vmem:[%s244 + $0x990] sm:$0xff]
      %v610 = vld [vmem:[%s244 + $0x998] sm:$0xff]
      %v611 = vld [vmem:[%s244 + $0x9a0] sm:$0xff]
      %v612 = vld [vmem:[%s244 + $0x9a8] sm:$0xff]
      %v613 = vld [vmem:[%s244 + $0x9b0] sm:$0xff]
      %v614 = vld [vmem:[%s244 + $0x9b8] sm:$0xff]
      %v615 = vld [vmem:[%s244 + $0x9c0] sm:$0xff]
      %v616 = vld [vmem:[%s244 + $0x9c8] sm:$0xff]
      %v617 = vld [vmem:[%s244 + $0x9d0] sm:$0xff]
      %v618 = vld [vmem:[%s244 + $0x9d8] sm:$0xff]
      %v619 = vld [vmem:[%s244 + $0x9e0] sm:$0xff]
      %v620 = vld [vmem:[%s244 + $0x9e8] sm:$0xff]
      %v621 = vld [vmem:[%s244 + $0x9f0] sm:$0xff]
      %v622 = vld [vmem:[%s244 + $0x9f8] sm:$0xff]
      %v623 = vld [vmem:[%s244 + $0xa00] sm:$0xff]
      %v624 = vld [vmem:[%s244 + $0xa08] sm:$0xff]
      %v625 = vld [vmem:[%s244 + $0xa10] sm:$0xff]
      %v626 = vld [vmem:[%s244 + $0xa18] sm:$0xff]
      %v627 = vld [vmem:[%s244 + $0xa20] sm:$0xff]
      %v628 = vld [vmem:[%s244 + $0xa28] sm:$0xff]
      %v629 = vld [vmem:[%s244 + $0xa30] sm:$0xff]
      %v630 = vld [vmem:[%s244 + $0xa38] sm:$0xff]
      %v631 = vld [vmem:[%s244 + $0xa40] sm:$0xff]
      %v632 = vld [vmem:[%s244 + $0xa48] sm:$0xff]
      %v633 = vld [vmem:[%s244 + $0xa50] sm:$0xff]
      %v634 = vld [vmem:[%s244 + $0xa58] sm:$0xff]
      %v635 = vld [vmem:[%s244 + $0xa60] sm:$0xff]
      %v636 = vld [vmem:[%s244 + $0xa68] sm:$0xff]
      %v637 = vld [vmem:[%s244 + $0xa70] sm:$0xff]
      %v638 = vld [vmem:[%s244 + $0xa78] sm:$0xff]
      %v639 = vld [vmem:[%s244 + $0xa80] sm:$0xff]
      %v640 = vld [vmem:[%s244 + $0xa88] sm:$0xff]
      %v641 = vld [vmem:[%s244 + $0xa90] sm:$0xff]
      %v642 = vld [vmem:[%s244 + $0xa98] sm:$0xff]
      %v643 = vld [vmem:[%s244 + $0xaa0] sm:$0xff]
      %v644 = vld [vmem:[%s244 + $0xaa8] sm:$0xff]
      %v645 = vld [vmem:[%s244 + $0xab0] sm:$0xff]
      %v646 = vld [vmem:[%s244 + $0xab8] sm:$0xff]
      %v647 = vld [vmem:[%s244 + $0xac0] sm:$0xff]
      %v648 = vld [vmem:[%s244 + $0xac8] sm:$0xff]
      %v649 = vld [vmem:[%s244 + $0xad0] sm:$0xff]
      %v650 = vld [vmem:[%s244 + $0xad8] sm:$0xff]
      %v651 = vld [vmem:[%s244 + $0xae0] sm:$0xff]
      %v652 = vld [vmem:[%s244 + $0xae8] sm:$0xff]
      %v653 = vld [vmem:[%s244 + $0xaf0] sm:$0xff]
      %v654 = vld [vmem:[%s244 + $0xaf8] sm:$0xff]
      %v655 = vld [vmem:[%s244 + $0xb00] sm:$0xff]
      %v656 = vld [vmem:[%s244 + $0xb08] sm:$0xff]
      %v657 = vld [vmem:[%s244 + $0xb10] sm:$0xff]
      %v658 = vld [vmem:[%s244 + $0xb18] sm:$0xff]
      %v659 = vld [vmem:[%s244 + $0xb20] sm:$0xff]
      %v660 = vld [vmem:[%s244 + $0xb28] sm:$0xff]
      %v661 = vld [vmem:[%s244 + $0xb30] sm:$0xff]
      %v662 = vld [vmem:[%s244 + $0xb38] sm:$0xff]
      %v663 = vld [vmem:[%s244 + $0xb40] sm:$0xff]
      %v664 = vld [vmem:[%s244 + $0xb48] sm:$0xff]
      %v665 = vld [vmem:[%s244 + $0xb50] sm:$0xff]
      %v666 = vld [vmem:[%s244 + $0xb58] sm:$0xff]
      %v667 = vld [vmem:[%s244 + $0xb60] sm:$0xff]
      %v668 = vld [vmem:[%s244 + $0xb68] sm:$0xff]
      %v669 = vld [vmem:[%s244 + $0xb70] sm:$0xff]
      %v670 = vld [vmem:[%s244 + $0xb78] sm:$0xff]
      %v671 = vld [vmem:[%s244 + $0xb80] sm:$0xff]
      %v672 = vld [vmem:[%s244 + $0xb88] sm:$0xff]
      %v673 = vld [vmem:[%s244 + $0xb90] sm:$0xff]
      %v674 = vld [vmem:[%s244 + $0xb98] sm:$0xff]
      %v675 = vld [vmem:[%s244 + $0xba0] sm:$0xff]
      %v676 = vld [vmem:[%s244 + $0xba8] sm:$0xff]
      %v677 = vld [vmem:[%s244 + $0xbb0] sm:$0xff]
      %v678 = vld [vmem:[%s244 + $0xbb8] sm:$0xff]
      %v679 = vld [vmem:[%s244 + $0xbc0] sm:$0xff]
      %v680 = vld [vmem:[%s244 + $0xbc8] sm:$0xff]
      %v681 = vld [vmem:[%s244 + $0xbd0] sm:$0xff]
      %v682 = vld [vmem:[%s244 + $0xbd8] sm:$0xff]
      %v683 = vld [vmem:[%s244 + $0xbe0] sm:$0xff]
      %v684 = vld [vmem:[%s244 + $0xbe8] sm:$0xff]
      %v685 = vld [vmem:[%s244 + $0xbf0] sm:$0xff]
      %v686 = vld [vmem:[%s244 + $0xbf8] sm:$0xff]
      %v687 = vld [vmem:[%s244 + $0xc00] sm:$0xff]
      %v688 = vld [vmem:[%s244 + $0xc08] sm:$0xff]
      %v689 = vld [vmem:[%s244 + $0xc10] sm:$0xff]
      %v690 = vld [vmem:[%s244 + $0xc18] sm:$0xff]
      %v691 = vld [vmem:[%s244 + $0xc20] sm:$0xff]
      %v692 = vld [vmem:[%s244 + $0xc28] sm:$0xff]
      %v693 = vld [vmem:[%s244 + $0xc30] sm:$0xff]
      %v694 = vld [vmem:[%s244 + $0xc38] sm:$0xff]
      %v695 = vld [vmem:[%s244 + $0xc40] sm:$0xff]
      %v696 = vld [vmem:[%s244 + $0xc48] sm:$0xff]
      %v697 = vld [vmem:[%s244 + $0xc50] sm:$0xff]
      %v698 = vld [vmem:[%s244 + $0xc58] sm:$0xff]
      %v699 = vld [vmem:[%s244 + $0xc60] sm:$0xff]
      %v700 = vld [vmem:[%s244 + $0xc68] sm:$0xff]
      %v701 = vld [vmem:[%s244 + $0xc70] sm:$0xff]
      %v702 = vld [vmem:[%s244 + $0xc78] sm:$0xff]
      %v703 = vld [vmem:[%s244 + $0xc80] sm:$0xff]
      %v704 = vld [vmem:[%s244 + $0xc88] sm:$0xff]
      %v705 = vld [vmem:[%s244 + $0xc90] sm:$0xff]
      %v706 = vld [vmem:[%s244 + $0xc98] sm:$0xff]
      %v707 = vld [vmem:[%s244 + $0xca0] sm:$0xff]
      %v708 = vld [vmem:[%s244 + $0xca8] sm:$0xff]
      %v709 = vld [vmem:[%s244 + $0xcb0] sm:$0xff]
      %v710 = vld [vmem:[%s244 + $0xcb8] sm:$0xff]
      %v711 = vld [vmem:[%s244 + $0xcc0] sm:$0xff]
      %v712 = vld [vmem:[%s244 + $0xcc8] sm:$0xff]
      %v713 = vld [vmem:[%s244 + $0xcd0] sm:$0xff]
      %v714 = vld [vmem:[%s244 + $0xcd8] sm:$0xff]
      %v715 = vld [vmem:[%s244 + $0xce0] sm:$0xff]
      %v716 = vld [vmem:[%s244 + $0xce8] sm:$0xff]
      %v717 = vld [vmem:[%s244 + $0xcf0] sm:$0xff]
      %v718 = vld [vmem:[%s244 + $0xcf8] sm:$0xff]
      %v719 = vld [vmem:[%s244 + $0xd00] sm:$0xff]
      %v720 = vld [vmem:[%s244 + $0xd08] sm:$0xff]
      %v721 = vld [vmem:[%s244 + $0xd10] sm:$0xff]
      %v722 = vld [vmem:[%s244 + $0xd18] sm:$0xff]
      %v723 = vld [vmem:[%s244 + $0xd20] sm:$0xff]
      %v724 = vld [vmem:[%s244 + $0xd28] sm:$0xff]
      %v725 = vld [vmem:[%s244 + $0xd30] sm:$0xff]
      %v726 = vld [vmem:[%s244 + $0xd38] sm:$0xff]
      %v727 = vld [vmem:[%s244 + $0xd40] sm:$0xff]
      %v728 = vld [vmem:[%s244 + $0xd48] sm:$0xff]
      %v729 = vld [vmem:[%s244 + $0xd50] sm:$0xff]
      %v730 = vld [vmem:[%s244 + $0xd58] sm:$0xff]
      %v731 = vld [vmem:[%s244 + $0xd60] sm:$0xff]
      %v732 = vld [vmem:[%s244 + $0xd68] sm:$0xff]
      %v733 = vld [vmem:[%s244 + $0xd70] sm:$0xff]
      %v734 = vld [vmem:[%s244 + $0xd78] sm:$0xff]
      %v735 = vld [vmem:[%s244 + $0xd80] sm:$0xff]
      %v736 = vld [vmem:[%s244 + $0xd88] sm:$0xff]
      %v737 = vld [vmem:[%s244 + $0xd90] sm:$0xff]
      %v738 = vld [vmem:[%s244 + $0xd98] sm:$0xff]
      %v739 = vld [vmem:[%s244 + $0xda0] sm:$0xff]
      %v740 = vld [vmem:[%s244 + $0xda8] sm:$0xff]
      %v741 = vld [vmem:[%s244 + $0xdb0] sm:$0xff]
      %v742 = vld [vmem:[%s244 + $0xdb8] sm:$0xff]
      %v743 = vld [vmem:[%s244 + $0xdc0] sm:$0xff]
      %v744 = vld [vmem:[%s244 + $0xdc8] sm:$0xff]
      %v745 = vld [vmem:[%s244 + $0xdd0] sm:$0xff]
      %v746 = vld [vmem:[%s244 + $0xdd8] sm:$0xff]
      %v747 = vld [vmem:[%s244 + $0xde0] sm:$0xff]
      %v748 = vld [vmem:[%s244 + $0xde8] sm:$0xff]
      %v749 = vld [vmem:[%s244 + $0xdf0] sm:$0xff]
      %v750 = vld [vmem:[%s244 + $0xdf8] sm:$0xff]
      %v751 = vld [vmem:[%s244 + $0xe00] sm:$0xff]
      %v752 = vld [vmem:[%s244 + $0xe08] sm:$0xff]
      %v753 = vld [vmem:[%s244 + $0xe10] sm:$0xff]
      %v754 = vld [vmem:[%s244 + $0xe18] sm:$0xff]
      %v755 = vld [vmem:[%s244 + $0xe20] sm:$0xff]
      %v756 = vld [vmem:[%s244 + $0xe28] sm:$0xff]
      %v757 = vld [vmem:[%s244 + $0xe30] sm:$0xff]
      %v758 = vld [vmem:[%s244 + $0xe38] sm:$0xff]
      %v759 = vld [vmem:[%s244 + $0xe40] sm:$0xff]
      %v760 = vld [vmem:[%s244 + $0xe48] sm:$0xff]
      %v761 = vld [vmem:[%s244 + $0xe50] sm:$0xff]
      %v762 = vld [vmem:[%s244 + $0xe58] sm:$0xff]
      %v763 = vld [vmem:[%s244 + $0xe60] sm:$0xff]
      %v764 = vld [vmem:[%s244 + $0xe68] sm:$0xff]
      %v765 = vld [vmem:[%s244 + $0xe70] sm:$0xff]
      %v766 = vld [vmem:[%s244 + $0xe78] sm:$0xff]
      %v767 = vld [vmem:[%s244 + $0xe80] sm:$0xff]
      %v768 = vld [vmem:[%s244 + $0xe88] sm:$0xff]
      %v769 = vld [vmem:[%s244 + $0xe90] sm:$0xff]
      %v770 = vld [vmem:[%s244 + $0xe98] sm:$0xff]
      %v771 = vld [vmem:[%s244 + $0xea0] sm:$0xff]
      %v772 = vld [vmem:[%s244 + $0xea8] sm:$0xff]
      %v773 = vld [vmem:[%s244 + $0xeb0] sm:$0xff]
      %v774 = vld [vmem:[%s244 + $0xeb8] sm:$0xff]
      %v775 = vld [vmem:[%s244 + $0xec0] sm:$0xff]
      %v776 = vld [vmem:[%s244 + $0xec8] sm:$0xff]
      %v777 = vld [vmem:[%s244 + $0xed0] sm:$0xff]
      %v778 = vld [vmem:[%s244 + $0xed8] sm:$0xff]
      %v779 = vld [vmem:[%s244 + $0xee0] sm:$0xff]
      %v780 = vld [vmem:[%s244 + $0xee8] sm:$0xff]
      %v781 = vld [vmem:[%s244 + $0xef0] sm:$0xff]
      %v782 = vld [vmem:[%s244 + $0xef8] sm:$0xff]
      %v783 = vld [vmem:[%s244 + $0xf00] sm:$0xff]
      %v784 = vld [vmem:[%s244 + $0xf08] sm:$0xff]
      %v785 = vld [vmem:[%s244 + $0xf10] sm:$0xff]
      %v786 = vld [vmem:[%s244 + $0xf18] sm:$0xff]
      %v787 = vld [vmem:[%s244 + $0xf20] sm:$0xff]
      %v788 = vld [vmem:[%s244 + $0xf28] sm:$0xff]
      %v789 = vld [vmem:[%s244 + $0xf30] sm:$0xff]
      %v790 = vld [vmem:[%s244 + $0xf38] sm:$0xff]
      %v791 = vld [vmem:[%s244 + $0xf40] sm:$0xff]
      %v792 = vld [vmem:[%s244 + $0xf48] sm:$0xff]
      %v793 = vld [vmem:[%s244 + $0xf50] sm:$0xff]
      %v794 = vld [vmem:[%s244 + $0xf58] sm:$0xff]
      %v795 = vld [vmem:[%s244 + $0xf60] sm:$0xff]
      %v796 = vld [vmem:[%s244 + $0xf68] sm:$0xff]
      %v797 = vld [vmem:[%s244 + $0xf70] sm:$0xff]
      %v798 = vld [vmem:[%s244 + $0xf78] sm:$0xff]
      %v799 = vld [vmem:[%s244 + $0xf80] sm:$0xff]
      %v800 = vld [vmem:[%s244 + $0xf88] sm:$0xff]
      %v801 = vld [vmem:[%s244 + $0xf90] sm:$0xff]
      %v802 = vld [vmem:[%s244 + $0xf98] sm:$0xff]
      %v803 = vld [vmem:[%s244 + $0xfa0] sm:$0xff]
      %v804 = vld [vmem:[%s244 + $0xfa8] sm:$0xff]
      %v805 = vld [vmem:[%s244 + $0xfb0] sm:$0xff]
      %v806 = vld [vmem:[%s244 + $0xfb8] sm:$0xff]
      %v807 = vld [vmem:[%s244 + $0xfc0] sm:$0xff]
      %v808 = vld [vmem:[%s244 + $0xfc8] sm:$0xff]
      %v809 = vld [vmem:[%s244 + $0xfd0] sm:$0xff]
      %v810 = vld [vmem:[%s244 + $0xfd8] sm:$0xff]
      %v811 = vld [vmem:[%s244 + $0xfe0] sm:$0xff]
      %v812 = vld [vmem:[%s244 + $0xfe8] sm:$0xff]
      %v813 = vld [vmem:[%s244 + $0xff0] sm:$0xff]
      %v814 = vld [vmem:[%s244 + $0xff8] sm:$0xff]
      %v815 = vld [vmem:[%s244 + $0x1000] sm:$0xff]
      %v816 = vld [vmem:[%s244 + $0x1008] sm:$0xff]
      %v817 = vld [vmem:[%s244 + $0x1010] sm:$0xff]
      %v818 = vld [vmem:[%s244 + $0x1018] sm:$0xff]
      %v819 = vld [vmem:[%s244 + $0x1020] sm:$0xff]
      %v820 = vld [vmem:[%s244 + $0x1028] sm:$0xff]
      %v821 = vld [vmem:[%s244 + $0x1030] sm:$0xff]
      %v822 = vld [vmem:[%s244 + $0x1038] sm:$0xff]
      %v823 = vld [vmem:[%s244 + $0x1040] sm:$0xff]
      %v824 = vld [vmem:[%s244 + $0x1048] sm:$0xff]
      %v825 = vld [vmem:[%s244 + $0x1050] sm:$0xff]
      %v826 = vld [vmem:[%s244 + $0x1058] sm:$0xff]
      %v827 = vld [vmem:[%s244 + $0x1060] sm:$0xff]
      %v828 = vld [vmem:[%s244 + $0x1068] sm:$0xff]
      %v829 = vld [vmem:[%s244 + $0x1070] sm:$0xff]
      %v830 = vld [vmem:[%s244 + $0x1078] sm:$0xff]
      %v831 = vld [vmem:[%s244 + $0x1080] sm:$0xff]
      %v832 = vld [vmem:[%s244 + $0x1088] sm:$0xff]
      %v833 = vld [vmem:[%s244 + $0x1090] sm:$0xff]
      %v834 = vld [vmem:[%s244 + $0x1098] sm:$0xff]
      %v835 = vld [vmem:[%s244 + $0x10a0] sm:$0xff]
      %v836 = vld [vmem:[%s244 + $0x10a8] sm:$0xff]
      %v837 = vld [vmem:[%s244 + $0x10b0] sm:$0xff]
      %v838 = vld [vmem:[%s244 + $0x10b8] sm:$0xff]
      %v839 = vld [vmem:[%s244 + $0x10c0] sm:$0xff]
      %v840 = vld [vmem:[%s244 + $0x10c8] sm:$0xff]
      %v841 = vld [vmem:[%s244 + $0x10d0] sm:$0xff]
      %v842 = vld [vmem:[%s244 + $0x10d8] sm:$0xff]
      %v843 = vld [vmem:[%s244 + $0x10e0] sm:$0xff]
      %v844 = vld [vmem:[%s244 + $0x10e8] sm:$0xff]
      %v845 = vld [vmem:[%s244 + $0x10f0] sm:$0xff]
      %v846 = vld [vmem:[%s244 + $0x10f8] sm:$0xff]
      %v847 = vld [vmem:[%s244 + $0x1100] sm:$0xff]
      %v848 = vld [vmem:[%s244 + $0x1108] sm:$0xff]
      %v849 = vld [vmem:[%s244 + $0x1110] sm:$0xff]
      %v850 = vld [vmem:[%s244 + $0x1118] sm:$0xff]
      %v851 = vld [vmem:[%s244 + $0x1120] sm:$0xff]
      %v852 = vld [vmem:[%s244 + $0x1128] sm:$0xff]
      %v853 = vld [vmem:[%s244 + $0x1130] sm:$0xff]
      %v854 = vld [vmem:[%s244 + $0x1138] sm:$0xff]
      %v855 = vld [vmem:[%s244 + $0x1140] sm:$0xff]
      %v856 = vld [vmem:[%s244 + $0x1148] sm:$0xff]
      %v857 = vld [vmem:[%s244 + $0x1150] sm:$0xff]
      %v858 = vld [vmem:[%s244 + $0x1158] sm:$0xff]
      %v859 = vld [vmem:[%s244 + $0x1160] sm:$0xff]
      %v860 = vld [vmem:[%s244 + $0x1168] sm:$0xff]
      %v861 = vld [vmem:[%s244 + $0x1170] sm:$0xff]
      %v862 = vld [vmem:[%s244 + $0x1178] sm:$0xff]
      %v863 = vld [vmem:[%s244 + $0x1180] sm:$0xff]
      %v864 = vld [vmem:[%s244 + $0x1188] sm:$0xff]
      %v865 = vld [vmem:[%s244 + $0x1190] sm:$0xff]
      %v866 = vld [vmem:[%s244 + $0x1198] sm:$0xff]
      %v867 = vld [vmem:[%s244 + $0x11a0] sm:$0xff]
      %v868 = vld [vmem:[%s244 + $0x11a8] sm:$0xff]
      %v869 = vld [vmem:[%s244 + $0x11b0] sm:$0xff]
      %v870 = vld [vmem:[%s244 + $0x11b8] sm:$0xff]
      %v871 = vld [vmem:[%s244 + $0x11c0] sm:$0xff]
      %v872 = vld [vmem:[%s244 + $0x11c8] sm:$0xff]
      %v873 = vld [vmem:[%s244 + $0x11d0] sm:$0xff]
      %v874 = vld [vmem:[%s244 + $0x11d8] sm:$0xff]
      %v875 = vld [vmem:[%s244 + $0x11e0] sm:$0xff]
      %v876 = vld [vmem:[%s244 + $0x11e8] sm:$0xff]
      %v877 = vld [vmem:[%s244 + $0x11f0] sm:$0xff]
      %v878 = vld [vmem:[%s244 + $0x11f8] sm:$0xff]
      %v879 = vld [vmem:[%s244 + $0x1200] sm:$0xff]
      %v880 = vld [vmem:[%s244 + $0x1208] sm:$0xff]
      %v881 = vld [vmem:[%s244 + $0x1210] sm:$0xff]
      %v882 = vld [vmem:[%s244 + $0x1218] sm:$0xff]
      %v883 = vld [vmem:[%s244 + $0x1220] sm:$0xff]
      %v884 = vld [vmem:[%s244 + $0x1228] sm:$0xff]
      %v885 = vld [vmem:[%s244 + $0x1230] sm:$0xff]
      %v886 = vld [vmem:[%s244 + $0x1238] sm:$0xff]
      %v887 = vld [vmem:[%s244 + $0x1240] sm:$0xff]
      %v888 = vld [vmem:[%s244 + $0x1248] sm:$0xff]
      %v889 = vld [vmem:[%s244 + $0x1250] sm:$0xff]
      %v890 = vld [vmem:[%s244 + $0x1258] sm:$0xff]
      %v891 = vld [vmem:[%s244 + $0x1260] sm:$0xff]
      %v892 = vld [vmem:[%s244 + $0x1268] sm:$0xff]
      %v893 = vld [vmem:[%s244 + $0x1270] sm:$0xff]
      %v894 = vld [vmem:[%s244 + $0x1278] sm:$0xff]
      %v895 = vld [vmem:[%s244 + $0x1280] sm:$0xff]
      %v896 = vld [vmem:[%s244 + $0x1288] sm:$0xff]
      %v897 = vld [vmem:[%s244 + $0x1290] sm:$0xff]
      %v898 = vld [vmem:[%s244 + $0x1298] sm:$0xff]
      %v899 = vld [vmem:[%s244 + $0x12a0] sm:$0xff]
      %v900 = vld [vmem:[%s244 + $0x12a8] sm:$0xff]
      %v901 = vld [vmem:[%s244 + $0x12b0] sm:$0xff]
      %v902 = vld [vmem:[%s244 + $0x12b8] sm:$0xff]
      %v903 = vld [vmem:[%s244 + $0x12c0] sm:$0xff]
      %v904 = vld [vmem:[%s244 + $0x12c8] sm:$0xff]
      %v905 = vld [vmem:[%s244 + $0x12d0] sm:$0xff]
      %v906 = vld [vmem:[%s244 + $0x12d8] sm:$0xff]
      %v907 = vld [vmem:[%s244 + $0x12e0] sm:$0xff]
      %v908 = vld [vmem:[%s244 + $0x12e8] sm:$0xff]
      %v909 = vld [vmem:[%s244 + $0x12f0] sm:$0xff]
      %v910 = vld [vmem:[%s244 + $0x12f8] sm:$0xff]
      %v911 = vld [vmem:[%s244 + $0x1300] sm:$0xff]
      %v912 = vld [vmem:[%s244 + $0x1308] sm:$0xff]
      %v913 = vld [vmem:[%s244 + $0x1310] sm:$0xff]
      %v914 = vld [vmem:[%s244 + $0x1318] sm:$0xff]
      %v915 = vld [vmem:[%s244 + $0x1320] sm:$0xff]
      %v916 = vld [vmem:[%s244 + $0x1328] sm:$0xff]
      %v917 = vld [vmem:[%s244 + $0x1330] sm:$0xff]
      %v918 = vld [vmem:[%s244 + $0x1338] sm:$0xff]
      %v919 = vld [vmem:[%s244 + $0x1340] sm:$0xff]
      %v920 = vld [vmem:[%s244 + $0x1348] sm:$0xff]
      %v921 = vld [vmem:[%s244 + $0x1350] sm:$0xff]
      %v922 = vld [vmem:[%s244 + $0x1358] sm:$0xff]
      %v923 = vld [vmem:[%s244 + $0x1360] sm:$0xff]
      %v924 = vld [vmem:[%s244 + $0x1368] sm:$0xff]
      %v925 = vld [vmem:[%s244 + $0x1370] sm:$0xff]
      %v926 = vld [vmem:[%s244 + $0x1378] sm:$0xff]
      %v927 = vld [vmem:[%s244 + $0x1380] sm:$0xff]
      %v928 = vld [vmem:[%s244 + $0x1388] sm:$0xff]
      %v929 = vld [vmem:[%s244 + $0x1390] sm:$0xff]
      %v930 = vld [vmem:[%s244 + $0x1398] sm:$0xff]
      %v931 = vld [vmem:[%s244 + $0x13a0] sm:$0xff]
      %v932 = vld [vmem:[%s244 + $0x13a8] sm:$0xff]
      %v933 = vld [vmem:[%s244 + $0x13b0] sm:$0xff]
      %v934 = vld [vmem:[%s244 + $0x13b8] sm:$0xff]
      %v935 = vld [vmem:[%s244 + $0x13c0] sm:$0xff]
      %v936 = vld [vmem:[%s244 + $0x13c8] sm:$0xff]
      %v937 = vld [vmem:[%s244 + $0x13d0] sm:$0xff]
      %v938 = vld [vmem:[%s244 + $0x13d8] sm:$0xff]
      %v939 = vld [vmem:[%s244 + $0x13e0] sm:$0xff]
      %v940 = vld [vmem:[%s244 + $0x13e8] sm:$0xff]
      %v941 = vld [vmem:[%s244 + $0x13f0] sm:$0xff]
      %v942 = vld [vmem:[%s244 + $0x13f8] sm:$0xff]
      %v943 = vld [vmem:[%s244 + $0x1400] sm:$0xff]
      %v944 = vld [vmem:[%s244 + $0x1408] sm:$0xff]
      %v945 = vld [vmem:[%s244 + $0x1410] sm:$0xff]
      %v946 = vld [vmem:[%s244 + $0x1418] sm:$0xff]
      %v947 = vld [vmem:[%s244 + $0x1420] sm:$0xff]
      %v948 = vld [vmem:[%s244 + $0x1428] sm:$0xff]
      %v949 = vld [vmem:[%s244 + $0x1430] sm:$0xff]
      %v950 = vld [vmem:[%s244 + $0x1438] sm:$0xff]
      %v951 = vld [vmem:[%s244 + $0x1440] sm:$0xff]
      %v952 = vld [vmem:[%s244 + $0x1448] sm:$0xff]
      %v953 = vld [vmem:[%s244 + $0x1450] sm:$0xff]
      %v954 = vld [vmem:[%s244 + $0x1458] sm:$0xff]
      %v955 = vld [vmem:[%s244 + $0x1460] sm:$0xff]
      %v956 = vld [vmem:[%s244 + $0x1468] sm:$0xff]
      %v957 = vld [vmem:[%s244 + $0x1470] sm:$0xff]
      %v958 = vld [vmem:[%s244 + $0x1478] sm:$0xff]
      %v959 = vld [vmem:[%s244 + $0x1480] sm:$0xff]
      %v960 = vld [vmem:[%s244 + $0x1488] sm:$0xff]
      %v961 = vld [vmem:[%s244 + $0x1490] sm:$0xff]
      %v962 = vld [vmem:[%s244 + $0x1498] sm:$0xff]
      %v963 = vld [vmem:[%s244 + $0x14a0] sm:$0xff]
      %v964 = vld [vmem:[%s244 + $0x14a8] sm:$0xff]
      %v965 = vld [vmem:[%s244 + $0x14b0] sm:$0xff]
      %v966 = vld [vmem:[%s244 + $0x14b8] sm:$0xff]
      %v967 = vld [vmem:[%s244 + $0x14c0] sm:$0xff]
      %v968 = vld [vmem:[%s244 + $0x14c8] sm:$0xff]
      %v969 = vld [vmem:[%s244 + $0x14d0] sm:$0xff]
      %v970 = vld [vmem:[%s244 + $0x14d8] sm:$0xff]
      %v971 = vld [vmem:[%s244 + $0x14e0] sm:$0xff]
      %v972 = vld [vmem:[%s244 + $0x14e8] sm:$0xff]
      %v973 = vld [vmem:[%s244 + $0x14f0] sm:$0xff]
      %v974 = vld [vmem:[%s244 + $0x14f8] sm:$0xff]
      %v975 = vld [vmem:[%s244 + $0x1500] sm:$0xff]
      %v976 = vld [vmem:[%s244 + $0x1508] sm:$0xff]
      %v977 = vld [vmem:[%s244 + $0x1510] sm:$0xff]
      %v978 = vld [vmem:[%s244 + $0x1518] sm:$0xff]
      %v979 = vld [vmem:[%s244 + $0x1520] sm:$0xff]
      %v980 = vld [vmem:[%s244 + $0x1528] sm:$0xff]
      %v981 = vld [vmem:[%s244 + $0x1530] sm:$0xff]
      %v982 = vld [vmem:[%s244 + $0x1538] sm:$0xff]
      %v983 = vld [vmem:[%s244 + $0x1540] sm:$0xff]
      %v984 = vld [vmem:[%s244 + $0x1548] sm:$0xff]
      %v985 = vld [vmem:[%s244 + $0x1550] sm:$0xff]
      %v986 = vld [vmem:[%s244 + $0x1558] sm:$0xff]
      %v987 = vld [vmem:[%s244 + $0x1560] sm:$0xff]
      %v988 = vld [vmem:[%s244 + $0x1568] sm:$0xff]
      %v989 = vld [vmem:[%s244 + $0x1570] sm:$0xff]
      %v990 = vld [vmem:[%s244 + $0x1578] sm:$0xff]
      %v991 = vld [vmem:[%s244 + $0x1580] sm:$0xff]
      %v992 = vld [vmem:[%s244 + $0x1588] sm:$0xff]
      %v993 = vld [vmem:[%s244 + $0x1590] sm:$0xff]
      %v994 = vld [vmem:[%s244 + $0x1598] sm:$0xff]
      %v995 = vld [vmem:[%s244 + $0x15a0] sm:$0xff]
      %v996 = vld [vmem:[%s244 + $0x15a8] sm:$0xff]
      %v997 = vld [vmem:[%s244 + $0x15b0] sm:$0xff]
      %v998 = vld [vmem:[%s244 + $0x15b8] sm:$0xff]
      %v999 = vld [vmem:[%s244 + $0x15c0] sm:$0xff]
      %v1000 = vld [vmem:[%s244 + $0x15c8] sm:$0xff]
      %v1001 = vld [vmem:[%s244 + $0x15d0] sm:$0xff]
      %v1002 = vld [vmem:[%s244 + $0x15d8] sm:$0xff]
      %v1003 = vld [vmem:[%s244 + $0x15e0] sm:$0xff]
      %v1004 = vld [vmem:[%s244 + $0x15e8] sm:$0xff]
      %v1005 = vld [vmem:[%s244 + $0x15f0] sm:$0xff]
      %v1006 = vld [vmem:[%s244 + $0x15f8] sm:$0xff]
      %v1007 = vld [vmem:[%s244 + $0x1600] sm:$0xff]
      %v1008 = vld [vmem:[%s244 + $0x1608] sm:$0xff]
      %v1009 = vld [vmem:[%s244 + $0x1610] sm:$0xff]
      %v1010 = vld [vmem:[%s244 + $0x1618] sm:$0xff]
      %v1011 = vld [vmem:[%s244 + $0x1620] sm:$0xff]
      %v1012 = vld [vmem:[%s244 + $0x1628] sm:$0xff]
      %v1013 = vld [vmem:[%s244 + $0x1630] sm:$0xff]
      %v1014 = vld [vmem:[%s244 + $0x1638] sm:$0xff]
      %v1015 = vld [vmem:[%s244 + $0x1640] sm:$0xff]
      %v1016 = vld [vmem:[%s244 + $0x1648] sm:$0xff]
      %v1017 = vld [vmem:[%s244 + $0x1650] sm:$0xff]
      %v1018 = vld [vmem:[%s244 + $0x1658] sm:$0xff]
      %v1019 = vld [vmem:[%s244 + $0x1660] sm:$0xff]
      %v1020 = vld [vmem:[%s244 + $0x1668] sm:$0xff]
      %v1021 = vld [vmem:[%s244 + $0x1670] sm:$0xff]
      %v1022 = vld [vmem:[%s244 + $0x1678] sm:$0xff]
      %v1023 = vld [vmem:[%s244 + $0x1680] sm:$0xff]
      %v1024 = vld [vmem:[%s244 + $0x1688] sm:$0xff]
      %v1025 = vld [vmem:[%s244 + $0x1690] sm:$0xff]
      %v1026 = vld [vmem:[%s244 + $0x1698] sm:$0xff]
      %v1027 = vld [vmem:[%s244 + $0x16a0] sm:$0xff]
      %v1028 = vld [vmem:[%s244 + $0x16a8] sm:$0xff]
      %v1029 = vld [vmem:[%s244 + $0x16b0] sm:$0xff]
      %v1030 = vld [vmem:[%s244 + $0x16b8] sm:$0xff]
      %v1031 = vld [vmem:[%s244 + $0x16c0] sm:$0xff]
      %v1032 = vld [vmem:[%s244 + $0x16c8] sm:$0xff]
      %v1033 = vld [vmem:[%s244 + $0x16d0] sm:$0xff]
      %v1034 = vld [vmem:[%s244 + $0x16d8] sm:$0xff]
      %v1035 = vld [vmem:[%s244 + $0x16e0] sm:$0xff]
      %v1036 = vld [vmem:[%s244 + $0x16e8] sm:$0xff]
      %v1037 = vld [vmem:[%s244 + $0x16f0] sm:$0xff]
      %v1038 = vld [vmem:[%s244 + $0x16f8] sm:$0xff]
      %v1039 = vld [vmem:[%s244 + $0x1700] sm:$0xff]
      %v1040 = vld [vmem:[%s244 + $0x1708] sm:$0xff]
      %v1041 = vld [vmem:[%s244 + $0x1710] sm:$0xff]
      %v1042 = vld [vmem:[%s244 + $0x1718] sm:$0xff]
      %v1043 = vld [vmem:[%s244 + $0x1720] sm:$0xff]
      %v1044 = vld [vmem:[%s244 + $0x1728] sm:$0xff]
      %v1045 = vld [vmem:[%s244 + $0x1730] sm:$0xff]
      %v1046 = vld [vmem:[%s244 + $0x1738] sm:$0xff]
      %v1047 = vld [vmem:[%s244 + $0x1740] sm:$0xff]
      %v1048 = vld [vmem:[%s244 + $0x1748] sm:$0xff]
      %v1049 = vld [vmem:[%s244 + $0x1750] sm:$0xff]
      %v1050 = vld [vmem:[%s244 + $0x1758] sm:$0xff]
      %v1051 = vld [vmem:[%s244 + $0x1760] sm:$0xff]
      %v1052 = vld [vmem:[%s244 + $0x1768] sm:$0xff]
      %v1053 = vld [vmem:[%s244 + $0x1770] sm:$0xff]
      %v1054 = vld [vmem:[%s244 + $0x1778] sm:$0xff]
      %v1055 = vld [vmem:[%s244 + $0x1780] sm:$0xff]
      %v1056 = vld [vmem:[%s244 + $0x1788] sm:$0xff]
      %v1057 = vld [vmem:[%s244 + $0x1790] sm:$0xff]
      %v1058 = vld [vmem:[%s244 + $0x1798] sm:$0xff]
      %v1059 = vld [vmem:[%s244 + $0x17a0] sm:$0xff]
      %v1060 = vld [vmem:[%s244 + $0x17a8] sm:$0xff]
      %v1061 = vld [vmem:[%s244 + $0x17b0] sm:$0xff]
      %v1062 = vld [vmem:[%s244 + $0x17b8] sm:$0xff]
      %v1063 = vld [vmem:[%s244 + $0x17c0] sm:$0xff]
      %v1064 = vld [vmem:[%s244 + $0x17c8] sm:$0xff]
      %v1065 = vld [vmem:[%s244 + $0x17d0] sm:$0xff]
      %v1066 = vld [vmem:[%s244 + $0x17d8] sm:$0xff]
      %v1067 = vld [vmem:[%s244 + $0x17e0] sm:$0xff]
      %v1068 = vld [vmem:[%s244 + $0x17e8] sm:$0xff]
      %v1069 = vld [vmem:[%s244 + $0x17f0] sm:$0xff]
      %v1070 = vld [vmem:[%s244 + $0x17f8] sm:$0xff]
      %v1071 = vld [vmem:[%s244 + $0x1800] sm:$0xff]
      %v1072 = vld [vmem:[%s244 + $0x1808] sm:$0xff]
      %v1073 = vld [vmem:[%s244 + $0x1810] sm:$0xff]
      %v1074 = vld [vmem:[%s244 + $0x1818] sm:$0xff]
      %v1075 = vld [vmem:[%s244 + $0x1820] sm:$0xff]
      %v1076 = vld [vmem:[%s244 + $0x1828] sm:$0xff]
      %v1077 = vld [vmem:[%s244 + $0x1830] sm:$0xff]
      %v1078 = vld [vmem:[%s244 + $0x1838] sm:$0xff]
      %v1079 = vld [vmem:[%s244 + $0x1840] sm:$0xff]
      %v1080 = vld [vmem:[%s244 + $0x1848] sm:$0xff]
      %v1081 = vld [vmem:[%s244 + $0x1850] sm:$0xff]
      %v1082 = vld [vmem:[%s244 + $0x1858] sm:$0xff]
      %v1083 = vld [vmem:[%s244 + $0x1860] sm:$0xff]
      %v1084 = vld [vmem:[%s244 + $0x1868] sm:$0xff]
      %v1085 = vld [vmem:[%s244 + $0x1870] sm:$0xff]
      %v1086 = vld [vmem:[%s244 + $0x1878] sm:$0xff]
      %v1087 = vld [vmem:[%s244 + $0x1880] sm:$0xff]
      %v1088 = vld [vmem:[%s244 + $0x1888] sm:$0xff]
      %v1089 = vld [vmem:[%s244 + $0x1890] sm:$0xff]
      %v1090 = vld [vmem:[%s244 + $0x1898] sm:$0xff]
      %v1091 = vld [vmem:[%s244 + $0x18a0] sm:$0xff]
      %v1092 = vld [vmem:[%s244 + $0x18a8] sm:$0xff]
      %v1093 = vld [vmem:[%s244 + $0x18b0] sm:$0xff]
      %v1094 = vld [vmem:[%s244 + $0x18b8] sm:$0xff]
      %v1095 = vld [vmem:[%s244 + $0x18c0] sm:$0xff]
      %v1096 = vld [vmem:[%s244 + $0x18c8] sm:$0xff]
      %v1097 = vld [vmem:[%s244 + $0x18d0] sm:$0xff]
      %v1098 = vld [vmem:[%s244 + $0x18d8] sm:$0xff]
      %v1099 = vld [vmem:[%s244 + $0x18e0] sm:$0xff]
      %v1100 = vld [vmem:[%s244 + $0x18e8] sm:$0xff]
      %v1101 = vld [vmem:[%s244 + $0x18f0] sm:$0xff]
      %v1102 = vld [vmem:[%s244 + $0x18f8] sm:$0xff]
      %v1103 = vld [vmem:[%s244 + $0x1900] sm:$0xff]
      %v1104 = vld [vmem:[%s244 + $0x1908] sm:$0xff]
      %v1105 = vld [vmem:[%s244 + $0x1910] sm:$0xff]
      %v1106 = vld [vmem:[%s244 + $0x1918] sm:$0xff]
      %v1107 = vld [vmem:[%s244 + $0x1920] sm:$0xff]
      %v1108 = vld [vmem:[%s244 + $0x1928] sm:$0xff]
      %v1109 = vld [vmem:[%s244 + $0x1930] sm:$0xff]
      %v1110 = vld [vmem:[%s244 + $0x1938] sm:$0xff]
      %v1111 = vld [vmem:[%s244 + $0x1940] sm:$0xff]
      %v1112 = vld [vmem:[%s244 + $0x1948] sm:$0xff]
      %v1113 = vld [vmem:[%s244 + $0x1950] sm:$0xff]
      %v1114 = vld [vmem:[%s244 + $0x1958] sm:$0xff]
      %v1115 = vld [vmem:[%s244 + $0x1960] sm:$0xff]
      %v1116 = vld [vmem:[%s244 + $0x1968] sm:$0xff]
      %v1117 = vld [vmem:[%s244 + $0x1970] sm:$0xff]
      %v1118 = vld [vmem:[%s244 + $0x1978] sm:$0xff]
      %v1119 = vld [vmem:[%s244 + $0x1980] sm:$0xff]
      %v1120 = vld [vmem:[%s244 + $0x1988] sm:$0xff]
      %v1121 = vld [vmem:[%s244 + $0x1990] sm:$0xff]
      %v1122 = vld [vmem:[%s244 + $0x1998] sm:$0xff]
      %v1123 = vld [vmem:[%s244 + $0x19a0] sm:$0xff]
      %v1124 = vld [vmem:[%s244 + $0x19a8] sm:$0xff]
      %v1125 = vld [vmem:[%s244 + $0x19b0] sm:$0xff]
      %v1126 = vld [vmem:[%s244 + $0x19b8] sm:$0xff]
      %v1127 = vld [vmem:[%s244 + $0x19c0] sm:$0xff]
      %v1128 = vld [vmem:[%s244 + $0x19c8] sm:$0xff]
      %v1129 = vld [vmem:[%s244 + $0x19d0] sm:$0xff]
      %v1130 = vld [vmem:[%s244 + $0x19d8] sm:$0xff]
      %v1131 = vld [vmem:[%s244 + $0x19e0] sm:$0xff]
      %v1132 = vld [vmem:[%s244 + $0x19e8] sm:$0xff]
      %v1133 = vld [vmem:[%s244 + $0x19f0] sm:$0xff]
      %v1134 = vld [vmem:[%s244 + $0x19f8] sm:$0xff]
      %v1135 = vld [vmem:[%s244 + $0x1a00] sm:$0xff]
      %v1136 = vld [vmem:[%s244 + $0x1a08] sm:$0xff]
      %v1137 = vld [vmem:[%s244 + $0x1a10] sm:$0xff]
      %v1138 = vld [vmem:[%s244 + $0x1a18] sm:$0xff]
      %v1139 = vld [vmem:[%s244 + $0x1a20] sm:$0xff]
      %v1140 = vld [vmem:[%s244 + $0x1a28] sm:$0xff]
      %v1141 = vld [vmem:[%s244 + $0x1a30] sm:$0xff]
      %v1142 = vld [vmem:[%s244 + $0x1a38] sm:$0xff]
      %v1143 = vld [vmem:[%s244 + $0x1a40] sm:$0xff]
      %v1144 = vld [vmem:[%s244 + $0x1a48] sm:$0xff]
      %v1145 = vld [vmem:[%s244 + $0x1a50] sm:$0xff]
      %v1146 = vld [vmem:[%s244 + $0x1a58] sm:$0xff]
      %v1147 = vld [vmem:[%s244 + $0x1a60] sm:$0xff]
      %v1148 = vld [vmem:[%s244 + $0x1a68] sm:$0xff]
      %v1149 = vld [vmem:[%s244 + $0x1a70] sm:$0xff]
      %v1150 = vld [vmem:[%s244 + $0x1a78] sm:$0xff]
      %v1151 = vld [vmem:[%s244 + $0x1a80] sm:$0xff]
      %v1152 = vld [vmem:[%s244 + $0x1a88] sm:$0xff]
      %v1153 = vld [vmem:[%s244 + $0x1a90] sm:$0xff]
      %v1154 = vld [vmem:[%s244 + $0x1a98] sm:$0xff]
      %v1155 = vld [vmem:[%s244 + $0x1aa0] sm:$0xff]
      %v1156 = vld [vmem:[%s244 + $0x1aa8] sm:$0xff]
      %v1157 = vld [vmem:[%s244 + $0x1ab0] sm:$0xff]
      %v1158 = vld [vmem:[%s244 + $0x1ab8] sm:$0xff]
      %v1159 = vld [vmem:[%s244 + $0x1ac0] sm:$0xff]
      %v1160 = vld [vmem:[%s244 + $0x1ac8] sm:$0xff]
      %v1161 = vld [vmem:[%s244 + $0x1ad0] sm:$0xff]
      %v1162 = vld [vmem:[%s244 + $0x1ad8] sm:$0xff]
      %v1163 = vld [vmem:[%s244 + $0x1ae0] sm:$0xff]
      %v1164 = vld [vmem:[%s244 + $0x1ae8] sm:$0xff]
      %v1165 = vld [vmem:[%s244 + $0x1af0] sm:$0xff]
      %v1166 = vld [vmem:[%s244 + $0x1af8] sm:$0xff]
      %v1167 = vld [vmem:[%s244 + $0x1b00] sm:$0xff]
      %v1168 = vld [vmem:[%s244 + $0x1b08] sm:$0xff]
      %v1169 = vld [vmem:[%s244 + $0x1b10] sm:$0xff]
      %v1170 = vld [vmem:[%s244 + $0x1b18] sm:$0xff]
      %v1171 = vld [vmem:[%s244 + $0x1b20] sm:$0xff]
      %v1172 = vld [vmem:[%s244 + $0x1b28] sm:$0xff]
      %v1173 = vld [vmem:[%s244 + $0x1b30] sm:$0xff]
      %v1174 = vld [vmem:[%s244 + $0x1b38] sm:$0xff]
      %v1175 = vld [vmem:[%s244 + $0x1b40] sm:$0xff]
      %v1176 = vld [vmem:[%s244 + $0x1b48] sm:$0xff]
      %v1177 = vld [vmem:[%s244 + $0x1b50] sm:$0xff]
      %v1178 = vld [vmem:[%s244 + $0x1b58] sm:$0xff]
      %v1179 = vld [vmem:[%s244 + $0x1b60] sm:$0xff]
      %v1180 = vld [vmem:[%s244 + $0x1b68] sm:$0xff]
      %v1181 = vld [vmem:[%s244 + $0x1b70] sm:$0xff]
      %v1182 = vld [vmem:[%s244 + $0x1b78] sm:$0xff]
      %v1183 = vld [vmem:[%s244 + $0x1b80] sm:$0xff]
      %v1184 = vld [vmem:[%s244 + $0x1b88] sm:$0xff]
      %v1185 = vld [vmem:[%s244 + $0x1b90] sm:$0xff]
      %v1186 = vld [vmem:[%s244 + $0x1b98] sm:$0xff]
      %v1187 = vld [vmem:[%s244 + $0x1ba0] sm:$0xff]
      %v1188 = vld [vmem:[%s244 + $0x1ba8] sm:$0xff]
      %v1189 = vld [vmem:[%s244 + $0x1bb0] sm:$0xff]
      %v1190 = vld [vmem:[%s244 + $0x1bb8] sm:$0xff]
      %v1191 = vld [vmem:[%s244 + $0x1bc0] sm:$0xff]
      %v1192 = vld [vmem:[%s244 + $0x1bc8] sm:$0xff]
      %v1193 = vld [vmem:[%s244 + $0x1bd0] sm:$0xff]
      %v1194 = vld [vmem:[%s244 + $0x1bd8] sm:$0xff]
      %v1195 = vld [vmem:[%s244 + $0x1be0] sm:$0xff]
      %v1196 = vld [vmem:[%s244 + $0x1be8] sm:$0xff]
      %v1197 = vld [vmem:[%s244 + $0x1bf0] sm:$0xff]
      %v1198 = vld [vmem:[%s244 + $0x1bf8] sm:$0xff]
      %v1199 = vld [vmem:[%s244 + $0x1c00] sm:$0xff]
      %v1200 = vld [vmem:[%s244 + $0x1c08] sm:$0xff]
      %v1201 = vld [vmem:[%s244 + $0x1c10] sm:$0xff]
      %v1202 = vld [vmem:[%s244 + $0x1c18] sm:$0xff]
      %v1203 = vld [vmem:[%s244 + $0x1c20] sm:$0xff]
      %v1204 = vld [vmem:[%s244 + $0x1c28] sm:$0xff]
      %v1205 = vld [vmem:[%s244 + $0x1c30] sm:$0xff]
      %v1206 = vld [vmem:[%s244 + $0x1c38] sm:$0xff]
      %v1207 = vld [vmem:[%s244 + $0x1c40] sm:$0xff]
      %v1208 = vld [vmem:[%s244 + $0x1c48] sm:$0xff]
      %v1209 = vld [vmem:[%s244 + $0x1c50] sm:$0xff]
      %v1210 = vld [vmem:[%s244 + $0x1c58] sm:$0xff]
      %v1211 = vld [vmem:[%s244 + $0x1c60] sm:$0xff]
      %v1212 = vld [vmem:[%s244 + $0x1c68] sm:$0xff]
      %v1213 = vld [vmem:[%s244 + $0x1c70] sm:$0xff]
      %v1214 = vld [vmem:[%s244 + $0x1c78] sm:$0xff]
      %v1215 = vld [vmem:[%s244 + $0x1c80] sm:$0xff]
      %v1216 = vld [vmem:[%s244 + $0x1c88] sm:$0xff]
      %v1217 = vld [vmem:[%s244 + $0x1c90] sm:$0xff]
      %v1218 = vld [vmem:[%s244 + $0x1c98] sm:$0xff]
      %v1219 = vld [vmem:[%s244 + $0x1ca0] sm:$0xff]
      %v1220 = vld [vmem:[%s244 + $0x1ca8] sm:$0xff]
      %v1221 = vld [vmem:[%s244 + $0x1cb0] sm:$0xff]
      %v1222 = vld [vmem:[%s244 + $0x1cb8] sm:$0xff]
      %v1223 = vld [vmem:[%s244 + $0x1cc0] sm:$0xff]
      %v1224 = vld [vmem:[%s244 + $0x1cc8] sm:$0xff]
      %v1225 = vld [vmem:[%s244 + $0x1cd0] sm:$0xff]
      %v1226 = vld [vmem:[%s244 + $0x1cd8] sm:$0xff]
      %v1227 = vld [vmem:[%s244 + $0x1ce0] sm:$0xff]
      %v1228 = vld [vmem:[%s244 + $0x1ce8] sm:$0xff]
      %v1229 = vld [vmem:[%s244 + $0x1cf0] sm:$0xff]
      %v1230 = vld [vmem:[%s244 + $0x1cf8] sm:$0xff]
      %v1231 = vld [vmem:[%s244 + $0x1d00] sm:$0xff]
      %v1232 = vld [vmem:[%s244 + $0x1d08] sm:$0xff]
      %v1233 = vld [vmem:[%s244 + $0x1d10] sm:$0xff]
      %v1234 = vld [vmem:[%s244 + $0x1d18] sm:$0xff]
      %v1235 = vld [vmem:[%s244 + $0x1d20] sm:$0xff]
      %v1236 = vld [vmem:[%s244 + $0x1d28] sm:$0xff]
      %v1237 = vld [vmem:[%s244 + $0x1d30] sm:$0xff]
      %v1238 = vld [vmem:[%s244 + $0x1d38] sm:$0xff]
      %v1239 = vld [vmem:[%s244 + $0x1d40] sm:$0xff]
      %v1240 = vld [vmem:[%s244 + $0x1d48] sm:$0xff]
      %v1241 = vld [vmem:[%s244 + $0x1d50] sm:$0xff]
      %v1242 = vld [vmem:[%s244 + $0x1d58] sm:$0xff]
      %v1243 = vld [vmem:[%s244 + $0x1d60] sm:$0xff]
      %v1244 = vld [vmem:[%s244 + $0x1d68] sm:$0xff]
      %v1245 = vld [vmem:[%s244 + $0x1d70] sm:$0xff]
      %v1246 = vld [vmem:[%s244 + $0x1d78] sm:$0xff]
      %v1247 = vld [vmem:[%s244 + $0x1d80] sm:$0xff]
      %v1248 = vld [vmem:[%s244 + $0x1d88] sm:$0xff]
      %v1249 = vld [vmem:[%s244 + $0x1d90] sm:$0xff]
      %v1250 = vld [vmem:[%s244 + $0x1d98] sm:$0xff]
      %v1251 = vld [vmem:[%s244 + $0x1da0] sm:$0xff]
      %v1252 = vld [vmem:[%s244 + $0x1da8] sm:$0xff]
      %v1253 = vld [vmem:[%s244 + $0x1db0] sm:$0xff]
      %v1254 = vld [vmem:[%s244 + $0x1db8] sm:$0xff]
      %v1255 = vld [vmem:[%s244 + $0x1dc0] sm:$0xff]
      %v1256 = vld [vmem:[%s244 + $0x1dc8] sm:$0xff]
      %v1257 = vld [vmem:[%s244 + $0x1dd0] sm:$0xff]
      %v1258 = vld [vmem:[%s244 + $0x1dd8] sm:$0xff]
      %v1259 = vld [vmem:[%s244 + $0x1de0] sm:$0xff]
      %v1260 = vld [vmem:[%s244 + $0x1de8] sm:$0xff]
      %v1261 = vld [vmem:[%s244 + $0x1df0] sm:$0xff]
      %v1262 = vld [vmem:[%s244 + $0x1df8] sm:$0xff]
      %v1263 = vld [vmem:[%s244 + $0x1e00] sm:$0xff]
      %v1264 = vld [vmem:[%s244 + $0x1e08] sm:$0xff]
      %v1265 = vld [vmem:[%s244 + $0x1e10] sm:$0xff]
      %v1266 = vld [vmem:[%s244 + $0x1e18] sm:$0xff]
      %v1267 = vld [vmem:[%s244 + $0x1e20] sm:$0xff]
      %v1268 = vld [vmem:[%s244 + $0x1e28] sm:$0xff]
      %v1269 = vld [vmem:[%s244 + $0x1e30] sm:$0xff]
      %v1270 = vld [vmem:[%s244 + $0x1e38] sm:$0xff]
      %v1271 = vld [vmem:[%s244 + $0x1e40] sm:$0xff]
      %v1272 = vld [vmem:[%s244 + $0x1e48] sm:$0xff]
      %v1273 = vld [vmem:[%s244 + $0x1e50] sm:$0xff]
      %v1274 = vld [vmem:[%s244 + $0x1e58] sm:$0xff]
      %v1275 = vld [vmem:[%s244 + $0x1e60] sm:$0xff]
      %v1276 = vld [vmem:[%s244 + $0x1e68] sm:$0xff]
      %v1277 = vld [vmem:[%s244 + $0x1e70] sm:$0xff]
      %v1278 = vld [vmem:[%s244 + $0x1e78] sm:$0xff]
      %v1279 = vld [vmem:[%s244 + $0x1e80] sm:$0xff]
      %v1280 = vld [vmem:[%s244 + $0x1e88] sm:$0xff]
      %v1281 = vld [vmem:[%s244 + $0x1e90] sm:$0xff]
      %v1282 = vld [vmem:[%s244 + $0x1e98] sm:$0xff]
      %v1283 = vld [vmem:[%s244 + $0x1ea0] sm:$0xff]
      %v1284 = vld [vmem:[%s244 + $0x1ea8] sm:$0xff]
      %v1285 = vld [vmem:[%s244 + $0x1eb0] sm:$0xff]
      %v1286 = vld [vmem:[%s244 + $0x1eb8] sm:$0xff]
      %v1287 = vld [vmem:[%s244 + $0x1ec0] sm:$0xff]
      %v1288 = vld [vmem:[%s244 + $0x1ec8] sm:$0xff]
      %v1289 = vld [vmem:[%s244 + $0x1ed0] sm:$0xff]
      %v1290 = vld [vmem:[%s244 + $0x1ed8] sm:$0xff]
      %v1291 = vld [vmem:[%s244 + $0x1ee0] sm:$0xff]
      %v1292 = vld [vmem:[%s244 + $0x1ee8] sm:$0xff]
      %v1293 = vld [vmem:[%s244 + $0x1ef0] sm:$0xff]
      %v1294 = vld [vmem:[%s244 + $0x1ef8] sm:$0xff]
      %v1295 = vld [vmem:[%s244 + $0x1f00] sm:$0xff]
      %v1296 = vld [vmem:[%s244 + $0x1f08] sm:$0xff]
      %v1297 = vld [vmem:[%s244 + $0x1f10] sm:$0xff]
      %v1298 = vld [vmem:[%s244 + $0x1f18] sm:$0xff]
      %v1299 = vld [vmem:[%s244 + $0x1f20] sm:$0xff]
      %v1300 = vld [vmem:[%s244 + $0x1f28] sm:$0xff]
      %v1301 = vld [vmem:[%s244 + $0x1f30] sm:$0xff]
      %v1302 = vld [vmem:[%s244 + $0x1f38] sm:$0xff]
      %v1303 = vld [vmem:[%s244 + $0x1f40] sm:$0xff]
      %v1304 = vld [vmem:[%s244 + $0x1f48] sm:$0xff]
      %v1305 = vld [vmem:[%s244 + $0x1f50] sm:$0xff]
      %v1306 = vld [vmem:[%s244 + $0x1f58] sm:$0xff]
      %v1307 = vld [vmem:[%s244 + $0x1f60] sm:$0xff]
      %v1308 = vld [vmem:[%s244 + $0x1f68] sm:$0xff]
      %v1309 = vld [vmem:[%s244 + $0x1f70] sm:$0xff]
      %v1310 = vld [vmem:[%s244 + $0x1f78] sm:$0xff]
      %v1311 = vld [vmem:[%s244 + $0x1f80] sm:$0xff]
      %v1312 = vld [vmem:[%s244 + $0x1f88] sm:$0xff]
      %v1313 = vld [vmem:[%s244 + $0x1f90] sm:$0xff]
      %v1314 = vld [vmem:[%s244 + $0x1f98] sm:$0xff]
      %v1315 = vld [vmem:[%s244 + $0x1fa0] sm:$0xff]
      %v1316 = vld [vmem:[%s244 + $0x1fa8] sm:$0xff]
      %v1317 = vld [vmem:[%s244 + $0x1fb0] sm:$0xff]
      %v1318 = vld [vmem:[%s244 + $0x1fb8] sm:$0xff]
      %v1319 = vld [vmem:[%s244 + $0x1fc0] sm:$0xff]
      %v1320 = vld [vmem:[%s244 + $0x1fc8] sm:$0xff]
      %v1321 = vld [vmem:[%s244 + $0x1fd0] sm:$0xff]
      %v1322 = vld [vmem:[%s244 + $0x1fd8] sm:$0xff]
      %v1323 = vld [vmem:[%s244 + $0x1fe0] sm:$0xff]
      %v1324 = vld [vmem:[%s244 + $0x1fe8] sm:$0xff]
      %v1325 = vld [vmem:[%s244 + $0x1ff0] sm:$0xff]
      %v1326 = vld [vmem:[%s244 + $0x1ff8] sm:$0xff]
      %v1327 = vld [vmem:[%s249] sm:$0xf]
      %v1329 = vlaneseq
      %v1330 = vshrl.u32 %v1329, 7
      %v1331 = vsub.s32 0, %v1330
      %v1332 = vrot.slane %v1327, %v1331
      %v1333 = vlaneseq
      %v1334 = vshrl.u32 %v1333, 7
      %v1335 = vsub.s32 1, %v1334
      %v1336 = vrot.slane %v1327, %v1335
      %v1337 = vlaneseq
      %v1338 = vshrl.u32 %v1337, 7
      %v1339 = vsub.s32 2, %v1338
      %v1340 = vrot.slane %v1327, %v1339
      %v1341 = vlaneseq
      %v1342 = vshrl.u32 %v1341, 7
      %v1343 = vsub.s32 3, %v1342
      %v1344 = vrot.slane %v1327, %v1343
      %v1381 = vunpack.c.l.b16 %v271
      %v1382 = vunpack.c.h.b16 %v271
      %v1383 = vunpack.c.l.b16 %v272
      %v1384 = vunpack.c.h.b16 %v272
      %v1385 = vunpack.c.l.b16 %v273
      %v1386 = vunpack.c.h.b16 %v273
      %v1387 = vunpack.c.l.b16 %v274
      %v1388 = vunpack.c.h.b16 %v274
      %v1389 = vunpack.c.l.b16 %v275
      %v1390 = vunpack.c.h.b16 %v275
      %v1391 = vunpack.c.l.b16 %v276
      %v1392 = vunpack.c.h.b16 %v276
      %v1393 = vunpack.c.l.b16 %v277
      %v1394 = vunpack.c.h.b16 %v277
      %v1395 = vunpack.c.l.b16 %v278
      %v1396 = vunpack.c.h.b16 %v278
      %v1397 = vunpack.c.l.b16 %v279
      %v1398 = vunpack.c.h.b16 %v279
      %v1399 = vunpack.c.l.b16 %v280
      %v1400 = vunpack.c.h.b16 %v280
      %v1401 = vunpack.c.l.b16 %v281
      %v1402 = vunpack.c.h.b16 %v281
      %v1403 = vunpack.c.l.b16 %v282
      %v1404 = vunpack.c.h.b16 %v282
      %v1405 = vunpack.c.l.b16 %v283
      %v1406 = vunpack.c.h.b16 %v283
      %v1407 = vunpack.c.l.b16 %v284
      %v1408 = vunpack.c.h.b16 %v284
      %v1409 = vunpack.c.l.b16 %v285
      %v1410 = vunpack.c.h.b16 %v285
      %v1411 = vunpack.c.l.b16 %v286
      %v1412 = vunpack.c.h.b16 %v286
      %v1413 = vunpack.c.l.b16 %v287
      %v1414 = vunpack.c.h.b16 %v287
      %v1415 = vunpack.c.l.b16 %v288
      %v1416 = vunpack.c.h.b16 %v288
      %v1417 = vunpack.c.l.b16 %v289
      %v1418 = vunpack.c.h.b16 %v289
      %v1419 = vunpack.c.l.b16 %v290
      %v1420 = vunpack.c.h.b16 %v290
      %v1421 = vunpack.c.l.b16 %v291
      %v1422 = vunpack.c.h.b16 %v291
      %v1423 = vunpack.c.l.b16 %v292
      %v1424 = vunpack.c.h.b16 %v292
      %v1425 = vunpack.c.l.b16 %v293
      %v1426 = vunpack.c.h.b16 %v293
      %v1427 = vunpack.c.l.b16 %v294
      %v1428 = vunpack.c.h.b16 %v294
      %v1429 = vunpack.c.l.b16 %v295
      %v1430 = vunpack.c.h.b16 %v295
      %v1431 = vunpack.c.l.b16 %v296
      %v1432 = vunpack.c.h.b16 %v296
      %v1433 = vunpack.c.l.b16 %v297
      %v1434 = vunpack.c.h.b16 %v297
      %v1435 = vunpack.c.l.b16 %v298
      %v1436 = vunpack.c.h.b16 %v298
      %v1437 = vunpack.c.l.b16 %v299
      %v1438 = vunpack.c.h.b16 %v299
      %v1439 = vunpack.c.l.b16 %v300
      %v1440 = vunpack.c.h.b16 %v300
      %v1441 = vunpack.c.l.b16 %v301
      %v1442 = vunpack.c.h.b16 %v301
      %v1443 = vunpack.c.l.b16 %v302
      %v1444 = vunpack.c.h.b16 %v302
      %v1445 = vpack.c.b16 %v1413, %v1381
      %v1446 = vpack.c.b16 %v1414, %v1382
      %v1447 = vpack.c.b16 %v1415, %v1383
      %v1448 = vpack.c.b16 %v1416, %v1384
      %v1449 = vpack.c.b16 %v1417, %v1385
      %v1450 = vpack.c.b16 %v1418, %v1386
      %v1451 = vpack.c.b16 %v1419, %v1387
      %v1452 = vpack.c.b16 %v1420, %v1388
      %v1453 = vpack.c.b16 %v1421, %v1389
      %v1454 = vpack.c.b16 %v1422, %v1390
      %v1455 = vpack.c.b16 %v1423, %v1391
      %v1456 = vpack.c.b16 %v1424, %v1392
      %v1457 = vpack.c.b16 %v1425, %v1393
      %v1458 = vpack.c.b16 %v1426, %v1394
      %v1459 = vpack.c.b16 %v1427, %v1395
      %v1460 = vpack.c.b16 %v1428, %v1396
      %v1461 = vpack.c.b16 %v1429, %v1397
      %v1462 = vpack.c.b16 %v1430, %v1398
      %v1463 = vpack.c.b16 %v1431, %v1399
      %v1464 = vpack.c.b16 %v1432, %v1400
      %v1465 = vpack.c.b16 %v1433, %v1401
      %v1466 = vpack.c.b16 %v1434, %v1402
      %v1467 = vpack.c.b16 %v1435, %v1403
      %v1468 = vpack.c.b16 %v1436, %v1404
      %v1469 = vpack.c.b16 %v1437, %v1405
      %v1470 = vpack.c.b16 %v1438, %v1406
      %v1471 = vpack.c.b16 %v1439, %v1407
      %v1472 = vpack.c.b16 %v1440, %v1408
      %v1473 = vpack.c.b16 %v1441, %v1409
      %v1474 = vpack.c.b16 %v1442, %v1410
      %v1475 = vpack.c.b16 %v1443, %v1411
      %v1476 = vpack.c.b16 %v1444, %v1412
      %v2533 = vunpack.c.l.b16 %v303
      %v2534 = vunpack.c.h.b16 %v303
      %v2535 = vunpack.c.l.b16 %v304
      %v2536 = vunpack.c.h.b16 %v304
      %v2537 = vunpack.c.l.b16 %v305
      %v2538 = vunpack.c.h.b16 %v305
      %v2539 = vunpack.c.l.b16 %v306
      %v2540 = vunpack.c.h.b16 %v306
      %v2541 = vunpack.c.l.b16 %v307
      %v2542 = vunpack.c.h.b16 %v307
      %v2543 = vunpack.c.l.b16 %v308
      %v2544 = vunpack.c.h.b16 %v308
      %v2545 = vunpack.c.l.b16 %v309
      %v2546 = vunpack.c.h.b16 %v309
      %v2547 = vunpack.c.l.b16 %v310
      %v2548 = vunpack.c.h.b16 %v310
      %v2549 = vunpack.c.l.b16 %v311
      %v2550 = vunpack.c.h.b16 %v311
      %v2551 = vunpack.c.l.b16 %v312
      %v2552 = vunpack.c.h.b16 %v312
      %v2553 = vunpack.c.l.b16 %v313
      %v2554 = vunpack.c.h.b16 %v313
      %v2555 = vunpack.c.l.b16 %v314
      %v2556 = vunpack.c.h.b16 %v314
      %v2557 = vunpack.c.l.b16 %v315
      %v2558 = vunpack.c.h.b16 %v315
      %v2559 = vunpack.c.l.b16 %v316
      %v2560 = vunpack.c.h.b16 %v316
      %v2561 = vunpack.c.l.b16 %v317
      %v2562 = vunpack.c.h.b16 %v317
      %v2563 = vunpack.c.l.b16 %v318
      %v2564 = vunpack.c.h.b16 %v318
      %v2565 = vunpack.c.l.b16 %v319
      %v2566 = vunpack.c.h.b16 %v319
      %v2567 = vunpack.c.l.b16 %v320
      %v2568 = vunpack.c.h.b16 %v320
      %v2569 = vunpack.c.l.b16 %v321
      %v2570 = vunpack.c.h.b16 %v321
      %v2571 = vunpack.c.l.b16 %v322
      %v2572 = vunpack.c.h.b16 %v322
      %v2573 = vunpack.c.l.b16 %v323
      %v2574 = vunpack.c.h.b16 %v323
      %v2575 = vunpack.c.l.b16 %v324
      %v2576 = vunpack.c.h.b16 %v324
      %v2577 = vunpack.c.l.b16 %v325
      %v2578 = vunpack.c.h.b16 %v325
      %v2579 = vunpack.c.l.b16 %v326
      %v2580 = vunpack.c.h.b16 %v326
      %v2581 = vunpack.c.l.b16 %v327
      %v2582 = vunpack.c.h.b16 %v327
      %v2583 = vunpack.c.l.b16 %v328
      %v2584 = vunpack.c.h.b16 %v328
      %v2585 = vunpack.c.l.b16 %v329
      %v2586 = vunpack.c.h.b16 %v329
      %v2587 = vunpack.c.l.b16 %v330
      %v2588 = vunpack.c.h.b16 %v330
      %v2589 = vunpack.c.l.b16 %v331
      %v2590 = vunpack.c.h.b16 %v331
      %v2591 = vunpack.c.l.b16 %v332
      %v2592 = vunpack.c.h.b16 %v332
      %v2593 = vunpack.c.l.b16 %v333
      %v2594 = vunpack.c.h.b16 %v333
      %v2595 = vunpack.c.l.b16 %v334
      %v2596 = vunpack.c.h.b16 %v334
      %v2597 = vunpack.c.l.b16 %v335
      %v2598 = vunpack.c.h.b16 %v335
      %v2599 = vunpack.c.l.b16 %v336
      %v2600 = vunpack.c.h.b16 %v336
      %v2601 = vunpack.c.l.b16 %v337
      %v2602 = vunpack.c.h.b16 %v337
      %v2603 = vunpack.c.l.b16 %v338
      %v2604 = vunpack.c.h.b16 %v338
      %v2605 = vunpack.c.l.b16 %v339
      %v2606 = vunpack.c.h.b16 %v339
      %v2607 = vunpack.c.l.b16 %v340
      %v2608 = vunpack.c.h.b16 %v340
      %v2609 = vunpack.c.l.b16 %v341
      %v2610 = vunpack.c.h.b16 %v341
      %v2611 = vunpack.c.l.b16 %v342
      %v2612 = vunpack.c.h.b16 %v342
      %v2613 = vunpack.c.l.b16 %v343
      %v2614 = vunpack.c.h.b16 %v343
      %v2615 = vunpack.c.l.b16 %v344
      %v2616 = vunpack.c.h.b16 %v344
      %v2617 = vunpack.c.l.b16 %v345
      %v2618 = vunpack.c.h.b16 %v345
      %v2619 = vunpack.c.l.b16 %v346
      %v2620 = vunpack.c.h.b16 %v346
      %v2621 = vunpack.c.l.b16 %v347
      %v2622 = vunpack.c.h.b16 %v347
      %v2623 = vunpack.c.l.b16 %v348
      %v2624 = vunpack.c.h.b16 %v348
      %v2625 = vunpack.c.l.b16 %v349
      %v2626 = vunpack.c.h.b16 %v349
      %v2627 = vunpack.c.l.b16 %v350
      %v2628 = vunpack.c.h.b16 %v350
      %v2629 = vunpack.c.l.b16 %v351
      %v2630 = vunpack.c.h.b16 %v351
      %v2631 = vunpack.c.l.b16 %v352
      %v2632 = vunpack.c.h.b16 %v352
      %v2633 = vunpack.c.l.b16 %v353
      %v2634 = vunpack.c.h.b16 %v353
      %v2635 = vunpack.c.l.b16 %v354
      %v2636 = vunpack.c.h.b16 %v354
      %v2637 = vunpack.c.l.b16 %v355
      %v2638 = vunpack.c.h.b16 %v355
      %v2639 = vunpack.c.l.b16 %v356
      %v2640 = vunpack.c.h.b16 %v356
      %v2641 = vunpack.c.l.b16 %v357
      %v2642 = vunpack.c.h.b16 %v357
      %v2643 = vunpack.c.l.b16 %v358
      %v2644 = vunpack.c.h.b16 %v358
      %v2645 = vunpack.c.l.b16 %v359
      %v2646 = vunpack.c.h.b16 %v359
      %v2647 = vunpack.c.l.b16 %v360
      %v2648 = vunpack.c.h.b16 %v360
      %v2649 = vunpack.c.l.b16 %v361
      %v2650 = vunpack.c.h.b16 %v361
      %v2651 = vunpack.c.l.b16 %v362
      %v2652 = vunpack.c.h.b16 %v362
      %v2653 = vunpack.c.l.b16 %v363
      %v2654 = vunpack.c.h.b16 %v363
      %v2655 = vunpack.c.l.b16 %v364
      %v2656 = vunpack.c.h.b16 %v364
      %v2657 = vunpack.c.l.b16 %v365
      %v2658 = vunpack.c.h.b16 %v365
      %v2659 = vunpack.c.l.b16 %v366
      %v2660 = vunpack.c.h.b16 %v366
      %v2661 = vunpack.c.l.b16 %v367
      %v2662 = vunpack.c.h.b16 %v367
      %v2663 = vunpack.c.l.b16 %v368
      %v2664 = vunpack.c.h.b16 %v368
      %v2665 = vunpack.c.l.b16 %v369
      %v2666 = vunpack.c.h.b16 %v369
      %v2667 = vunpack.c.l.b16 %v370
      %v2668 = vunpack.c.h.b16 %v370
      %v2669 = vunpack.c.l.b16 %v371
      %v2670 = vunpack.c.h.b16 %v371
      %v2671 = vunpack.c.l.b16 %v372
      %v2672 = vunpack.c.h.b16 %v372
      %v2673 = vunpack.c.l.b16 %v373
      %v2674 = vunpack.c.h.b16 %v373
      %v2675 = vunpack.c.l.b16 %v374
      %v2676 = vunpack.c.h.b16 %v374
      %v2677 = vunpack.c.l.b16 %v375
      %v2678 = vunpack.c.h.b16 %v375
      %v2679 = vunpack.c.l.b16 %v376
      %v2680 = vunpack.c.h.b16 %v376
      %v2681 = vunpack.c.l.b16 %v377
      %v2682 = vunpack.c.h.b16 %v377
      %v2683 = vunpack.c.l.b16 %v378
      %v2684 = vunpack.c.h.b16 %v378
      %v2685 = vunpack.c.l.b16 %v379
      %v2686 = vunpack.c.h.b16 %v379
      %v2687 = vunpack.c.l.b16 %v380
      %v2688 = vunpack.c.h.b16 %v380
      %v2689 = vunpack.c.l.b16 %v381
      %v2690 = vunpack.c.h.b16 %v381
      %v2691 = vunpack.c.l.b16 %v382
      %v2692 = vunpack.c.h.b16 %v382
      %v2693 = vunpack.c.l.b16 %v383
      %v2694 = vunpack.c.h.b16 %v383
      %v2695 = vunpack.c.l.b16 %v384
      %v2696 = vunpack.c.h.b16 %v384
      %v2697 = vunpack.c.l.b16 %v385
      %v2698 = vunpack.c.h.b16 %v385
      %v2699 = vunpack.c.l.b16 %v386
      %v2700 = vunpack.c.h.b16 %v386
      %v2701 = vunpack.c.l.b16 %v387
      %v2702 = vunpack.c.h.b16 %v387
      %v2703 = vunpack.c.l.b16 %v388
      %v2704 = vunpack.c.h.b16 %v388
      %v2705 = vunpack.c.l.b16 %v389
      %v2706 = vunpack.c.h.b16 %v389
      %v2707 = vunpack.c.l.b16 %v390
      %v2708 = vunpack.c.h.b16 %v390
      %v2709 = vunpack.c.l.b16 %v391
      %v2710 = vunpack.c.h.b16 %v391
      %v2711 = vunpack.c.l.b16 %v392
      %v2712 = vunpack.c.h.b16 %v392
      %v2713 = vunpack.c.l.b16 %v393
      %v2714 = vunpack.c.h.b16 %v393
      %v2715 = vunpack.c.l.b16 %v394
      %v2716 = vunpack.c.h.b16 %v394
      %v2717 = vunpack.c.l.b16 %v395
      %v2718 = vunpack.c.h.b16 %v395
      %v2719 = vunpack.c.l.b16 %v396
      %v2720 = vunpack.c.h.b16 %v396
      %v2721 = vunpack.c.l.b16 %v397
      %v2722 = vunpack.c.h.b16 %v397
      %v2723 = vunpack.c.l.b16 %v398
      %v2724 = vunpack.c.h.b16 %v398
      %v2725 = vunpack.c.l.b16 %v399
      %v2726 = vunpack.c.h.b16 %v399
      %v2727 = vunpack.c.l.b16 %v400
      %v2728 = vunpack.c.h.b16 %v400
      %v2729 = vunpack.c.l.b16 %v401
      %v2730 = vunpack.c.h.b16 %v401
      %v2731 = vunpack.c.l.b16 %v402
      %v2732 = vunpack.c.h.b16 %v402
      %v2733 = vunpack.c.l.b16 %v403
      %v2734 = vunpack.c.h.b16 %v403
      %v2735 = vunpack.c.l.b16 %v404
      %v2736 = vunpack.c.h.b16 %v404
      %v2737 = vunpack.c.l.b16 %v405
      %v2738 = vunpack.c.h.b16 %v405
      %v2739 = vunpack.c.l.b16 %v406
      %v2740 = vunpack.c.h.b16 %v406
      %v2741 = vunpack.c.l.b16 %v407
      %v2742 = vunpack.c.h.b16 %v407
      %v2743 = vunpack.c.l.b16 %v408
      %v2744 = vunpack.c.h.b16 %v408
      %v2745 = vunpack.c.l.b16 %v409
      %v2746 = vunpack.c.h.b16 %v409
      %v2747 = vunpack.c.l.b16 %v410
      %v2748 = vunpack.c.h.b16 %v410
      %v2749 = vunpack.c.l.b16 %v411
      %v2750 = vunpack.c.h.b16 %v411
      %v2751 = vunpack.c.l.b16 %v412
      %v2752 = vunpack.c.h.b16 %v412
      %v2753 = vunpack.c.l.b16 %v413
      %v2754 = vunpack.c.h.b16 %v413
      %v2755 = vunpack.c.l.b16 %v414
      %v2756 = vunpack.c.h.b16 %v414
      %v2757 = vunpack.c.l.b16 %v415
      %v2758 = vunpack.c.h.b16 %v415
      %v2759 = vunpack.c.l.b16 %v416
      %v2760 = vunpack.c.h.b16 %v416
      %v2761 = vunpack.c.l.b16 %v417
      %v2762 = vunpack.c.h.b16 %v417
      %v2763 = vunpack.c.l.b16 %v418
      %v2764 = vunpack.c.h.b16 %v418
      %v2765 = vunpack.c.l.b16 %v419
      %v2766 = vunpack.c.h.b16 %v419
      %v2767 = vunpack.c.l.b16 %v420
      %v2768 = vunpack.c.h.b16 %v420
      %v2769 = vunpack.c.l.b16 %v421
      %v2770 = vunpack.c.h.b16 %v421
      %v2771 = vunpack.c.l.b16 %v422
      %v2772 = vunpack.c.h.b16 %v422
      %v2773 = vunpack.c.l.b16 %v423
      %v2774 = vunpack.c.h.b16 %v423
      %v2775 = vunpack.c.l.b16 %v424
      %v2776 = vunpack.c.h.b16 %v424
      %v2777 = vunpack.c.l.b16 %v425
      %v2778 = vunpack.c.h.b16 %v425
      %v2779 = vunpack.c.l.b16 %v426
      %v2780 = vunpack.c.h.b16 %v426
      %v2781 = vunpack.c.l.b16 %v427
      %v2782 = vunpack.c.h.b16 %v427
      %v2783 = vunpack.c.l.b16 %v428
      %v2784 = vunpack.c.h.b16 %v428
      %v2785 = vunpack.c.l.b16 %v429
      %v2786 = vunpack.c.h.b16 %v429
      %v2787 = vunpack.c.l.b16 %v430
      %v2788 = vunpack.c.h.b16 %v430
      %v2789 = vunpack.c.l.b16 %v431
      %v2790 = vunpack.c.h.b16 %v431
      %v2791 = vunpack.c.l.b16 %v432
      %v2792 = vunpack.c.h.b16 %v432
      %v2793 = vunpack.c.l.b16 %v433
      %v2794 = vunpack.c.h.b16 %v433
      %v2795 = vunpack.c.l.b16 %v434
      %v2796 = vunpack.c.h.b16 %v434
      %v2797 = vunpack.c.l.b16 %v435
      %v2798 = vunpack.c.h.b16 %v435
      %v2799 = vunpack.c.l.b16 %v436
      %v2800 = vunpack.c.h.b16 %v436
      %v2801 = vunpack.c.l.b16 %v437
      %v2802 = vunpack.c.h.b16 %v437
      %v2803 = vunpack.c.l.b16 %v438
      %v2804 = vunpack.c.h.b16 %v438
      %v2805 = vunpack.c.l.b16 %v439
      %v2806 = vunpack.c.h.b16 %v439
      %v2807 = vunpack.c.l.b16 %v440
      %v2808 = vunpack.c.h.b16 %v440
      %v2809 = vunpack.c.l.b16 %v441
      %v2810 = vunpack.c.h.b16 %v441
      %v2811 = vunpack.c.l.b16 %v442
      %v2812 = vunpack.c.h.b16 %v442
      %v2813 = vunpack.c.l.b16 %v443
      %v2814 = vunpack.c.h.b16 %v443
      %v2815 = vunpack.c.l.b16 %v444
      %v2816 = vunpack.c.h.b16 %v444
      %v2817 = vunpack.c.l.b16 %v445
      %v2818 = vunpack.c.h.b16 %v445
      %v2819 = vunpack.c.l.b16 %v446
      %v2820 = vunpack.c.h.b16 %v446
      %v2821 = vunpack.c.l.b16 %v447
      %v2822 = vunpack.c.h.b16 %v447
      %v2823 = vunpack.c.l.b16 %v448
      %v2824 = vunpack.c.h.b16 %v448
      %v2825 = vunpack.c.l.b16 %v449
      %v2826 = vunpack.c.h.b16 %v449
      %v2827 = vunpack.c.l.b16 %v450
      %v2828 = vunpack.c.h.b16 %v450
      %v2829 = vunpack.c.l.b16 %v451
      %v2830 = vunpack.c.h.b16 %v451
      %v2831 = vunpack.c.l.b16 %v452
      %v2832 = vunpack.c.h.b16 %v452
      %v2833 = vunpack.c.l.b16 %v453
      %v2834 = vunpack.c.h.b16 %v453
      %v2835 = vunpack.c.l.b16 %v454
      %v2836 = vunpack.c.h.b16 %v454
      %v2837 = vunpack.c.l.b16 %v455
      %v2838 = vunpack.c.h.b16 %v455
      %v2839 = vunpack.c.l.b16 %v456
      %v2840 = vunpack.c.h.b16 %v456
      %v2841 = vunpack.c.l.b16 %v457
      %v2842 = vunpack.c.h.b16 %v457
      %v2843 = vunpack.c.l.b16 %v458
      %v2844 = vunpack.c.h.b16 %v458
      %v2845 = vunpack.c.l.b16 %v459
      %v2846 = vunpack.c.h.b16 %v459
      %v2847 = vunpack.c.l.b16 %v460
      %v2848 = vunpack.c.h.b16 %v460
      %v2849 = vunpack.c.l.b16 %v461
      %v2850 = vunpack.c.h.b16 %v461
      %v2851 = vunpack.c.l.b16 %v462
      %v2852 = vunpack.c.h.b16 %v462
      %v2853 = vunpack.c.l.b16 %v463
      %v2854 = vunpack.c.h.b16 %v463
      %v2855 = vunpack.c.l.b16 %v464
      %v2856 = vunpack.c.h.b16 %v464
      %v2857 = vunpack.c.l.b16 %v465
      %v2858 = vunpack.c.h.b16 %v465
      %v2859 = vunpack.c.l.b16 %v466
      %v2860 = vunpack.c.h.b16 %v466
      %v2861 = vunpack.c.l.b16 %v467
      %v2862 = vunpack.c.h.b16 %v467
      %v2863 = vunpack.c.l.b16 %v468
      %v2864 = vunpack.c.h.b16 %v468
      %v2865 = vunpack.c.l.b16 %v469
      %v2866 = vunpack.c.h.b16 %v469
      %v2867 = vunpack.c.l.b16 %v470
      %v2868 = vunpack.c.h.b16 %v470
      %v2869 = vunpack.c.l.b16 %v471
      %v2870 = vunpack.c.h.b16 %v471
      %v2871 = vunpack.c.l.b16 %v472
      %v2872 = vunpack.c.h.b16 %v472
      %v2873 = vunpack.c.l.b16 %v473
      %v2874 = vunpack.c.h.b16 %v473
      %v2875 = vunpack.c.l.b16 %v474
      %v2876 = vunpack.c.h.b16 %v474
      %v2877 = vunpack.c.l.b16 %v475
      %v2878 = vunpack.c.h.b16 %v475
      %v2879 = vunpack.c.l.b16 %v476
      %v2880 = vunpack.c.h.b16 %v476
      %v2881 = vunpack.c.l.b16 %v477
      %v2882 = vunpack.c.h.b16 %v477
      %v2883 = vunpack.c.l.b16 %v478
      %v2884 = vunpack.c.h.b16 %v478
      %v2885 = vunpack.c.l.b16 %v479
      %v2886 = vunpack.c.h.b16 %v479
      %v2887 = vunpack.c.l.b16 %v480
      %v2888 = vunpack.c.h.b16 %v480
      %v2889 = vunpack.c.l.b16 %v481
      %v2890 = vunpack.c.h.b16 %v481
      %v2891 = vunpack.c.l.b16 %v482
      %v2892 = vunpack.c.h.b16 %v482
      %v2893 = vunpack.c.l.b16 %v483
      %v2894 = vunpack.c.h.b16 %v483
      %v2895 = vunpack.c.l.b16 %v484
      %v2896 = vunpack.c.h.b16 %v484
      %v2897 = vunpack.c.l.b16 %v485
      %v2898 = vunpack.c.h.b16 %v485
      %v2899 = vunpack.c.l.b16 %v486
      %v2900 = vunpack.c.h.b16 %v486
      %v2901 = vunpack.c.l.b16 %v487
      %v2902 = vunpack.c.h.b16 %v487
      %v2903 = vunpack.c.l.b16 %v488
      %v2904 = vunpack.c.h.b16 %v488
      %v2905 = vunpack.c.l.b16 %v489
      %v2906 = vunpack.c.h.b16 %v489
      %v2907 = vunpack.c.l.b16 %v490
      %v2908 = vunpack.c.h.b16 %v490
      %v2909 = vunpack.c.l.b16 %v491
      %v2910 = vunpack.c.h.b16 %v491
      %v2911 = vunpack.c.l.b16 %v492
      %v2912 = vunpack.c.h.b16 %v492
      %v2913 = vunpack.c.l.b16 %v493
      %v2914 = vunpack.c.h.b16 %v493
      %v2915 = vunpack.c.l.b16 %v494
      %v2916 = vunpack.c.h.b16 %v494
      %v2917 = vunpack.c.l.b16 %v495
      %v2918 = vunpack.c.h.b16 %v495
      %v2919 = vunpack.c.l.b16 %v496
      %v2920 = vunpack.c.h.b16 %v496
      %v2921 = vunpack.c.l.b16 %v497
      %v2922 = vunpack.c.h.b16 %v497
      %v2923 = vunpack.c.l.b16 %v498
      %v2924 = vunpack.c.h.b16 %v498
      %v2925 = vunpack.c.l.b16 %v499
      %v2926 = vunpack.c.h.b16 %v499
      %v2927 = vunpack.c.l.b16 %v500
      %v2928 = vunpack.c.h.b16 %v500
      %v2929 = vunpack.c.l.b16 %v501
      %v2930 = vunpack.c.h.b16 %v501
      %v2931 = vunpack.c.l.b16 %v502
      %v2932 = vunpack.c.h.b16 %v502
      %v2933 = vunpack.c.l.b16 %v503
      %v2934 = vunpack.c.h.b16 %v503
      %v2935 = vunpack.c.l.b16 %v504
      %v2936 = vunpack.c.h.b16 %v504
      %v2937 = vunpack.c.l.b16 %v505
      %v2938 = vunpack.c.h.b16 %v505
      %v2939 = vunpack.c.l.b16 %v506
      %v2940 = vunpack.c.h.b16 %v506
      %v2941 = vunpack.c.l.b16 %v507
      %v2942 = vunpack.c.h.b16 %v507
      %v2943 = vunpack.c.l.b16 %v508
      %v2944 = vunpack.c.h.b16 %v508
      %v2945 = vunpack.c.l.b16 %v509
      %v2946 = vunpack.c.h.b16 %v509
      %v2947 = vunpack.c.l.b16 %v510
      %v2948 = vunpack.c.h.b16 %v510
      %v2949 = vunpack.c.l.b16 %v511
      %v2950 = vunpack.c.h.b16 %v511
      %v2951 = vunpack.c.l.b16 %v512
      %v2952 = vunpack.c.h.b16 %v512
      %v2953 = vunpack.c.l.b16 %v513
      %v2954 = vunpack.c.h.b16 %v513
      %v2955 = vunpack.c.l.b16 %v514
      %v2956 = vunpack.c.h.b16 %v514
      %v2957 = vunpack.c.l.b16 %v515
      %v2958 = vunpack.c.h.b16 %v515
      %v2959 = vunpack.c.l.b16 %v516
      %v2960 = vunpack.c.h.b16 %v516
      %v2961 = vunpack.c.l.b16 %v517
      %v2962 = vunpack.c.h.b16 %v517
      %v2963 = vunpack.c.l.b16 %v518
      %v2964 = vunpack.c.h.b16 %v518
      %v2965 = vunpack.c.l.b16 %v519
      %v2966 = vunpack.c.h.b16 %v519
      %v2967 = vunpack.c.l.b16 %v520
      %v2968 = vunpack.c.h.b16 %v520
      %v2969 = vunpack.c.l.b16 %v521
      %v2970 = vunpack.c.h.b16 %v521
      %v2971 = vunpack.c.l.b16 %v522
      %v2972 = vunpack.c.h.b16 %v522
      %v2973 = vunpack.c.l.b16 %v523
      %v2974 = vunpack.c.h.b16 %v523
      %v2975 = vunpack.c.l.b16 %v524
      %v2976 = vunpack.c.h.b16 %v524
      %v2977 = vunpack.c.l.b16 %v525
      %v2978 = vunpack.c.h.b16 %v525
      %v2979 = vunpack.c.l.b16 %v526
      %v2980 = vunpack.c.h.b16 %v526
      %v2981 = vunpack.c.l.b16 %v527
      %v2982 = vunpack.c.h.b16 %v527
      %v2983 = vunpack.c.l.b16 %v528
      %v2984 = vunpack.c.h.b16 %v528
      %v2985 = vunpack.c.l.b16 %v529
      %v2986 = vunpack.c.h.b16 %v529
      %v2987 = vunpack.c.l.b16 %v530
      %v2988 = vunpack.c.h.b16 %v530
      %v2989 = vunpack.c.l.b16 %v531
      %v2990 = vunpack.c.h.b16 %v531
      %v2991 = vunpack.c.l.b16 %v532
      %v2992 = vunpack.c.h.b16 %v532
      %v2993 = vunpack.c.l.b16 %v533
      %v2994 = vunpack.c.h.b16 %v533
      %v2995 = vunpack.c.l.b16 %v534
      %v2996 = vunpack.c.h.b16 %v534
      %v2997 = vunpack.c.l.b16 %v535
      %v2998 = vunpack.c.h.b16 %v535
      %v2999 = vunpack.c.l.b16 %v536
      %v3000 = vunpack.c.h.b16 %v536
      %v3001 = vunpack.c.l.b16 %v537
      %v3002 = vunpack.c.h.b16 %v537
      %v3003 = vunpack.c.l.b16 %v538
      %v3004 = vunpack.c.h.b16 %v538
      %v3005 = vunpack.c.l.b16 %v539
      %v3006 = vunpack.c.h.b16 %v539
      %v3007 = vunpack.c.l.b16 %v540
      %v3008 = vunpack.c.h.b16 %v540
      %v3009 = vunpack.c.l.b16 %v541
      %v3010 = vunpack.c.h.b16 %v541
      %v3011 = vunpack.c.l.b16 %v542
      %v3012 = vunpack.c.h.b16 %v542
      %v3013 = vunpack.c.l.b16 %v543
      %v3014 = vunpack.c.h.b16 %v543
      %v3015 = vunpack.c.l.b16 %v544
      %v3016 = vunpack.c.h.b16 %v544
      %v3017 = vunpack.c.l.b16 %v545
      %v3018 = vunpack.c.h.b16 %v545
      %v3019 = vunpack.c.l.b16 %v546
      %v3020 = vunpack.c.h.b16 %v546
      %v3021 = vunpack.c.l.b16 %v547
      %v3022 = vunpack.c.h.b16 %v547
      %v3023 = vunpack.c.l.b16 %v548
      %v3024 = vunpack.c.h.b16 %v548
      %v3025 = vunpack.c.l.b16 %v549
      %v3026 = vunpack.c.h.b16 %v549
      %v3027 = vunpack.c.l.b16 %v550
      %v3028 = vunpack.c.h.b16 %v550
      %v3029 = vunpack.c.l.b16 %v551
      %v3030 = vunpack.c.h.b16 %v551
      %v3031 = vunpack.c.l.b16 %v552
      %v3032 = vunpack.c.h.b16 %v552
      %v3033 = vunpack.c.l.b16 %v553
      %v3034 = vunpack.c.h.b16 %v553
      %v3035 = vunpack.c.l.b16 %v554
      %v3036 = vunpack.c.h.b16 %v554
      %v3037 = vunpack.c.l.b16 %v555
      %v3038 = vunpack.c.h.b16 %v555
      %v3039 = vunpack.c.l.b16 %v556
      %v3040 = vunpack.c.h.b16 %v556
      %v3041 = vunpack.c.l.b16 %v557
      %v3042 = vunpack.c.h.b16 %v557
      %v3043 = vunpack.c.l.b16 %v558
      %v3044 = vunpack.c.h.b16 %v558
      %v3045 = vunpack.c.l.b16 %v559
      %v3046 = vunpack.c.h.b16 %v559
      %v3047 = vunpack.c.l.b16 %v560
      %v3048 = vunpack.c.h.b16 %v560
      %v3049 = vunpack.c.l.b16 %v561
      %v3050 = vunpack.c.h.b16 %v561
      %v3051 = vunpack.c.l.b16 %v562
      %v3052 = vunpack.c.h.b16 %v562
      %v3053 = vunpack.c.l.b16 %v563
      %v3054 = vunpack.c.h.b16 %v563
      %v3055 = vunpack.c.l.b16 %v564
      %v3056 = vunpack.c.h.b16 %v564
      %v3057 = vunpack.c.l.b16 %v565
      %v3058 = vunpack.c.h.b16 %v565
      %v3059 = vunpack.c.l.b16 %v566
      %v3060 = vunpack.c.h.b16 %v566
      %v3061 = vunpack.c.l.b16 %v567
      %v3062 = vunpack.c.h.b16 %v567
      %v3063 = vunpack.c.l.b16 %v568
      %v3064 = vunpack.c.h.b16 %v568
      %v3065 = vunpack.c.l.b16 %v569
      %v3066 = vunpack.c.h.b16 %v569
      %v3067 = vunpack.c.l.b16 %v570
      %v3068 = vunpack.c.h.b16 %v570
      %v3069 = vunpack.c.l.b16 %v571
      %v3070 = vunpack.c.h.b16 %v571
      %v3071 = vunpack.c.l.b16 %v572
      %v3072 = vunpack.c.h.b16 %v572
      %v3073 = vunpack.c.l.b16 %v573
      %v3074 = vunpack.c.h.b16 %v573
      %v3075 = vunpack.c.l.b16 %v574
      %v3076 = vunpack.c.h.b16 %v574
      %v3077 = vunpack.c.l.b16 %v575
      %v3078 = vunpack.c.h.b16 %v575
      %v3079 = vunpack.c.l.b16 %v576
      %v3080 = vunpack.c.h.b16 %v576
      %v3081 = vunpack.c.l.b16 %v577
      %v3082 = vunpack.c.h.b16 %v577
      %v3083 = vunpack.c.l.b16 %v578
      %v3084 = vunpack.c.h.b16 %v578
      %v3085 = vunpack.c.l.b16 %v579
      %v3086 = vunpack.c.h.b16 %v579
      %v3087 = vunpack.c.l.b16 %v580
      %v3088 = vunpack.c.h.b16 %v580
      %v3089 = vunpack.c.l.b16 %v581
      %v3090 = vunpack.c.h.b16 %v581
      %v3091 = vunpack.c.l.b16 %v582
      %v3092 = vunpack.c.h.b16 %v582
      %v3093 = vunpack.c.l.b16 %v583
      %v3094 = vunpack.c.h.b16 %v583
      %v3095 = vunpack.c.l.b16 %v584
      %v3096 = vunpack.c.h.b16 %v584
      %v3097 = vunpack.c.l.b16 %v585
      %v3098 = vunpack.c.h.b16 %v585
      %v3099 = vunpack.c.l.b16 %v586
      %v3100 = vunpack.c.h.b16 %v586
      %v3101 = vunpack.c.l.b16 %v587
      %v3102 = vunpack.c.h.b16 %v587
      %v3103 = vunpack.c.l.b16 %v588
      %v3104 = vunpack.c.h.b16 %v588
      %v3105 = vunpack.c.l.b16 %v589
      %v3106 = vunpack.c.h.b16 %v589
      %v3107 = vunpack.c.l.b16 %v590
      %v3108 = vunpack.c.h.b16 %v590
      %v3109 = vunpack.c.l.b16 %v591
      %v3110 = vunpack.c.h.b16 %v591
      %v3111 = vunpack.c.l.b16 %v592
      %v3112 = vunpack.c.h.b16 %v592
      %v3113 = vunpack.c.l.b16 %v593
      %v3114 = vunpack.c.h.b16 %v593
      %v3115 = vunpack.c.l.b16 %v594
      %v3116 = vunpack.c.h.b16 %v594
      %v3117 = vunpack.c.l.b16 %v595
      %v3118 = vunpack.c.h.b16 %v595
      %v3119 = vunpack.c.l.b16 %v596
      %v3120 = vunpack.c.h.b16 %v596
      %v3121 = vunpack.c.l.b16 %v597
      %v3122 = vunpack.c.h.b16 %v597
      %v3123 = vunpack.c.l.b16 %v598
      %v3124 = vunpack.c.h.b16 %v598
      %v3125 = vunpack.c.l.b16 %v599
      %v3126 = vunpack.c.h.b16 %v599
      %v3127 = vunpack.c.l.b16 %v600
      %v3128 = vunpack.c.h.b16 %v600
      %v3129 = vunpack.c.l.b16 %v601
      %v3130 = vunpack.c.h.b16 %v601
      %v3131 = vunpack.c.l.b16 %v602
      %v3132 = vunpack.c.h.b16 %v602
      %v3133 = vunpack.c.l.b16 %v603
      %v3134 = vunpack.c.h.b16 %v603
      %v3135 = vunpack.c.l.b16 %v604
      %v3136 = vunpack.c.h.b16 %v604
      %v3137 = vunpack.c.l.b16 %v605
      %v3138 = vunpack.c.h.b16 %v605
      %v3139 = vunpack.c.l.b16 %v606
      %v3140 = vunpack.c.h.b16 %v606
      %v3141 = vunpack.c.l.b16 %v607
      %v3142 = vunpack.c.h.b16 %v607
      %v3143 = vunpack.c.l.b16 %v608
      %v3144 = vunpack.c.h.b16 %v608
      %v3145 = vunpack.c.l.b16 %v609
      %v3146 = vunpack.c.h.b16 %v609
      %v3147 = vunpack.c.l.b16 %v610
      %v3148 = vunpack.c.h.b16 %v610
      %v3149 = vunpack.c.l.b16 %v611
      %v3150 = vunpack.c.h.b16 %v611
      %v3151 = vunpack.c.l.b16 %v612
      %v3152 = vunpack.c.h.b16 %v612
      %v3153 = vunpack.c.l.b16 %v613
      %v3154 = vunpack.c.h.b16 %v613
      %v3155 = vunpack.c.l.b16 %v614
      %v3156 = vunpack.c.h.b16 %v614
      %v3157 = vunpack.c.l.b16 %v615
      %v3158 = vunpack.c.h.b16 %v615
      %v3159 = vunpack.c.l.b16 %v616
      %v3160 = vunpack.c.h.b16 %v616
      %v3161 = vunpack.c.l.b16 %v617
      %v3162 = vunpack.c.h.b16 %v617
      %v3163 = vunpack.c.l.b16 %v618
      %v3164 = vunpack.c.h.b16 %v618
      %v3165 = vunpack.c.l.b16 %v619
      %v3166 = vunpack.c.h.b16 %v619
      %v3167 = vunpack.c.l.b16 %v620
      %v3168 = vunpack.c.h.b16 %v620
      %v3169 = vunpack.c.l.b16 %v621
      %v3170 = vunpack.c.h.b16 %v621
      %v3171 = vunpack.c.l.b16 %v622
      %v3172 = vunpack.c.h.b16 %v622
      %v3173 = vunpack.c.l.b16 %v623
      %v3174 = vunpack.c.h.b16 %v623
      %v3175 = vunpack.c.l.b16 %v624
      %v3176 = vunpack.c.h.b16 %v624
      %v3177 = vunpack.c.l.b16 %v625
      %v3178 = vunpack.c.h.b16 %v625
      %v3179 = vunpack.c.l.b16 %v626
      %v3180 = vunpack.c.h.b16 %v626
      %v3181 = vunpack.c.l.b16 %v627
      %v3182 = vunpack.c.h.b16 %v627
      %v3183 = vunpack.c.l.b16 %v628
      %v3184 = vunpack.c.h.b16 %v628
      %v3185 = vunpack.c.l.b16 %v629
      %v3186 = vunpack.c.h.b16 %v629
      %v3187 = vunpack.c.l.b16 %v630
      %v3188 = vunpack.c.h.b16 %v630
      %v3189 = vunpack.c.l.b16 %v631
      %v3190 = vunpack.c.h.b16 %v631
      %v3191 = vunpack.c.l.b16 %v632
      %v3192 = vunpack.c.h.b16 %v632
      %v3193 = vunpack.c.l.b16 %v633
      %v3194 = vunpack.c.h.b16 %v633
      %v3195 = vunpack.c.l.b16 %v634
      %v3196 = vunpack.c.h.b16 %v634
      %v3197 = vunpack.c.l.b16 %v635
      %v3198 = vunpack.c.h.b16 %v635
      %v3199 = vunpack.c.l.b16 %v636
      %v3200 = vunpack.c.h.b16 %v636
      %v3201 = vunpack.c.l.b16 %v637
      %v3202 = vunpack.c.h.b16 %v637
      %v3203 = vunpack.c.l.b16 %v638
      %v3204 = vunpack.c.h.b16 %v638
      %v3205 = vunpack.c.l.b16 %v639
      %v3206 = vunpack.c.h.b16 %v639
      %v3207 = vunpack.c.l.b16 %v640
      %v3208 = vunpack.c.h.b16 %v640
      %v3209 = vunpack.c.l.b16 %v641
      %v3210 = vunpack.c.h.b16 %v641
      %v3211 = vunpack.c.l.b16 %v642
      %v3212 = vunpack.c.h.b16 %v642
      %v3213 = vunpack.c.l.b16 %v643
      %v3214 = vunpack.c.h.b16 %v643
      %v3215 = vunpack.c.l.b16 %v644
      %v3216 = vunpack.c.h.b16 %v644
      %v3217 = vunpack.c.l.b16 %v645
      %v3218 = vunpack.c.h.b16 %v645
      %v3219 = vunpack.c.l.b16 %v646
      %v3220 = vunpack.c.h.b16 %v646
      %v3221 = vunpack.c.l.b16 %v647
      %v3222 = vunpack.c.h.b16 %v647
      %v3223 = vunpack.c.l.b16 %v648
      %v3224 = vunpack.c.h.b16 %v648
      %v3225 = vunpack.c.l.b16 %v649
      %v3226 = vunpack.c.h.b16 %v649
      %v3227 = vunpack.c.l.b16 %v650
      %v3228 = vunpack.c.h.b16 %v650
      %v3229 = vunpack.c.l.b16 %v651
      %v3230 = vunpack.c.h.b16 %v651
      %v3231 = vunpack.c.l.b16 %v652
      %v3232 = vunpack.c.h.b16 %v652
      %v3233 = vunpack.c.l.b16 %v653
      %v3234 = vunpack.c.h.b16 %v653
      %v3235 = vunpack.c.l.b16 %v654
      %v3236 = vunpack.c.h.b16 %v654
      %v3237 = vunpack.c.l.b16 %v655
      %v3238 = vunpack.c.h.b16 %v655
      %v3239 = vunpack.c.l.b16 %v656
      %v3240 = vunpack.c.h.b16 %v656
      %v3241 = vunpack.c.l.b16 %v657
      %v3242 = vunpack.c.h.b16 %v657
      %v3243 = vunpack.c.l.b16 %v658
      %v3244 = vunpack.c.h.b16 %v658
      %v3245 = vunpack.c.l.b16 %v659
      %v3246 = vunpack.c.h.b16 %v659
      %v3247 = vunpack.c.l.b16 %v660
      %v3248 = vunpack.c.h.b16 %v660
      %v3249 = vunpack.c.l.b16 %v661
      %v3250 = vunpack.c.h.b16 %v661
      %v3251 = vunpack.c.l.b16 %v662
      %v3252 = vunpack.c.h.b16 %v662
      %v3253 = vunpack.c.l.b16 %v663
      %v3254 = vunpack.c.h.b16 %v663
      %v3255 = vunpack.c.l.b16 %v664
      %v3256 = vunpack.c.h.b16 %v664
      %v3257 = vunpack.c.l.b16 %v665
      %v3258 = vunpack.c.h.b16 %v665
      %v3259 = vunpack.c.l.b16 %v666
      %v3260 = vunpack.c.h.b16 %v666
      %v3261 = vunpack.c.l.b16 %v667
      %v3262 = vunpack.c.h.b16 %v667
      %v3263 = vunpack.c.l.b16 %v668
      %v3264 = vunpack.c.h.b16 %v668
      %v3265 = vunpack.c.l.b16 %v669
      %v3266 = vunpack.c.h.b16 %v669
      %v3267 = vunpack.c.l.b16 %v670
      %v3268 = vunpack.c.h.b16 %v670
      %v3269 = vunpack.c.l.b16 %v671
      %v3270 = vunpack.c.h.b16 %v671
      %v3271 = vunpack.c.l.b16 %v672
      %v3272 = vunpack.c.h.b16 %v672
      %v3273 = vunpack.c.l.b16 %v673
      %v3274 = vunpack.c.h.b16 %v673
      %v3275 = vunpack.c.l.b16 %v674
      %v3276 = vunpack.c.h.b16 %v674
      %v3277 = vunpack.c.l.b16 %v675
      %v3278 = vunpack.c.h.b16 %v675
      %v3279 = vunpack.c.l.b16 %v676
      %v3280 = vunpack.c.h.b16 %v676
      %v3281 = vunpack.c.l.b16 %v677
      %v3282 = vunpack.c.h.b16 %v677
      %v3283 = vunpack.c.l.b16 %v678
      %v3284 = vunpack.c.h.b16 %v678
      %v3285 = vunpack.c.l.b16 %v679
      %v3286 = vunpack.c.h.b16 %v679
      %v3287 = vunpack.c.l.b16 %v680
      %v3288 = vunpack.c.h.b16 %v680
      %v3289 = vunpack.c.l.b16 %v681
      %v3290 = vunpack.c.h.b16 %v681
      %v3291 = vunpack.c.l.b16 %v682
      %v3292 = vunpack.c.h.b16 %v682
      %v3293 = vunpack.c.l.b16 %v683
      %v3294 = vunpack.c.h.b16 %v683
      %v3295 = vunpack.c.l.b16 %v684
      %v3296 = vunpack.c.h.b16 %v684
      %v3297 = vunpack.c.l.b16 %v685
      %v3298 = vunpack.c.h.b16 %v685
      %v3299 = vunpack.c.l.b16 %v686
      %v3300 = vunpack.c.h.b16 %v686
      %v3301 = vunpack.c.l.b16 %v687
      %v3302 = vunpack.c.h.b16 %v687
      %v3303 = vunpack.c.l.b16 %v688
      %v3304 = vunpack.c.h.b16 %v688
      %v3305 = vunpack.c.l.b16 %v689
      %v3306 = vunpack.c.h.b16 %v689
      %v3307 = vunpack.c.l.b16 %v690
      %v3308 = vunpack.c.h.b16 %v690
      %v3309 = vunpack.c.l.b16 %v691
      %v3310 = vunpack.c.h.b16 %v691
      %v3311 = vunpack.c.l.b16 %v692
      %v3312 = vunpack.c.h.b16 %v692
      %v3313 = vunpack.c.l.b16 %v693
      %v3314 = vunpack.c.h.b16 %v693
      %v3315 = vunpack.c.l.b16 %v694
      %v3316 = vunpack.c.h.b16 %v694
      %v3317 = vunpack.c.l.b16 %v695
      %v3318 = vunpack.c.h.b16 %v695
      %v3319 = vunpack.c.l.b16 %v696
      %v3320 = vunpack.c.h.b16 %v696
      %v3321 = vunpack.c.l.b16 %v697
      %v3322 = vunpack.c.h.b16 %v697
      %v3323 = vunpack.c.l.b16 %v698
      %v3324 = vunpack.c.h.b16 %v698
      %v3325 = vunpack.c.l.b16 %v699
      %v3326 = vunpack.c.h.b16 %v699
      %v3327 = vunpack.c.l.b16 %v700
      %v3328 = vunpack.c.h.b16 %v700
      %v3329 = vunpack.c.l.b16 %v701
      %v3330 = vunpack.c.h.b16 %v701
      %v3331 = vunpack.c.l.b16 %v702
      %v3332 = vunpack.c.h.b16 %v702
      %v3333 = vunpack.c.l.b16 %v703
      %v3334 = vunpack.c.h.b16 %v703
      %v3335 = vunpack.c.l.b16 %v704
      %v3336 = vunpack.c.h.b16 %v704
      %v3337 = vunpack.c.l.b16 %v705
      %v3338 = vunpack.c.h.b16 %v705
      %v3339 = vunpack.c.l.b16 %v706
      %v3340 = vunpack.c.h.b16 %v706
      %v3341 = vunpack.c.l.b16 %v707
      %v3342 = vunpack.c.h.b16 %v707
      %v3343 = vunpack.c.l.b16 %v708
      %v3344 = vunpack.c.h.b16 %v708
      %v3345 = vunpack.c.l.b16 %v709
      %v3346 = vunpack.c.h.b16 %v709
      %v3347 = vunpack.c.l.b16 %v710
      %v3348 = vunpack.c.h.b16 %v710
      %v3349 = vunpack.c.l.b16 %v711
      %v3350 = vunpack.c.h.b16 %v711
      %v3351 = vunpack.c.l.b16 %v712
      %v3352 = vunpack.c.h.b16 %v712
      %v3353 = vunpack.c.l.b16 %v713
      %v3354 = vunpack.c.h.b16 %v713
      %v3355 = vunpack.c.l.b16 %v714
      %v3356 = vunpack.c.h.b16 %v714
      %v3357 = vunpack.c.l.b16 %v715
      %v3358 = vunpack.c.h.b16 %v715
      %v3359 = vunpack.c.l.b16 %v716
      %v3360 = vunpack.c.h.b16 %v716
      %v3361 = vunpack.c.l.b16 %v717
      %v3362 = vunpack.c.h.b16 %v717
      %v3363 = vunpack.c.l.b16 %v718
      %v3364 = vunpack.c.h.b16 %v718
      %v3365 = vunpack.c.l.b16 %v719
      %v3366 = vunpack.c.h.b16 %v719
      %v3367 = vunpack.c.l.b16 %v720
      %v3368 = vunpack.c.h.b16 %v720
      %v3369 = vunpack.c.l.b16 %v721
      %v3370 = vunpack.c.h.b16 %v721
      %v3371 = vunpack.c.l.b16 %v722
      %v3372 = vunpack.c.h.b16 %v722
      %v3373 = vunpack.c.l.b16 %v723
      %v3374 = vunpack.c.h.b16 %v723
      %v3375 = vunpack.c.l.b16 %v724
      %v3376 = vunpack.c.h.b16 %v724
      %v3377 = vunpack.c.l.b16 %v725
      %v3378 = vunpack.c.h.b16 %v725
      %v3379 = vunpack.c.l.b16 %v726
      %v3380 = vunpack.c.h.b16 %v726
      %v3381 = vunpack.c.l.b16 %v727
      %v3382 = vunpack.c.h.b16 %v727
      %v3383 = vunpack.c.l.b16 %v728
      %v3384 = vunpack.c.h.b16 %v728
      %v3385 = vunpack.c.l.b16 %v729
      %v3386 = vunpack.c.h.b16 %v729
      %v3387 = vunpack.c.l.b16 %v730
      %v3388 = vunpack.c.h.b16 %v730
      %v3389 = vunpack.c.l.b16 %v731
      %v3390 = vunpack.c.h.b16 %v731
      %v3391 = vunpack.c.l.b16 %v732
      %v3392 = vunpack.c.h.b16 %v732
      %v3393 = vunpack.c.l.b16 %v733
      %v3394 = vunpack.c.h.b16 %v733
      %v3395 = vunpack.c.l.b16 %v734
      %v3396 = vunpack.c.h.b16 %v734
      %v3397 = vunpack.c.l.b16 %v735
      %v3398 = vunpack.c.h.b16 %v735
      %v3399 = vunpack.c.l.b16 %v736
      %v3400 = vunpack.c.h.b16 %v736
      %v3401 = vunpack.c.l.b16 %v737
      %v3402 = vunpack.c.h.b16 %v737
      %v3403 = vunpack.c.l.b16 %v738
      %v3404 = vunpack.c.h.b16 %v738
      %v3405 = vunpack.c.l.b16 %v739
      %v3406 = vunpack.c.h.b16 %v739
      %v3407 = vunpack.c.l.b16 %v740
      %v3408 = vunpack.c.h.b16 %v740
      %v3409 = vunpack.c.l.b16 %v741
      %v3410 = vunpack.c.h.b16 %v741
      %v3411 = vunpack.c.l.b16 %v742
      %v3412 = vunpack.c.h.b16 %v742
      %v3413 = vunpack.c.l.b16 %v743
      %v3414 = vunpack.c.h.b16 %v743
      %v3415 = vunpack.c.l.b16 %v744
      %v3416 = vunpack.c.h.b16 %v744
      %v3417 = vunpack.c.l.b16 %v745
      %v3418 = vunpack.c.h.b16 %v745
      %v3419 = vunpack.c.l.b16 %v746
      %v3420 = vunpack.c.h.b16 %v746
      %v3421 = vunpack.c.l.b16 %v747
      %v3422 = vunpack.c.h.b16 %v747
      %v3423 = vunpack.c.l.b16 %v748
      %v3424 = vunpack.c.h.b16 %v748
      %v3425 = vunpack.c.l.b16 %v749
      %v3426 = vunpack.c.h.b16 %v749
      %v3427 = vunpack.c.l.b16 %v750
      %v3428 = vunpack.c.h.b16 %v750
      %v3429 = vunpack.c.l.b16 %v751
      %v3430 = vunpack.c.h.b16 %v751
      %v3431 = vunpack.c.l.b16 %v752
      %v3432 = vunpack.c.h.b16 %v752
      %v3433 = vunpack.c.l.b16 %v753
      %v3434 = vunpack.c.h.b16 %v753
      %v3435 = vunpack.c.l.b16 %v754
      %v3436 = vunpack.c.h.b16 %v754
      %v3437 = vunpack.c.l.b16 %v755
      %v3438 = vunpack.c.h.b16 %v755
      %v3439 = vunpack.c.l.b16 %v756
      %v3440 = vunpack.c.h.b16 %v756
      %v3441 = vunpack.c.l.b16 %v757
      %v3442 = vunpack.c.h.b16 %v757
      %v3443 = vunpack.c.l.b16 %v758
      %v3444 = vunpack.c.h.b16 %v758
      %v3445 = vunpack.c.l.b16 %v759
      %v3446 = vunpack.c.h.b16 %v759
      %v3447 = vunpack.c.l.b16 %v760
      %v3448 = vunpack.c.h.b16 %v760
      %v3449 = vunpack.c.l.b16 %v761
      %v3450 = vunpack.c.h.b16 %v761
      %v3451 = vunpack.c.l.b16 %v762
      %v3452 = vunpack.c.h.b16 %v762
      %v3453 = vunpack.c.l.b16 %v763
      %v3454 = vunpack.c.h.b16 %v763
      %v3455 = vunpack.c.l.b16 %v764
      %v3456 = vunpack.c.h.b16 %v764
      %v3457 = vunpack.c.l.b16 %v765
      %v3458 = vunpack.c.h.b16 %v765
      %v3459 = vunpack.c.l.b16 %v766
      %v3460 = vunpack.c.h.b16 %v766
      %v3461 = vunpack.c.l.b16 %v767
      %v3462 = vunpack.c.h.b16 %v767
      %v3463 = vunpack.c.l.b16 %v768
      %v3464 = vunpack.c.h.b16 %v768
      %v3465 = vunpack.c.l.b16 %v769
      %v3466 = vunpack.c.h.b16 %v769
      %v3467 = vunpack.c.l.b16 %v770
      %v3468 = vunpack.c.h.b16 %v770
      %v3469 = vunpack.c.l.b16 %v771
      %v3470 = vunpack.c.h.b16 %v771
      %v3471 = vunpack.c.l.b16 %v772
      %v3472 = vunpack.c.h.b16 %v772
      %v3473 = vunpack.c.l.b16 %v773
      %v3474 = vunpack.c.h.b16 %v773
      %v3475 = vunpack.c.l.b16 %v774
      %v3476 = vunpack.c.h.b16 %v774
      %v3477 = vunpack.c.l.b16 %v775
      %v3478 = vunpack.c.h.b16 %v775
      %v3479 = vunpack.c.l.b16 %v776
      %v3480 = vunpack.c.h.b16 %v776
      %v3481 = vunpack.c.l.b16 %v777
      %v3482 = vunpack.c.h.b16 %v777
      %v3483 = vunpack.c.l.b16 %v778
      %v3484 = vunpack.c.h.b16 %v778
      %v3485 = vunpack.c.l.b16 %v779
      %v3486 = vunpack.c.h.b16 %v779
      %v3487 = vunpack.c.l.b16 %v780
      %v3488 = vunpack.c.h.b16 %v780
      %v3489 = vunpack.c.l.b16 %v781
      %v3490 = vunpack.c.h.b16 %v781
      %v3491 = vunpack.c.l.b16 %v782
      %v3492 = vunpack.c.h.b16 %v782
      %v3493 = vunpack.c.l.b16 %v783
      %v3494 = vunpack.c.h.b16 %v783
      %v3495 = vunpack.c.l.b16 %v784
      %v3496 = vunpack.c.h.b16 %v784
      %v3497 = vunpack.c.l.b16 %v785
      %v3498 = vunpack.c.h.b16 %v785
      %v3499 = vunpack.c.l.b16 %v786
      %v3500 = vunpack.c.h.b16 %v786
      %v3501 = vunpack.c.l.b16 %v787
      %v3502 = vunpack.c.h.b16 %v787
      %v3503 = vunpack.c.l.b16 %v788
      %v3504 = vunpack.c.h.b16 %v788
      %v3505 = vunpack.c.l.b16 %v789
      %v3506 = vunpack.c.h.b16 %v789
      %v3507 = vunpack.c.l.b16 %v790
      %v3508 = vunpack.c.h.b16 %v790
      %v3509 = vunpack.c.l.b16 %v791
      %v3510 = vunpack.c.h.b16 %v791
      %v3511 = vunpack.c.l.b16 %v792
      %v3512 = vunpack.c.h.b16 %v792
      %v3513 = vunpack.c.l.b16 %v793
      %v3514 = vunpack.c.h.b16 %v793
      %v3515 = vunpack.c.l.b16 %v794
      %v3516 = vunpack.c.h.b16 %v794
      %v3517 = vunpack.c.l.b16 %v795
      %v3518 = vunpack.c.h.b16 %v795
      %v3519 = vunpack.c.l.b16 %v796
      %v3520 = vunpack.c.h.b16 %v796
      %v3521 = vunpack.c.l.b16 %v797
      %v3522 = vunpack.c.h.b16 %v797
      %v3523 = vunpack.c.l.b16 %v798
      %v3524 = vunpack.c.h.b16 %v798
      %v3525 = vunpack.c.l.b16 %v799
      %v3526 = vunpack.c.h.b16 %v799
      %v3527 = vunpack.c.l.b16 %v800
      %v3528 = vunpack.c.h.b16 %v800
      %v3529 = vunpack.c.l.b16 %v801
      %v3530 = vunpack.c.h.b16 %v801
      %v3531 = vunpack.c.l.b16 %v802
      %v3532 = vunpack.c.h.b16 %v802
      %v3533 = vunpack.c.l.b16 %v803
      %v3534 = vunpack.c.h.b16 %v803
      %v3535 = vunpack.c.l.b16 %v804
      %v3536 = vunpack.c.h.b16 %v804
      %v3537 = vunpack.c.l.b16 %v805
      %v3538 = vunpack.c.h.b16 %v805
      %v3539 = vunpack.c.l.b16 %v806
      %v3540 = vunpack.c.h.b16 %v806
      %v3541 = vunpack.c.l.b16 %v807
      %v3542 = vunpack.c.h.b16 %v807
      %v3543 = vunpack.c.l.b16 %v808
      %v3544 = vunpack.c.h.b16 %v808
      %v3545 = vunpack.c.l.b16 %v809
      %v3546 = vunpack.c.h.b16 %v809
      %v3547 = vunpack.c.l.b16 %v810
      %v3548 = vunpack.c.h.b16 %v810
      %v3549 = vunpack.c.l.b16 %v811
      %v3550 = vunpack.c.h.b16 %v811
      %v3551 = vunpack.c.l.b16 %v812
      %v3552 = vunpack.c.h.b16 %v812
      %v3553 = vunpack.c.l.b16 %v813
      %v3554 = vunpack.c.h.b16 %v813
      %v3555 = vunpack.c.l.b16 %v814
      %v3556 = vunpack.c.h.b16 %v814
      %v3557 = vunpack.c.l.b16 %v815
      %v3558 = vunpack.c.h.b16 %v815
      %v3559 = vunpack.c.l.b16 %v816
      %v3560 = vunpack.c.h.b16 %v816
      %v3561 = vunpack.c.l.b16 %v817
      %v3562 = vunpack.c.h.b16 %v817
      %v3563 = vunpack.c.l.b16 %v818
      %v3564 = vunpack.c.h.b16 %v818
      %v3565 = vunpack.c.l.b16 %v819
      %v3566 = vunpack.c.h.b16 %v819
      %v3567 = vunpack.c.l.b16 %v820
      %v3568 = vunpack.c.h.b16 %v820
      %v3569 = vunpack.c.l.b16 %v821
      %v3570 = vunpack.c.h.b16 %v821
      %v3571 = vunpack.c.l.b16 %v822
      %v3572 = vunpack.c.h.b16 %v822
      %v3573 = vunpack.c.l.b16 %v823
      %v3574 = vunpack.c.h.b16 %v823
      %v3575 = vunpack.c.l.b16 %v824
      %v3576 = vunpack.c.h.b16 %v824
      %v3577 = vunpack.c.l.b16 %v825
      %v3578 = vunpack.c.h.b16 %v825
      %v3579 = vunpack.c.l.b16 %v826
      %v3580 = vunpack.c.h.b16 %v826
      %v3581 = vunpack.c.l.b16 %v827
      %v3582 = vunpack.c.h.b16 %v827
      %v3583 = vunpack.c.l.b16 %v828
      %v3584 = vunpack.c.h.b16 %v828
      %v3585 = vunpack.c.l.b16 %v829
      %v3586 = vunpack.c.h.b16 %v829
      %v3587 = vunpack.c.l.b16 %v830
      %v3588 = vunpack.c.h.b16 %v830
      %v3589 = vunpack.c.l.b16 %v831
      %v3590 = vunpack.c.h.b16 %v831
      %v3591 = vunpack.c.l.b16 %v832
      %v3592 = vunpack.c.h.b16 %v832
      %v3593 = vunpack.c.l.b16 %v833
      %v3594 = vunpack.c.h.b16 %v833
      %v3595 = vunpack.c.l.b16 %v834
      %v3596 = vunpack.c.h.b16 %v834
      %v3597 = vunpack.c.l.b16 %v835
      %v3598 = vunpack.c.h.b16 %v835
      %v3599 = vunpack.c.l.b16 %v836
      %v3600 = vunpack.c.h.b16 %v836
      %v3601 = vunpack.c.l.b16 %v837
      %v3602 = vunpack.c.h.b16 %v837
      %v3603 = vunpack.c.l.b16 %v838
      %v3604 = vunpack.c.h.b16 %v838
      %v3605 = vunpack.c.l.b16 %v839
      %v3606 = vunpack.c.h.b16 %v839
      %v3607 = vunpack.c.l.b16 %v840
      %v3608 = vunpack.c.h.b16 %v840
      %v3609 = vunpack.c.l.b16 %v841
      %v3610 = vunpack.c.h.b16 %v841
      %v3611 = vunpack.c.l.b16 %v842
      %v3612 = vunpack.c.h.b16 %v842
      %v3613 = vunpack.c.l.b16 %v843
      %v3614 = vunpack.c.h.b16 %v843
      %v3615 = vunpack.c.l.b16 %v844
      %v3616 = vunpack.c.h.b16 %v844
      %v3617 = vunpack.c.l.b16 %v845
      %v3618 = vunpack.c.h.b16 %v845
      %v3619 = vunpack.c.l.b16 %v846
      %v3620 = vunpack.c.h.b16 %v846
      %v3621 = vunpack.c.l.b16 %v847
      %v3622 = vunpack.c.h.b16 %v847
      %v3623 = vunpack.c.l.b16 %v848
      %v3624 = vunpack.c.h.b16 %v848
      %v3625 = vunpack.c.l.b16 %v849
      %v3626 = vunpack.c.h.b16 %v849
      %v3627 = vunpack.c.l.b16 %v850
      %v3628 = vunpack.c.h.b16 %v850
      %v3629 = vunpack.c.l.b16 %v851
      %v3630 = vunpack.c.h.b16 %v851
      %v3631 = vunpack.c.l.b16 %v852
      %v3632 = vunpack.c.h.b16 %v852
      %v3633 = vunpack.c.l.b16 %v853
      %v3634 = vunpack.c.h.b16 %v853
      %v3635 = vunpack.c.l.b16 %v854
      %v3636 = vunpack.c.h.b16 %v854
      %v3637 = vunpack.c.l.b16 %v855
      %v3638 = vunpack.c.h.b16 %v855
      %v3639 = vunpack.c.l.b16 %v856
      %v3640 = vunpack.c.h.b16 %v856
      %v3641 = vunpack.c.l.b16 %v857
      %v3642 = vunpack.c.h.b16 %v857
      %v3643 = vunpack.c.l.b16 %v858
      %v3644 = vunpack.c.h.b16 %v858
      %v3645 = vunpack.c.l.b16 %v859
      %v3646 = vunpack.c.h.b16 %v859
      %v3647 = vunpack.c.l.b16 %v860
      %v3648 = vunpack.c.h.b16 %v860
      %v3649 = vunpack.c.l.b16 %v861
      %v3650 = vunpack.c.h.b16 %v861
      %v3651 = vunpack.c.l.b16 %v862
      %v3652 = vunpack.c.h.b16 %v862
      %v3653 = vunpack.c.l.b16 %v863
      %v3654 = vunpack.c.h.b16 %v863
      %v3655 = vunpack.c.l.b16 %v864
      %v3656 = vunpack.c.h.b16 %v864
      %v3657 = vunpack.c.l.b16 %v865
      %v3658 = vunpack.c.h.b16 %v865
      %v3659 = vunpack.c.l.b16 %v866
      %v3660 = vunpack.c.h.b16 %v866
      %v3661 = vunpack.c.l.b16 %v867
      %v3662 = vunpack.c.h.b16 %v867
      %v3663 = vunpack.c.l.b16 %v868
      %v3664 = vunpack.c.h.b16 %v868
      %v3665 = vunpack.c.l.b16 %v869
      %v3666 = vunpack.c.h.b16 %v869
      %v3667 = vunpack.c.l.b16 %v870
      %v3668 = vunpack.c.h.b16 %v870
      %v3669 = vunpack.c.l.b16 %v871
      %v3670 = vunpack.c.h.b16 %v871
      %v3671 = vunpack.c.l.b16 %v872
      %v3672 = vunpack.c.h.b16 %v872
      %v3673 = vunpack.c.l.b16 %v873
      %v3674 = vunpack.c.h.b16 %v873
      %v3675 = vunpack.c.l.b16 %v874
      %v3676 = vunpack.c.h.b16 %v874
      %v3677 = vunpack.c.l.b16 %v875
      %v3678 = vunpack.c.h.b16 %v875
      %v3679 = vunpack.c.l.b16 %v876
      %v3680 = vunpack.c.h.b16 %v876
      %v3681 = vunpack.c.l.b16 %v877
      %v3682 = vunpack.c.h.b16 %v877
      %v3683 = vunpack.c.l.b16 %v878
      %v3684 = vunpack.c.h.b16 %v878
      %v3685 = vunpack.c.l.b16 %v879
      %v3686 = vunpack.c.h.b16 %v879
      %v3687 = vunpack.c.l.b16 %v880
      %v3688 = vunpack.c.h.b16 %v880
      %v3689 = vunpack.c.l.b16 %v881
      %v3690 = vunpack.c.h.b16 %v881
      %v3691 = vunpack.c.l.b16 %v882
      %v3692 = vunpack.c.h.b16 %v882
      %v3693 = vunpack.c.l.b16 %v883
      %v3694 = vunpack.c.h.b16 %v883
      %v3695 = vunpack.c.l.b16 %v884
      %v3696 = vunpack.c.h.b16 %v884
      %v3697 = vunpack.c.l.b16 %v885
      %v3698 = vunpack.c.h.b16 %v885
      %v3699 = vunpack.c.l.b16 %v886
      %v3700 = vunpack.c.h.b16 %v886
      %v3701 = vunpack.c.l.b16 %v887
      %v3702 = vunpack.c.h.b16 %v887
      %v3703 = vunpack.c.l.b16 %v888
      %v3704 = vunpack.c.h.b16 %v888
      %v3705 = vunpack.c.l.b16 %v889
      %v3706 = vunpack.c.h.b16 %v889
      %v3707 = vunpack.c.l.b16 %v890
      %v3708 = vunpack.c.h.b16 %v890
      %v3709 = vunpack.c.l.b16 %v891
      %v3710 = vunpack.c.h.b16 %v891
      %v3711 = vunpack.c.l.b16 %v892
      %v3712 = vunpack.c.h.b16 %v892
      %v3713 = vunpack.c.l.b16 %v893
      %v3714 = vunpack.c.h.b16 %v893
      %v3715 = vunpack.c.l.b16 %v894
      %v3716 = vunpack.c.h.b16 %v894
      %v3717 = vunpack.c.l.b16 %v895
      %v3718 = vunpack.c.h.b16 %v895
      %v3719 = vunpack.c.l.b16 %v896
      %v3720 = vunpack.c.h.b16 %v896
      %v3721 = vunpack.c.l.b16 %v897
      %v3722 = vunpack.c.h.b16 %v897
      %v3723 = vunpack.c.l.b16 %v898
      %v3724 = vunpack.c.h.b16 %v898
      %v3725 = vunpack.c.l.b16 %v899
      %v3726 = vunpack.c.h.b16 %v899
      %v3727 = vunpack.c.l.b16 %v900
      %v3728 = vunpack.c.h.b16 %v900
      %v3729 = vunpack.c.l.b16 %v901
      %v3730 = vunpack.c.h.b16 %v901
      %v3731 = vunpack.c.l.b16 %v902
      %v3732 = vunpack.c.h.b16 %v902
      %v3733 = vunpack.c.l.b16 %v903
      %v3734 = vunpack.c.h.b16 %v903
      %v3735 = vunpack.c.l.b16 %v904
      %v3736 = vunpack.c.h.b16 %v904
      %v3737 = vunpack.c.l.b16 %v905
      %v3738 = vunpack.c.h.b16 %v905
      %v3739 = vunpack.c.l.b16 %v906
      %v3740 = vunpack.c.h.b16 %v906
      %v3741 = vunpack.c.l.b16 %v907
      %v3742 = vunpack.c.h.b16 %v907
      %v3743 = vunpack.c.l.b16 %v908
      %v3744 = vunpack.c.h.b16 %v908
      %v3745 = vunpack.c.l.b16 %v909
      %v3746 = vunpack.c.h.b16 %v909
      %v3747 = vunpack.c.l.b16 %v910
      %v3748 = vunpack.c.h.b16 %v910
      %v3749 = vunpack.c.l.b16 %v911
      %v3750 = vunpack.c.h.b16 %v911
      %v3751 = vunpack.c.l.b16 %v912
      %v3752 = vunpack.c.h.b16 %v912
      %v3753 = vunpack.c.l.b16 %v913
      %v3754 = vunpack.c.h.b16 %v913
      %v3755 = vunpack.c.l.b16 %v914
      %v3756 = vunpack.c.h.b16 %v914
      %v3757 = vunpack.c.l.b16 %v915
      %v3758 = vunpack.c.h.b16 %v915
      %v3759 = vunpack.c.l.b16 %v916
      %v3760 = vunpack.c.h.b16 %v916
      %v3761 = vunpack.c.l.b16 %v917
      %v3762 = vunpack.c.h.b16 %v917
      %v3763 = vunpack.c.l.b16 %v918
      %v3764 = vunpack.c.h.b16 %v918
      %v3765 = vunpack.c.l.b16 %v919
      %v3766 = vunpack.c.h.b16 %v919
      %v3767 = vunpack.c.l.b16 %v920
      %v3768 = vunpack.c.h.b16 %v920
      %v3769 = vunpack.c.l.b16 %v921
      %v3770 = vunpack.c.h.b16 %v921
      %v3771 = vunpack.c.l.b16 %v922
      %v3772 = vunpack.c.h.b16 %v922
      %v3773 = vunpack.c.l.b16 %v923
      %v3774 = vunpack.c.h.b16 %v923
      %v3775 = vunpack.c.l.b16 %v924
      %v3776 = vunpack.c.h.b16 %v924
      %v3777 = vunpack.c.l.b16 %v925
      %v3778 = vunpack.c.h.b16 %v925
      %v3779 = vunpack.c.l.b16 %v926
      %v3780 = vunpack.c.h.b16 %v926
      %v3781 = vunpack.c.l.b16 %v927
      %v3782 = vunpack.c.h.b16 %v927
      %v3783 = vunpack.c.l.b16 %v928
      %v3784 = vunpack.c.h.b16 %v928
      %v3785 = vunpack.c.l.b16 %v929
      %v3786 = vunpack.c.h.b16 %v929
      %v3787 = vunpack.c.l.b16 %v930
      %v3788 = vunpack.c.h.b16 %v930
      %v3789 = vunpack.c.l.b16 %v931
      %v3790 = vunpack.c.h.b16 %v931
      %v3791 = vunpack.c.l.b16 %v932
      %v3792 = vunpack.c.h.b16 %v932
      %v3793 = vunpack.c.l.b16 %v933
      %v3794 = vunpack.c.h.b16 %v933
      %v3795 = vunpack.c.l.b16 %v934
      %v3796 = vunpack.c.h.b16 %v934
      %v3797 = vunpack.c.l.b16 %v935
      %v3798 = vunpack.c.h.b16 %v935
      %v3799 = vunpack.c.l.b16 %v936
      %v3800 = vunpack.c.h.b16 %v936
      %v3801 = vunpack.c.l.b16 %v937
      %v3802 = vunpack.c.h.b16 %v937
      %v3803 = vunpack.c.l.b16 %v938
      %v3804 = vunpack.c.h.b16 %v938
      %v3805 = vunpack.c.l.b16 %v939
      %v3806 = vunpack.c.h.b16 %v939
      %v3807 = vunpack.c.l.b16 %v940
      %v3808 = vunpack.c.h.b16 %v940
      %v3809 = vunpack.c.l.b16 %v941
      %v3810 = vunpack.c.h.b16 %v941
      %v3811 = vunpack.c.l.b16 %v942
      %v3812 = vunpack.c.h.b16 %v942
      %v3813 = vunpack.c.l.b16 %v943
      %v3814 = vunpack.c.h.b16 %v943
      %v3815 = vunpack.c.l.b16 %v944
      %v3816 = vunpack.c.h.b16 %v944
      %v3817 = vunpack.c.l.b16 %v945
      %v3818 = vunpack.c.h.b16 %v945
      %v3819 = vunpack.c.l.b16 %v946
      %v3820 = vunpack.c.h.b16 %v946
      %v3821 = vunpack.c.l.b16 %v947
      %v3822 = vunpack.c.h.b16 %v947
      %v3823 = vunpack.c.l.b16 %v948
      %v3824 = vunpack.c.h.b16 %v948
      %v3825 = vunpack.c.l.b16 %v949
      %v3826 = vunpack.c.h.b16 %v949
      %v3827 = vunpack.c.l.b16 %v950
      %v3828 = vunpack.c.h.b16 %v950
      %v3829 = vunpack.c.l.b16 %v951
      %v3830 = vunpack.c.h.b16 %v951
      %v3831 = vunpack.c.l.b16 %v952
      %v3832 = vunpack.c.h.b16 %v952
      %v3833 = vunpack.c.l.b16 %v953
      %v3834 = vunpack.c.h.b16 %v953
      %v3835 = vunpack.c.l.b16 %v954
      %v3836 = vunpack.c.h.b16 %v954
      %v3837 = vunpack.c.l.b16 %v955
      %v3838 = vunpack.c.h.b16 %v955
      %v3839 = vunpack.c.l.b16 %v956
      %v3840 = vunpack.c.h.b16 %v956
      %v3841 = vunpack.c.l.b16 %v957
      %v3842 = vunpack.c.h.b16 %v957
      %v3843 = vunpack.c.l.b16 %v958
      %v3844 = vunpack.c.h.b16 %v958
      %v3845 = vunpack.c.l.b16 %v959
      %v3846 = vunpack.c.h.b16 %v959
      %v3847 = vunpack.c.l.b16 %v960
      %v3848 = vunpack.c.h.b16 %v960
      %v3849 = vunpack.c.l.b16 %v961
      %v3850 = vunpack.c.h.b16 %v961
      %v3851 = vunpack.c.l.b16 %v962
      %v3852 = vunpack.c.h.b16 %v962
      %v3853 = vunpack.c.l.b16 %v963
      %v3854 = vunpack.c.h.b16 %v963
      %v3855 = vunpack.c.l.b16 %v964
      %v3856 = vunpack.c.h.b16 %v964
      %v3857 = vunpack.c.l.b16 %v965
      %v3858 = vunpack.c.h.b16 %v965
      %v3859 = vunpack.c.l.b16 %v966
      %v3860 = vunpack.c.h.b16 %v966
      %v3861 = vunpack.c.l.b16 %v967
      %v3862 = vunpack.c.h.b16 %v967
      %v3863 = vunpack.c.l.b16 %v968
      %v3864 = vunpack.c.h.b16 %v968
      %v3865 = vunpack.c.l.b16 %v969
      %v3866 = vunpack.c.h.b16 %v969
      %v3867 = vunpack.c.l.b16 %v970
      %v3868 = vunpack.c.h.b16 %v970
      %v3869 = vunpack.c.l.b16 %v971
      %v3870 = vunpack.c.h.b16 %v971
      %v3871 = vunpack.c.l.b16 %v972
      %v3872 = vunpack.c.h.b16 %v972
      %v3873 = vunpack.c.l.b16 %v973
      %v3874 = vunpack.c.h.b16 %v973
      %v3875 = vunpack.c.l.b16 %v974
      %v3876 = vunpack.c.h.b16 %v974
      %v3877 = vunpack.c.l.b16 %v975
      %v3878 = vunpack.c.h.b16 %v975
      %v3879 = vunpack.c.l.b16 %v976
      %v3880 = vunpack.c.h.b16 %v976
      %v3881 = vunpack.c.l.b16 %v977
      %v3882 = vunpack.c.h.b16 %v977
      %v3883 = vunpack.c.l.b16 %v978
      %v3884 = vunpack.c.h.b16 %v978
      %v3885 = vunpack.c.l.b16 %v979
      %v3886 = vunpack.c.h.b16 %v979
      %v3887 = vunpack.c.l.b16 %v980
      %v3888 = vunpack.c.h.b16 %v980
      %v3889 = vunpack.c.l.b16 %v981
      %v3890 = vunpack.c.h.b16 %v981
      %v3891 = vunpack.c.l.b16 %v982
      %v3892 = vunpack.c.h.b16 %v982
      %v3893 = vunpack.c.l.b16 %v983
      %v3894 = vunpack.c.h.b16 %v983
      %v3895 = vunpack.c.l.b16 %v984
      %v3896 = vunpack.c.h.b16 %v984
      %v3897 = vunpack.c.l.b16 %v985
      %v3898 = vunpack.c.h.b16 %v985
      %v3899 = vunpack.c.l.b16 %v986
      %v3900 = vunpack.c.h.b16 %v986
      %v3901 = vunpack.c.l.b16 %v987
      %v3902 = vunpack.c.h.b16 %v987
      %v3903 = vunpack.c.l.b16 %v988
      %v3904 = vunpack.c.h.b16 %v988
      %v3905 = vunpack.c.l.b16 %v989
      %v3906 = vunpack.c.h.b16 %v989
      %v3907 = vunpack.c.l.b16 %v990
      %v3908 = vunpack.c.h.b16 %v990
      %v3909 = vunpack.c.l.b16 %v991
      %v3910 = vunpack.c.h.b16 %v991
      %v3911 = vunpack.c.l.b16 %v992
      %v3912 = vunpack.c.h.b16 %v992
      %v3913 = vunpack.c.l.b16 %v993
      %v3914 = vunpack.c.h.b16 %v993
      %v3915 = vunpack.c.l.b16 %v994
      %v3916 = vunpack.c.h.b16 %v994
      %v3917 = vunpack.c.l.b16 %v995
      %v3918 = vunpack.c.h.b16 %v995
      %v3919 = vunpack.c.l.b16 %v996
      %v3920 = vunpack.c.h.b16 %v996
      %v3921 = vunpack.c.l.b16 %v997
      %v3922 = vunpack.c.h.b16 %v997
      %v3923 = vunpack.c.l.b16 %v998
      %v3924 = vunpack.c.h.b16 %v998
      %v3925 = vunpack.c.l.b16 %v999
      %v3926 = vunpack.c.h.b16 %v999
      %v3927 = vunpack.c.l.b16 %v1000
      %v3928 = vunpack.c.h.b16 %v1000
      %v3929 = vunpack.c.l.b16 %v1001
      %v3930 = vunpack.c.h.b16 %v1001
      %v3931 = vunpack.c.l.b16 %v1002
      %v3932 = vunpack.c.h.b16 %v1002
      %v3933 = vunpack.c.l.b16 %v1003
      %v3934 = vunpack.c.h.b16 %v1003
      %v3935 = vunpack.c.l.b16 %v1004
      %v3936 = vunpack.c.h.b16 %v1004
      %v3937 = vunpack.c.l.b16 %v1005
      %v3938 = vunpack.c.h.b16 %v1005
      %v3939 = vunpack.c.l.b16 %v1006
      %v3940 = vunpack.c.h.b16 %v1006
      %v3941 = vunpack.c.l.b16 %v1007
      %v3942 = vunpack.c.h.b16 %v1007
      %v3943 = vunpack.c.l.b16 %v1008
      %v3944 = vunpack.c.h.b16 %v1008
      %v3945 = vunpack.c.l.b16 %v1009
      %v3946 = vunpack.c.h.b16 %v1009
      %v3947 = vunpack.c.l.b16 %v1010
      %v3948 = vunpack.c.h.b16 %v1010
      %v3949 = vunpack.c.l.b16 %v1011
      %v3950 = vunpack.c.h.b16 %v1011
      %v3951 = vunpack.c.l.b16 %v1012
      %v3952 = vunpack.c.h.b16 %v1012
      %v3953 = vunpack.c.l.b16 %v1013
      %v3954 = vunpack.c.h.b16 %v1013
      %v3955 = vunpack.c.l.b16 %v1014
      %v3956 = vunpack.c.h.b16 %v1014
      %v3957 = vunpack.c.l.b16 %v1015
      %v3958 = vunpack.c.h.b16 %v1015
      %v3959 = vunpack.c.l.b16 %v1016
      %v3960 = vunpack.c.h.b16 %v1016
      %v3961 = vunpack.c.l.b16 %v1017
      %v3962 = vunpack.c.h.b16 %v1017
      %v3963 = vunpack.c.l.b16 %v1018
      %v3964 = vunpack.c.h.b16 %v1018
      %v3965 = vunpack.c.l.b16 %v1019
      %v3966 = vunpack.c.h.b16 %v1019
      %v3967 = vunpack.c.l.b16 %v1020
      %v3968 = vunpack.c.h.b16 %v1020
      %v3969 = vunpack.c.l.b16 %v1021
      %v3970 = vunpack.c.h.b16 %v1021
      %v3971 = vunpack.c.l.b16 %v1022
      %v3972 = vunpack.c.h.b16 %v1022
      %v3973 = vunpack.c.l.b16 %v1023
      %v3974 = vunpack.c.h.b16 %v1023
      %v3975 = vunpack.c.l.b16 %v1024
      %v3976 = vunpack.c.h.b16 %v1024
      %v3977 = vunpack.c.l.b16 %v1025
      %v3978 = vunpack.c.h.b16 %v1025
      %v3979 = vunpack.c.l.b16 %v1026
      %v3980 = vunpack.c.h.b16 %v1026
      %v3981 = vunpack.c.l.b16 %v1027
      %v3982 = vunpack.c.h.b16 %v1027
      %v3983 = vunpack.c.l.b16 %v1028
      %v3984 = vunpack.c.h.b16 %v1028
      %v3985 = vunpack.c.l.b16 %v1029
      %v3986 = vunpack.c.h.b16 %v1029
      %v3987 = vunpack.c.l.b16 %v1030
      %v3988 = vunpack.c.h.b16 %v1030
      %v3989 = vunpack.c.l.b16 %v1031
      %v3990 = vunpack.c.h.b16 %v1031
      %v3991 = vunpack.c.l.b16 %v1032
      %v3992 = vunpack.c.h.b16 %v1032
      %v3993 = vunpack.c.l.b16 %v1033
      %v3994 = vunpack.c.h.b16 %v1033
      %v3995 = vunpack.c.l.b16 %v1034
      %v3996 = vunpack.c.h.b16 %v1034
      %v3997 = vunpack.c.l.b16 %v1035
      %v3998 = vunpack.c.h.b16 %v1035
      %v3999 = vunpack.c.l.b16 %v1036
      %v4000 = vunpack.c.h.b16 %v1036
      %v4001 = vunpack.c.l.b16 %v1037
      %v4002 = vunpack.c.h.b16 %v1037
      %v4003 = vunpack.c.l.b16 %v1038
      %v4004 = vunpack.c.h.b16 %v1038
      %v4005 = vunpack.c.l.b16 %v1039
      %v4006 = vunpack.c.h.b16 %v1039
      %v4007 = vunpack.c.l.b16 %v1040
      %v4008 = vunpack.c.h.b16 %v1040
      %v4009 = vunpack.c.l.b16 %v1041
      %v4010 = vunpack.c.h.b16 %v1041
      %v4011 = vunpack.c.l.b16 %v1042
      %v4012 = vunpack.c.h.b16 %v1042
      %v4013 = vunpack.c.l.b16 %v1043
      %v4014 = vunpack.c.h.b16 %v1043
      %v4015 = vunpack.c.l.b16 %v1044
      %v4016 = vunpack.c.h.b16 %v1044
      %v4017 = vunpack.c.l.b16 %v1045
      %v4018 = vunpack.c.h.b16 %v1045
      %v4019 = vunpack.c.l.b16 %v1046
      %v4020 = vunpack.c.h.b16 %v1046
      %v4021 = vunpack.c.l.b16 %v1047
      %v4022 = vunpack.c.h.b16 %v1047
      %v4023 = vunpack.c.l.b16 %v1048
      %v4024 = vunpack.c.h.b16 %v1048
      %v4025 = vunpack.c.l.b16 %v1049
      %v4026 = vunpack.c.h.b16 %v1049
      %v4027 = vunpack.c.l.b16 %v1050
      %v4028 = vunpack.c.h.b16 %v1050
      %v4029 = vunpack.c.l.b16 %v1051
      %v4030 = vunpack.c.h.b16 %v1051
      %v4031 = vunpack.c.l.b16 %v1052
      %v4032 = vunpack.c.h.b16 %v1052
      %v4033 = vunpack.c.l.b16 %v1053
      %v4034 = vunpack.c.h.b16 %v1053
      %v4035 = vunpack.c.l.b16 %v1054
      %v4036 = vunpack.c.h.b16 %v1054
      %v4037 = vunpack.c.l.b16 %v1055
      %v4038 = vunpack.c.h.b16 %v1055
      %v4039 = vunpack.c.l.b16 %v1056
      %v4040 = vunpack.c.h.b16 %v1056
      %v4041 = vunpack.c.l.b16 %v1057
      %v4042 = vunpack.c.h.b16 %v1057
      %v4043 = vunpack.c.l.b16 %v1058
      %v4044 = vunpack.c.h.b16 %v1058
      %v4045 = vunpack.c.l.b16 %v1059
      %v4046 = vunpack.c.h.b16 %v1059
      %v4047 = vunpack.c.l.b16 %v1060
      %v4048 = vunpack.c.h.b16 %v1060
      %v4049 = vunpack.c.l.b16 %v1061
      %v4050 = vunpack.c.h.b16 %v1061
      %v4051 = vunpack.c.l.b16 %v1062
      %v4052 = vunpack.c.h.b16 %v1062
      %v4053 = vunpack.c.l.b16 %v1063
      %v4054 = vunpack.c.h.b16 %v1063
      %v4055 = vunpack.c.l.b16 %v1064
      %v4056 = vunpack.c.h.b16 %v1064
      %v4057 = vunpack.c.l.b16 %v1065
      %v4058 = vunpack.c.h.b16 %v1065
      %v4059 = vunpack.c.l.b16 %v1066
      %v4060 = vunpack.c.h.b16 %v1066
      %v4061 = vunpack.c.l.b16 %v1067
      %v4062 = vunpack.c.h.b16 %v1067
      %v4063 = vunpack.c.l.b16 %v1068
      %v4064 = vunpack.c.h.b16 %v1068
      %v4065 = vunpack.c.l.b16 %v1069
      %v4066 = vunpack.c.h.b16 %v1069
      %v4067 = vunpack.c.l.b16 %v1070
      %v4068 = vunpack.c.h.b16 %v1070
      %v4069 = vunpack.c.l.b16 %v1071
      %v4070 = vunpack.c.h.b16 %v1071
      %v4071 = vunpack.c.l.b16 %v1072
      %v4072 = vunpack.c.h.b16 %v1072
      %v4073 = vunpack.c.l.b16 %v1073
      %v4074 = vunpack.c.h.b16 %v1073
      %v4075 = vunpack.c.l.b16 %v1074
      %v4076 = vunpack.c.h.b16 %v1074
      %v4077 = vunpack.c.l.b16 %v1075
      %v4078 = vunpack.c.h.b16 %v1075
      %v4079 = vunpack.c.l.b16 %v1076
      %v4080 = vunpack.c.h.b16 %v1076
      %v4081 = vunpack.c.l.b16 %v1077
      %v4082 = vunpack.c.h.b16 %v1077
      %v4083 = vunpack.c.l.b16 %v1078
      %v4084 = vunpack.c.h.b16 %v1078
      %v4085 = vunpack.c.l.b16 %v1079
      %v4086 = vunpack.c.h.b16 %v1079
      %v4087 = vunpack.c.l.b16 %v1080
      %v4088 = vunpack.c.h.b16 %v1080
      %v4089 = vunpack.c.l.b16 %v1081
      %v4090 = vunpack.c.h.b16 %v1081
      %v4091 = vunpack.c.l.b16 %v1082
      %v4092 = vunpack.c.h.b16 %v1082
      %v4093 = vunpack.c.l.b16 %v1083
      %v4094 = vunpack.c.h.b16 %v1083
      %v4095 = vunpack.c.l.b16 %v1084
      %v4096 = vunpack.c.h.b16 %v1084
      %v4097 = vunpack.c.l.b16 %v1085
      %v4098 = vunpack.c.h.b16 %v1085
      %v4099 = vunpack.c.l.b16 %v1086
      %v4100 = vunpack.c.h.b16 %v1086
      %v4101 = vunpack.c.l.b16 %v1087
      %v4102 = vunpack.c.h.b16 %v1087
      %v4103 = vunpack.c.l.b16 %v1088
      %v4104 = vunpack.c.h.b16 %v1088
      %v4105 = vunpack.c.l.b16 %v1089
      %v4106 = vunpack.c.h.b16 %v1089
      %v4107 = vunpack.c.l.b16 %v1090
      %v4108 = vunpack.c.h.b16 %v1090
      %v4109 = vunpack.c.l.b16 %v1091
      %v4110 = vunpack.c.h.b16 %v1091
      %v4111 = vunpack.c.l.b16 %v1092
      %v4112 = vunpack.c.h.b16 %v1092
      %v4113 = vunpack.c.l.b16 %v1093
      %v4114 = vunpack.c.h.b16 %v1093
      %v4115 = vunpack.c.l.b16 %v1094
      %v4116 = vunpack.c.h.b16 %v1094
      %v4117 = vunpack.c.l.b16 %v1095
      %v4118 = vunpack.c.h.b16 %v1095
      %v4119 = vunpack.c.l.b16 %v1096
      %v4120 = vunpack.c.h.b16 %v1096
      %v4121 = vunpack.c.l.b16 %v1097
      %v4122 = vunpack.c.h.b16 %v1097
      %v4123 = vunpack.c.l.b16 %v1098
      %v4124 = vunpack.c.h.b16 %v1098
      %v4125 = vunpack.c.l.b16 %v1099
      %v4126 = vunpack.c.h.b16 %v1099
      %v4127 = vunpack.c.l.b16 %v1100
      %v4128 = vunpack.c.h.b16 %v1100
      %v4129 = vunpack.c.l.b16 %v1101
      %v4130 = vunpack.c.h.b16 %v1101
      %v4131 = vunpack.c.l.b16 %v1102
      %v4132 = vunpack.c.h.b16 %v1102
      %v4133 = vunpack.c.l.b16 %v1103
      %v4134 = vunpack.c.h.b16 %v1103
      %v4135 = vunpack.c.l.b16 %v1104
      %v4136 = vunpack.c.h.b16 %v1104
      %v4137 = vunpack.c.l.b16 %v1105
      %v4138 = vunpack.c.h.b16 %v1105
      %v4139 = vunpack.c.l.b16 %v1106
      %v4140 = vunpack.c.h.b16 %v1106
      %v4141 = vunpack.c.l.b16 %v1107
      %v4142 = vunpack.c.h.b16 %v1107
      %v4143 = vunpack.c.l.b16 %v1108
      %v4144 = vunpack.c.h.b16 %v1108
      %v4145 = vunpack.c.l.b16 %v1109
      %v4146 = vunpack.c.h.b16 %v1109
      %v4147 = vunpack.c.l.b16 %v1110
      %v4148 = vunpack.c.h.b16 %v1110
      %v4149 = vunpack.c.l.b16 %v1111
      %v4150 = vunpack.c.h.b16 %v1111
      %v4151 = vunpack.c.l.b16 %v1112
      %v4152 = vunpack.c.h.b16 %v1112
      %v4153 = vunpack.c.l.b16 %v1113
      %v4154 = vunpack.c.h.b16 %v1113
      %v4155 = vunpack.c.l.b16 %v1114
      %v4156 = vunpack.c.h.b16 %v1114
      %v4157 = vunpack.c.l.b16 %v1115
      %v4158 = vunpack.c.h.b16 %v1115
      %v4159 = vunpack.c.l.b16 %v1116
      %v4160 = vunpack.c.h.b16 %v1116
      %v4161 = vunpack.c.l.b16 %v1117
      %v4162 = vunpack.c.h.b16 %v1117
      %v4163 = vunpack.c.l.b16 %v1118
      %v4164 = vunpack.c.h.b16 %v1118
      %v4165 = vunpack.c.l.b16 %v1119
      %v4166 = vunpack.c.h.b16 %v1119
      %v4167 = vunpack.c.l.b16 %v1120
      %v4168 = vunpack.c.h.b16 %v1120
      %v4169 = vunpack.c.l.b16 %v1121
      %v4170 = vunpack.c.h.b16 %v1121
      %v4171 = vunpack.c.l.b16 %v1122
      %v4172 = vunpack.c.h.b16 %v1122
      %v4173 = vunpack.c.l.b16 %v1123
      %v4174 = vunpack.c.h.b16 %v1123
      %v4175 = vunpack.c.l.b16 %v1124
      %v4176 = vunpack.c.h.b16 %v1124
      %v4177 = vunpack.c.l.b16 %v1125
      %v4178 = vunpack.c.h.b16 %v1125
      %v4179 = vunpack.c.l.b16 %v1126
      %v4180 = vunpack.c.h.b16 %v1126
      %v4181 = vunpack.c.l.b16 %v1127
      %v4182 = vunpack.c.h.b16 %v1127
      %v4183 = vunpack.c.l.b16 %v1128
      %v4184 = vunpack.c.h.b16 %v1128
      %v4185 = vunpack.c.l.b16 %v1129
      %v4186 = vunpack.c.h.b16 %v1129
      %v4187 = vunpack.c.l.b16 %v1130
      %v4188 = vunpack.c.h.b16 %v1130
      %v4189 = vunpack.c.l.b16 %v1131
      %v4190 = vunpack.c.h.b16 %v1131
      %v4191 = vunpack.c.l.b16 %v1132
      %v4192 = vunpack.c.h.b16 %v1132
      %v4193 = vunpack.c.l.b16 %v1133
      %v4194 = vunpack.c.h.b16 %v1133
      %v4195 = vunpack.c.l.b16 %v1134
      %v4196 = vunpack.c.h.b16 %v1134
      %v4197 = vunpack.c.l.b16 %v1135
      %v4198 = vunpack.c.h.b16 %v1135
      %v4199 = vunpack.c.l.b16 %v1136
      %v4200 = vunpack.c.h.b16 %v1136
      %v4201 = vunpack.c.l.b16 %v1137
      %v4202 = vunpack.c.h.b16 %v1137
      %v4203 = vunpack.c.l.b16 %v1138
      %v4204 = vunpack.c.h.b16 %v1138
      %v4205 = vunpack.c.l.b16 %v1139
      %v4206 = vunpack.c.h.b16 %v1139
      %v4207 = vunpack.c.l.b16 %v1140
      %v4208 = vunpack.c.h.b16 %v1140
      %v4209 = vunpack.c.l.b16 %v1141
      %v4210 = vunpack.c.h.b16 %v1141
      %v4211 = vunpack.c.l.b16 %v1142
      %v4212 = vunpack.c.h.b16 %v1142
      %v4213 = vunpack.c.l.b16 %v1143
      %v4214 = vunpack.c.h.b16 %v1143
      %v4215 = vunpack.c.l.b16 %v1144
      %v4216 = vunpack.c.h.b16 %v1144
      %v4217 = vunpack.c.l.b16 %v1145
      %v4218 = vunpack.c.h.b16 %v1145
      %v4219 = vunpack.c.l.b16 %v1146
      %v4220 = vunpack.c.h.b16 %v1146
      %v4221 = vunpack.c.l.b16 %v1147
      %v4222 = vunpack.c.h.b16 %v1147
      %v4223 = vunpack.c.l.b16 %v1148
      %v4224 = vunpack.c.h.b16 %v1148
      %v4225 = vunpack.c.l.b16 %v1149
      %v4226 = vunpack.c.h.b16 %v1149
      %v4227 = vunpack.c.l.b16 %v1150
      %v4228 = vunpack.c.h.b16 %v1150
      %v4229 = vunpack.c.l.b16 %v1151
      %v4230 = vunpack.c.h.b16 %v1151
      %v4231 = vunpack.c.l.b16 %v1152
      %v4232 = vunpack.c.h.b16 %v1152
      %v4233 = vunpack.c.l.b16 %v1153
      %v4234 = vunpack.c.h.b16 %v1153
      %v4235 = vunpack.c.l.b16 %v1154
      %v4236 = vunpack.c.h.b16 %v1154
      %v4237 = vunpack.c.l.b16 %v1155
      %v4238 = vunpack.c.h.b16 %v1155
      %v4239 = vunpack.c.l.b16 %v1156
      %v4240 = vunpack.c.h.b16 %v1156
      %v4241 = vunpack.c.l.b16 %v1157
      %v4242 = vunpack.c.h.b16 %v1157
      %v4243 = vunpack.c.l.b16 %v1158
      %v4244 = vunpack.c.h.b16 %v1158
      %v4245 = vunpack.c.l.b16 %v1159
      %v4246 = vunpack.c.h.b16 %v1159
      %v4247 = vunpack.c.l.b16 %v1160
      %v4248 = vunpack.c.h.b16 %v1160
      %v4249 = vunpack.c.l.b16 %v1161
      %v4250 = vunpack.c.h.b16 %v1161
      %v4251 = vunpack.c.l.b16 %v1162
      %v4252 = vunpack.c.h.b16 %v1162
      %v4253 = vunpack.c.l.b16 %v1163
      %v4254 = vunpack.c.h.b16 %v1163
      %v4255 = vunpack.c.l.b16 %v1164
      %v4256 = vunpack.c.h.b16 %v1164
      %v4257 = vunpack.c.l.b16 %v1165
      %v4258 = vunpack.c.h.b16 %v1165
      %v4259 = vunpack.c.l.b16 %v1166
      %v4260 = vunpack.c.h.b16 %v1166
      %v4261 = vunpack.c.l.b16 %v1167
      %v4262 = vunpack.c.h.b16 %v1167
      %v4263 = vunpack.c.l.b16 %v1168
      %v4264 = vunpack.c.h.b16 %v1168
      %v4265 = vunpack.c.l.b16 %v1169
      %v4266 = vunpack.c.h.b16 %v1169
      %v4267 = vunpack.c.l.b16 %v1170
      %v4268 = vunpack.c.h.b16 %v1170
      %v4269 = vunpack.c.l.b16 %v1171
      %v4270 = vunpack.c.h.b16 %v1171
      %v4271 = vunpack.c.l.b16 %v1172
      %v4272 = vunpack.c.h.b16 %v1172
      %v4273 = vunpack.c.l.b16 %v1173
      %v4274 = vunpack.c.h.b16 %v1173
      %v4275 = vunpack.c.l.b16 %v1174
      %v4276 = vunpack.c.h.b16 %v1174
      %v4277 = vunpack.c.l.b16 %v1175
      %v4278 = vunpack.c.h.b16 %v1175
      %v4279 = vunpack.c.l.b16 %v1176
      %v4280 = vunpack.c.h.b16 %v1176
      %v4281 = vunpack.c.l.b16 %v1177
      %v4282 = vunpack.c.h.b16 %v1177
      %v4283 = vunpack.c.l.b16 %v1178
      %v4284 = vunpack.c.h.b16 %v1178
      %v4285 = vunpack.c.l.b16 %v1179
      %v4286 = vunpack.c.h.b16 %v1179
      %v4287 = vunpack.c.l.b16 %v1180
      %v4288 = vunpack.c.h.b16 %v1180
      %v4289 = vunpack.c.l.b16 %v1181
      %v4290 = vunpack.c.h.b16 %v1181
      %v4291 = vunpack.c.l.b16 %v1182
      %v4292 = vunpack.c.h.b16 %v1182
      %v4293 = vunpack.c.l.b16 %v1183
      %v4294 = vunpack.c.h.b16 %v1183
      %v4295 = vunpack.c.l.b16 %v1184
      %v4296 = vunpack.c.h.b16 %v1184
      %v4297 = vunpack.c.l.b16 %v1185
      %v4298 = vunpack.c.h.b16 %v1185
      %v4299 = vunpack.c.l.b16 %v1186
      %v4300 = vunpack.c.h.b16 %v1186
      %v4301 = vunpack.c.l.b16 %v1187
      %v4302 = vunpack.c.h.b16 %v1187
      %v4303 = vunpack.c.l.b16 %v1188
      %v4304 = vunpack.c.h.b16 %v1188
      %v4305 = vunpack.c.l.b16 %v1189
      %v4306 = vunpack.c.h.b16 %v1189
      %v4307 = vunpack.c.l.b16 %v1190
      %v4308 = vunpack.c.h.b16 %v1190
      %v4309 = vunpack.c.l.b16 %v1191
      %v4310 = vunpack.c.h.b16 %v1191
      %v4311 = vunpack.c.l.b16 %v1192
      %v4312 = vunpack.c.h.b16 %v1192
      %v4313 = vunpack.c.l.b16 %v1193
      %v4314 = vunpack.c.h.b16 %v1193
      %v4315 = vunpack.c.l.b16 %v1194
      %v4316 = vunpack.c.h.b16 %v1194
      %v4317 = vunpack.c.l.b16 %v1195
      %v4318 = vunpack.c.h.b16 %v1195
      %v4319 = vunpack.c.l.b16 %v1196
      %v4320 = vunpack.c.h.b16 %v1196
      %v4321 = vunpack.c.l.b16 %v1197
      %v4322 = vunpack.c.h.b16 %v1197
      %v4323 = vunpack.c.l.b16 %v1198
      %v4324 = vunpack.c.h.b16 %v1198
      %v4325 = vunpack.c.l.b16 %v1199
      %v4326 = vunpack.c.h.b16 %v1199
      %v4327 = vunpack.c.l.b16 %v1200
      %v4328 = vunpack.c.h.b16 %v1200
      %v4329 = vunpack.c.l.b16 %v1201
      %v4330 = vunpack.c.h.b16 %v1201
      %v4331 = vunpack.c.l.b16 %v1202
      %v4332 = vunpack.c.h.b16 %v1202
      %v4333 = vunpack.c.l.b16 %v1203
      %v4334 = vunpack.c.h.b16 %v1203
      %v4335 = vunpack.c.l.b16 %v1204
      %v4336 = vunpack.c.h.b16 %v1204
      %v4337 = vunpack.c.l.b16 %v1205
      %v4338 = vunpack.c.h.b16 %v1205
      %v4339 = vunpack.c.l.b16 %v1206
      %v4340 = vunpack.c.h.b16 %v1206
      %v4341 = vunpack.c.l.b16 %v1207
      %v4342 = vunpack.c.h.b16 %v1207
      %v4343 = vunpack.c.l.b16 %v1208
      %v4344 = vunpack.c.h.b16 %v1208
      %v4345 = vunpack.c.l.b16 %v1209
      %v4346 = vunpack.c.h.b16 %v1209
      %v4347 = vunpack.c.l.b16 %v1210
      %v4348 = vunpack.c.h.b16 %v1210
      %v4349 = vunpack.c.l.b16 %v1211
      %v4350 = vunpack.c.h.b16 %v1211
      %v4351 = vunpack.c.l.b16 %v1212
      %v4352 = vunpack.c.h.b16 %v1212
      %v4353 = vunpack.c.l.b16 %v1213
      %v4354 = vunpack.c.h.b16 %v1213
      %v4355 = vunpack.c.l.b16 %v1214
      %v4356 = vunpack.c.h.b16 %v1214
      %v4357 = vunpack.c.l.b16 %v1215
      %v4358 = vunpack.c.h.b16 %v1215
      %v4359 = vunpack.c.l.b16 %v1216
      %v4360 = vunpack.c.h.b16 %v1216
      %v4361 = vunpack.c.l.b16 %v1217
      %v4362 = vunpack.c.h.b16 %v1217
      %v4363 = vunpack.c.l.b16 %v1218
      %v4364 = vunpack.c.h.b16 %v1218
      %v4365 = vunpack.c.l.b16 %v1219
      %v4366 = vunpack.c.h.b16 %v1219
      %v4367 = vunpack.c.l.b16 %v1220
      %v4368 = vunpack.c.h.b16 %v1220
      %v4369 = vunpack.c.l.b16 %v1221
      %v4370 = vunpack.c.h.b16 %v1221
      %v4371 = vunpack.c.l.b16 %v1222
      %v4372 = vunpack.c.h.b16 %v1222
      %v4373 = vunpack.c.l.b16 %v1223
      %v4374 = vunpack.c.h.b16 %v1223
      %v4375 = vunpack.c.l.b16 %v1224
      %v4376 = vunpack.c.h.b16 %v1224
      %v4377 = vunpack.c.l.b16 %v1225
      %v4378 = vunpack.c.h.b16 %v1225
      %v4379 = vunpack.c.l.b16 %v1226
      %v4380 = vunpack.c.h.b16 %v1226
      %v4381 = vunpack.c.l.b16 %v1227
      %v4382 = vunpack.c.h.b16 %v1227
      %v4383 = vunpack.c.l.b16 %v1228
      %v4384 = vunpack.c.h.b16 %v1228
      %v4385 = vunpack.c.l.b16 %v1229
      %v4386 = vunpack.c.h.b16 %v1229
      %v4387 = vunpack.c.l.b16 %v1230
      %v4388 = vunpack.c.h.b16 %v1230
      %v4389 = vunpack.c.l.b16 %v1231
      %v4390 = vunpack.c.h.b16 %v1231
      %v4391 = vunpack.c.l.b16 %v1232
      %v4392 = vunpack.c.h.b16 %v1232
      %v4393 = vunpack.c.l.b16 %v1233
      %v4394 = vunpack.c.h.b16 %v1233
      %v4395 = vunpack.c.l.b16 %v1234
      %v4396 = vunpack.c.h.b16 %v1234
      %v4397 = vunpack.c.l.b16 %v1235
      %v4398 = vunpack.c.h.b16 %v1235
      %v4399 = vunpack.c.l.b16 %v1236
      %v4400 = vunpack.c.h.b16 %v1236
      %v4401 = vunpack.c.l.b16 %v1237
      %v4402 = vunpack.c.h.b16 %v1237
      %v4403 = vunpack.c.l.b16 %v1238
      %v4404 = vunpack.c.h.b16 %v1238
      %v4405 = vunpack.c.l.b16 %v1239
      %v4406 = vunpack.c.h.b16 %v1239
      %v4407 = vunpack.c.l.b16 %v1240
      %v4408 = vunpack.c.h.b16 %v1240
      %v4409 = vunpack.c.l.b16 %v1241
      %v4410 = vunpack.c.h.b16 %v1241
      %v4411 = vunpack.c.l.b16 %v1242
      %v4412 = vunpack.c.h.b16 %v1242
      %v4413 = vunpack.c.l.b16 %v1243
      %v4414 = vunpack.c.h.b16 %v1243
      %v4415 = vunpack.c.l.b16 %v1244
      %v4416 = vunpack.c.h.b16 %v1244
      %v4417 = vunpack.c.l.b16 %v1245
      %v4418 = vunpack.c.h.b16 %v1245
      %v4419 = vunpack.c.l.b16 %v1246
      %v4420 = vunpack.c.h.b16 %v1246
      %v4421 = vunpack.c.l.b16 %v1247
      %v4422 = vunpack.c.h.b16 %v1247
      %v4423 = vunpack.c.l.b16 %v1248
      %v4424 = vunpack.c.h.b16 %v1248
      %v4425 = vunpack.c.l.b16 %v1249
      %v4426 = vunpack.c.h.b16 %v1249
      %v4427 = vunpack.c.l.b16 %v1250
      %v4428 = vunpack.c.h.b16 %v1250
      %v4429 = vunpack.c.l.b16 %v1251
      %v4430 = vunpack.c.h.b16 %v1251
      %v4431 = vunpack.c.l.b16 %v1252
      %v4432 = vunpack.c.h.b16 %v1252
      %v4433 = vunpack.c.l.b16 %v1253
      %v4434 = vunpack.c.h.b16 %v1253
      %v4435 = vunpack.c.l.b16 %v1254
      %v4436 = vunpack.c.h.b16 %v1254
      %v4437 = vunpack.c.l.b16 %v1255
      %v4438 = vunpack.c.h.b16 %v1255
      %v4439 = vunpack.c.l.b16 %v1256
      %v4440 = vunpack.c.h.b16 %v1256
      %v4441 = vunpack.c.l.b16 %v1257
      %v4442 = vunpack.c.h.b16 %v1257
      %v4443 = vunpack.c.l.b16 %v1258
      %v4444 = vunpack.c.h.b16 %v1258
      %v4445 = vunpack.c.l.b16 %v1259
      %v4446 = vunpack.c.h.b16 %v1259
      %v4447 = vunpack.c.l.b16 %v1260
      %v4448 = vunpack.c.h.b16 %v1260
      %v4449 = vunpack.c.l.b16 %v1261
      %v4450 = vunpack.c.h.b16 %v1261
      %v4451 = vunpack.c.l.b16 %v1262
      %v4452 = vunpack.c.h.b16 %v1262
      %v4453 = vunpack.c.l.b16 %v1263
      %v4454 = vunpack.c.h.b16 %v1263
      %v4455 = vunpack.c.l.b16 %v1264
      %v4456 = vunpack.c.h.b16 %v1264
      %v4457 = vunpack.c.l.b16 %v1265
      %v4458 = vunpack.c.h.b16 %v1265
      %v4459 = vunpack.c.l.b16 %v1266
      %v4460 = vunpack.c.h.b16 %v1266
      %v4461 = vunpack.c.l.b16 %v1267
      %v4462 = vunpack.c.h.b16 %v1267
      %v4463 = vunpack.c.l.b16 %v1268
      %v4464 = vunpack.c.h.b16 %v1268
      %v4465 = vunpack.c.l.b16 %v1269
      %v4466 = vunpack.c.h.b16 %v1269
      %v4467 = vunpack.c.l.b16 %v1270
      %v4468 = vunpack.c.h.b16 %v1270
      %v4469 = vunpack.c.l.b16 %v1271
      %v4470 = vunpack.c.h.b16 %v1271
      %v4471 = vunpack.c.l.b16 %v1272
      %v4472 = vunpack.c.h.b16 %v1272
      %v4473 = vunpack.c.l.b16 %v1273
      %v4474 = vunpack.c.h.b16 %v1273
      %v4475 = vunpack.c.l.b16 %v1274
      %v4476 = vunpack.c.h.b16 %v1274
      %v4477 = vunpack.c.l.b16 %v1275
      %v4478 = vunpack.c.h.b16 %v1275
      %v4479 = vunpack.c.l.b16 %v1276
      %v4480 = vunpack.c.h.b16 %v1276
      %v4481 = vunpack.c.l.b16 %v1277
      %v4482 = vunpack.c.h.b16 %v1277
      %v4483 = vunpack.c.l.b16 %v1278
      %v4484 = vunpack.c.h.b16 %v1278
      %v4485 = vunpack.c.l.b16 %v1279
      %v4486 = vunpack.c.h.b16 %v1279
      %v4487 = vunpack.c.l.b16 %v1280
      %v4488 = vunpack.c.h.b16 %v1280
      %v4489 = vunpack.c.l.b16 %v1281
      %v4490 = vunpack.c.h.b16 %v1281
      %v4491 = vunpack.c.l.b16 %v1282
      %v4492 = vunpack.c.h.b16 %v1282
      %v4493 = vunpack.c.l.b16 %v1283
      %v4494 = vunpack.c.h.b16 %v1283
      %v4495 = vunpack.c.l.b16 %v1284
      %v4496 = vunpack.c.h.b16 %v1284
      %v4497 = vunpack.c.l.b16 %v1285
      %v4498 = vunpack.c.h.b16 %v1285
      %v4499 = vunpack.c.l.b16 %v1286
      %v4500 = vunpack.c.h.b16 %v1286
      %v4501 = vunpack.c.l.b16 %v1287
      %v4502 = vunpack.c.h.b16 %v1287
      %v4503 = vunpack.c.l.b16 %v1288
      %v4504 = vunpack.c.h.b16 %v1288
      %v4505 = vunpack.c.l.b16 %v1289
      %v4506 = vunpack.c.h.b16 %v1289
      %v4507 = vunpack.c.l.b16 %v1290
      %v4508 = vunpack.c.h.b16 %v1290
      %v4509 = vunpack.c.l.b16 %v1291
      %v4510 = vunpack.c.h.b16 %v1291
      %v4511 = vunpack.c.l.b16 %v1292
      %v4512 = vunpack.c.h.b16 %v1292
      %v4513 = vunpack.c.l.b16 %v1293
      %v4514 = vunpack.c.h.b16 %v1293
      %v4515 = vunpack.c.l.b16 %v1294
      %v4516 = vunpack.c.h.b16 %v1294
      %v4517 = vunpack.c.l.b16 %v1295
      %v4518 = vunpack.c.h.b16 %v1295
      %v4519 = vunpack.c.l.b16 %v1296
      %v4520 = vunpack.c.h.b16 %v1296
      %v4521 = vunpack.c.l.b16 %v1297
      %v4522 = vunpack.c.h.b16 %v1297
      %v4523 = vunpack.c.l.b16 %v1298
      %v4524 = vunpack.c.h.b16 %v1298
      %v4525 = vunpack.c.l.b16 %v1299
      %v4526 = vunpack.c.h.b16 %v1299
      %v4527 = vunpack.c.l.b16 %v1300
      %v4528 = vunpack.c.h.b16 %v1300
      %v4529 = vunpack.c.l.b16 %v1301
      %v4530 = vunpack.c.h.b16 %v1301
      %v4531 = vunpack.c.l.b16 %v1302
      %v4532 = vunpack.c.h.b16 %v1302
      %v4533 = vunpack.c.l.b16 %v1303
      %v4534 = vunpack.c.h.b16 %v1303
      %v4535 = vunpack.c.l.b16 %v1304
      %v4536 = vunpack.c.h.b16 %v1304
      %v4537 = vunpack.c.l.b16 %v1305
      %v4538 = vunpack.c.h.b16 %v1305
      %v4539 = vunpack.c.l.b16 %v1306
      %v4540 = vunpack.c.h.b16 %v1306
      %v4541 = vunpack.c.l.b16 %v1307
      %v4542 = vunpack.c.h.b16 %v1307
      %v4543 = vunpack.c.l.b16 %v1308
      %v4544 = vunpack.c.h.b16 %v1308
      %v4545 = vunpack.c.l.b16 %v1309
      %v4546 = vunpack.c.h.b16 %v1309
      %v4547 = vunpack.c.l.b16 %v1310
      %v4548 = vunpack.c.h.b16 %v1310
      %v4549 = vunpack.c.l.b16 %v1311
      %v4550 = vunpack.c.h.b16 %v1311
      %v4551 = vunpack.c.l.b16 %v1312
      %v4552 = vunpack.c.h.b16 %v1312
      %v4553 = vunpack.c.l.b16 %v1313
      %v4554 = vunpack.c.h.b16 %v1313
      %v4555 = vunpack.c.l.b16 %v1314
      %v4556 = vunpack.c.h.b16 %v1314
      %v4557 = vunpack.c.l.b16 %v1315
      %v4558 = vunpack.c.h.b16 %v1315
      %v4559 = vunpack.c.l.b16 %v1316
      %v4560 = vunpack.c.h.b16 %v1316
      %v4561 = vunpack.c.l.b16 %v1317
      %v4562 = vunpack.c.h.b16 %v1317
      %v4563 = vunpack.c.l.b16 %v1318
      %v4564 = vunpack.c.h.b16 %v1318
      %v4565 = vunpack.c.l.b16 %v1319
      %v4566 = vunpack.c.h.b16 %v1319
      %v4567 = vunpack.c.l.b16 %v1320
      %v4568 = vunpack.c.h.b16 %v1320
      %v4569 = vunpack.c.l.b16 %v1321
      %v4570 = vunpack.c.h.b16 %v1321
      %v4571 = vunpack.c.l.b16 %v1322
      %v4572 = vunpack.c.h.b16 %v1322
      %v4573 = vunpack.c.l.b16 %v1323
      %v4574 = vunpack.c.h.b16 %v1323
      %v4575 = vunpack.c.l.b16 %v1324
      %v4576 = vunpack.c.h.b16 %v1324
      %v4577 = vunpack.c.l.b16 %v1325
      %v4578 = vunpack.c.h.b16 %v1325
      %v4579 = vunpack.c.l.b16 %v1326
      %v4580 = vunpack.c.h.b16 %v1326
      %v4581 = vpack.c.b16 %v2537, %v2533
      %v4582 = vpack.c.b16 %v2538, %v2534
      %v4583 = vpack.c.b16 %v2539, %v2535
      %v4584 = vpack.c.b16 %v2540, %v2536
      %v4585 = vpack.c.b16 %v2545, %v2541
      %v4586 = vpack.c.b16 %v2546, %v2542
      %v4587 = vpack.c.b16 %v2547, %v2543
      %v4588 = vpack.c.b16 %v2548, %v2544
      %v4589 = vpack.c.b16 %v2553, %v2549
      %v4590 = vpack.c.b16 %v2554, %v2550
      %v4591 = vpack.c.b16 %v2555, %v2551
      %v4592 = vpack.c.b16 %v2556, %v2552
      %v4593 = vpack.c.b16 %v2561, %v2557
      %v4594 = vpack.c.b16 %v2562, %v2558
      %v4595 = vpack.c.b16 %v2563, %v2559
      %v4596 = vpack.c.b16 %v2564, %v2560
      %v4597 = vpack.c.b16 %v2569, %v2565
      %v4598 = vpack.c.b16 %v2570, %v2566
      %v4599 = vpack.c.b16 %v2571, %v2567
      %v4600 = vpack.c.b16 %v2572, %v2568
      %v4601 = vpack.c.b16 %v2577, %v2573
      %v4602 = vpack.c.b16 %v2578, %v2574
      %v4603 = vpack.c.b16 %v2579, %v2575
      %v4604 = vpack.c.b16 %v2580, %v2576
      %v4605 = vpack.c.b16 %v2585, %v2581
      %v4606 = vpack.c.b16 %v2586, %v2582
      %v4607 = vpack.c.b16 %v2587, %v2583
      %v4608 = vpack.c.b16 %v2588, %v2584
      %v4609 = vpack.c.b16 %v2593, %v2589
      %v4610 = vpack.c.b16 %v2594, %v2590
      %v4611 = vpack.c.b16 %v2595, %v2591
      %v4612 = vpack.c.b16 %v2596, %v2592
      %v4613 = vpack.c.b16 %v2601, %v2597
      %v4614 = vpack.c.b16 %v2602, %v2598
      %v4615 = vpack.c.b16 %v2603, %v2599
      %v4616 = vpack.c.b16 %v2604, %v2600
      %v4617 = vpack.c.b16 %v2609, %v2605
      %v4618 = vpack.c.b16 %v2610, %v2606
      %v4619 = vpack.c.b16 %v2611, %v2607
      %v4620 = vpack.c.b16 %v2612, %v2608
      %v4621 = vpack.c.b16 %v2617, %v2613
      %v4622 = vpack.c.b16 %v2618, %v2614
      %v4623 = vpack.c.b16 %v2619, %v2615
      %v4624 = vpack.c.b16 %v2620, %v2616
      %v4625 = vpack.c.b16 %v2625, %v2621
      %v4626 = vpack.c.b16 %v2626, %v2622
      %v4627 = vpack.c.b16 %v2627, %v2623
      %v4628 = vpack.c.b16 %v2628, %v2624
      %v4629 = vpack.c.b16 %v2633, %v2629
      %v4630 = vpack.c.b16 %v2634, %v2630
      %v4631 = vpack.c.b16 %v2635, %v2631
      %v4632 = vpack.c.b16 %v2636, %v2632
      %v4633 = vpack.c.b16 %v2641, %v2637
      %v4634 = vpack.c.b16 %v2642, %v2638
      %v4635 = vpack.c.b16 %v2643, %v2639
      %v4636 = vpack.c.b16 %v2644, %v2640
      %v4637 = vpack.c.b16 %v2649, %v2645
      %v4638 = vpack.c.b16 %v2650, %v2646
      %v4639 = vpack.c.b16 %v2651, %v2647
      %v4640 = vpack.c.b16 %v2652, %v2648
      %v4641 = vpack.c.b16 %v2657, %v2653
      %v4642 = vpack.c.b16 %v2658, %v2654
      %v4643 = vpack.c.b16 %v2659, %v2655
      %v4644 = vpack.c.b16 %v2660, %v2656
      %v4645 = vpack.c.b16 %v2665, %v2661
      %v4646 = vpack.c.b16 %v2666, %v2662
      %v4647 = vpack.c.b16 %v2667, %v2663
      %v4648 = vpack.c.b16 %v2668, %v2664
      %v4649 = vpack.c.b16 %v2673, %v2669
      %v4650 = vpack.c.b16 %v2674, %v2670
      %v4651 = vpack.c.b16 %v2675, %v2671
      %v4652 = vpack.c.b16 %v2676, %v2672
      %v4653 = vpack.c.b16 %v2681, %v2677
      %v4654 = vpack.c.b16 %v2682, %v2678
      %v4655 = vpack.c.b16 %v2683, %v2679
      %v4656 = vpack.c.b16 %v2684, %v2680
      %v4657 = vpack.c.b16 %v2689, %v2685
      %v4658 = vpack.c.b16 %v2690, %v2686
      %v4659 = vpack.c.b16 %v2691, %v2687
      %v4660 = vpack.c.b16 %v2692, %v2688
      %v4661 = vpack.c.b16 %v2697, %v2693
      %v4662 = vpack.c.b16 %v2698, %v2694
      %v4663 = vpack.c.b16 %v2699, %v2695
      %v4664 = vpack.c.b16 %v2700, %v2696
      %v4665 = vpack.c.b16 %v2705, %v2701
      %v4666 = vpack.c.b16 %v2706, %v2702
      %v4667 = vpack.c.b16 %v2707, %v2703
      %v4668 = vpack.c.b16 %v2708, %v2704
      %v4669 = vpack.c.b16 %v2713, %v2709
      %v4670 = vpack.c.b16 %v2714, %v2710
      %v4671 = vpack.c.b16 %v2715, %v2711
      %v4672 = vpack.c.b16 %v2716, %v2712
      %v4673 = vpack.c.b16 %v2721, %v2717
      %v4674 = vpack.c.b16 %v2722, %v2718
      %v4675 = vpack.c.b16 %v2723, %v2719
      %v4676 = vpack.c.b16 %v2724, %v2720
      %v4677 = vpack.c.b16 %v2729, %v2725
      %v4678 = vpack.c.b16 %v2730, %v2726
      %v4679 = vpack.c.b16 %v2731, %v2727
      %v4680 = vpack.c.b16 %v2732, %v2728
      %v4681 = vpack.c.b16 %v2737, %v2733
      %v4682 = vpack.c.b16 %v2738, %v2734
      %v4683 = vpack.c.b16 %v2739, %v2735
      %v4684 = vpack.c.b16 %v2740, %v2736
      %v4685 = vpack.c.b16 %v2745, %v2741
      %v4686 = vpack.c.b16 %v2746, %v2742
      %v4687 = vpack.c.b16 %v2747, %v2743
      %v4688 = vpack.c.b16 %v2748, %v2744
      %v4689 = vpack.c.b16 %v2753, %v2749
      %v4690 = vpack.c.b16 %v2754, %v2750
      %v4691 = vpack.c.b16 %v2755, %v2751
      %v4692 = vpack.c.b16 %v2756, %v2752
      %v4693 = vpack.c.b16 %v2761, %v2757
      %v4694 = vpack.c.b16 %v2762, %v2758
      %v4695 = vpack.c.b16 %v2763, %v2759
      %v4696 = vpack.c.b16 %v2764, %v2760
      %v4697 = vpack.c.b16 %v2769, %v2765
      %v4698 = vpack.c.b16 %v2770, %v2766
      %v4699 = vpack.c.b16 %v2771, %v2767
      %v4700 = vpack.c.b16 %v2772, %v2768
      %v4701 = vpack.c.b16 %v2777, %v2773
      %v4702 = vpack.c.b16 %v2778, %v2774
      %v4703 = vpack.c.b16 %v2779, %v2775
      %v4704 = vpack.c.b16 %v2780, %v2776
      %v4705 = vpack.c.b16 %v2785, %v2781
      %v4706 = vpack.c.b16 %v2786, %v2782
      %v4707 = vpack.c.b16 %v2787, %v2783
      %v4708 = vpack.c.b16 %v2788, %v2784
      %v4709 = vpack.c.b16 %v2793, %v2789
      %v4710 = vpack.c.b16 %v2794, %v2790
      %v4711 = vpack.c.b16 %v2795, %v2791
      %v4712 = vpack.c.b16 %v2796, %v2792
      %v4713 = vpack.c.b16 %v2801, %v2797
      %v4714 = vpack.c.b16 %v2802, %v2798
      %v4715 = vpack.c.b16 %v2803, %v2799
      %v4716 = vpack.c.b16 %v2804, %v2800
      %v4717 = vpack.c.b16 %v2809, %v2805
      %v4718 = vpack.c.b16 %v2810, %v2806
      %v4719 = vpack.c.b16 %v2811, %v2807
      %v4720 = vpack.c.b16 %v2812, %v2808
      %v4721 = vpack.c.b16 %v2817, %v2813
      %v4722 = vpack.c.b16 %v2818, %v2814
      %v4723 = vpack.c.b16 %v2819, %v2815
      %v4724 = vpack.c.b16 %v2820, %v2816
      %v4725 = vpack.c.b16 %v2825, %v2821
      %v4726 = vpack.c.b16 %v2826, %v2822
      %v4727 = vpack.c.b16 %v2827, %v2823
      %v4728 = vpack.c.b16 %v2828, %v2824
      %v4729 = vpack.c.b16 %v2833, %v2829
      %v4730 = vpack.c.b16 %v2834, %v2830
      %v4731 = vpack.c.b16 %v2835, %v2831
      %v4732 = vpack.c.b16 %v2836, %v2832
      %v4733 = vpack.c.b16 %v2841, %v2837
      %v4734 = vpack.c.b16 %v2842, %v2838
      %v4735 = vpack.c.b16 %v2843, %v2839
      %v4736 = vpack.c.b16 %v2844, %v2840
      %v4737 = vpack.c.b16 %v2849, %v2845
      %v4738 = vpack.c.b16 %v2850, %v2846
      %v4739 = vpack.c.b16 %v2851, %v2847
      %v4740 = vpack.c.b16 %v2852, %v2848
      %v4741 = vpack.c.b16 %v2857, %v2853
      %v4742 = vpack.c.b16 %v2858, %v2854
      %v4743 = vpack.c.b16 %v2859, %v2855
      %v4744 = vpack.c.b16 %v2860, %v2856
      %v4745 = vpack.c.b16 %v2865, %v2861
      %v4746 = vpack.c.b16 %v2866, %v2862
      %v4747 = vpack.c.b16 %v2867, %v2863
      %v4748 = vpack.c.b16 %v2868, %v2864
      %v4749 = vpack.c.b16 %v2873, %v2869
      %v4750 = vpack.c.b16 %v2874, %v2870
      %v4751 = vpack.c.b16 %v2875, %v2871
      %v4752 = vpack.c.b16 %v2876, %v2872
      %v4753 = vpack.c.b16 %v2881, %v2877
      %v4754 = vpack.c.b16 %v2882, %v2878
      %v4755 = vpack.c.b16 %v2883, %v2879
      %v4756 = vpack.c.b16 %v2884, %v2880
      %v4757 = vpack.c.b16 %v2889, %v2885
      %v4758 = vpack.c.b16 %v2890, %v2886
      %v4759 = vpack.c.b16 %v2891, %v2887
      %v4760 = vpack.c.b16 %v2892, %v2888
      %v4761 = vpack.c.b16 %v2897, %v2893
      %v4762 = vpack.c.b16 %v2898, %v2894
      %v4763 = vpack.c.b16 %v2899, %v2895
      %v4764 = vpack.c.b16 %v2900, %v2896
      %v4765 = vpack.c.b16 %v2905, %v2901
      %v4766 = vpack.c.b16 %v2906, %v2902
      %v4767 = vpack.c.b16 %v2907, %v2903
      %v4768 = vpack.c.b16 %v2908, %v2904
      %v4769 = vpack.c.b16 %v2913, %v2909
      %v4770 = vpack.c.b16 %v2914, %v2910
      %v4771 = vpack.c.b16 %v2915, %v2911
      %v4772 = vpack.c.b16 %v2916, %v2912
      %v4773 = vpack.c.b16 %v2921, %v2917
      %v4774 = vpack.c.b16 %v2922, %v2918
      %v4775 = vpack.c.b16 %v2923, %v2919
      %v4776 = vpack.c.b16 %v2924, %v2920
      %v4777 = vpack.c.b16 %v2929, %v2925
      %v4778 = vpack.c.b16 %v2930, %v2926
      %v4779 = vpack.c.b16 %v2931, %v2927
      %v4780 = vpack.c.b16 %v2932, %v2928
      %v4781 = vpack.c.b16 %v2937, %v2933
      %v4782 = vpack.c.b16 %v2938, %v2934
      %v4783 = vpack.c.b16 %v2939, %v2935
      %v4784 = vpack.c.b16 %v2940, %v2936
      %v4785 = vpack.c.b16 %v2945, %v2941
      %v4786 = vpack.c.b16 %v2946, %v2942
      %v4787 = vpack.c.b16 %v2947, %v2943
      %v4788 = vpack.c.b16 %v2948, %v2944
      %v4789 = vpack.c.b16 %v2953, %v2949
      %v4790 = vpack.c.b16 %v2954, %v2950
      %v4791 = vpack.c.b16 %v2955, %v2951
      %v4792 = vpack.c.b16 %v2956, %v2952
      %v4793 = vpack.c.b16 %v2961, %v2957
      %v4794 = vpack.c.b16 %v2962, %v2958
      %v4795 = vpack.c.b16 %v2963, %v2959
      %v4796 = vpack.c.b16 %v2964, %v2960
      %v4797 = vpack.c.b16 %v2969, %v2965
      %v4798 = vpack.c.b16 %v2970, %v2966
      %v4799 = vpack.c.b16 %v2971, %v2967
      %v4800 = vpack.c.b16 %v2972, %v2968
      %v4801 = vpack.c.b16 %v2977, %v2973
      %v4802 = vpack.c.b16 %v2978, %v2974
      %v4803 = vpack.c.b16 %v2979, %v2975
      %v4804 = vpack.c.b16 %v2980, %v2976
      %v4805 = vpack.c.b16 %v2985, %v2981
      %v4806 = vpack.c.b16 %v2986, %v2982
      %v4807 = vpack.c.b16 %v2987, %v2983
      %v4808 = vpack.c.b16 %v2988, %v2984
      %v4809 = vpack.c.b16 %v2993, %v2989
      %v4810 = vpack.c.b16 %v2994, %v2990
      %v4811 = vpack.c.b16 %v2995, %v2991
      %v4812 = vpack.c.b16 %v2996, %v2992
      %v4813 = vpack.c.b16 %v3001, %v2997
      %v4814 = vpack.c.b16 %v3002, %v2998
      %v4815 = vpack.c.b16 %v3003, %v2999
      %v4816 = vpack.c.b16 %v3004, %v3000
      %v4817 = vpack.c.b16 %v3009, %v3005
      %v4818 = vpack.c.b16 %v3010, %v3006
      %v4819 = vpack.c.b16 %v3011, %v3007
      %v4820 = vpack.c.b16 %v3012, %v3008
      %v4821 = vpack.c.b16 %v3017, %v3013
      %v4822 = vpack.c.b16 %v3018, %v3014
      %v4823 = vpack.c.b16 %v3019, %v3015
      %v4824 = vpack.c.b16 %v3020, %v3016
      %v4825 = vpack.c.b16 %v3025, %v3021
      %v4826 = vpack.c.b16 %v3026, %v3022
      %v4827 = vpack.c.b16 %v3027, %v3023
      %v4828 = vpack.c.b16 %v3028, %v3024
      %v4829 = vpack.c.b16 %v3033, %v3029
      %v4830 = vpack.c.b16 %v3034, %v3030
      %v4831 = vpack.c.b16 %v3035, %v3031
      %v4832 = vpack.c.b16 %v3036, %v3032
      %v4833 = vpack.c.b16 %v3041, %v3037
      %v4834 = vpack.c.b16 %v3042, %v3038
      %v4835 = vpack.c.b16 %v3043, %v3039
      %v4836 = vpack.c.b16 %v3044, %v3040
      %v4837 = vpack.c.b16 %v3049, %v3045
      %v4838 = vpack.c.b16 %v3050, %v3046
      %v4839 = vpack.c.b16 %v3051, %v3047
      %v4840 = vpack.c.b16 %v3052, %v3048
      %v4841 = vpack.c.b16 %v3057, %v3053
      %v4842 = vpack.c.b16 %v3058, %v3054
      %v4843 = vpack.c.b16 %v3059, %v3055
      %v4844 = vpack.c.b16 %v3060, %v3056
      %v4845 = vpack.c.b16 %v3065, %v3061
      %v4846 = vpack.c.b16 %v3066, %v3062
      %v4847 = vpack.c.b16 %v3067, %v3063
      %v4848 = vpack.c.b16 %v3068, %v3064
      %v4849 = vpack.c.b16 %v3073, %v3069
      %v4850 = vpack.c.b16 %v3074, %v3070
      %v4851 = vpack.c.b16 %v3075, %v3071
      %v4852 = vpack.c.b16 %v3076, %v3072
      %v4853 = vpack.c.b16 %v3081, %v3077
      %v4854 = vpack.c.b16 %v3082, %v3078
      %v4855 = vpack.c.b16 %v3083, %v3079
      %v4856 = vpack.c.b16 %v3084, %v3080
      %v4857 = vpack.c.b16 %v3089, %v3085
      %v4858 = vpack.c.b16 %v3090, %v3086
      %v4859 = vpack.c.b16 %v3091, %v3087
      %v4860 = vpack.c.b16 %v3092, %v3088
      %v4861 = vpack.c.b16 %v3097, %v3093
      %v4862 = vpack.c.b16 %v3098, %v3094
      %v4863 = vpack.c.b16 %v3099, %v3095
      %v4864 = vpack.c.b16 %v3100, %v3096
      %v4865 = vpack.c.b16 %v3105, %v3101
      %v4866 = vpack.c.b16 %v3106, %v3102
      %v4867 = vpack.c.b16 %v3107, %v3103
      %v4868 = vpack.c.b16 %v3108, %v3104
      %v4869 = vpack.c.b16 %v3113, %v3109
      %v4870 = vpack.c.b16 %v3114, %v3110
      %v4871 = vpack.c.b16 %v3115, %v3111
      %v4872 = vpack.c.b16 %v3116, %v3112
      %v4873 = vpack.c.b16 %v3121, %v3117
      %v4874 = vpack.c.b16 %v3122, %v3118
      %v4875 = vpack.c.b16 %v3123, %v3119
      %v4876 = vpack.c.b16 %v3124, %v3120
      %v4877 = vpack.c.b16 %v3129, %v3125
      %v4878 = vpack.c.b16 %v3130, %v3126
      %v4879 = vpack.c.b16 %v3131, %v3127
      %v4880 = vpack.c.b16 %v3132, %v3128
      %v4881 = vpack.c.b16 %v3137, %v3133
      %v4882 = vpack.c.b16 %v3138, %v3134
      %v4883 = vpack.c.b16 %v3139, %v3135
      %v4884 = vpack.c.b16 %v3140, %v3136
      %v4885 = vpack.c.b16 %v3145, %v3141
      %v4886 = vpack.c.b16 %v3146, %v3142
      %v4887 = vpack.c.b16 %v3147, %v3143
      %v4888 = vpack.c.b16 %v3148, %v3144
      %v4889 = vpack.c.b16 %v3153, %v3149
      %v4890 = vpack.c.b16 %v3154, %v3150
      %v4891 = vpack.c.b16 %v3155, %v3151
      %v4892 = vpack.c.b16 %v3156, %v3152
      %v4893 = vpack.c.b16 %v3161, %v3157
      %v4894 = vpack.c.b16 %v3162, %v3158
      %v4895 = vpack.c.b16 %v3163, %v3159
      %v4896 = vpack.c.b16 %v3164, %v3160
      %v4897 = vpack.c.b16 %v3169, %v3165
      %v4898 = vpack.c.b16 %v3170, %v3166
      %v4899 = vpack.c.b16 %v3171, %v3167
      %v4900 = vpack.c.b16 %v3172, %v3168
      %v4901 = vpack.c.b16 %v3177, %v3173
      %v4902 = vpack.c.b16 %v3178, %v3174
      %v4903 = vpack.c.b16 %v3179, %v3175
      %v4904 = vpack.c.b16 %v3180, %v3176
      %v4905 = vpack.c.b16 %v3185, %v3181
      %v4906 = vpack.c.b16 %v3186, %v3182
      %v4907 = vpack.c.b16 %v3187, %v3183
      %v4908 = vpack.c.b16 %v3188, %v3184
      %v4909 = vpack.c.b16 %v3193, %v3189
      %v4910 = vpack.c.b16 %v3194, %v3190
      %v4911 = vpack.c.b16 %v3195, %v3191
      %v4912 = vpack.c.b16 %v3196, %v3192
      %v4913 = vpack.c.b16 %v3201, %v3197
      %v4914 = vpack.c.b16 %v3202, %v3198
      %v4915 = vpack.c.b16 %v3203, %v3199
      %v4916 = vpack.c.b16 %v3204, %v3200
      %v4917 = vpack.c.b16 %v3209, %v3205
      %v4918 = vpack.c.b16 %v3210, %v3206
      %v4919 = vpack.c.b16 %v3211, %v3207
      %v4920 = vpack.c.b16 %v3212, %v3208
      %v4921 = vpack.c.b16 %v3217, %v3213
      %v4922 = vpack.c.b16 %v3218, %v3214
      %v4923 = vpack.c.b16 %v3219, %v3215
      %v4924 = vpack.c.b16 %v3220, %v3216
      %v4925 = vpack.c.b16 %v3225, %v3221
      %v4926 = vpack.c.b16 %v3226, %v3222
      %v4927 = vpack.c.b16 %v3227, %v3223
      %v4928 = vpack.c.b16 %v3228, %v3224
      %v4929 = vpack.c.b16 %v3233, %v3229
      %v4930 = vpack.c.b16 %v3234, %v3230
      %v4931 = vpack.c.b16 %v3235, %v3231
      %v4932 = vpack.c.b16 %v3236, %v3232
      %v4933 = vpack.c.b16 %v3241, %v3237
      %v4934 = vpack.c.b16 %v3242, %v3238
      %v4935 = vpack.c.b16 %v3243, %v3239
      %v4936 = vpack.c.b16 %v3244, %v3240
      %v4937 = vpack.c.b16 %v3249, %v3245
      %v4938 = vpack.c.b16 %v3250, %v3246
      %v4939 = vpack.c.b16 %v3251, %v3247
      %v4940 = vpack.c.b16 %v3252, %v3248
      %v4941 = vpack.c.b16 %v3257, %v3253
      %v4942 = vpack.c.b16 %v3258, %v3254
      %v4943 = vpack.c.b16 %v3259, %v3255
      %v4944 = vpack.c.b16 %v3260, %v3256
      %v4945 = vpack.c.b16 %v3265, %v3261
      %v4946 = vpack.c.b16 %v3266, %v3262
      %v4947 = vpack.c.b16 %v3267, %v3263
      %v4948 = vpack.c.b16 %v3268, %v3264
      %v4949 = vpack.c.b16 %v3273, %v3269
      %v4950 = vpack.c.b16 %v3274, %v3270
      %v4951 = vpack.c.b16 %v3275, %v3271
      %v4952 = vpack.c.b16 %v3276, %v3272
      %v4953 = vpack.c.b16 %v3281, %v3277
      %v4954 = vpack.c.b16 %v3282, %v3278
      %v4955 = vpack.c.b16 %v3283, %v3279
      %v4956 = vpack.c.b16 %v3284, %v3280
      %v4957 = vpack.c.b16 %v3289, %v3285
      %v4958 = vpack.c.b16 %v3290, %v3286
      %v4959 = vpack.c.b16 %v3291, %v3287
      %v4960 = vpack.c.b16 %v3292, %v3288
      %v4961 = vpack.c.b16 %v3297, %v3293
      %v4962 = vpack.c.b16 %v3298, %v3294
      %v4963 = vpack.c.b16 %v3299, %v3295
      %v4964 = vpack.c.b16 %v3300, %v3296
      %v4965 = vpack.c.b16 %v3305, %v3301
      %v4966 = vpack.c.b16 %v3306, %v3302
      %v4967 = vpack.c.b16 %v3307, %v3303
      %v4968 = vpack.c.b16 %v3308, %v3304
      %v4969 = vpack.c.b16 %v3313, %v3309
      %v4970 = vpack.c.b16 %v3314, %v3310
      %v4971 = vpack.c.b16 %v3315, %v3311
      %v4972 = vpack.c.b16 %v3316, %v3312
      %v4973 = vpack.c.b16 %v3321, %v3317
      %v4974 = vpack.c.b16 %v3322, %v3318
      %v4975 = vpack.c.b16 %v3323, %v3319
      %v4976 = vpack.c.b16 %v3324, %v3320
      %v4977 = vpack.c.b16 %v3329, %v3325
      %v4978 = vpack.c.b16 %v3330, %v3326
      %v4979 = vpack.c.b16 %v3331, %v3327
      %v4980 = vpack.c.b16 %v3332, %v3328
      %v4981 = vpack.c.b16 %v3337, %v3333
      %v4982 = vpack.c.b16 %v3338, %v3334
      %v4983 = vpack.c.b16 %v3339, %v3335
      %v4984 = vpack.c.b16 %v3340, %v3336
      %v4985 = vpack.c.b16 %v3345, %v3341
      %v4986 = vpack.c.b16 %v3346, %v3342
      %v4987 = vpack.c.b16 %v3347, %v3343
      %v4988 = vpack.c.b16 %v3348, %v3344
      %v4989 = vpack.c.b16 %v3353, %v3349
      %v4990 = vpack.c.b16 %v3354, %v3350
      %v4991 = vpack.c.b16 %v3355, %v3351
      %v4992 = vpack.c.b16 %v3356, %v3352
      %v4993 = vpack.c.b16 %v3361, %v3357
      %v4994 = vpack.c.b16 %v3362, %v3358
      %v4995 = vpack.c.b16 %v3363, %v3359
      %v4996 = vpack.c.b16 %v3364, %v3360
      %v4997 = vpack.c.b16 %v3369, %v3365
      %v4998 = vpack.c.b16 %v3370, %v3366
      %v4999 = vpack.c.b16 %v3371, %v3367
      %v5000 = vpack.c.b16 %v3372, %v3368
      %v5001 = vpack.c.b16 %v3377, %v3373
      %v5002 = vpack.c.b16 %v3378, %v3374
      %v5003 = vpack.c.b16 %v3379, %v3375
      %v5004 = vpack.c.b16 %v3380, %v3376
      %v5005 = vpack.c.b16 %v3385, %v3381
      %v5006 = vpack.c.b16 %v3386, %v3382
      %v5007 = vpack.c.b16 %v3387, %v3383
      %v5008 = vpack.c.b16 %v3388, %v3384
      %v5009 = vpack.c.b16 %v3393, %v3389
      %v5010 = vpack.c.b16 %v3394, %v3390
      %v5011 = vpack.c.b16 %v3395, %v3391
      %v5012 = vpack.c.b16 %v3396, %v3392
      %v5013 = vpack.c.b16 %v3401, %v3397
      %v5014 = vpack.c.b16 %v3402, %v3398
      %v5015 = vpack.c.b16 %v3403, %v3399
      %v5016 = vpack.c.b16 %v3404, %v3400
      %v5017 = vpack.c.b16 %v3409, %v3405
      %v5018 = vpack.c.b16 %v3410, %v3406
      %v5019 = vpack.c.b16 %v3411, %v3407
      %v5020 = vpack.c.b16 %v3412, %v3408
      %v5021 = vpack.c.b16 %v3417, %v3413
      %v5022 = vpack.c.b16 %v3418, %v3414
      %v5023 = vpack.c.b16 %v3419, %v3415
      %v5024 = vpack.c.b16 %v3420, %v3416
      %v5025 = vpack.c.b16 %v3425, %v3421
      %v5026 = vpack.c.b16 %v3426, %v3422
      %v5027 = vpack.c.b16 %v3427, %v3423
      %v5028 = vpack.c.b16 %v3428, %v3424
      %v5029 = vpack.c.b16 %v3433, %v3429
      %v5030 = vpack.c.b16 %v3434, %v3430
      %v5031 = vpack.c.b16 %v3435, %v3431
      %v5032 = vpack.c.b16 %v3436, %v3432
      %v5033 = vpack.c.b16 %v3441, %v3437
      %v5034 = vpack.c.b16 %v3442, %v3438
      %v5035 = vpack.c.b16 %v3443, %v3439
      %v5036 = vpack.c.b16 %v3444, %v3440
      %v5037 = vpack.c.b16 %v3449, %v3445
      %v5038 = vpack.c.b16 %v3450, %v3446
      %v5039 = vpack.c.b16 %v3451, %v3447
      %v5040 = vpack.c.b16 %v3452, %v3448
      %v5041 = vpack.c.b16 %v3457, %v3453
      %v5042 = vpack.c.b16 %v3458, %v3454
      %v5043 = vpack.c.b16 %v3459, %v3455
      %v5044 = vpack.c.b16 %v3460, %v3456
      %v5045 = vpack.c.b16 %v3465, %v3461
      %v5046 = vpack.c.b16 %v3466, %v3462
      %v5047 = vpack.c.b16 %v3467, %v3463
      %v5048 = vpack.c.b16 %v3468, %v3464
      %v5049 = vpack.c.b16 %v3473, %v3469
      %v5050 = vpack.c.b16 %v3474, %v3470
      %v5051 = vpack.c.b16 %v3475, %v3471
      %v5052 = vpack.c.b16 %v3476, %v3472
      %v5053 = vpack.c.b16 %v3481, %v3477
      %v5054 = vpack.c.b16 %v3482, %v3478
      %v5055 = vpack.c.b16 %v3483, %v3479
      %v5056 = vpack.c.b16 %v3484, %v3480
      %v5057 = vpack.c.b16 %v3489, %v3485
      %v5058 = vpack.c.b16 %v3490, %v3486
      %v5059 = vpack.c.b16 %v3491, %v3487
      %v5060 = vpack.c.b16 %v3492, %v3488
      %v5061 = vpack.c.b16 %v3497, %v3493
      %v5062 = vpack.c.b16 %v3498, %v3494
      %v5063 = vpack.c.b16 %v3499, %v3495
      %v5064 = vpack.c.b16 %v3500, %v3496
      %v5065 = vpack.c.b16 %v3505, %v3501
      %v5066 = vpack.c.b16 %v3506, %v3502
      %v5067 = vpack.c.b16 %v3507, %v3503
      %v5068 = vpack.c.b16 %v3508, %v3504
      %v5069 = vpack.c.b16 %v3513, %v3509
      %v5070 = vpack.c.b16 %v3514, %v3510
      %v5071 = vpack.c.b16 %v3515, %v3511
      %v5072 = vpack.c.b16 %v3516, %v3512
      %v5073 = vpack.c.b16 %v3521, %v3517
      %v5074 = vpack.c.b16 %v3522, %v3518
      %v5075 = vpack.c.b16 %v3523, %v3519
      %v5076 = vpack.c.b16 %v3524, %v3520
      %v5077 = vpack.c.b16 %v3529, %v3525
      %v5078 = vpack.c.b16 %v3530, %v3526
      %v5079 = vpack.c.b16 %v3531, %v3527
      %v5080 = vpack.c.b16 %v3532, %v3528
      %v5081 = vpack.c.b16 %v3537, %v3533
      %v5082 = vpack.c.b16 %v3538, %v3534
      %v5083 = vpack.c.b16 %v3539, %v3535
      %v5084 = vpack.c.b16 %v3540, %v3536
      %v5085 = vpack.c.b16 %v3545, %v3541
      %v5086 = vpack.c.b16 %v3546, %v3542
      %v5087 = vpack.c.b16 %v3547, %v3543
      %v5088 = vpack.c.b16 %v3548, %v3544
      %v5089 = vpack.c.b16 %v3553, %v3549
      %v5090 = vpack.c.b16 %v3554, %v3550
      %v5091 = vpack.c.b16 %v3555, %v3551
      %v5092 = vpack.c.b16 %v3556, %v3552
      %v5093 = vpack.c.b16 %v3561, %v3557
      %v5094 = vpack.c.b16 %v3562, %v3558
      %v5095 = vpack.c.b16 %v3563, %v3559
      %v5096 = vpack.c.b16 %v3564, %v3560
      %v5097 = vpack.c.b16 %v3569, %v3565
      %v5098 = vpack.c.b16 %v3570, %v3566
      %v5099 = vpack.c.b16 %v3571, %v3567
      %v5100 = vpack.c.b16 %v3572, %v3568
      %v5101 = vpack.c.b16 %v3577, %v3573
      %v5102 = vpack.c.b16 %v3578, %v3574
      %v5103 = vpack.c.b16 %v3579, %v3575
      %v5104 = vpack.c.b16 %v3580, %v3576
      %v5105 = vpack.c.b16 %v3585, %v3581
      %v5106 = vpack.c.b16 %v3586, %v3582
      %v5107 = vpack.c.b16 %v3587, %v3583
      %v5108 = vpack.c.b16 %v3588, %v3584
      %v5109 = vpack.c.b16 %v3593, %v3589
      %v5110 = vpack.c.b16 %v3594, %v3590
      %v5111 = vpack.c.b16 %v3595, %v3591
      %v5112 = vpack.c.b16 %v3596, %v3592
      %v5113 = vpack.c.b16 %v3601, %v3597
      %v5114 = vpack.c.b16 %v3602, %v3598
      %v5115 = vpack.c.b16 %v3603, %v3599
      %v5116 = vpack.c.b16 %v3604, %v3600
      %v5117 = vpack.c.b16 %v3609, %v3605
      %v5118 = vpack.c.b16 %v3610, %v3606
      %v5119 = vpack.c.b16 %v3611, %v3607
      %v5120 = vpack.c.b16 %v3612, %v3608
      %v5121 = vpack.c.b16 %v3617, %v3613
      %v5122 = vpack.c.b16 %v3618, %v3614
      %v5123 = vpack.c.b16 %v3619, %v3615
      %v5124 = vpack.c.b16 %v3620, %v3616
      %v5125 = vpack.c.b16 %v3625, %v3621
      %v5126 = vpack.c.b16 %v3626, %v3622
      %v5127 = vpack.c.b16 %v3627, %v3623
      %v5128 = vpack.c.b16 %v3628, %v3624
      %v5129 = vpack.c.b16 %v3633, %v3629
      %v5130 = vpack.c.b16 %v3634, %v3630
      %v5131 = vpack.c.b16 %v3635, %v3631
      %v5132 = vpack.c.b16 %v3636, %v3632
      %v5133 = vpack.c.b16 %v3641, %v3637
      %v5134 = vpack.c.b16 %v3642, %v3638
      %v5135 = vpack.c.b16 %v3643, %v3639
      %v5136 = vpack.c.b16 %v3644, %v3640
      %v5137 = vpack.c.b16 %v3649, %v3645
      %v5138 = vpack.c.b16 %v3650, %v3646
      %v5139 = vpack.c.b16 %v3651, %v3647
      %v5140 = vpack.c.b16 %v3652, %v3648
      %v5141 = vpack.c.b16 %v3657, %v3653
      %v5142 = vpack.c.b16 %v3658, %v3654
      %v5143 = vpack.c.b16 %v3659, %v3655
      %v5144 = vpack.c.b16 %v3660, %v3656
      %v5145 = vpack.c.b16 %v3665, %v3661
      %v5146 = vpack.c.b16 %v3666, %v3662
      %v5147 = vpack.c.b16 %v3667, %v3663
      %v5148 = vpack.c.b16 %v3668, %v3664
      %v5149 = vpack.c.b16 %v3673, %v3669
      %v5150 = vpack.c.b16 %v3674, %v3670
      %v5151 = vpack.c.b16 %v3675, %v3671
      %v5152 = vpack.c.b16 %v3676, %v3672
      %v5153 = vpack.c.b16 %v3681, %v3677
      %v5154 = vpack.c.b16 %v3682, %v3678
      %v5155 = vpack.c.b16 %v3683, %v3679
      %v5156 = vpack.c.b16 %v3684, %v3680
      %v5157 = vpack.c.b16 %v3689, %v3685
      %v5158 = vpack.c.b16 %v3690, %v3686
      %v5159 = vpack.c.b16 %v3691, %v3687
      %v5160 = vpack.c.b16 %v3692, %v3688
      %v5161 = vpack.c.b16 %v3697, %v3693
      %v5162 = vpack.c.b16 %v3698, %v3694
      %v5163 = vpack.c.b16 %v3699, %v3695
      %v5164 = vpack.c.b16 %v3700, %v3696
      %v5165 = vpack.c.b16 %v3705, %v3701
      %v5166 = vpack.c.b16 %v3706, %v3702
      %v5167 = vpack.c.b16 %v3707, %v3703
      %v5168 = vpack.c.b16 %v3708, %v3704
      %v5169 = vpack.c.b16 %v3713, %v3709
      %v5170 = vpack.c.b16 %v3714, %v3710
      %v5171 = vpack.c.b16 %v3715, %v3711
      %v5172 = vpack.c.b16 %v3716, %v3712
      %v5173 = vpack.c.b16 %v3721, %v3717
      %v5174 = vpack.c.b16 %v3722, %v3718
      %v5175 = vpack.c.b16 %v3723, %v3719
      %v5176 = vpack.c.b16 %v3724, %v3720
      %v5177 = vpack.c.b16 %v3729, %v3725
      %v5178 = vpack.c.b16 %v3730, %v3726
      %v5179 = vpack.c.b16 %v3731, %v3727
      %v5180 = vpack.c.b16 %v3732, %v3728
      %v5181 = vpack.c.b16 %v3737, %v3733
      %v5182 = vpack.c.b16 %v3738, %v3734
      %v5183 = vpack.c.b16 %v3739, %v3735
      %v5184 = vpack.c.b16 %v3740, %v3736
      %v5185 = vpack.c.b16 %v3745, %v3741
      %v5186 = vpack.c.b16 %v3746, %v3742
      %v5187 = vpack.c.b16 %v3747, %v3743
      %v5188 = vpack.c.b16 %v3748, %v3744
      %v5189 = vpack.c.b16 %v3753, %v3749
      %v5190 = vpack.c.b16 %v3754, %v3750
      %v5191 = vpack.c.b16 %v3755, %v3751
      %v5192 = vpack.c.b16 %v3756, %v3752
      %v5193 = vpack.c.b16 %v3761, %v3757
      %v5194 = vpack.c.b16 %v3762, %v3758
      %v5195 = vpack.c.b16 %v3763, %v3759
      %v5196 = vpack.c.b16 %v3764, %v3760
      %v5197 = vpack.c.b16 %v3769, %v3765
      %v5198 = vpack.c.b16 %v3770, %v3766
      %v5199 = vpack.c.b16 %v3771, %v3767
      %v5200 = vpack.c.b16 %v3772, %v3768
      %v5201 = vpack.c.b16 %v3777, %v3773
      %v5202 = vpack.c.b16 %v3778, %v3774
      %v5203 = vpack.c.b16 %v3779, %v3775
      %v5204 = vpack.c.b16 %v3780, %v3776
      %v5205 = vpack.c.b16 %v3785, %v3781
      %v5206 = vpack.c.b16 %v3786, %v3782
      %v5207 = vpack.c.b16 %v3787, %v3783
      %v5208 = vpack.c.b16 %v3788, %v3784
      %v5209 = vpack.c.b16 %v3793, %v3789
      %v5210 = vpack.c.b16 %v3794, %v3790
      %v5211 = vpack.c.b16 %v3795, %v3791
      %v5212 = vpack.c.b16 %v3796, %v3792
      %v5213 = vpack.c.b16 %v3801, %v3797
      %v5214 = vpack.c.b16 %v3802, %v3798
      %v5215 = vpack.c.b16 %v3803, %v3799
      %v5216 = vpack.c.b16 %v3804, %v3800
      %v5217 = vpack.c.b16 %v3809, %v3805
      %v5218 = vpack.c.b16 %v3810, %v3806
      %v5219 = vpack.c.b16 %v3811, %v3807
      %v5220 = vpack.c.b16 %v3812, %v3808
      %v5221 = vpack.c.b16 %v3817, %v3813
      %v5222 = vpack.c.b16 %v3818, %v3814
      %v5223 = vpack.c.b16 %v3819, %v3815
      %v5224 = vpack.c.b16 %v3820, %v3816
      %v5225 = vpack.c.b16 %v3825, %v3821
      %v5226 = vpack.c.b16 %v3826, %v3822
      %v5227 = vpack.c.b16 %v3827, %v3823
      %v5228 = vpack.c.b16 %v3828, %v3824
      %v5229 = vpack.c.b16 %v3833, %v3829
      %v5230 = vpack.c.b16 %v3834, %v3830
      %v5231 = vpack.c.b16 %v3835, %v3831
      %v5232 = vpack.c.b16 %v3836, %v3832
      %v5233 = vpack.c.b16 %v3841, %v3837
      %v5234 = vpack.c.b16 %v3842, %v3838
      %v5235 = vpack.c.b16 %v3843, %v3839
      %v5236 = vpack.c.b16 %v3844, %v3840
      %v5237 = vpack.c.b16 %v3849, %v3845
      %v5238 = vpack.c.b16 %v3850, %v3846
      %v5239 = vpack.c.b16 %v3851, %v3847
      %v5240 = vpack.c.b16 %v3852, %v3848
      %v5241 = vpack.c.b16 %v3857, %v3853
      %v5242 = vpack.c.b16 %v3858, %v3854
      %v5243 = vpack.c.b16 %v3859, %v3855
      %v5244 = vpack.c.b16 %v3860, %v3856
      %v5245 = vpack.c.b16 %v3865, %v3861
      %v5246 = vpack.c.b16 %v3866, %v3862
      %v5247 = vpack.c.b16 %v3867, %v3863
      %v5248 = vpack.c.b16 %v3868, %v3864
      %v5249 = vpack.c.b16 %v3873, %v3869
      %v5250 = vpack.c.b16 %v3874, %v3870
      %v5251 = vpack.c.b16 %v3875, %v3871
      %v5252 = vpack.c.b16 %v3876, %v3872
      %v5253 = vpack.c.b16 %v3881, %v3877
      %v5254 = vpack.c.b16 %v3882, %v3878
      %v5255 = vpack.c.b16 %v3883, %v3879
      %v5256 = vpack.c.b16 %v3884, %v3880
      %v5257 = vpack.c.b16 %v3889, %v3885
      %v5258 = vpack.c.b16 %v3890, %v3886
      %v5259 = vpack.c.b16 %v3891, %v3887
      %v5260 = vpack.c.b16 %v3892, %v3888
      %v5261 = vpack.c.b16 %v3897, %v3893
      %v5262 = vpack.c.b16 %v3898, %v3894
      %v5263 = vpack.c.b16 %v3899, %v3895
      %v5264 = vpack.c.b16 %v3900, %v3896
      %v5265 = vpack.c.b16 %v3905, %v3901
      %v5266 = vpack.c.b16 %v3906, %v3902
      %v5267 = vpack.c.b16 %v3907, %v3903
      %v5268 = vpack.c.b16 %v3908, %v3904
      %v5269 = vpack.c.b16 %v3913, %v3909
      %v5270 = vpack.c.b16 %v3914, %v3910
      %v5271 = vpack.c.b16 %v3915, %v3911
      %v5272 = vpack.c.b16 %v3916, %v3912
      %v5273 = vpack.c.b16 %v3921, %v3917
      %v5274 = vpack.c.b16 %v3922, %v3918
      %v5275 = vpack.c.b16 %v3923, %v3919
      %v5276 = vpack.c.b16 %v3924, %v3920
      %v5277 = vpack.c.b16 %v3929, %v3925
      %v5278 = vpack.c.b16 %v3930, %v3926
      %v5279 = vpack.c.b16 %v3931, %v3927
      %v5280 = vpack.c.b16 %v3932, %v3928
      %v5281 = vpack.c.b16 %v3937, %v3933
      %v5282 = vpack.c.b16 %v3938, %v3934
      %v5283 = vpack.c.b16 %v3939, %v3935
      %v5284 = vpack.c.b16 %v3940, %v3936
      %v5285 = vpack.c.b16 %v3945, %v3941
      %v5286 = vpack.c.b16 %v3946, %v3942
      %v5287 = vpack.c.b16 %v3947, %v3943
      %v5288 = vpack.c.b16 %v3948, %v3944
      %v5289 = vpack.c.b16 %v3953, %v3949
      %v5290 = vpack.c.b16 %v3954, %v3950
      %v5291 = vpack.c.b16 %v3955, %v3951
      %v5292 = vpack.c.b16 %v3956, %v3952
      %v5293 = vpack.c.b16 %v3961, %v3957
      %v5294 = vpack.c.b16 %v3962, %v3958
      %v5295 = vpack.c.b16 %v3963, %v3959
      %v5296 = vpack.c.b16 %v3964, %v3960
      %v5297 = vpack.c.b16 %v3969, %v3965
      %v5298 = vpack.c.b16 %v3970, %v3966
      %v5299 = vpack.c.b16 %v3971, %v3967
      %v5300 = vpack.c.b16 %v3972, %v3968
      %v5301 = vpack.c.b16 %v3977, %v3973
      %v5302 = vpack.c.b16 %v3978, %v3974
      %v5303 = vpack.c.b16 %v3979, %v3975
      %v5304 = vpack.c.b16 %v3980, %v3976
      %v5305 = vpack.c.b16 %v3985, %v3981
      %v5306 = vpack.c.b16 %v3986, %v3982
      %v5307 = vpack.c.b16 %v3987, %v3983
      %v5308 = vpack.c.b16 %v3988, %v3984
      %v5309 = vpack.c.b16 %v3993, %v3989
      %v5310 = vpack.c.b16 %v3994, %v3990
      %v5311 = vpack.c.b16 %v3995, %v3991
      %v5312 = vpack.c.b16 %v3996, %v3992
      %v5313 = vpack.c.b16 %v4001, %v3997
      %v5314 = vpack.c.b16 %v4002, %v3998
      %v5315 = vpack.c.b16 %v4003, %v3999
      %v5316 = vpack.c.b16 %v4004, %v4000
      %v5317 = vpack.c.b16 %v4009, %v4005
      %v5318 = vpack.c.b16 %v4010, %v4006
      %v5319 = vpack.c.b16 %v4011, %v4007
      %v5320 = vpack.c.b16 %v4012, %v4008
      %v5321 = vpack.c.b16 %v4017, %v4013
      %v5322 = vpack.c.b16 %v4018, %v4014
      %v5323 = vpack.c.b16 %v4019, %v4015
      %v5324 = vpack.c.b16 %v4020, %v4016
      %v5325 = vpack.c.b16 %v4025, %v4021
      %v5326 = vpack.c.b16 %v4026, %v4022
      %v5327 = vpack.c.b16 %v4027, %v4023
      %v5328 = vpack.c.b16 %v4028, %v4024
      %v5329 = vpack.c.b16 %v4033, %v4029
      %v5330 = vpack.c.b16 %v4034, %v4030
      %v5331 = vpack.c.b16 %v4035, %v4031
      %v5332 = vpack.c.b16 %v4036, %v4032
      %v5333 = vpack.c.b16 %v4041, %v4037
      %v5334 = vpack.c.b16 %v4042, %v4038
      %v5335 = vpack.c.b16 %v4043, %v4039
      %v5336 = vpack.c.b16 %v4044, %v4040
      %v5337 = vpack.c.b16 %v4049, %v4045
      %v5338 = vpack.c.b16 %v4050, %v4046
      %v5339 = vpack.c.b16 %v4051, %v4047
      %v5340 = vpack.c.b16 %v4052, %v4048
      %v5341 = vpack.c.b16 %v4057, %v4053
      %v5342 = vpack.c.b16 %v4058, %v4054
      %v5343 = vpack.c.b16 %v4059, %v4055
      %v5344 = vpack.c.b16 %v4060, %v4056
      %v5345 = vpack.c.b16 %v4065, %v4061
      %v5346 = vpack.c.b16 %v4066, %v4062
      %v5347 = vpack.c.b16 %v4067, %v4063
      %v5348 = vpack.c.b16 %v4068, %v4064
      %v5349 = vpack.c.b16 %v4073, %v4069
      %v5350 = vpack.c.b16 %v4074, %v4070
      %v5351 = vpack.c.b16 %v4075, %v4071
      %v5352 = vpack.c.b16 %v4076, %v4072
      %v5353 = vpack.c.b16 %v4081, %v4077
      %v5354 = vpack.c.b16 %v4082, %v4078
      %v5355 = vpack.c.b16 %v4083, %v4079
      %v5356 = vpack.c.b16 %v4084, %v4080
      %v5357 = vpack.c.b16 %v4089, %v4085
      %v5358 = vpack.c.b16 %v4090, %v4086
      %v5359 = vpack.c.b16 %v4091, %v4087
      %v5360 = vpack.c.b16 %v4092, %v4088
      %v5361 = vpack.c.b16 %v4097, %v4093
      %v5362 = vpack.c.b16 %v4098, %v4094
      %v5363 = vpack.c.b16 %v4099, %v4095
      %v5364 = vpack.c.b16 %v4100, %v4096
      %v5365 = vpack.c.b16 %v4105, %v4101
      %v5366 = vpack.c.b16 %v4106, %v4102
      %v5367 = vpack.c.b16 %v4107, %v4103
      %v5368 = vpack.c.b16 %v4108, %v4104
      %v5369 = vpack.c.b16 %v4113, %v4109
      %v5370 = vpack.c.b16 %v4114, %v4110
      %v5371 = vpack.c.b16 %v4115, %v4111
      %v5372 = vpack.c.b16 %v4116, %v4112
      %v5373 = vpack.c.b16 %v4121, %v4117
      %v5374 = vpack.c.b16 %v4122, %v4118
      %v5375 = vpack.c.b16 %v4123, %v4119
      %v5376 = vpack.c.b16 %v4124, %v4120
      %v5377 = vpack.c.b16 %v4129, %v4125
      %v5378 = vpack.c.b16 %v4130, %v4126
      %v5379 = vpack.c.b16 %v4131, %v4127
      %v5380 = vpack.c.b16 %v4132, %v4128
      %v5381 = vpack.c.b16 %v4137, %v4133
      %v5382 = vpack.c.b16 %v4138, %v4134
      %v5383 = vpack.c.b16 %v4139, %v4135
      %v5384 = vpack.c.b16 %v4140, %v4136
      %v5385 = vpack.c.b16 %v4145, %v4141
      %v5386 = vpack.c.b16 %v4146, %v4142
      %v5387 = vpack.c.b16 %v4147, %v4143
      %v5388 = vpack.c.b16 %v4148, %v4144
      %v5389 = vpack.c.b16 %v4153, %v4149
      %v5390 = vpack.c.b16 %v4154, %v4150
      %v5391 = vpack.c.b16 %v4155, %v4151
      %v5392 = vpack.c.b16 %v4156, %v4152
      %v5393 = vpack.c.b16 %v4161, %v4157
      %v5394 = vpack.c.b16 %v4162, %v4158
      %v5395 = vpack.c.b16 %v4163, %v4159
      %v5396 = vpack.c.b16 %v4164, %v4160
      %v5397 = vpack.c.b16 %v4169, %v4165
      %v5398 = vpack.c.b16 %v4170, %v4166
      %v5399 = vpack.c.b16 %v4171, %v4167
      %v5400 = vpack.c.b16 %v4172, %v4168
      %v5401 = vpack.c.b16 %v4177, %v4173
      %v5402 = vpack.c.b16 %v4178, %v4174
      %v5403 = vpack.c.b16 %v4179, %v4175
      %v5404 = vpack.c.b16 %v4180, %v4176
      %v5405 = vpack.c.b16 %v4185, %v4181
      %v5406 = vpack.c.b16 %v4186, %v4182
      %v5407 = vpack.c.b16 %v4187, %v4183
      %v5408 = vpack.c.b16 %v4188, %v4184
      %v5409 = vpack.c.b16 %v4193, %v4189
      %v5410 = vpack.c.b16 %v4194, %v4190
      %v5411 = vpack.c.b16 %v4195, %v4191
      %v5412 = vpack.c.b16 %v4196, %v4192
      %v5413 = vpack.c.b16 %v4201, %v4197
      %v5414 = vpack.c.b16 %v4202, %v4198
      %v5415 = vpack.c.b16 %v4203, %v4199
      %v5416 = vpack.c.b16 %v4204, %v4200
      %v5417 = vpack.c.b16 %v4209, %v4205
      %v5418 = vpack.c.b16 %v4210, %v4206
      %v5419 = vpack.c.b16 %v4211, %v4207
      %v5420 = vpack.c.b16 %v4212, %v4208
      %v5421 = vpack.c.b16 %v4217, %v4213
      %v5422 = vpack.c.b16 %v4218, %v4214
      %v5423 = vpack.c.b16 %v4219, %v4215
      %v5424 = vpack.c.b16 %v4220, %v4216
      %v5425 = vpack.c.b16 %v4225, %v4221
      %v5426 = vpack.c.b16 %v4226, %v4222
      %v5427 = vpack.c.b16 %v4227, %v4223
      %v5428 = vpack.c.b16 %v4228, %v4224
      %v5429 = vpack.c.b16 %v4233, %v4229
      %v5430 = vpack.c.b16 %v4234, %v4230
      %v5431 = vpack.c.b16 %v4235, %v4231
      %v5432 = vpack.c.b16 %v4236, %v4232
      %v5433 = vpack.c.b16 %v4241, %v4237
      %v5434 = vpack.c.b16 %v4242, %v4238
      %v5435 = vpack.c.b16 %v4243, %v4239
      %v5436 = vpack.c.b16 %v4244, %v4240
      %v5437 = vpack.c.b16 %v4249, %v4245
      %v5438 = vpack.c.b16 %v4250, %v4246
      %v5439 = vpack.c.b16 %v4251, %v4247
      %v5440 = vpack.c.b16 %v4252, %v4248
      %v5441 = vpack.c.b16 %v4257, %v4253
      %v5442 = vpack.c.b16 %v4258, %v4254
      %v5443 = vpack.c.b16 %v4259, %v4255
      %v5444 = vpack.c.b16 %v4260, %v4256
      %v5445 = vpack.c.b16 %v4265, %v4261
      %v5446 = vpack.c.b16 %v4266, %v4262
      %v5447 = vpack.c.b16 %v4267, %v4263
      %v5448 = vpack.c.b16 %v4268, %v4264
      %v5449 = vpack.c.b16 %v4273, %v4269
      %v5450 = vpack.c.b16 %v4274, %v4270
      %v5451 = vpack.c.b16 %v4275, %v4271
      %v5452 = vpack.c.b16 %v4276, %v4272
      %v5453 = vpack.c.b16 %v4281, %v4277
      %v5454 = vpack.c.b16 %v4282, %v4278
      %v5455 = vpack.c.b16 %v4283, %v4279
      %v5456 = vpack.c.b16 %v4284, %v4280
      %v5457 = vpack.c.b16 %v4289, %v4285
      %v5458 = vpack.c.b16 %v4290, %v4286
      %v5459 = vpack.c.b16 %v4291, %v4287
      %v5460 = vpack.c.b16 %v4292, %v4288
      %v5461 = vpack.c.b16 %v4297, %v4293
      %v5462 = vpack.c.b16 %v4298, %v4294
      %v5463 = vpack.c.b16 %v4299, %v4295
      %v5464 = vpack.c.b16 %v4300, %v4296
      %v5465 = vpack.c.b16 %v4305, %v4301
      %v5466 = vpack.c.b16 %v4306, %v4302
      %v5467 = vpack.c.b16 %v4307, %v4303
      %v5468 = vpack.c.b16 %v4308, %v4304
      %v5469 = vpack.c.b16 %v4313, %v4309
      %v5470 = vpack.c.b16 %v4314, %v4310
      %v5471 = vpack.c.b16 %v4315, %v4311
      %v5472 = vpack.c.b16 %v4316, %v4312
      %v5473 = vpack.c.b16 %v4321, %v4317
      %v5474 = vpack.c.b16 %v4322, %v4318
      %v5475 = vpack.c.b16 %v4323, %v4319
      %v5476 = vpack.c.b16 %v4324, %v4320
      %v5477 = vpack.c.b16 %v4329, %v4325
      %v5478 = vpack.c.b16 %v4330, %v4326
      %v5479 = vpack.c.b16 %v4331, %v4327
      %v5480 = vpack.c.b16 %v4332, %v4328
      %v5481 = vpack.c.b16 %v4337, %v4333
      %v5482 = vpack.c.b16 %v4338, %v4334
      %v5483 = vpack.c.b16 %v4339, %v4335
      %v5484 = vpack.c.b16 %v4340, %v4336
      %v5485 = vpack.c.b16 %v4345, %v4341
      %v5486 = vpack.c.b16 %v4346, %v4342
      %v5487 = vpack.c.b16 %v4347, %v4343
      %v5488 = vpack.c.b16 %v4348, %v4344
      %v5489 = vpack.c.b16 %v4353, %v4349
      %v5490 = vpack.c.b16 %v4354, %v4350
      %v5491 = vpack.c.b16 %v4355, %v4351
      %v5492 = vpack.c.b16 %v4356, %v4352
      %v5493 = vpack.c.b16 %v4361, %v4357
      %v5494 = vpack.c.b16 %v4362, %v4358
      %v5495 = vpack.c.b16 %v4363, %v4359
      %v5496 = vpack.c.b16 %v4364, %v4360
      %v5497 = vpack.c.b16 %v4369, %v4365
      %v5498 = vpack.c.b16 %v4370, %v4366
      %v5499 = vpack.c.b16 %v4371, %v4367
      %v5500 = vpack.c.b16 %v4372, %v4368
      %v5501 = vpack.c.b16 %v4377, %v4373
      %v5502 = vpack.c.b16 %v4378, %v4374
      %v5503 = vpack.c.b16 %v4379, %v4375
      %v5504 = vpack.c.b16 %v4380, %v4376
      %v5505 = vpack.c.b16 %v4385, %v4381
      %v5506 = vpack.c.b16 %v4386, %v4382
      %v5507 = vpack.c.b16 %v4387, %v4383
      %v5508 = vpack.c.b16 %v4388, %v4384
      %v5509 = vpack.c.b16 %v4393, %v4389
      %v5510 = vpack.c.b16 %v4394, %v4390
      %v5511 = vpack.c.b16 %v4395, %v4391
      %v5512 = vpack.c.b16 %v4396, %v4392
      %v5513 = vpack.c.b16 %v4401, %v4397
      %v5514 = vpack.c.b16 %v4402, %v4398
      %v5515 = vpack.c.b16 %v4403, %v4399
      %v5516 = vpack.c.b16 %v4404, %v4400
      %v5517 = vpack.c.b16 %v4409, %v4405
      %v5518 = vpack.c.b16 %v4410, %v4406
      %v5519 = vpack.c.b16 %v4411, %v4407
      %v5520 = vpack.c.b16 %v4412, %v4408
      %v5521 = vpack.c.b16 %v4417, %v4413
      %v5522 = vpack.c.b16 %v4418, %v4414
      %v5523 = vpack.c.b16 %v4419, %v4415
      %v5524 = vpack.c.b16 %v4420, %v4416
      %v5525 = vpack.c.b16 %v4425, %v4421
      %v5526 = vpack.c.b16 %v4426, %v4422
      %v5527 = vpack.c.b16 %v4427, %v4423
      %v5528 = vpack.c.b16 %v4428, %v4424
      %v5529 = vpack.c.b16 %v4433, %v4429
      %v5530 = vpack.c.b16 %v4434, %v4430
      %v5531 = vpack.c.b16 %v4435, %v4431
      %v5532 = vpack.c.b16 %v4436, %v4432
      %v5533 = vpack.c.b16 %v4441, %v4437
      %v5534 = vpack.c.b16 %v4442, %v4438
      %v5535 = vpack.c.b16 %v4443, %v4439
      %v5536 = vpack.c.b16 %v4444, %v4440
      %v5537 = vpack.c.b16 %v4449, %v4445
      %v5538 = vpack.c.b16 %v4450, %v4446
      %v5539 = vpack.c.b16 %v4451, %v4447
      %v5540 = vpack.c.b16 %v4452, %v4448
      %v5541 = vpack.c.b16 %v4457, %v4453
      %v5542 = vpack.c.b16 %v4458, %v4454
      %v5543 = vpack.c.b16 %v4459, %v4455
      %v5544 = vpack.c.b16 %v4460, %v4456
      %v5545 = vpack.c.b16 %v4465, %v4461
      %v5546 = vpack.c.b16 %v4466, %v4462
      %v5547 = vpack.c.b16 %v4467, %v4463
      %v5548 = vpack.c.b16 %v4468, %v4464
      %v5549 = vpack.c.b16 %v4473, %v4469
      %v5550 = vpack.c.b16 %v4474, %v4470
      %v5551 = vpack.c.b16 %v4475, %v4471
      %v5552 = vpack.c.b16 %v4476, %v4472
      %v5553 = vpack.c.b16 %v4481, %v4477
      %v5554 = vpack.c.b16 %v4482, %v4478
      %v5555 = vpack.c.b16 %v4483, %v4479
      %v5556 = vpack.c.b16 %v4484, %v4480
      %v5557 = vpack.c.b16 %v4489, %v4485
      %v5558 = vpack.c.b16 %v4490, %v4486
      %v5559 = vpack.c.b16 %v4491, %v4487
      %v5560 = vpack.c.b16 %v4492, %v4488
      %v5561 = vpack.c.b16 %v4497, %v4493
      %v5562 = vpack.c.b16 %v4498, %v4494
      %v5563 = vpack.c.b16 %v4499, %v4495
      %v5564 = vpack.c.b16 %v4500, %v4496
      %v5565 = vpack.c.b16 %v4505, %v4501
      %v5566 = vpack.c.b16 %v4506, %v4502
      %v5567 = vpack.c.b16 %v4507, %v4503
      %v5568 = vpack.c.b16 %v4508, %v4504
      %v5569 = vpack.c.b16 %v4513, %v4509
      %v5570 = vpack.c.b16 %v4514, %v4510
      %v5571 = vpack.c.b16 %v4515, %v4511
      %v5572 = vpack.c.b16 %v4516, %v4512
      %v5573 = vpack.c.b16 %v4521, %v4517
      %v5574 = vpack.c.b16 %v4522, %v4518
      %v5575 = vpack.c.b16 %v4523, %v4519
      %v5576 = vpack.c.b16 %v4524, %v4520
      %v5577 = vpack.c.b16 %v4529, %v4525
      %v5578 = vpack.c.b16 %v4530, %v4526
      %v5579 = vpack.c.b16 %v4531, %v4527
      %v5580 = vpack.c.b16 %v4532, %v4528
      %v5581 = vpack.c.b16 %v4537, %v4533
      %v5582 = vpack.c.b16 %v4538, %v4534
      %v5583 = vpack.c.b16 %v4539, %v4535
      %v5584 = vpack.c.b16 %v4540, %v4536
      %v5585 = vpack.c.b16 %v4545, %v4541
      %v5586 = vpack.c.b16 %v4546, %v4542
      %v5587 = vpack.c.b16 %v4547, %v4543
      %v5588 = vpack.c.b16 %v4548, %v4544
      %v5589 = vpack.c.b16 %v4553, %v4549
      %v5590 = vpack.c.b16 %v4554, %v4550
      %v5591 = vpack.c.b16 %v4555, %v4551
      %v5592 = vpack.c.b16 %v4556, %v4552
      %v5593 = vpack.c.b16 %v4561, %v4557
      %v5594 = vpack.c.b16 %v4562, %v4558
      %v5595 = vpack.c.b16 %v4563, %v4559
      %v5596 = vpack.c.b16 %v4564, %v4560
      %v5597 = vpack.c.b16 %v4569, %v4565
      %v5598 = vpack.c.b16 %v4570, %v4566
      %v5599 = vpack.c.b16 %v4571, %v4567
      %v5600 = vpack.c.b16 %v4572, %v4568
      %v5601 = vpack.c.b16 %v4577, %v4573
      %v5602 = vpack.c.b16 %v4578, %v4574
      %v5603 = vpack.c.b16 %v4579, %v4575
      %v5604 = vpack.c.b16 %v4580, %v4576
      %6629 = vmatprep.subr.bf16.mxu0 %v4582
      %6630 = vmatpush1.bf16.msra.mxu0 %v4581
      %6631 = vmatprep.subr.bf16.mxu0 %v4586
      %6632 = vmatpush1.bf16.msra.mxu0 %v4585
      %6633 = vmatprep.subr.bf16.mxu0 %v4590
      %6634 = vmatpush1.bf16.msra.mxu0 %v4589
      %6635 = vmatprep.subr.bf16.mxu0 %v4594
      %6636 = vmatpush1.bf16.msra.mxu0 %v4593
      %6637 = vmatprep.subr.bf16.mxu0 %v4598
      %6638 = vmatpush1.bf16.msra.mxu0 %v4597
      %6639 = vmatprep.subr.bf16.mxu0 %v4602
      %6640 = vmatpush1.bf16.msra.mxu0 %v4601
      %6641 = vmatprep.subr.bf16.mxu0 %v4606
      %6642 = vmatpush1.bf16.msra.mxu0 %v4605
      %6643 = vmatprep.subr.bf16.mxu0 %v4610
      %6644 = vmatpush1.bf16.msra.mxu0 %v4609
      %6645 = vmatprep.subr.bf16.mxu0 %v4614
      %6646 = vmatpush1.bf16.msra.mxu0 %v4613
      %6647 = vmatprep.subr.bf16.mxu0 %v4618
      %6648 = vmatpush1.bf16.msra.mxu0 %v4617
      %6649 = vmatprep.subr.bf16.mxu0 %v4622
      %6650 = vmatpush1.bf16.msra.mxu0 %v4621
      %6651 = vmatprep.subr.bf16.mxu0 %v4626
      %6652 = vmatpush1.bf16.msra.mxu0 %v4625
      %6653 = vmatprep.subr.bf16.mxu0 %v4630
      %6654 = vmatpush1.bf16.msra.mxu0 %v4629
      %6655 = vmatprep.subr.bf16.mxu0 %v4634
      %6656 = vmatpush1.bf16.msra.mxu0 %v4633
      %6657 = vmatprep.subr.bf16.mxu0 %v4638
      %6658 = vmatpush1.bf16.msra.mxu0 %v4637
      %6659 = vmatprep.subr.bf16.mxu0 %v4642
      %6660 = vmatpush1.bf16.msra.mxu0 %v4641
      %6661 = vmatprep.mubr.bf16.mxu0 %v1446
      %6662 = vmatmul.mubr.bf16.gmra.mrb[0].mxu0 %v1445
      %v6663 = vpop.f32.mrb[0].mxu0
      %v6664 = vadd.f32 %v1332, %v6663
      %v6665 = vpop.f32.mrb[0].mxu0
      %v6666 = vadd.f32 %v1336, %v6665
      %v6667 = vpop.f32.mrb[0].mxu0
      %v6668 = vadd.f32 %v1332, %v6667
      %v6669 = vpop.f32.mrb[0].mxu0
      %v6670 = vadd.f32 %v1336, %v6669
      %6671 = vdwg.mxu0
      %6672 = vmatprep.subr.bf16.mxu0 %v4646
      %6673 = vmatpush1.bf16.msra.mxu0 %v4645
      %6674 = vmatprep.subr.bf16.mxu0 %v4650
      %6675 = vmatpush1.bf16.msra.mxu0 %v4649
      %6676 = vmatprep.subr.bf16.mxu0 %v4654
      %6677 = vmatpush1.bf16.msra.mxu0 %v4653
      %6678 = vmatprep.subr.bf16.mxu0 %v4658
      %6679 = vmatpush1.bf16.msra.mxu0 %v4657
      %6680 = vmatprep.subr.bf16.mxu0 %v4662
      %6681 = vmatpush1.bf16.msra.mxu0 %v4661
      %6682 = vmatprep.subr.bf16.mxu0 %v4666
      %6683 = vmatpush1.bf16.msra.mxu0 %v4665
      %6684 = vmatprep.subr.bf16.mxu0 %v4670
      %6685 = vmatpush1.bf16.msra.mxu0 %v4669
      %6686 = vmatprep.subr.bf16.mxu0 %v4674
      %6687 = vmatpush1.bf16.msra.mxu0 %v4673
      %6688 = vmatprep.subr.bf16.mxu0 %v4678
      %6689 = vmatpush1.bf16.msra.mxu0 %v4677
      %6690 = vmatprep.subr.bf16.mxu0 %v4682
      %6691 = vmatpush1.bf16.msra.mxu0 %v4681
      %6692 = vmatprep.subr.bf16.mxu0 %v4686
      %6693 = vmatpush1.bf16.msra.mxu0 %v4685
      %6694 = vmatprep.subr.bf16.mxu0 %v4690
      %6695 = vmatpush1.bf16.msra.mxu0 %v4689
      %6696 = vmatprep.subr.bf16.mxu0 %v4694
      %6697 = vmatpush1.bf16.msra.mxu0 %v4693
      %6698 = vmatprep.subr.bf16.mxu0 %v4698
      %6699 = vmatpush1.bf16.msra.mxu0 %v4697
      %6700 = vmatprep.subr.bf16.mxu0 %v4702
      %6701 = vmatpush1.bf16.msra.mxu0 %v4701
      %6702 = vmatprep.subr.bf16.mxu0 %v4706
      %6703 = vmatpush1.bf16.msra.mxu0 %v4705
      %6704 = vmatprep.mubr.bf16.mxu0 %v1448
      %6705 = vmatmul.mubr.bf16.gmra.mrb[0].mxu0 %v1447
      %v6706 = vpop.f32.mrb[0].mxu0
      %v6707 = vadd.f32 %v6664, %v6706
      %v6708 = vpop.f32.mrb[0].mxu0
      %v6709 = vadd.f32 %v6666, %v6708
      %v6710 = vpop.f32.mrb[0].mxu0
      %v6711 = vadd.f32 %v6668, %v6710
      %v6712 = vpop.f32.mrb[0].mxu0
      %v6713 = vadd.f32 %v6670, %v6712
      %6714 = vdwg.mxu0
      %6715 = vmatprep.subr.bf16.mxu0 %v4710
      %6716 = vmatpush1.bf16.msra.mxu0 %v4709
      %6717 = vmatprep.subr.bf16.mxu0 %v4714
      %6718 = vmatpush1.bf16.msra.mxu0 %v4713
      %6719 = vmatprep.subr.bf16.mxu0 %v4718
      %6720 = vmatpush1.bf16.msra.mxu0 %v4717
      %6721 = vmatprep.subr.bf16.mxu0 %v4722
      %6722 = vmatpush1.bf16.msra.mxu0 %v4721
      %6723 = vmatprep.subr.bf16.mxu0 %v4726
      %6724 = vmatpush1.bf16.msra.mxu0 %v4725
      %6725 = vmatprep.subr.bf16.mxu0 %v4730
      %6726 = vmatpush1.bf16.msra.mxu0 %v4729
      %6727 = vmatprep.subr.bf16.mxu0 %v4734
      %6728 = vmatpush1.bf16.msra.mxu0 %v4733
      %6729 = vmatprep.subr.bf16.mxu0 %v4738
      %6730 = vmatpush1.bf16.msra.mxu0 %v4737
      %6731 = vmatprep.subr.bf16.mxu0 %v4742
      %6732 = vmatpush1.bf16.msra.mxu0 %v4741
      %6733 = vmatprep.subr.bf16.mxu0 %v4746
      %6734 = vmatpush1.bf16.msra.mxu0 %v4745
      %6735 = vmatprep.subr.bf16.mxu0 %v4750
      %6736 = vmatpush1.bf16.msra.mxu0 %v4749
      %6737 = vmatprep.subr.bf16.mxu0 %v4754
      %6738 = vmatpush1.bf16.msra.mxu0 %v4753
      %6739 = vmatprep.subr.bf16.mxu0 %v4758
      %6740 = vmatpush1.bf16.msra.mxu0 %v4757
      %6741 = vmatprep.subr.bf16.mxu0 %v4762
      %6742 = vmatpush1.bf16.msra.mxu0 %v4761
      %6743 = vmatprep.subr.bf16.mxu0 %v4766
      %6744 = vmatpush1.bf16.msra.mxu0 %v4765
      %6745 = vmatprep.subr.bf16.mxu0 %v4770
      %6746 = vmatpush1.bf16.msra.mxu0 %v4769
      %6747 = vmatprep.mubr.bf16.mxu0 %v1450
      %6748 = vmatmul.mubr.bf16.gmra.mrb[0].mxu0 %v1449
      %v6749 = vpop.f32.mrb[0].mxu0
      %v6750 = vadd.f32 %v6707, %v6749
      %v6751 = vpop.f32.mrb[0].mxu0
      %v6752 = vadd.f32 %v6709, %v6751
      %v6753 = vpop.f32.mrb[0].mxu0
      %v6754 = vadd.f32 %v6711, %v6753
      %v6755 = vpop.f32.mrb[0].mxu0
      %v6756 = vadd.f32 %v6713, %v6755
      %6757 = vdwg.mxu0
      %6758 = vmatprep.subr.bf16.mxu0 %v4774
      %6759 = vmatpush1.bf16.msra.mxu0 %v4773
      %6760 = vmatprep.subr.bf16.mxu0 %v4778
      %6761 = vmatpush1.bf16.msra.mxu0 %v4777
      %6762 = vmatprep.subr.bf16.mxu0 %v4782
      %6763 = vmatpush1.bf16.msra.mxu0 %v4781
      %6764 = vmatprep.subr.bf16.mxu0 %v4786
      %6765 = vmatpush1.bf16.msra.mxu0 %v4785
      %6766 = vmatprep.subr.bf16.mxu0 %v4790
      %6767 = vmatpush1.bf16.msra.mxu0 %v4789
      %6768 = vmatprep.subr.bf16.mxu0 %v4794
      %6769 = vmatpush1.bf16.msra.mxu0 %v4793
      %6770 = vmatprep.subr.bf16.mxu0 %v4798
      %6771 = vmatpush1.bf16.msra.mxu0 %v4797
      %6772 = vmatprep.subr.bf16.mxu0 %v4802
      %6773 = vmatpush1.bf16.msra.mxu0 %v4801
      %6774 = vmatprep.subr.bf16.mxu0 %v4806
      %6775 = vmatpush1.bf16.msra.mxu0 %v4805
      %6776 = vmatprep.subr.bf16.mxu0 %v4810
      %6777 = vmatpush1.bf16.msra.mxu0 %v4809
      %6778 = vmatprep.subr.bf16.mxu0 %v4814
      %6779 = vmatpush1.bf16.msra.mxu0 %v4813
      %6780 = vmatprep.subr.bf16.mxu0 %v4818
      %6781 = vmatpush1.bf16.msra.mxu0 %v4817
      %6782 = vmatprep.subr.bf16.mxu0 %v4822
      %6783 = vmatpush1.bf16.msra.mxu0 %v4821
      %6784 = vmatprep.subr.bf16.mxu0 %v4826
      %6785 = vmatpush1.bf16.msra.mxu0 %v4825
      %6786 = vmatprep.subr.bf16.mxu0 %v4830
      %6787 = vmatpush1.bf16.msra.mxu0 %v4829
      %6788 = vmatprep.subr.bf16.mxu0 %v4834
      %6789 = vmatpush1.bf16.msra.mxu0 %v4833
      %6790 = vmatprep.mubr.bf16.mxu0 %v1452
      %6791 = vmatmul.mubr.bf16.gmra.mrb[0].mxu0 %v1451
      %v6792 = vpop.f32.mrb[0].mxu0
      %v6793 = vadd.f32 %v6750, %v6792
      %v6794 = vpop.f32.mrb[0].mxu0
      %v6795 = vadd.f32 %v6752, %v6794
      %v6796 = vpop.f32.mrb[0].mxu0
      %v6797 = vadd.f32 %v6754, %v6796
      %v6798 = vpop.f32.mrb[0].mxu0
      %v6799 = vadd.f32 %v6756, %v6798
      %6800 = vdwg.mxu0
      %6801 = vmatprep.subr.bf16.mxu0 %v4838
      %6802 = vmatpush1.bf16.msra.mxu0 %v4837
      %6803 = vmatprep.subr.bf16.mxu0 %v4842
      %6804 = vmatpush1.bf16.msra.mxu0 %v4841
      %6805 = vmatprep.subr.bf16.mxu0 %v4846
      %6806 = vmatpush1.bf16.msra.mxu0 %v4845
      %6807 = vmatprep.subr.bf16.mxu0 %v4850
      %6808 = vmatpush1.bf16.msra.mxu0 %v4849
      %6809 = vmatprep.subr.bf16.mxu0 %v4854
      %6810 = vmatpush1.bf16.msra.mxu0 %v4853
      %6811 = vmatprep.subr.bf16.mxu0 %v4858
      %6812 = vmatpush1.bf16.msra.mxu0 %v4857
      %6813 = vmatprep.subr.bf16.mxu0 %v4862
      %6814 = vmatpush1.bf16.msra.mxu0 %v4861
      %6815 = vmatprep.subr.bf16.mxu0 %v4866
      %6816 = vmatpush1.bf16.msra.mxu0 %v4865
      %6817 = vmatprep.subr.bf16.mxu0 %v4870
      %6818 = vmatpush1.bf16.msra.mxu0 %v4869
      %6819 = vmatprep.subr.bf16.mxu0 %v4874
      %6820 = vmatpush1.bf16.msra.mxu0 %v4873
      %6821 = vmatprep.subr.bf16.mxu0 %v4878
      %6822 = vmatpush1.bf16.msra.mxu0 %v4877
      %6823 = vmatprep.subr.bf16.mxu0 %v4882
      %6824 = vmatpush1.bf16.msra.mxu0 %v4881
      %6825 = vmatprep.subr.bf16.mxu0 %v4886
      %6826 = vmatpush1.bf16.msra.mxu0 %v4885
      %6827 = vmatprep.subr.bf16.mxu0 %v4890
      %6828 = vmatpush1.bf16.msra.mxu0 %v4889
      %6829 = vmatprep.subr.bf16.mxu0 %v4894
      %6830 = vmatpush1.bf16.msra.mxu0 %v4893
      %6831 = vmatprep.subr.bf16.mxu0 %v4898
      %6832 = vmatpush1.bf16.msra.mxu0 %v4897
      %6833 = vmatprep.mubr.bf16.mxu0 %v1454
      %6834 = vmatmul.mubr.bf16.gmra.mrb[0].mxu0 %v1453
      %v6835 = vpop.f32.mrb[0].mxu0
      %v6836 = vadd.f32 %v6793, %v6835
      %v6837 = vpop.f32.mrb[0].mxu0
      %v6838 = vadd.f32 %v6795, %v6837
      %v6839 = vpop.f32.mrb[0].mxu0
      %v6840 = vadd.f32 %v6797, %v6839
      %v6841 = vpop.f32.mrb[0].mxu0
      %v6842 = vadd.f32 %v6799, %v6841
      %6843 = vdwg.mxu0
      %6844 = vmatprep.subr.bf16.mxu0 %v4902
      %6845 = vmatpush1.bf16.msra.mxu0 %v4901
      %6846 = vmatprep.subr.bf16.mxu0 %v4906
      %6847 = vmatpush1.bf16.msra.mxu0 %v4905
      %6848 = vmatprep.subr.bf16.mxu0 %v4910
      %6849 = vmatpush1.bf16.msra.mxu0 %v4909
      %6850 = vmatprep.subr.bf16.mxu0 %v4914
      %6851 = vmatpush1.bf16.msra.mxu0 %v4913
      %6852 = vmatprep.subr.bf16.mxu0 %v4918
      %6853 = vmatpush1.bf16.msra.mxu0 %v4917
      %6854 = vmatprep.subr.bf16.mxu0 %v4922
      %6855 = vmatpush1.bf16.msra.mxu0 %v4921
      %6856 = vmatprep.subr.bf16.mxu0 %v4926
      %6857 = vmatpush1.bf16.msra.mxu0 %v4925
      %6858 = vmatprep.subr.bf16.mxu0 %v4930
      %6859 = vmatpush1.bf16.msra.mxu0 %v4929
      %6860 = vmatprep.subr.bf16.mxu0 %v4934
      %6861 = vmatpush1.bf16.msra.mxu0 %v4933
      %6862 = vmatprep.subr.bf16.mxu0 %v4938
      %6863 = vmatpush1.bf16.msra.mxu0 %v4937
      %6864 = vmatprep.subr.bf16.mxu0 %v4942
      %6865 = vmatpush1.bf16.msra.mxu0 %v4941
      %6866 = vmatprep.subr.bf16.mxu0 %v4946
      %6867 = vmatpush1.bf16.msra.mxu0 %v4945
      %6868 = vmatprep.subr.bf16.mxu0 %v4950
      %6869 = vmatpush1.bf16.msra.mxu0 %v4949
      %6870 = vmatprep.subr.bf16.mxu0 %v4954
      %6871 = vmatpush1.bf16.msra.mxu0 %v4953
      %6872 = vmatprep.subr.bf16.mxu0 %v4958
      %6873 = vmatpush1.bf16.msra.mxu0 %v4957
      %6874 = vmatprep.subr.bf16.mxu0 %v4962
      %6875 = vmatpush1.bf16.msra.mxu0 %v4961
      %6876 = vmatprep.mubr.bf16.mxu0 %v1456
      %6877 = vmatmul.mubr.bf16.gmra.mrb[0].mxu0 %v1455
      %v6878 = vpop.f32.mrb[0].mxu0
      %v6879 = vadd.f32 %v6836, %v6878
      %v6880 = vpop.f32.mrb[0].mxu0
      %v6881 = vadd.f32 %v6838, %v6880
      %v6882 = vpop.f32.mrb[0].mxu0
      %v6883 = vadd.f32 %v6840, %v6882
      %v6884 = vpop.f32.mrb[0].mxu0
      %v6885 = vadd.f32 %v6842, %v6884
      %6886 = vdwg.mxu0
      %6887 = vmatprep.subr.bf16.mxu0 %v4966
      %6888 = vmatpush1.bf16.msra.mxu0 %v4965
      %6889 = vmatprep.subr.bf16.mxu0 %v4970
      %6890 = vmatpush1.bf16.msra.mxu0 %v4969
      %6891 = vmatprep.subr.bf16.mxu0 %v4974
      %6892 = vmatpush1.bf16.msra.mxu0 %v4973
      %6893 = vmatprep.subr.bf16.mxu0 %v4978
      %6894 = vmatpush1.bf16.msra.mxu0 %v4977
      %6895 = vmatprep.subr.bf16.mxu0 %v4982
      %6896 = vmatpush1.bf16.msra.mxu0 %v4981
      %6897 = vmatprep.subr.bf16.mxu0 %v4986
      %6898 = vmatpush1.bf16.msra.mxu0 %v4985
      %6899 = vmatprep.subr.bf16.mxu0 %v4990
      %6900 = vmatpush1.bf16.msra.mxu0 %v4989
      %6901 = vmatprep.subr.bf16.mxu0 %v4994
      %6902 = vmatpush1.bf16.msra.mxu0 %v4993
      %6903 = vmatprep.subr.bf16.mxu0 %v4998
      %6904 = vmatpush1.bf16.msra.mxu0 %v4997
      %6905 = vmatprep.subr.bf16.mxu0 %v5002
      %6906 = vmatpush1.bf16.msra.mxu0 %v5001
      %6907 = vmatprep.subr.bf16.mxu0 %v5006
      %6908 = vmatpush1.bf16.msra.mxu0 %v5005
      %6909 = vmatprep.subr.bf16.mxu0 %v5010
      %6910 = vmatpush1.bf16.msra.mxu0 %v5009
      %6911 = vmatprep.subr.bf16.mxu0 %v5014
      %6912 = vmatpush1.bf16.msra.mxu0 %v5013
      %6913 = vmatprep.subr.bf16.mxu0 %v5018
      %6914 = vmatpush1.bf16.msra.mxu0 %v5017
      %6915 = vmatprep.subr.bf16.mxu0 %v5022
      %6916 = vmatpush1.bf16.msra.mxu0 %v5021
      %6917 = vmatprep.subr.bf16.mxu0 %v5026
      %6918 = vmatpush1.bf16.msra.mxu0 %v5025
      %6919 = vmatprep.mubr.bf16.mxu0 %v1458
      %6920 = vmatmul.mubr.bf16.gmra.mrb[0].mxu0 %v1457
      %v6921 = vpop.f32.mrb[0].mxu0
      %v6922 = vadd.f32 %v6879, %v6921
      %v6923 = vpop.f32.mrb[0].mxu0
      %v6924 = vadd.f32 %v6881, %v6923
      %v6925 = vpop.f32.mrb[0].mxu0
      %v6926 = vadd.f32 %v6883, %v6925
      %v6927 = vpop.f32.mrb[0].mxu0
      %v6928 = vadd.f32 %v6885, %v6927
      %6929 = vdwg.mxu0
      %6930 = vmatprep.subr.bf16.mxu0 %v5030
      %6931 = vmatpush1.bf16.msra.mxu0 %v5029
      %6932 = vmatprep.subr.bf16.mxu0 %v5034
      %6933 = vmatpush1.bf16.msra.mxu0 %v5033
      %6934 = vmatprep.subr.bf16.mxu0 %v5038
      %6935 = vmatpush1.bf16.msra.mxu0 %v5037
      %6936 = vmatprep.subr.bf16.mxu0 %v5042
      %6937 = vmatpush1.bf16.msra.mxu0 %v5041
      %6938 = vmatprep.subr.bf16.mxu0 %v5046
      %6939 = vmatpush1.bf16.msra.mxu0 %v5045
      %6940 = vmatprep.subr.bf16.mxu0 %v5050
      %6941 = vmatpush1.bf16.msra.mxu0 %v5049
      %6942 = vmatprep.subr.bf16.mxu0 %v5054
      %6943 = vmatpush1.bf16.msra.mxu0 %v5053
      %6944 = vmatprep.subr.bf16.mxu0 %v5058
      %6945 = vmatpush1.bf16.msra.mxu0 %v5057
      %6946 = vmatprep.subr.bf16.mxu0 %v5062
      %6947 = vmatpush1.bf16.msra.mxu0 %v5061
      %6948 = vmatprep.subr.bf16.mxu0 %v5066
      %6949 = vmatpush1.bf16.msra.mxu0 %v5065
      %6950 = vmatprep.subr.bf16.mxu0 %v5070
      %6951 = vmatpush1.bf16.msra.mxu0 %v5069
      %6952 = vmatprep.subr.bf16.mxu0 %v5074
      %6953 = vmatpush1.bf16.msra.mxu0 %v5073
      %6954 = vmatprep.subr.bf16.mxu0 %v5078
      %6955 = vmatpush1.bf16.msra.mxu0 %v5077
      %6956 = vmatprep.subr.bf16.mxu0 %v5082
      %6957 = vmatpush1.bf16.msra.mxu0 %v5081
      %6958 = vmatprep.subr.bf16.mxu0 %v5086
      %6959 = vmatpush1.bf16.msra.mxu0 %v5085
      %6960 = vmatprep.subr.bf16.mxu0 %v5090
      %6961 = vmatpush1.bf16.msra.mxu0 %v5089
      %6962 = vmatprep.mubr.bf16.mxu0 %v1460
      %6963 = vmatmul.mubr.bf16.gmra.mrb[0].mxu0 %v1459
      %v6964 = vpop.f32.mrb[0].mxu0
      %v6965 = vadd.f32 %v6922, %v6964
      %v6966 = vpop.f32.mrb[0].mxu0
      %v6967 = vadd.f32 %v6924, %v6966
      %v6968 = vpop.f32.mrb[0].mxu0
      %v6969 = vadd.f32 %v6926, %v6968
      %v6970 = vpop.f32.mrb[0].mxu0
      %v6971 = vadd.f32 %v6928, %v6970
      %6972 = vdwg.mxu0
      %6973 = vmatprep.subr.bf16.mxu0 %v5094
      %6974 = vmatpush1.bf16.msra.mxu0 %v5093
      %6975 = vmatprep.subr.bf16.mxu0 %v5098
      %6976 = vmatpush1.bf16.msra.mxu0 %v5097
      %6977 = vmatprep.subr.bf16.mxu0 %v5102
      %6978 = vmatpush1.bf16.msra.mxu0 %v5101
      %6979 = vmatprep.subr.bf16.mxu0 %v5106
      %6980 = vmatpush1.bf16.msra.mxu0 %v5105
      %6981 = vmatprep.subr.bf16.mxu0 %v5110
      %6982 = vmatpush1.bf16.msra.mxu0 %v5109
      %6983 = vmatprep.subr.bf16.mxu0 %v5114
      %6984 = vmatpush1.bf16.msra.mxu0 %v5113
      %6985 = vmatprep.subr.bf16.mxu0 %v5118
      %6986 = vmatpush1.bf16.msra.mxu0 %v5117
      %6987 = vmatprep.subr.bf16.mxu0 %v5122
      %6988 = vmatpush1.bf16.msra.mxu0 %v5121
      %6989 = vmatprep.subr.bf16.mxu0 %v5126
      %6990 = vmatpush1.bf16.msra.mxu0 %v5125
      %6991 = vmatprep.subr.bf16.mxu0 %v5130
      %6992 = vmatpush1.bf16.msra.mxu0 %v5129
      %6993 = vmatprep.subr.bf16.mxu0 %v5134
      %6994 = vmatpush1.bf16.msra.mxu0 %v5133
      %6995 = vmatprep.subr.bf16.mxu0 %v5138
      %6996 = vmatpush1.bf16.msra.mxu0 %v5137
      %6997 = vmatprep.subr.bf16.mxu0 %v5142
      %6998 = vmatpush1.bf16.msra.mxu0 %v5141
      %6999 = vmatprep.subr.bf16.mxu0 %v5146
      %7000 = vmatpush1.bf16.msra.mxu0 %v5145
      %7001 = vmatprep.subr.bf16.mxu0 %v5150
      %7002 = vmatpush1.bf16.msra.mxu0 %v5149
      %7003 = vmatprep.subr.bf16.mxu0 %v5154
      %7004 = vmatpush1.bf16.msra.mxu0 %v5153
      %7005 = vmatprep.mubr.bf16.mxu0 %v1462
      %7006 = vmatmul.mubr.bf16.gmra.mrb[0].mxu0 %v1461
      %v7007 = vpop.f32.mrb[0].mxu0
      %v7008 = vadd.f32 %v6965, %v7007
      %v7009 = vpop.f32.mrb[0].mxu0
      %v7010 = vadd.f32 %v6967, %v7009
      %v7011 = vpop.f32.mrb[0].mxu0
      %v7012 = vadd.f32 %v6969, %v7011
      %v7013 = vpop.f32.mrb[0].mxu0
      %v7014 = vadd.f32 %v6971, %v7013
      %7015 = vdwg.mxu0
      %7016 = vmatprep.subr.bf16.mxu0 %v5158
      %7017 = vmatpush1.bf16.msra.mxu0 %v5157
      %7018 = vmatprep.subr.bf16.mxu0 %v5162
      %7019 = vmatpush1.bf16.msra.mxu0 %v5161
      %7020 = vmatprep.subr.bf16.mxu0 %v5166
      %7021 = vmatpush1.bf16.msra.mxu0 %v5165
      %7022 = vmatprep.subr.bf16.mxu0 %v5170
      %7023 = vmatpush1.bf16.msra.mxu0 %v5169
      %7024 = vmatprep.subr.bf16.mxu0 %v5174
      %7025 = vmatpush1.bf16.msra.mxu0 %v5173
      %7026 = vmatprep.subr.bf16.mxu0 %v5178
      %7027 = vmatpush1.bf16.msra.mxu0 %v5177
      %7028 = vmatprep.subr.bf16.mxu0 %v5182
      %7029 = vmatpush1.bf16.msra.mxu0 %v5181
      %7030 = vmatprep.subr.bf16.mxu0 %v5186
      %7031 = vmatpush1.bf16.msra.mxu0 %v5185
      %7032 = vmatprep.subr.bf16.mxu0 %v5190
      %7033 = vmatpush1.bf16.msra.mxu0 %v5189
      %7034 = vmatprep.subr.bf16.mxu0 %v5194
      %7035 = vmatpush1.bf16.msra.mxu0 %v5193
      %7036 = vmatprep.subr.bf16.mxu0 %v5198
      %7037 = vmatpush1.bf16.msra.mxu0 %v5197
      %7038 = vmatprep.subr.bf16.mxu0 %v5202
      %7039 = vmatpush1.bf16.msra.mxu0 %v5201
      %7040 = vmatprep.subr.bf16.mxu0 %v5206
      %7041 = vmatpush1.bf16.msra.mxu0 %v5205
      %7042 = vmatprep.subr.bf16.mxu0 %v5210
      %7043 = vmatpush1.bf16.msra.mxu0 %v5209
      %7044 = vmatprep.subr.bf16.mxu0 %v5214
      %7045 = vmatpush1.bf16.msra.mxu0 %v5213
      %7046 = vmatprep.subr.bf16.mxu0 %v5218
      %7047 = vmatpush1.bf16.msra.mxu0 %v5217
      %7048 = vmatprep.mubr.bf16.mxu0 %v1464
      %7049 = vmatmul.mubr.bf16.gmra.mrb[0].mxu0 %v1463
      %v7050 = vpop.f32.mrb[0].mxu0
      %v7051 = vadd.f32 %v7008, %v7050
      %v7052 = vpop.f32.mrb[0].mxu0
      %v7053 = vadd.f32 %v7010, %v7052
      %v7054 = vpop.f32.mrb[0].mxu0
      %v7055 = vadd.f32 %v7012, %v7054
      %v7056 = vpop.f32.mrb[0].mxu0
      %v7057 = vadd.f32 %v7014, %v7056
      %7058 = vdwg.mxu0
      %7059 = vmatprep.subr.bf16.mxu0 %v5222
      %7060 = vmatpush1.bf16.msra.mxu0 %v5221
      %7061 = vmatprep.subr.bf16.mxu0 %v5226
      %7062 = vmatpush1.bf16.msra.mxu0 %v5225
      %7063 = vmatprep.subr.bf16.mxu0 %v5230
      %7064 = vmatpush1.bf16.msra.mxu0 %v5229
      %7065 = vmatprep.subr.bf16.mxu0 %v5234
      %7066 = vmatpush1.bf16.msra.mxu0 %v5233
      %7067 = vmatprep.subr.bf16.mxu0 %v5238
      %7068 = vmatpush1.bf16.msra.mxu0 %v5237
      %7069 = vmatprep.subr.bf16.mxu0 %v5242
      %7070 = vmatpush1.bf16.msra.mxu0 %v5241
      %7071 = vmatprep.subr.bf16.mxu0 %v5246
      %7072 = vmatpush1.bf16.msra.mxu0 %v5245
      %7073 = vmatprep.subr.bf16.mxu0 %v5250
      %7074 = vmatpush1.bf16.msra.mxu0 %v5249
      %7075 = vmatprep.subr.bf16.mxu0 %v5254
      %7076 = vmatpush1.bf16.msra.mxu0 %v5253
      %7077 = vmatprep.subr.bf16.mxu0 %v5258
      %7078 = vmatpush1.bf16.msra.mxu0 %v5257
      %7079 = vmatprep.subr.bf16.mxu0 %v5262
      %7080 = vmatpush1.bf16.msra.mxu0 %v5261
      %7081 = vmatprep.subr.bf16.mxu0 %v5266
      %7082 = vmatpush1.bf16.msra.mxu0 %v5265
      %7083 = vmatprep.subr.bf16.mxu0 %v5270
      %7084 = vmatpush1.bf16.msra.mxu0 %v5269
      %7085 = vmatprep.subr.bf16.mxu0 %v5274
      %7086 = vmatpush1.bf16.msra.mxu0 %v5273
      %7087 = vmatprep.subr.bf16.mxu0 %v5278
      %7088 = vmatpush1.bf16.msra.mxu0 %v5277
      %7089 = vmatprep.subr.bf16.mxu0 %v5282
      %7090 = vmatpush1.bf16.msra.mxu0 %v5281
      %7091 = vmatprep.mubr.bf16.mxu0 %v1466
      %7092 = vmatmul.mubr.bf16.gmra.mrb[0].mxu0 %v1465
      %v7093 = vpop.f32.mrb[0].mxu0
      %v7094 = vadd.f32 %v7051, %v7093
      %v7095 = vpop.f32.mrb[0].mxu0
      %v7096 = vadd.f32 %v7053, %v7095
      %v7097 = vpop.f32.mrb[0].mxu0
      %v7098 = vadd.f32 %v7055, %v7097
      %v7099 = vpop.f32.mrb[0].mxu0
      %v7100 = vadd.f32 %v7057, %v7099
      %7101 = vdwg.mxu0
      %7102 = vmatprep.subr.bf16.mxu0 %v5286
      %7103 = vmatpush1.bf16.msra.mxu0 %v5285
      %7104 = vmatprep.subr.bf16.mxu0 %v5290
      %7105 = vmatpush1.bf16.msra.mxu0 %v5289
      %7106 = vmatprep.subr.bf16.mxu0 %v5294
      %7107 = vmatpush1.bf16.msra.mxu0 %v5293
      %7108 = vmatprep.subr.bf16.mxu0 %v5298
      %7109 = vmatpush1.bf16.msra.mxu0 %v5297
      %7110 = vmatprep.subr.bf16.mxu0 %v5302
      %7111 = vmatpush1.bf16.msra.mxu0 %v5301
      %7112 = vmatprep.subr.bf16.mxu0 %v5306
      %7113 = vmatpush1.bf16.msra.mxu0 %v5305
      %7114 = vmatprep.subr.bf16.mxu0 %v5310
      %7115 = vmatpush1.bf16.msra.mxu0 %v5309
      %7116 = vmatprep.subr.bf16.mxu0 %v5314
      %7117 = vmatpush1.bf16.msra.mxu0 %v5313
      %7118 = vmatprep.subr.bf16.mxu0 %v5318
      %7119 = vmatpush1.bf16.msra.mxu0 %v5317
      %7120 = vmatprep.subr.bf16.mxu0 %v5322
      %7121 = vmatpush1.bf16.msra.mxu0 %v5321
      %7122 = vmatprep.subr.bf16.mxu0 %v5326
      %7123 = vmatpush1.bf16.msra.mxu0 %v5325
      %7124 = vmatprep.subr.bf16.mxu0 %v5330
      %7125 = vmatpush1.bf16.msra.mxu0 %v5329
      %7126 = vmatprep.subr.bf16.mxu0 %v5334
      %7127 = vmatpush1.bf16.msra.mxu0 %v5333
      %7128 = vmatprep.subr.bf16.mxu0 %v5338
      %7129 = vmatpush1.bf16.msra.mxu0 %v5337
      %7130 = vmatprep.subr.bf16.mxu0 %v5342
      %7131 = vmatpush1.bf16.msra.mxu0 %v5341
      %7132 = vmatprep.subr.bf16.mxu0 %v5346
      %7133 = vmatpush1.bf16.msra.mxu0 %v5345
      %7134 = vmatprep.mubr.bf16.mxu0 %v1468
      %7135 = vmatmul.mubr.bf16.gmra.mrb[0].mxu0 %v1467
      %v7136 = vpop.f32.mrb[0].mxu0
      %v7137 = vadd.f32 %v7094, %v7136
      %v7138 = vpop.f32.mrb[0].mxu0
      %v7139 = vadd.f32 %v7096, %v7138
      %v7140 = vpop.f32.mrb[0].mxu0
      %v7141 = vadd.f32 %v7098, %v7140
      %v7142 = vpop.f32.mrb[0].mxu0
      %v7143 = vadd.f32 %v7100, %v7142
      %7144 = vdwg.mxu0
      %7145 = vmatprep.subr.bf16.mxu0 %v5350
      %7146 = vmatpush1.bf16.msra.mxu0 %v5349
      %7147 = vmatprep.subr.bf16.mxu0 %v5354
      %7148 = vmatpush1.bf16.msra.mxu0 %v5353
      %7149 = vmatprep.subr.bf16.mxu0 %v5358
      %7150 = vmatpush1.bf16.msra.mxu0 %v5357
      %7151 = vmatprep.subr.bf16.mxu0 %v5362
      %7152 = vmatpush1.bf16.msra.mxu0 %v5361
      %7153 = vmatprep.subr.bf16.mxu0 %v5366
      %7154 = vmatpush1.bf16.msra.mxu0 %v5365
      %7155 = vmatprep.subr.bf16.mxu0 %v5370
      %7156 = vmatpush1.bf16.msra.mxu0 %v5369
      %7157 = vmatprep.subr.bf16.mxu0 %v5374
      %7158 = vmatpush1.bf16.msra.mxu0 %v5373
      %7159 = vmatprep.subr.bf16.mxu0 %v5378
      %7160 = vmatpush1.bf16.msra.mxu0 %v5377
      %7161 = vmatprep.subr.bf16.mxu0 %v5382
      %7162 = vmatpush1.bf16.msra.mxu0 %v5381
      %7163 = vmatprep.subr.bf16.mxu0 %v5386
      %7164 = vmatpush1.bf16.msra.mxu0 %v5385
      %7165 = vmatprep.subr.bf16.mxu0 %v5390
      %7166 = vmatpush1.bf16.msra.mxu0 %v5389
      %7167 = vmatprep.subr.bf16.mxu0 %v5394
      %7168 = vmatpush1.bf16.msra.mxu0 %v5393
      %7169 = vmatprep.subr.bf16.mxu0 %v5398
      %7170 = vmatpush1.bf16.msra.mxu0 %v5397
      %7171 = vmatprep.subr.bf16.mxu0 %v5402
      %7172 = vmatpush1.bf16.msra.mxu0 %v5401
      %7173 = vmatprep.subr.bf16.mxu0 %v5406
      %7174 = vmatpush1.bf16.msra.mxu0 %v5405
      %7175 = vmatprep.subr.bf16.mxu0 %v5410
      %7176 = vmatpush1.bf16.msra.mxu0 %v5409
      %7177 = vmatprep.mubr.bf16.mxu0 %v1470
      %7178 = vmatmul.mubr.bf16.gmra.mrb[0].mxu0 %v1469
      %v7179 = vpop.f32.mrb[0].mxu0
      %v7180 = vadd.f32 %v7137, %v7179
      %v7181 = vpop.f32.mrb[0].mxu0
      %v7182 = vadd.f32 %v7139, %v7181
      %v7183 = vpop.f32.mrb[0].mxu0
      %v7184 = vadd.f32 %v7141, %v7183
      %v7185 = vpop.f32.mrb[0].mxu0
      %v7186 = vadd.f32 %v7143, %v7185
      %7187 = vdwg.mxu0
      %7188 = vmatprep.subr.bf16.mxu0 %v5414
      %7189 = vmatpush1.bf16.msra.mxu0 %v5413
      %7190 = vmatprep.subr.bf16.mxu0 %v5418
      %7191 = vmatpush1.bf16.msra.mxu0 %v5417
      %7192 = vmatprep.subr.bf16.mxu0 %v5422
      %7193 = vmatpush1.bf16.msra.mxu0 %v5421
      %7194 = vmatprep.subr.bf16.mxu0 %v5426
      %7195 = vmatpush1.bf16.msra.mxu0 %v5425
      %7196 = vmatprep.subr.bf16.mxu0 %v5430
      %7197 = vmatpush1.bf16.msra.mxu0 %v5429
      %7198 = vmatprep.subr.bf16.mxu0 %v5434
      %7199 = vmatpush1.bf16.msra.mxu0 %v5433
      %7200 = vmatprep.subr.bf16.mxu0 %v5438
      %7201 = vmatpush1.bf16.msra.mxu0 %v5437
      %7202 = vmatprep.subr.bf16.mxu0 %v5442
      %7203 = vmatpush1.bf16.msra.mxu0 %v5441
      %7204 = vmatprep.subr.bf16.mxu0 %v5446
      %7205 = vmatpush1.bf16.msra.mxu0 %v5445
      %7206 = vmatprep.subr.bf16.mxu0 %v5450
      %7207 = vmatpush1.bf16.msra.mxu0 %v5449
      %7208 = vmatprep.subr.bf16.mxu0 %v5454
      %7209 = vmatpush1.bf16.msra.mxu0 %v5453
      %7210 = vmatprep.subr.bf16.mxu0 %v5458
      %7211 = vmatpush1.bf16.msra.mxu0 %v5457
      %7212 = vmatprep.subr.bf16.mxu0 %v5462
      %7213 = vmatpush1.bf16.msra.mxu0 %v5461
      %7214 = vmatprep.subr.bf16.mxu0 %v5466
      %7215 = vmatpush1.bf16.msra.mxu0 %v5465
      %7216 = vmatprep.subr.bf16.mxu0 %v5470
      %7217 = vmatpush1.bf16.msra.mxu0 %v5469
      %7218 = vmatprep.subr.bf16.mxu0 %v5474
      %7219 = vmatpush1.bf16.msra.mxu0 %v5473
      %7220 = vmatprep.mubr.bf16.mxu0 %v1472
      %7221 = vmatmul.mubr.bf16.gmra.mrb[0].mxu0 %v1471
      %v7222 = vpop.f32.mrb[0].mxu0
      %v7223 = vadd.f32 %v7180, %v7222
      %v7224 = vpop.f32.mrb[0].mxu0
      %v7225 = vadd.f32 %v7182, %v7224
      %v7226 = vpop.f32.mrb[0].mxu0
      %v7227 = vadd.f32 %v7184, %v7226
      %v7228 = vpop.f32.mrb[0].mxu0
      %v7229 = vadd.f32 %v7186, %v7228
      %7230 = vdwg.mxu0
      %7231 = vmatprep.subr.bf16.mxu0 %v5478
      %7232 = vmatpush1.bf16.msra.mxu0 %v5477
      %7233 = vmatprep.subr.bf16.mxu0 %v5482
      %7234 = vmatpush1.bf16.msra.mxu0 %v5481
      %7235 = vmatprep.subr.bf16.mxu0 %v5486
      %7236 = vmatpush1.bf16.msra.mxu0 %v5485
      %7237 = vmatprep.subr.bf16.mxu0 %v5490
      %7238 = vmatpush1.bf16.msra.mxu0 %v5489
      %7239 = vmatprep.subr.bf16.mxu0 %v5494
      %7240 = vmatpush1.bf16.msra.mxu0 %v5493
      %7241 = vmatprep.subr.bf16.mxu0 %v5498
      %7242 = vmatpush1.bf16.msra.mxu0 %v5497
      %7243 = vmatprep.subr.bf16.mxu0 %v5502
      %7244 = vmatpush1.bf16.msra.mxu0 %v5501
      %7245 = vmatprep.subr.bf16.mxu0 %v5506
      %7246 = vmatpush1.bf16.msra.mxu0 %v5505
      %7247 = vmatprep.subr.bf16.mxu0 %v5510
      %7248 = vmatpush1.bf16.msra.mxu0 %v5509
      %7249 = vmatprep.subr.bf16.mxu0 %v5514
      %7250 = vmatpush1.bf16.msra.mxu0 %v5513
      %7251 = vmatprep.subr.bf16.mxu0 %v5518
      %7252 = vmatpush1.bf16.msra.mxu0 %v5517
      %7253 = vmatprep.subr.bf16.mxu0 %v5522
      %7254 = vmatpush1.bf16.msra.mxu0 %v5521
      %7255 = vmatprep.subr.bf16.mxu0 %v5526
      %7256 = vmatpush1.bf16.msra.mxu0 %v5525
      %7257 = vmatprep.subr.bf16.mxu0 %v5530
      %7258 = vmatpush1.bf16.msra.mxu0 %v5529
      %7259 = vmatprep.subr.bf16.mxu0 %v5534
      %7260 = vmatpush1.bf16.msra.mxu0 %v5533
      %7261 = vmatprep.subr.bf16.mxu0 %v5538
      %7262 = vmatpush1.bf16.msra.mxu0 %v5537
      %7263 = vmatprep.mubr.bf16.mxu0 %v1474
      %7264 = vmatmul.mubr.bf16.gmra.mrb[0].mxu0 %v1473
      %v7265 = vpop.f32.mrb[0].mxu0
      %v7266 = vadd.f32 %v7223, %v7265
      %v7267 = vpop.f32.mrb[0].mxu0
      %v7268 = vadd.f32 %v7225, %v7267
      %v7269 = vpop.f32.mrb[0].mxu0
      %v7270 = vadd.f32 %v7227, %v7269
      %v7271 = vpop.f32.mrb[0].mxu0
      %v7272 = vadd.f32 %v7229, %v7271
      %7273 = vdwg.mxu0
      %7274 = vmatprep.subr.bf16.mxu0 %v5542
      %7275 = vmatpush1.bf16.msra.mxu0 %v5541
      %7276 = vmatprep.subr.bf16.mxu0 %v5546
      %7277 = vmatpush1.bf16.msra.mxu0 %v5545
      %7278 = vmatprep.subr.bf16.mxu0 %v5550
      %7279 = vmatpush1.bf16.msra.mxu0 %v5549
      %7280 = vmatprep.subr.bf16.mxu0 %v5554
      %7281 = vmatpush1.bf16.msra.mxu0 %v5553
      %7282 = vmatprep.subr.bf16.mxu0 %v5558
      %7283 = vmatpush1.bf16.msra.mxu0 %v5557
      %7284 = vmatprep.subr.bf16.mxu0 %v5562
      %7285 = vmatpush1.bf16.msra.mxu0 %v5561
      %7286 = vmatprep.subr.bf16.mxu0 %v5566
      %7287 = vmatpush1.bf16.msra.mxu0 %v5565
      %7288 = vmatprep.subr.bf16.mxu0 %v5570
      %7289 = vmatpush1.bf16.msra.mxu0 %v5569
      %7290 = vmatprep.subr.bf16.mxu0 %v5574
      %7291 = vmatpush1.bf16.msra.mxu0 %v5573
      %7292 = vmatprep.subr.bf16.mxu0 %v5578
      %7293 = vmatpush1.bf16.msra.mxu0 %v5577
      %7294 = vmatprep.subr.bf16.mxu0 %v5582
      %7295 = vmatpush1.bf16.msra.mxu0 %v5581
      %7296 = vmatprep.subr.bf16.mxu0 %v5586
      %7297 = vmatpush1.bf16.msra.mxu0 %v5585
      %7298 = vmatprep.subr.bf16.mxu0 %v5590
      %7299 = vmatpush1.bf16.msra.mxu0 %v5589
      %7300 = vmatprep.subr.bf16.mxu0 %v5594
      %7301 = vmatpush1.bf16.msra.mxu0 %v5593
      %7302 = vmatprep.subr.bf16.mxu0 %v5598
      %7303 = vmatpush1.bf16.msra.mxu0 %v5597
      %7304 = vmatprep.subr.bf16.mxu0 %v5602
      %7305 = vmatpush1.bf16.msra.mxu0 %v5601
      %7306 = vmatprep.mubr.bf16.mxu0 %v1476
      %7307 = vmatmul.mubr.bf16.gmra.mrb[0].mxu0 %v1475
      %v7308 = vpop.f32.mrb[0].mxu0
      %v7309 = vadd.f32 %v7266, %v7308
      %v7310 = vpop.f32.mrb[0].mxu0
      %v7311 = vadd.f32 %v7268, %v7310
      %v7312 = vpop.f32.mrb[0].mxu0
      %v7313 = vadd.f32 %v7270, %v7312
      %v7314 = vpop.f32.mrb[0].mxu0
      %v7315 = vadd.f32 %v7272, %v7314
      %7316 = vdwg.mxu0
      %7317 = vmatprep.subr.bf16.mxu0 %v4584
      %7318 = vmatpush1.bf16.msra.mxu0 %v4583
      %7319 = vmatprep.subr.bf16.mxu0 %v4588
      %7320 = vmatpush1.bf16.msra.mxu0 %v4587
      %7321 = vmatprep.subr.bf16.mxu0 %v4592
      %7322 = vmatpush1.bf16.msra.mxu0 %v4591
      %7323 = vmatprep.subr.bf16.mxu0 %v4596
      %7324 = vmatpush1.bf16.msra.mxu0 %v4595
      %7325 = vmatprep.subr.bf16.mxu0 %v4600
      %7326 = vmatpush1.bf16.msra.mxu0 %v4599
      %7327 = vmatprep.subr.bf16.mxu0 %v4604
      %7328 = vmatpush1.bf16.msra.mxu0 %v4603
      %7329 = vmatprep.subr.bf16.mxu0 %v4608
      %7330 = vmatpush1.bf16.msra.mxu0 %v4607
      %7331 = vmatprep.subr.bf16.mxu0 %v4612
      %7332 = vmatpush1.bf16.msra.mxu0 %v4611
      %7333 = vmatprep.subr.bf16.mxu0 %v4616
      %7334 = vmatpush1.bf16.msra.mxu0 %v4615
      %7335 = vmatprep.subr.bf16.mxu0 %v4620
      %7336 = vmatpush1.bf16.msra.mxu0 %v4619
      %7337 = vmatprep.subr.bf16.mxu0 %v4624
      %7338 = vmatpush1.bf16.msra.mxu0 %v4623
      %7339 = vmatprep.subr.bf16.mxu0 %v4628
      %7340 = vmatpush1.bf16.msra.mxu0 %v4627
      %7341 = vmatprep.subr.bf16.mxu0 %v4632
      %7342 = vmatpush1.bf16.msra.mxu0 %v4631
      %7343 = vmatprep.subr.bf16.mxu0 %v4636
      %7344 = vmatpush1.bf16.msra.mxu0 %v4635
      %7345 = vmatprep.subr.bf16.mxu0 %v4640
      %7346 = vmatpush1.bf16.msra.mxu0 %v4639
      %7347 = vmatprep.subr.bf16.mxu0 %v4644
      %7348 = vmatpush1.bf16.msra.mxu0 %v4643
      %7349 = vmatprep.mubr.bf16.mxu0 %v1446
      %7350 = vmatmul.mubr.bf16.gmra.mrb[0].mxu0 %v1445
      %v7351 = vpop.f32.mrb[0].mxu0
      %v7352 = vadd.f32 %v1340, %v7351
      %v7353 = vpop.f32.mrb[0].mxu0
      %v7354 = vadd.f32 %v1344, %v7353
      %v7355 = vpop.f32.mrb[0].mxu0
      %v7356 = vadd.f32 %v1340, %v7355
      %v7357 = vpop.f32.mrb[0].mxu0
      %v7358 = vadd.f32 %v1344, %v7357
      %7359 = vdwg.mxu0
      %7360 = vmatprep.subr.bf16.mxu0 %v4648
      %7361 = vmatpush1.bf16.msra.mxu0 %v4647
      %7362 = vmatprep.subr.bf16.mxu0 %v4652
      %7363 = vmatpush1.bf16.msra.mxu0 %v4651
      %7364 = vmatprep.subr.bf16.mxu0 %v4656
      %7365 = vmatpush1.bf16.msra.mxu0 %v4655
      %7366 = vmatprep.subr.bf16.mxu0 %v4660
      %7367 = vmatpush1.bf16.msra.mxu0 %v4659
      %7368 = vmatprep.subr.bf16.mxu0 %v4664
      %7369 = vmatpush1.bf16.msra.mxu0 %v4663
      %7370 = vmatprep.subr.bf16.mxu0 %v4668
      %7371 = vmatpush1.bf16.msra.mxu0 %v4667
      %7372 = vmatprep.subr.bf16.mxu0 %v4672
      %7373 = vmatpush1.bf16.msra.mxu0 %v4671
      %7374 = vmatprep.subr.bf16.mxu0 %v4676
      %7375 = vmatpush1.bf16.msra.mxu0 %v4675
      %7376 = vmatprep.subr.bf16.mxu0 %v4680
      %7377 = vmatpush1.bf16.msra.mxu0 %v4679
      %7378 = vmatprep.subr.bf16.mxu0 %v4684
      %7379 = vmatpush1.bf16.msra.mxu0 %v4683
      %7380 = vmatprep.subr.bf16.mxu0 %v4688
      %7381 = vmatpush1.bf16.msra.mxu0 %v4687
      %7382 = vmatprep.subr.bf16.mxu0 %v4692
      %7383 = vmatpush1.bf16.msra.mxu0 %v4691
      %7384 = vmatprep.subr.bf16.mxu0 %v4696
      %7385 = vmatpush1.bf16.msra.mxu0 %v4695
      %7386 = vmatprep.subr.bf16.mxu0 %v4700
      %7387 = vmatpush1.bf16.msra.mxu0 %v4699
      %7388 = vmatprep.subr.bf16.mxu0 %v4704
      %7389 = vmatpush1.bf16.msra.mxu0 %v4703
      %7390 = vmatprep.subr.bf16.mxu0 %v4708
      %7391 = vmatpush1.bf16.msra.mxu0 %v4707
      %7392 = vmatprep.mubr.bf16.mxu0 %v1448
      %7393 = vmatmul.mubr.bf16.gmra.mrb[0].mxu0 %v1447
      %v7394 = vpop.f32.mrb[0].mxu0
      %v7395 = vadd.f32 %v7352, %v7394
      %v7396 = vpop.f32.mrb[0].mxu0
      %v7397 = vadd.f32 %v7354, %v7396
      %v7398 = vpop.f32.mrb[0].mxu0
      %v7399 = vadd.f32 %v7356, %v7398
      %v7400 = vpop.f32.mrb[0].mxu0
      %v7401 = vadd.f32 %v7358, %v7400
      %7402 = vdwg.mxu0
      %7403 = vmatprep.subr.bf16.mxu0 %v4712
      %7404 = vmatpush1.bf16.msra.mxu0 %v4711
      %7405 = vmatprep.subr.bf16.mxu0 %v4716
      %7406 = vmatpush1.bf16.msra.mxu0 %v4715
      %7407 = vmatprep.subr.bf16.mxu0 %v4720
      %7408 = vmatpush1.bf16.msra.mxu0 %v4719
      %7409 = vmatprep.subr.bf16.mxu0 %v4724
      %7410 = vmatpush1.bf16.msra.mxu0 %v4723
      %7411 = vmatprep.subr.bf16.mxu0 %v4728
      %7412 = vmatpush1.bf16.msra.mxu0 %v4727
      %7413 = vmatprep.subr.bf16.mxu0 %v4732
      %7414 = vmatpush1.bf16.msra.mxu0 %v4731
      %7415 = vmatprep.subr.bf16.mxu0 %v4736
      %7416 = vmatpush1.bf16.msra.mxu0 %v4735
      %7417 = vmatprep.subr.bf16.mxu0 %v4740
      %7418 = vmatpush1.bf16.msra.mxu0 %v4739
      %7419 = vmatprep.subr.bf16.mxu0 %v4744
      %7420 = vmatpush1.bf16.msra.mxu0 %v4743
      %7421 = vmatprep.subr.bf16.mxu0 %v4748
      %7422 = vmatpush1.bf16.msra.mxu0 %v4747
      %7423 = vmatprep.subr.bf16.mxu0 %v4752
      %7424 = vmatpush1.bf16.msra.mxu0 %v4751
      %7425 = vmatprep.subr.bf16.mxu0 %v4756
      %7426 = vmatpush1.bf16.msra.mxu0 %v4755
      %7427 = vmatprep.subr.bf16.mxu0 %v4760
      %7428 = vmatpush1.bf16.msra.mxu0 %v4759
      %7429 = vmatprep.subr.bf16.mxu0 %v4764
      %7430 = vmatpush1.bf16.msra.mxu0 %v4763
      %7431 = vmatprep.subr.bf16.mxu0 %v4768
      %7432 = vmatpush1.bf16.msra.mxu0 %v4767
      %7433 = vmatprep.subr.bf16.mxu0 %v4772
      %7434 = vmatpush1.bf16.msra.mxu0 %v4771
      %7435 = vmatprep.mubr.bf16.mxu0 %v1450
      %7436 = vmatmul.mubr.bf16.gmra.mrb[0].mxu0 %v1449
      %v7437 = vpop.f32.mrb[0].mxu0
      %v7438 = vadd.f32 %v7395, %v7437
      %v7439 = vpop.f32.mrb[0].mxu0
      %v7440 = vadd.f32 %v7397, %v7439
      %v7441 = vpop.f32.mrb[0].mxu0
      %v7442 = vadd.f32 %v7399, %v7441
      %v7443 = vpop.f32.mrb[0].mxu0
      %v7444 = vadd.f32 %v7401, %v7443
      %7445 = vdwg.mxu0
      %7446 = vmatprep.subr.bf16.mxu0 %v4776
      %7447 = vmatpush1.bf16.msra.mxu0 %v4775
      %7448 = vmatprep.subr.bf16.mxu0 %v4780
      %7449 = vmatpush1.bf16.msra.mxu0 %v4779
      %7450 = vmatprep.subr.bf16.mxu0 %v4784
      %7451 = vmatpush1.bf16.msra.mxu0 %v4783
      %7452 = vmatprep.subr.bf16.mxu0 %v4788
      %7453 = vmatpush1.bf16.msra.mxu0 %v4787
      %7454 = vmatprep.subr.bf16.mxu0 %v4792
      %7455 = vmatpush1.bf16.msra.mxu0 %v4791
      %7456 = vmatprep.subr.bf16.mxu0 %v4796
      %7457 = vmatpush1.bf16.msra.mxu0 %v4795
      %7458 = vmatprep.subr.bf16.mxu0 %v4800
      %7459 = vmatpush1.bf16.msra.mxu0 %v4799
      %7460 = vmatprep.subr.bf16.mxu0 %v4804
      %7461 = vmatpush1.bf16.msra.mxu0 %v4803
      %7462 = vmatprep.subr.bf16.mxu0 %v4808
      %7463 = vmatpush1.bf16.msra.mxu0 %v4807
      %7464 = vmatprep.subr.bf16.mxu0 %v4812
      %7465 = vmatpush1.bf16.msra.mxu0 %v4811
      %7466 = vmatprep.subr.bf16.mxu0 %v4816
      %7467 = vmatpush1.bf16.msra.mxu0 %v4815
      %7468 = vmatprep.subr.bf16.mxu0 %v4820
      %7469 = vmatpush1.bf16.msra.mxu0 %v4819
      %7470 = vmatprep.subr.bf16.mxu0 %v4824
      %7471 = vmatpush1.bf16.msra.mxu0 %v4823
      %7472 = vmatprep.subr.bf16.mxu0 %v4828
      %7473 = vmatpush1.bf16.msra.mxu0 %v4827
      %7474 = vmatprep.subr.bf16.mxu0 %v4832
      %7475 = vmatpush1.bf16.msra.mxu0 %v4831
      %7476 = vmatprep.subr.bf16.mxu0 %v4836
      %7477 = vmatpush1.bf16.msra.mxu0 %v4835
      %7478 = vmatprep.mubr.bf16.mxu0 %v1452
      %7479 = vmatmul.mubr.bf16.gmra.mrb[0].mxu0 %v1451
      %v7480 = vpop.f32.mrb[0].mxu0
      %v7481 = vadd.f32 %v7438, %v7480
      %v7482 = vpop.f32.mrb[0].mxu0
      %v7483 = vadd.f32 %v7440, %v7482
      %v7484 = vpop.f32.mrb[0].mxu0
      %v7485 = vadd.f32 %v7442, %v7484
      %v7486 = vpop.f32.mrb[0].mxu0
      %v7487 = vadd.f32 %v7444, %v7486
      %7488 = vdwg.mxu0
      %7489 = vmatprep.subr.bf16.mxu0 %v4840
      %7490 = vmatpush1.bf16.msra.mxu0 %v4839
      %7491 = vmatprep.subr.bf16.mxu0 %v4844
      %7492 = vmatpush1.bf16.msra.mxu0 %v4843
      %7493 = vmatprep.subr.bf16.mxu0 %v4848
      %7494 = vmatpush1.bf16.msra.mxu0 %v4847
      %7495 = vmatprep.subr.bf16.mxu0 %v4852
      %7496 = vmatpush1.bf16.msra.mxu0 %v4851
      %7497 = vmatprep.subr.bf16.mxu0 %v4856
      %7498 = vmatpush1.bf16.msra.mxu0 %v4855
      %7499 = vmatprep.subr.bf16.mxu0 %v4860
      %7500 = vmatpush1.bf16.msra.mxu0 %v4859
      %7501 = vmatprep.subr.bf16.mxu0 %v4864
      %7502 = vmatpush1.bf16.msra.mxu0 %v4863
      %7503 = vmatprep.subr.bf16.mxu0 %v4868
      %7504 = vmatpush1.bf16.msra.mxu0 %v4867
      %7505 = vmatprep.subr.bf16.mxu0 %v4872
      %7506 = vmatpush1.bf16.msra.mxu0 %v4871
      %7507 = vmatprep.subr.bf16.mxu0 %v4876
      %7508 = vmatpush1.bf16.msra.mxu0 %v4875
      %7509 = vmatprep.subr.bf16.mxu0 %v4880
      %7510 = vmatpush1.bf16.msra.mxu0 %v4879
      %7511 = vmatprep.subr.bf16.mxu0 %v4884
      %7512 = vmatpush1.bf16.msra.mxu0 %v4883
      %7513 = vmatprep.subr.bf16.mxu0 %v4888
      %7514 = vmatpush1.bf16.msra.mxu0 %v4887
      %7515 = vmatprep.subr.bf16.mxu0 %v4892
      %7516 = vmatpush1.bf16.msra.mxu0 %v4891
      %7517 = vmatprep.subr.bf16.mxu0 %v4896
      %7518 = vmatpush1.bf16.msra.mxu0 %v4895
      %7519 = vmatprep.subr.bf16.mxu0 %v4900
      %7520 = vmatpush1.bf16.msra.mxu0 %v4899
      %7521 = vmatprep.mubr.bf16.mxu0 %v1454
      %7522 = vmatmul.mubr.bf16.gmra.mrb[0].mxu0 %v1453
      %v7523 = vpop.f32.mrb[0].mxu0
      %v7524 = vadd.f32 %v7481, %v7523
      %v7525 = vpop.f32.mrb[0].mxu0
      %v7526 = vadd.f32 %v7483, %v7525
      %v7527 = vpop.f32.mrb[0].mxu0
      %v7528 = vadd.f32 %v7485, %v7527
      %v7529 = vpop.f32.mrb[0].mxu0
      %v7530 = vadd.f32 %v7487, %v7529
      %7531 = vdwg.mxu0
      %7532 = vmatprep.subr.bf16.mxu0 %v4904
      %7533 = vmatpush1.bf16.msra.mxu0 %v4903
      %7534 = vmatprep.subr.bf16.mxu0 %v4908
      %7535 = vmatpush1.bf16.msra.mxu0 %v4907
      %7536 = vmatprep.subr.bf16.mxu0 %v4912
      %7537 = vmatpush1.bf16.msra.mxu0 %v4911
      %7538 = vmatprep.subr.bf16.mxu0 %v4916
      %7539 = vmatpush1.bf16.msra.mxu0 %v4915
      %7540 = vmatprep.subr.bf16.mxu0 %v4920
      %7541 = vmatpush1.bf16.msra.mxu0 %v4919
      %7542 = vmatprep.subr.bf16.mxu0 %v4924
      %7543 = vmatpush1.bf16.msra.mxu0 %v4923
      %7544 = vmatprep.subr.bf16.mxu0 %v4928
      %7545 = vmatpush1.bf16.msra.mxu0 %v4927
      %7546 = vmatprep.subr.bf16.mxu0 %v4932
      %7547 = vmatpush1.bf16.msra.mxu0 %v4931
      %7548 = vmatprep.subr.bf16.mxu0 %v4936
      %7549 = vmatpush1.bf16.msra.mxu0 %v4935
      %7550 = vmatprep.subr.bf16.mxu0 %v4940
      %7551 = vmatpush1.bf16.msra.mxu0 %v4939
      %7552 = vmatprep.subr.bf16.mxu0 %v4944
      %7553 = vmatpush1.bf16.msra.mxu0 %v4943
      %7554 = vmatprep.subr.bf16.mxu0 %v4948
      %7555 = vmatpush1.bf16.msra.mxu0 %v4947
      %7556 = vmatprep.subr.bf16.mxu0 %v4952
      %7557 = vmatpush1.bf16.msra.mxu0 %v4951
      %7558 = vmatprep.subr.bf16.mxu0 %v4956
      %7559 = vmatpush1.bf16.msra.mxu0 %v4955
      %7560 = vmatprep.subr.bf16.mxu0 %v4960
      %7561 = vmatpush1.bf16.msra.mxu0 %v4959
      %7562 = vmatprep.subr.bf16.mxu0 %v4964
      %7563 = vmatpush1.bf16.msra.mxu0 %v4963
      %7564 = vmatprep.mubr.bf16.mxu0 %v1456
      %7565 = vmatmul.mubr.bf16.gmra.mrb[0].mxu0 %v1455
      %v7566 = vpop.f32.mrb[0].mxu0
      %v7567 = vadd.f32 %v7524, %v7566
      %v7568 = vpop.f32.mrb[0].mxu0
      %v7569 = vadd.f32 %v7526, %v7568
      %v7570 = vpop.f32.mrb[0].mxu0
      %v7571 = vadd.f32 %v7528, %v7570
      %v7572 = vpop.f32.mrb[0].mxu0
      %v7573 = vadd.f32 %v7530, %v7572
      %7574 = vdwg.mxu0
      %7575 = vmatprep.subr.bf16.mxu0 %v4968
      %7576 = vmatpush1.bf16.msra.mxu0 %v4967
      %7577 = vmatprep.subr.bf16.mxu0 %v4972
      %7578 = vmatpush1.bf16.msra.mxu0 %v4971
      %7579 = vmatprep.subr.bf16.mxu0 %v4976
      %7580 = vmatpush1.bf16.msra.mxu0 %v4975
      %7581 = vmatprep.subr.bf16.mxu0 %v4980
      %7582 = vmatpush1.bf16.msra.mxu0 %v4979
      %7583 = vmatprep.subr.bf16.mxu0 %v4984
      %7584 = vmatpush1.bf16.msra.mxu0 %v4983
      %7585 = vmatprep.subr.bf16.mxu0 %v4988
      %7586 = vmatpush1.bf16.msra.mxu0 %v4987
      %7587 = vmatprep.subr.bf16.mxu0 %v4992
      %7588 = vmatpush1.bf16.msra.mxu0 %v4991
      %7589 = vmatprep.subr.bf16.mxu0 %v4996
      %7590 = vmatpush1.bf16.msra.mxu0 %v4995
      %7591 = vmatprep.subr.bf16.mxu0 %v5000
      %7592 = vmatpush1.bf16.msra.mxu0 %v4999
      %7593 = vmatprep.subr.bf16.mxu0 %v5004
      %7594 = vmatpush1.bf16.msra.mxu0 %v5003
      %7595 = vmatprep.subr.bf16.mxu0 %v5008
      %7596 = vmatpush1.bf16.msra.mxu0 %v5007
      %7597 = vmatprep.subr.bf16.mxu0 %v5012
      %7598 = vmatpush1.bf16.msra.mxu0 %v5011
      %7599 = vmatprep.subr.bf16.mxu0 %v5016
      %7600 = vmatpush1.bf16.msra.mxu0 %v5015
      %7601 = vmatprep.subr.bf16.mxu0 %v5020
      %7602 = vmatpush1.bf16.msra.mxu0 %v5019
      %7603 = vmatprep.subr.bf16.mxu0 %v5024
      %7604 = vmatpush1.bf16.msra.mxu0 %v5023
      %7605 = vmatprep.subr.bf16.mxu0 %v5028
      %7606 = vmatpush1.bf16.msra.mxu0 %v5027
      %7607 = vmatprep.mubr.bf16.mxu0 %v1458
      %7608 = vmatmul.mubr.bf16.gmra.mrb[0].mxu0 %v1457
      %v7609 = vpop.f32.mrb[0].mxu0
      %v7610 = vadd.f32 %v7567, %v7609
      %v7611 = vpop.f32.mrb[0].mxu0
      %v7612 = vadd.f32 %v7569, %v7611
      %v7613 = vpop.f32.mrb[0].mxu0
      %v7614 = vadd.f32 %v7571, %v7613
      %v7615 = vpop.f32.mrb[0].mxu0
      %v7616 = vadd.f32 %v7573, %v7615
      %7617 = vdwg.mxu0
      %7618 = vmatprep.subr.bf16.mxu0 %v5032
      %7619 = vmatpush1.bf16.msra.mxu0 %v5031
      %7620 = vmatprep.subr.bf16.mxu0 %v5036
      %7621 = vmatpush1.bf16.msra.mxu0 %v5035
      %7622 = vmatprep.subr.bf16.mxu0 %v5040
      %7623 = vmatpush1.bf16.msra.mxu0 %v5039
      %7624 = vmatprep.subr.bf16.mxu0 %v5044
      %7625 = vmatpush1.bf16.msra.mxu0 %v5043
      %7626 = vmatprep.subr.bf16.mxu0 %v5048
      %7627 = vmatpush1.bf16.msra.mxu0 %v5047
      %7628 = vmatprep.subr.bf16.mxu0 %v5052
      %7629 = vmatpush1.bf16.msra.mxu0 %v5051
      %7630 = vmatprep.subr.bf16.mxu0 %v5056
      %7631 = vmatpush1.bf16.msra.mxu0 %v5055
      %7632 = vmatprep.subr.bf16.mxu0 %v5060
      %7633 = vmatpush1.bf16.msra.mxu0 %v5059
      %7634 = vmatprep.subr.bf16.mxu0 %v5064
      %7635 = vmatpush1.bf16.msra.mxu0 %v5063
      %7636 = vmatprep.subr.bf16.mxu0 %v5068
      %7637 = vmatpush1.bf16.msra.mxu0 %v5067
      %7638 = vmatprep.subr.bf16.mxu0 %v5072
      %7639 = vmatpush1.bf16.msra.mxu0 %v5071
      %7640 = vmatprep.subr.bf16.mxu0 %v5076
      %7641 = vmatpush1.bf16.msra.mxu0 %v5075
      %7642 = vmatprep.subr.bf16.mxu0 %v5080
      %7643 = vmatpush1.bf16.msra.mxu0 %v5079
      %7644 = vmatprep.subr.bf16.mxu0 %v5084
      %7645 = vmatpush1.bf16.msra.mxu0 %v5083
      %7646 = vmatprep.subr.bf16.mxu0 %v5088
      %7647 = vmatpush1.bf16.msra.mxu0 %v5087
      %7648 = vmatprep.subr.bf16.mxu0 %v5092
      %7649 = vmatpush1.bf16.msra.mxu0 %v5091
      %7650 = vmatprep.mubr.bf16.mxu0 %v1460
      %7651 = vmatmul.mubr.bf16.gmra.mrb[0].mxu0 %v1459
      %v7652 = vpop.f32.mrb[0].mxu0
      %v7653 = vadd.f32 %v7610, %v7652
      %v7654 = vpop.f32.mrb[0].mxu0
      %v7655 = vadd.f32 %v7612, %v7654
      %v7656 = vpop.f32.mrb[0].mxu0
      %v7657 = vadd.f32 %v7614, %v7656
      %v7658 = vpop.f32.mrb[0].mxu0
      %v7659 = vadd.f32 %v7616, %v7658
      %7660 = vdwg.mxu0
      %7661 = vmatprep.subr.bf16.mxu0 %v5096
      %7662 = vmatpush1.bf16.msra.mxu0 %v5095
      %7663 = vmatprep.subr.bf16.mxu0 %v5100
      %7664 = vmatpush1.bf16.msra.mxu0 %v5099
      %7665 = vmatprep.subr.bf16.mxu0 %v5104
      %7666 = vmatpush1.bf16.msra.mxu0 %v5103
      %7667 = vmatprep.subr.bf16.mxu0 %v5108
      %7668 = vmatpush1.bf16.msra.mxu0 %v5107
      %7669 = vmatprep.subr.bf16.mxu0 %v5112
      %7670 = vmatpush1.bf16.msra.mxu0 %v5111
      %7671 = vmatprep.subr.bf16.mxu0 %v5116
      %7672 = vmatpush1.bf16.msra.mxu0 %v5115
      %7673 = vmatprep.subr.bf16.mxu0 %v5120
      %7674 = vmatpush1.bf16.msra.mxu0 %v5119
      %7675 = vmatprep.subr.bf16.mxu0 %v5124
      %7676 = vmatpush1.bf16.msra.mxu0 %v5123
      %7677 = vmatprep.subr.bf16.mxu0 %v5128
      %7678 = vmatpush1.bf16.msra.mxu0 %v5127
      %7679 = vmatprep.subr.bf16.mxu0 %v5132
      %7680 = vmatpush1.bf16.msra.mxu0 %v5131
      %7681 = vmatprep.subr.bf16.mxu0 %v5136
      %7682 = vmatpush1.bf16.msra.mxu0 %v5135
      %7683 = vmatprep.subr.bf16.mxu0 %v5140
      %7684 = vmatpush1.bf16.msra.mxu0 %v5139
      %7685 = vmatprep.subr.bf16.mxu0 %v5144
      %7686 = vmatpush1.bf16.msra.mxu0 %v5143
      %7687 = vmatprep.subr.bf16.mxu0 %v5148
      %7688 = vmatpush1.bf16.msra.mxu0 %v5147
      %7689 = vmatprep.subr.bf16.mxu0 %v5152
      %7690 = vmatpush1.bf16.msra.mxu0 %v5151
      %7691 = vmatprep.subr.bf16.mxu0 %v5156
      %7692 = vmatpush1.bf16.msra.mxu0 %v5155
      %7693 = vmatprep.mubr.bf16.mxu0 %v1462
      %7694 = vmatmul.mubr.bf16.gmra.mrb[0].mxu0 %v1461
      %v7695 = vpop.f32.mrb[0].mxu0
      %v7696 = vadd.f32 %v7653, %v7695
      %v7697 = vpop.f32.mrb[0].mxu0
      %v7698 = vadd.f32 %v7655, %v7697
      %v7699 = vpop.f32.mrb[0].mxu0
      %v7700 = vadd.f32 %v7657, %v7699
      %v7701 = vpop.f32.mrb[0].mxu0
      %v7702 = vadd.f32 %v7659, %v7701
      %7703 = vdwg.mxu0
      %7704 = vmatprep.subr.bf16.mxu0 %v5160
      %7705 = vmatpush1.bf16.msra.mxu0 %v5159
      %7706 = vmatprep.subr.bf16.mxu0 %v5164
      %7707 = vmatpush1.bf16.msra.mxu0 %v5163
      %7708 = vmatprep.subr.bf16.mxu0 %v5168
      %7709 = vmatpush1.bf16.msra.mxu0 %v5167
      %7710 = vmatprep.subr.bf16.mxu0 %v5172
      %7711 = vmatpush1.bf16.msra.mxu0 %v5171
      %7712 = vmatprep.subr.bf16.mxu0 %v5176
      %7713 = vmatpush1.bf16.msra.mxu0 %v5175
      %7714 = vmatprep.subr.bf16.mxu0 %v5180
      %7715 = vmatpush1.bf16.msra.mxu0 %v5179
      %7716 = vmatprep.subr.bf16.mxu0 %v5184
      %7717 = vmatpush1.bf16.msra.mxu0 %v5183
      %7718 = vmatprep.subr.bf16.mxu0 %v5188
      %7719 = vmatpush1.bf16.msra.mxu0 %v5187
      %7720 = vmatprep.subr.bf16.mxu0 %v5192
      %7721 = vmatpush1.bf16.msra.mxu0 %v5191
      %7722 = vmatprep.subr.bf16.mxu0 %v5196
      %7723 = vmatpush1.bf16.msra.mxu0 %v5195
      %7724 = vmatprep.subr.bf16.mxu0 %v5200
      %7725 = vmatpush1.bf16.msra.mxu0 %v5199
      %7726 = vmatprep.subr.bf16.mxu0 %v5204
      %7727 = vmatpush1.bf16.msra.mxu0 %v5203
      %7728 = vmatprep.subr.bf16.mxu0 %v5208
      %7729 = vmatpush1.bf16.msra.mxu0 %v5207
      %7730 = vmatprep.subr.bf16.mxu0 %v5212
      %7731 = vmatpush1.bf16.msra.mxu0 %v5211
      %7732 = vmatprep.subr.bf16.mxu0 %v5216
      %7733 = vmatpush1.bf16.msra.mxu0 %v5215
      %7734 = vmatprep.subr.bf16.mxu0 %v5220
      %7735 = vmatpush1.bf16.msra.mxu0 %v5219
      %7736 = vmatprep.mubr.bf16.mxu0 %v1464
      %7737 = vmatmul.mubr.bf16.gmra.mrb[0].mxu0 %v1463
      %v7738 = vpop.f32.mrb[0].mxu0
      %v7739 = vadd.f32 %v7696, %v7738
      %v7740 = vpop.f32.mrb[0].mxu0
      %v7741 = vadd.f32 %v7698, %v7740
      %v7742 = vpop.f32.mrb[0].mxu0
      %v7743 = vadd.f32 %v7700, %v7742
      %v7744 = vpop.f32.mrb[0].mxu0
      %v7745 = vadd.f32 %v7702, %v7744
      %7746 = vdwg.mxu0
      %7747 = vmatprep.subr.bf16.mxu0 %v5224
      %7748 = vmatpush1.bf16.msra.mxu0 %v5223
      %7749 = vmatprep.subr.bf16.mxu0 %v5228
      %7750 = vmatpush1.bf16.msra.mxu0 %v5227
      %7751 = vmatprep.subr.bf16.mxu0 %v5232
      %7752 = vmatpush1.bf16.msra.mxu0 %v5231
      %7753 = vmatprep.subr.bf16.mxu0 %v5236
      %7754 = vmatpush1.bf16.msra.mxu0 %v5235
      %7755 = vmatprep.subr.bf16.mxu0 %v5240
      %7756 = vmatpush1.bf16.msra.mxu0 %v5239
      %7757 = vmatprep.subr.bf16.mxu0 %v5244
      %7758 = vmatpush1.bf16.msra.mxu0 %v5243
      %7759 = vmatprep.subr.bf16.mxu0 %v5248
      %7760 = vmatpush1.bf16.msra.mxu0 %v5247
      %7761 = vmatprep.subr.bf16.mxu0 %v5252
      %7762 = vmatpush1.bf16.msra.mxu0 %v5251
      %7763 = vmatprep.subr.bf16.mxu0 %v5256
      %7764 = vmatpush1.bf16.msra.mxu0 %v5255
      %7765 = vmatprep.subr.bf16.mxu0 %v5260
      %7766 = vmatpush1.bf16.msra.mxu0 %v5259
      %7767 = vmatprep.subr.bf16.mxu0 %v5264
      %7768 = vmatpush1.bf16.msra.mxu0 %v5263
      %7769 = vmatprep.subr.bf16.mxu0 %v5268
      %7770 = vmatpush1.bf16.msra.mxu0 %v5267
      %7771 = vmatprep.subr.bf16.mxu0 %v5272
      %7772 = vmatpush1.bf16.msra.mxu0 %v5271
      %7773 = vmatprep.subr.bf16.mxu0 %v5276
      %7774 = vmatpush1.bf16.msra.mxu0 %v5275
      %7775 = vmatprep.subr.bf16.mxu0 %v5280
      %7776 = vmatpush1.bf16.msra.mxu0 %v5279
      %7777 = vmatprep.subr.bf16.mxu0 %v5284
      %7778 = vmatpush1.bf16.msra.mxu0 %v5283
      %7779 = vmatprep.mubr.bf16.mxu0 %v1466
      %7780 = vmatmul.mubr.bf16.gmra.mrb[0].mxu0 %v1465
      %v7781 = vpop.f32.mrb[0].mxu0
      %v7782 = vadd.f32 %v7739, %v7781
      %v7783 = vpop.f32.mrb[0].mxu0
      %v7784 = vadd.f32 %v7741, %v7783
      %v7785 = vpop.f32.mrb[0].mxu0
      %v7786 = vadd.f32 %v7743, %v7785
      %v7787 = vpop.f32.mrb[0].mxu0
      %v7788 = vadd.f32 %v7745, %v7787
      %7789 = vdwg.mxu0
      %7790 = vmatprep.subr.bf16.mxu0 %v5288
      %7791 = vmatpush1.bf16.msra.mxu0 %v5287
      %7792 = vmatprep.subr.bf16.mxu0 %v5292
      %7793 = vmatpush1.bf16.msra.mxu0 %v5291
      %7794 = vmatprep.subr.bf16.mxu0 %v5296
      %7795 = vmatpush1.bf16.msra.mxu0 %v5295
      %7796 = vmatprep.subr.bf16.mxu0 %v5300
      %7797 = vmatpush1.bf16.msra.mxu0 %v5299
      %7798 = vmatprep.subr.bf16.mxu0 %v5304
      %7799 = vmatpush1.bf16.msra.mxu0 %v5303
      %7800 = vmatprep.subr.bf16.mxu0 %v5308
      %7801 = vmatpush1.bf16.msra.mxu0 %v5307
      %7802 = vmatprep.subr.bf16.mxu0 %v5312
      %7803 = vmatpush1.bf16.msra.mxu0 %v5311
      %7804 = vmatprep.subr.bf16.mxu0 %v5316
      %7805 = vmatpush1.bf16.msra.mxu0 %v5315
      %7806 = vmatprep.subr.bf16.mxu0 %v5320
      %7807 = vmatpush1.bf16.msra.mxu0 %v5319
      %7808 = vmatprep.subr.bf16.mxu0 %v5324
      %7809 = vmatpush1.bf16.msra.mxu0 %v5323
      %7810 = vmatprep.subr.bf16.mxu0 %v5328
      %7811 = vmatpush1.bf16.msra.mxu0 %v5327
      %7812 = vmatprep.subr.bf16.mxu0 %v5332
      %7813 = vmatpush1.bf16.msra.mxu0 %v5331
      %7814 = vmatprep.subr.bf16.mxu0 %v5336
      %7815 = vmatpush1.bf16.msra.mxu0 %v5335
      %7816 = vmatprep.subr.bf16.mxu0 %v5340
      %7817 = vmatpush1.bf16.msra.mxu0 %v5339
      %7818 = vmatprep.subr.bf16.mxu0 %v5344
      %7819 = vmatpush1.bf16.msra.mxu0 %v5343
      %7820 = vmatprep.subr.bf16.mxu0 %v5348
      %7821 = vmatpush1.bf16.msra.mxu0 %v5347
      %7822 = vmatprep.mubr.bf16.mxu0 %v1468
      %7823 = vmatmul.mubr.bf16.gmra.mrb[0].mxu0 %v1467
      %v7824 = vpop.f32.mrb[0].mxu0
      %v7825 = vadd.f32 %v7782, %v7824
      %v7826 = vpop.f32.mrb[0].mxu0
      %v7827 = vadd.f32 %v7784, %v7826
      %v7828 = vpop.f32.mrb[0].mxu0
      %v7829 = vadd.f32 %v7786, %v7828
      %v7830 = vpop.f32.mrb[0].mxu0
      %v7831 = vadd.f32 %v7788, %v7830
      %7832 = vdwg.mxu0
      %7833 = vmatprep.subr.bf16.mxu0 %v5352
      %7834 = vmatpush1.bf16.msra.mxu0 %v5351
      %7835 = vmatprep.subr.bf16.mxu0 %v5356
      %7836 = vmatpush1.bf16.msra.mxu0 %v5355
      %7837 = vmatprep.subr.bf16.mxu0 %v5360
      %7838 = vmatpush1.bf16.msra.mxu0 %v5359
      %7839 = vmatprep.subr.bf16.mxu0 %v5364
      %7840 = vmatpush1.bf16.msra.mxu0 %v5363
      %7841 = vmatprep.subr.bf16.mxu0 %v5368
      %7842 = vmatpush1.bf16.msra.mxu0 %v5367
      %7843 = vmatprep.subr.bf16.mxu0 %v5372
      %7844 = vmatpush1.bf16.msra.mxu0 %v5371
      %7845 = vmatprep.subr.bf16.mxu0 %v5376
      %7846 = vmatpush1.bf16.msra.mxu0 %v5375
      %7847 = vmatprep.subr.bf16.mxu0 %v5380
      %7848 = vmatpush1.bf16.msra.mxu0 %v5379
      %7849 = vmatprep.subr.bf16.mxu0 %v5384
      %7850 = vmatpush1.bf16.msra.mxu0 %v5383
      %7851 = vmatprep.subr.bf16.mxu0 %v5388
      %7852 = vmatpush1.bf16.msra.mxu0 %v5387
      %7853 = vmatprep.subr.bf16.mxu0 %v5392
      %7854 = vmatpush1.bf16.msra.mxu0 %v5391
      %7855 = vmatprep.subr.bf16.mxu0 %v5396
      %7856 = vmatpush1.bf16.msra.mxu0 %v5395
      %7857 = vmatprep.subr.bf16.mxu0 %v5400
      %7858 = vmatpush1.bf16.msra.mxu0 %v5399
      %7859 = vmatprep.subr.bf16.mxu0 %v5404
      %7860 = vmatpush1.bf16.msra.mxu0 %v5403
      %7861 = vmatprep.subr.bf16.mxu0 %v5408
      %7862 = vmatpush1.bf16.msra.mxu0 %v5407
      %7863 = vmatprep.subr.bf16.mxu0 %v5412
      %7864 = vmatpush1.bf16.msra.mxu0 %v5411
      %7865 = vmatprep.mubr.bf16.mxu0 %v1470
      %7866 = vmatmul.mubr.bf16.gmra.mrb[0].mxu0 %v1469
      %v7867 = vpop.f32.mrb[0].mxu0
      %v7868 = vadd.f32 %v7825, %v7867
      %v7869 = vpop.f32.mrb[0].mxu0
      %v7870 = vadd.f32 %v7827, %v7869
      %v7871 = vpop.f32.mrb[0].mxu0
      %v7872 = vadd.f32 %v7829, %v7871
      %v7873 = vpop.f32.mrb[0].mxu0
      %v7874 = vadd.f32 %v7831, %v7873
      %7875 = vdwg.mxu0
      %7876 = vmatprep.subr.bf16.mxu0 %v5416
      %7877 = vmatpush1.bf16.msra.mxu0 %v5415
      %7878 = vmatprep.subr.bf16.mxu0 %v5420
      %7879 = vmatpush1.bf16.msra.mxu0 %v5419
      %7880 = vmatprep.subr.bf16.mxu0 %v5424
      %7881 = vmatpush1.bf16.msra.mxu0 %v5423
      %7882 = vmatprep.subr.bf16.mxu0 %v5428
      %7883 = vmatpush1.bf16.msra.mxu0 %v5427
      %7884 = vmatprep.subr.bf16.mxu0 %v5432
      %7885 = vmatpush1.bf16.msra.mxu0 %v5431
      %7886 = vmatprep.subr.bf16.mxu0 %v5436
      %7887 = vmatpush1.bf16.msra.mxu0 %v5435
      %7888 = vmatprep.subr.bf16.mxu0 %v5440
      %7889 = vmatpush1.bf16.msra.mxu0 %v5439
      %7890 = vmatprep.subr.bf16.mxu0 %v5444
      %7891 = vmatpush1.bf16.msra.mxu0 %v5443
      %7892 = vmatprep.subr.bf16.mxu0 %v5448
      %7893 = vmatpush1.bf16.msra.mxu0 %v5447
      %7894 = vmatprep.subr.bf16.mxu0 %v5452
      %7895 = vmatpush1.bf16.msra.mxu0 %v5451
      %7896 = vmatprep.subr.bf16.mxu0 %v5456
      %7897 = vmatpush1.bf16.msra.mxu0 %v5455
      %7898 = vmatprep.subr.bf16.mxu0 %v5460
      %7899 = vmatpush1.bf16.msra.mxu0 %v5459
      %7900 = vmatprep.subr.bf16.mxu0 %v5464
      %7901 = vmatpush1.bf16.msra.mxu0 %v5463
      %7902 = vmatprep.subr.bf16.mxu0 %v5468
      %7903 = vmatpush1.bf16.msra.mxu0 %v5467
      %7904 = vmatprep.subr.bf16.mxu0 %v5472
      %7905 = vmatpush1.bf16.msra.mxu0 %v5471
      %7906 = vmatprep.subr.bf16.mxu0 %v5476
      %7907 = vmatpush1.bf16.msra.mxu0 %v5475
      %7908 = vmatprep.mubr.bf16.mxu0 %v1472
      %7909 = vmatmul.mubr.bf16.gmra.mrb[0].mxu0 %v1471
      %v7910 = vpop.f32.mrb[0].mxu0
      %v7911 = vadd.f32 %v7868, %v7910
      %v7912 = vpop.f32.mrb[0].mxu0
      %v7913 = vadd.f32 %v7870, %v7912
      %v7914 = vpop.f32.mrb[0].mxu0
      %v7915 = vadd.f32 %v7872, %v7914
      %v7916 = vpop.f32.mrb[0].mxu0
      %v7917 = vadd.f32 %v7874, %v7916
      %7918 = vdwg.mxu0
      %7919 = vmatprep.subr.bf16.mxu0 %v5480
      %7920 = vmatpush1.bf16.msra.mxu0 %v5479
      %7921 = vmatprep.subr.bf16.mxu0 %v5484
      %7922 = vmatpush1.bf16.msra.mxu0 %v5483
      %7923 = vmatprep.subr.bf16.mxu0 %v5488
      %7924 = vmatpush1.bf16.msra.mxu0 %v5487
      %7925 = vmatprep.subr.bf16.mxu0 %v5492
      %7926 = vmatpush1.bf16.msra.mxu0 %v5491
      %7927 = vmatprep.subr.bf16.mxu0 %v5496
      %7928 = vmatpush1.bf16.msra.mxu0 %v5495
      %7929 = vmatprep.subr.bf16.mxu0 %v5500
      %7930 = vmatpush1.bf16.msra.mxu0 %v5499
      %7931 = vmatprep.subr.bf16.mxu0 %v5504
      %7932 = vmatpush1.bf16.msra.mxu0 %v5503
      %7933 = vmatprep.subr.bf16.mxu0 %v5508
      %7934 = vmatpush1.bf16.msra.mxu0 %v5507
      %7935 = vmatprep.subr.bf16.mxu0 %v5512
      %7936 = vmatpush1.bf16.msra.mxu0 %v5511
      %7937 = vmatprep.subr.bf16.mxu0 %v5516
      %7938 = vmatpush1.bf16.msra.mxu0 %v5515
      %7939 = vmatprep.subr.bf16.mxu0 %v5520
      %7940 = vmatpush1.bf16.msra.mxu0 %v5519
      %7941 = vmatprep.subr.bf16.mxu0 %v5524
      %7942 = vmatpush1.bf16.msra.mxu0 %v5523
      %7943 = vmatprep.subr.bf16.mxu0 %v5528
      %7944 = vmatpush1.bf16.msra.mxu0 %v5527
      %7945 = vmatprep.subr.bf16.mxu0 %v5532
      %7946 = vmatpush1.bf16.msra.mxu0 %v5531
      %7947 = vmatprep.subr.bf16.mxu0 %v5536
      %7948 = vmatpush1.bf16.msra.mxu0 %v5535
      %7949 = vmatprep.subr.bf16.mxu0 %v5540
      %7950 = vmatpush1.bf16.msra.mxu0 %v5539
      %7951 = vmatprep.mubr.bf16.mxu0 %v1474
      %7952 = vmatmul.mubr.bf16.gmra.mrb[0].mxu0 %v1473
      %v7953 = vpop.f32.mrb[0].mxu0
      %v7954 = vadd.f32 %v7911, %v7953
      %v7955 = vpop.f32.mrb[0].mxu0
      %v7956 = vadd.f32 %v7913, %v7955
      %v7957 = vpop.f32.mrb[0].mxu0
      %v7958 = vadd.f32 %v7915, %v7957
      %v7959 = vpop.f32.mrb[0].mxu0
      %v7960 = vadd.f32 %v7917, %v7959
      %7961 = vdwg.mxu0
      %7962 = vmatprep.subr.bf16.mxu0 %v5544
      %7963 = vmatpush1.bf16.msra.mxu0 %v5543
      %7964 = vmatprep.subr.bf16.mxu0 %v5548
      %7965 = vmatpush1.bf16.msra.mxu0 %v5547
      %7966 = vmatprep.subr.bf16.mxu0 %v5552
      %7967 = vmatpush1.bf16.msra.mxu0 %v5551
      %7968 = vmatprep.subr.bf16.mxu0 %v5556
      %7969 = vmatpush1.bf16.msra.mxu0 %v5555
      %7970 = vmatprep.subr.bf16.mxu0 %v5560
      %7971 = vmatpush1.bf16.msra.mxu0 %v5559
      %7972 = vmatprep.subr.bf16.mxu0 %v5564
      %7973 = vmatpush1.bf16.msra.mxu0 %v5563
      %7974 = vmatprep.subr.bf16.mxu0 %v5568
      %7975 = vmatpush1.bf16.msra.mxu0 %v5567
      %7976 = vmatprep.subr.bf16.mxu0 %v5572
      %7977 = vmatpush1.bf16.msra.mxu0 %v5571
      %7978 = vmatprep.subr.bf16.mxu0 %v5576
      %7979 = vmatpush1.bf16.msra.mxu0 %v5575
      %7980 = vmatprep.subr.bf16.mxu0 %v5580
      %7981 = vmatpush1.bf16.msra.mxu0 %v5579
      %7982 = vmatprep.subr.bf16.mxu0 %v5584
      %7983 = vmatpush1.bf16.msra.mxu0 %v5583
      %7984 = vmatprep.subr.bf16.mxu0 %v5588
      %7985 = vmatpush1.bf16.msra.mxu0 %v5587
      %7986 = vmatprep.subr.bf16.mxu0 %v5592
      %7987 = vmatpush1.bf16.msra.mxu0 %v5591
      %7988 = vmatprep.subr.bf16.mxu0 %v5596
      %7989 = vmatpush1.bf16.msra.mxu0 %v5595
      %7990 = vmatprep.subr.bf16.mxu0 %v5600
      %7991 = vmatpush1.bf16.msra.mxu0 %v5599
      %7992 = vmatprep.subr.bf16.mxu0 %v5604
      %7993 = vmatpush1.bf16.msra.mxu0 %v5603
      %7994 = vmatprep.mubr.bf16.mxu0 %v1476
      %7995 = vmatmul.mubr.bf16.gmra.mrb[0].mxu0 %v1475
      %v7996 = vpop.f32.mrb[0].mxu0
      %v7997 = vadd.f32 %v7954, %v7996
      %v7998 = vpop.f32.mrb[0].mxu0
      %v7999 = vadd.f32 %v7956, %v7998
      %v8000 = vpop.f32.mrb[0].mxu0
      %v8001 = vadd.f32 %v7958, %v8000
      %v8002 = vpop.f32.mrb[0].mxu0
      %v8003 = vadd.f32 %v7960, %v8002
      %8004 = vdwg.mxu0
      %p8005 = scmp.ne.s32.totalorder %s21, 0
      // Predicated region
      $region37: #{discriminator_forward.7} parent=31 // pred_check
        %p8006 = pneg %p8005
      $region38: #{discriminator_forward.7} parent=31 // pred_check_branch
        %8008 = sbr.rel (%p8006) target = $region40
      $region39: #{discriminator_forward.7} parent=31 // pred_region
        %v8009 = vld [vmem:[#allocation2] sm:$0xf]
        %v8010 = vadd.f32 %v7309, %v7313
        %v8011 = vrot.slane %v8010, 4
        %v8012 = vadd.f32 %v8010, %v8011
        %v8013 = vrot.slane %v8012, 2
        %v8014 = vadd.f32 %v8012, %v8013
        %v8015 = vrot.slane %v8014, 1
        %v8016 = vadd.f32 %v8014, %v8015
        %v8017 = vadd.f32 %v7311, %v7315
        %v8018 = vrot.slane %v8017, 4
        %v8019 = vadd.f32 %v8017, %v8018
        %v8020 = vrot.slane %v8019, 2
        %v8021 = vadd.f32 %v8019, %v8020
        %v8022 = vrot.slane %v8021, 1
        %v8023 = vadd.f32 %v8021, %v8022
        %v8024 = vadd.f32 %v7997, %v8001
        %v8025 = vrot.slane %v8024, 4
        %v8026 = vadd.f32 %v8024, %v8025
        %v8027 = vrot.slane %v8026, 2
        %v8028 = vadd.f32 %v8026, %v8027
        %v8029 = vrot.slane %v8028, 1
        %v8030 = vadd.f32 %v8028, %v8029
        %v8031 = vadd.f32 %v7999, %v8003
        %v8032 = vrot.slane %v8031, 4
        %v8033 = vadd.f32 %v8031, %v8032
        %v8034 = vrot.slane %v8033, 2
        %v8035 = vadd.f32 %v8033, %v8034
        %v8036 = vrot.slane %v8035, 1
        %v8037 = vadd.f32 %v8035, %v8036
        %v8042 = vcombine.low %v8016, %v8023
        %v8043 = vcombine.low %v8030, %v8037
        %v8045 = vunpack.c.l.s4 1966171168
        %v8046 = vunpack.c.0.s8 %v8045
        %v8047 = vlaneseq
        %v8048 = vshrl.u32 %v8047, 7
        %v8049 = vsub.s32 %v8046, %v8048
        %v8050 = vrot.slane %v8042, %v8049
        %v8052 = vunpack.c.l.s4 1966171168
        %v8053 = vunpack.c.0.s8 %v8052
        %v8054 = vlaneseq
        %v8055 = vshrl.u32 %v8054, 7
        %v8056 = vsub.s32 %v8053, %v8055
        %v8057 = vrot.slane %v8043, %v8056
        %v8058 = vcombine.low %v8050, %v8057
        %v8060 = vunpack.c.l.s4 1966171168
        %v8061 = vunpack.c.0.s8 %v8060
        %v8062 = vlaneseq
        %v8063 = vshrl.u32 %v8062, 7
        %v8064 = vsub.s32 %v8061, %v8063
        %v8065 = vrot.slane %v8058, %v8064
        %v8067 = vadd.f32 %v8009, %v8065
        %v8068 = vlaneseq
        %vm8069 = vcmp.ge.s32.totalorder %v8068, 0
        %vm8070 = vcmp.lt.s32.totalorder %v8068, 512
        %vm8071 = vmand %vm8069, %vm8070
        %8072 = vst.msk [vmem:[#allocation2] sm:$0xf] %vm8071, %v8067
        %v8073 = vld [vmem:[#allocation3] sm:$0xf]
        %v8074 = vmul.f32 %v7309, %v7309
        %v8075 = vmul.f32 %v7311, %v7311
        %v8076 = vmul.f32 %v7997, %v7997
        %v8077 = vmul.f32 %v7999, %v7999
        %v8078 = vmul.f32 %v7313, %v7313
        %v8079 = vmul.f32 %v7315, %v7315
        %v8080 = vmul.f32 %v8001, %v8001
        %v8081 = vmul.f32 %v8003, %v8003
        %v8082 = vadd.f32 %v8074, %v8078
        %v8083 = vrot.slane %v8082, 4
        %v8084 = vadd.f32 %v8082, %v8083
        %v8085 = vrot.slane %v8084, 2
        %v8086 = vadd.f32 %v8084, %v8085
        %v8087 = vrot.slane %v8086, 1
        %v8088 = vadd.f32 %v8086, %v8087
        %v8089 = vadd.f32 %v8075, %v8079
        %v8090 = vrot.slane %v8089, 4
        %v8091 = vadd.f32 %v8089, %v8090
        %v8092 = vrot.slane %v8091, 2
        %v8093 = vadd.f32 %v8091, %v8092
        %v8094 = vrot.slane %v8093, 1
        %v8095 = vadd.f32 %v8093, %v8094
        %v8096 = vadd.f32 %v8076, %v8080
        %v8097 = vrot.slane %v8096, 4
        %v8098 = vadd.f32 %v8096, %v8097
        %v8099 = vrot.slane %v8098, 2
        %v8100 = vadd.f32 %v8098, %v8099
        %v8101 = vrot.slane %v8100, 1
        %v8102 = vadd.f32 %v8100, %v8101
        %v8103 = vadd.f32 %v8077, %v8081
        %v8104 = vrot.slane %v8103, 4
        %v8105 = vadd.f32 %v8103, %v8104
        %v8106 = vrot.slane %v8105, 2
        %v8107 = vadd.f32 %v8105, %v8106
        %v8108 = vrot.slane %v8107, 1
        %v8109 = vadd.f32 %v8107, %v8108
        %v8114 = vcombine.low %v8088, %v8095
        %v8115 = vcombine.low %v8102, %v8109
        %v8117 = vunpack.c.l.s4 1966171168
        %v8118 = vunpack.c.0.s8 %v8117
        %v8119 = vlaneseq
        %v8120 = vshrl.u32 %v8119, 7
        %v8121 = vsub.s32 %v8118, %v8120
        %v8122 = vrot.slane %v8114, %v8121
        %v8124 = vunpack.c.l.s4 1966171168
        %v8125 = vunpack.c.0.s8 %v8124
        %v8126 = vlaneseq
        %v8127 = vshrl.u32 %v8126, 7
        %v8128 = vsub.s32 %v8125, %v8127
        %v8129 = vrot.slane %v8115, %v8128
        %v8130 = vcombine.low %v8122, %v8129
        %v8132 = vunpack.c.l.s4 1966171168
        %v8133 = vunpack.c.0.s8 %v8132
        %v8134 = vlaneseq
        %v8135 = vshrl.u32 %v8134, 7
        %v8136 = vsub.s32 %v8133, %v8135
        %v8137 = vrot.slane %v8130, %v8136
        %v8139 = vadd.f32 %v8073, %v8137
        %8140 = vst.msk [vmem:[#allocation3] sm:$0xf] %vm8071, %v8139
      $region40: #{discriminator_forward.7} parent=31 // pred_fallthru
        _
      // Predicated region
      $region41: #{discriminator_forward.7} parent=31 // pred_check
        %p8141 = pneg %p261
      $region42: #{discriminator_forward.7} parent=31 // pred_check_branch
        %8143 = sbr.rel (%p8141) target = $region44
      $region43: #{discriminator_forward.7} parent=31 // pred_region
        %s8144 = smul.u32 %s21, 16
        %v8145 = vlaneseq
        %v8146 = vshrl.u32 %v8145, 7
        %v8147 = vadd.s32 %v8146, 8
        %v8148 = vstv %s8144
        %v8149 = vadd.s32 %v8148, %v8146
        %v8150 = vadd.s32 %v8148, %v8147
        %vm8151 = vcmp.lt.s32.totalorder %v8149, 9
        %vm8152 = vcmp.lt.s32.totalorder %v8150, 9
        %v8153 = vsel %vm8151, 1, 0
        %v8154 = vsel %vm8152, 1, 0
        %vm8155 = vcmp.eq.s32.totalorder %v8153, 1
        %vm8156 = vcmp.eq.s32.totalorder %v8154, 1
        %v8157 = vsel %vm8155, %v7309, 0.0
        %v8158 = vsel %vm8155, %v7311, 0.0
        %v8159 = vsel %vm8155, %v7997, 0.0
        %v8160 = vsel %vm8155, %v7999, 0.0
        %v8161 = vsel %vm8156, %v7313, 0.0
        %v8162 = vsel %vm8156, %v7315, 0.0
        %v8163 = vsel %vm8156, %v8001, 0.0
        %v8164 = vsel %vm8156, %v8003, 0.0
        %v8165 = vld [vmem:[#allocation2] sm:$0xf]
        %v8166 = vadd.f32 %v8157, %v8161
        %v8167 = vrot.slane %v8166, 4
        %v8168 = vadd.f32 %v8166, %v8167
        %v8169 = vrot.slane %v8168, 2
        %v8170 = vadd.f32 %v8168, %v8169
        %v8171 = vrot.slane %v8170, 1
        %v8172 = vadd.f32 %v8170, %v8171
        %v8173 = vadd.f32 %v8158, %v8162
        %v8174 = vrot.slane %v8173, 4
        %v8175 = vadd.f32 %v8173, %v8174
        %v8176 = vrot.slane %v8175, 2
        %v8177 = vadd.f32 %v8175, %v8176
        %v8178 = vrot.slane %v8177, 1
        %v8179 = vadd.f32 %v8177, %v8178
        %v8180 = vadd.f32 %v8159, %v8163
        %v8181 = vrot.slane %v8180, 4
        %v8182 = vadd.f32 %v8180, %v8181
        %v8183 = vrot.slane %v8182, 2
        %v8184 = vadd.f32 %v8182, %v8183
        %v8185 = vrot.slane %v8184, 1
        %v8186 = vadd.f32 %v8184, %v8185
        %v8187 = vadd.f32 %v8160, %v8164
        %v8188 = vrot.slane %v8187, 4
        %v8189 = vadd.f32 %v8187, %v8188
        %v8190 = vrot.slane %v8189, 2
        %v8191 = vadd.f32 %v8189, %v8190
        %v8192 = vrot.slane %v8191, 1
        %v8193 = vadd.f32 %v8191, %v8192
        %v8198 = vcombine.low %v8172, %v8179
        %v8199 = vcombine.low %v8186, %v8193
        %v8201 = vunpack.c.l.s4 1966171168
        %v8202 = vunpack.c.0.s8 %v8201
        %v8203 = vlaneseq
        %v8204 = vshrl.u32 %v8203, 7
        %v8205 = vsub.s32 %v8202, %v8204
        %v8206 = vrot.slane %v8198, %v8205
        %v8208 = vunpack.c.l.s4 1966171168
        %v8209 = vunpack.c.0.s8 %v8208
        %v8210 = vlaneseq
        %v8211 = vshrl.u32 %v8210, 7
        %v8212 = vsub.s32 %v8209, %v8211
        %v8213 = vrot.slane %v8199, %v8212
        %v8214 = vcombine.low %v8206, %v8213
        %v8216 = vunpack.c.l.s4 1966171168
        %v8217 = vunpack.c.0.s8 %v8216
        %v8218 = vlaneseq
        %v8219 = vshrl.u32 %v8218, 7
        %v8220 = vsub.s32 %v8217, %v8219
        %v8221 = vrot.slane %v8214, %v8220
        %v8223 = vadd.f32 %v8165, %v8221
        %v8224 = vlaneseq
        %vm8225 = vcmp.ge.s32.totalorder %v8224, 0
        %vm8226 = vcmp.lt.s32.totalorder %v8224, 512
        %vm8227 = vmand %vm8225, %vm8226
        %8228 = vst.msk [vmem:[#allocation2] sm:$0xf] %vm8227, %v8223
        %v8229 = vld [vmem:[#allocation3] sm:$0xf]
        %v8230 = vmul.f32 %v8157, %v8157
        %v8231 = vmul.f32 %v8158, %v8158
        %v8232 = vmul.f32 %v8159, %v8159
        %v8233 = vmul.f32 %v8160, %v8160
        %v8234 = vmul.f32 %v8161, %v8161
        %v8235 = vmul.f32 %v8162, %v8162
        %v8236 = vmul.f32 %v8163, %v8163
        %v8237 = vmul.f32 %v8164, %v8164
        %v8238 = vadd.f32 %v8230, %v8234
        %v8239 = vrot.slane %v8238, 4
        %v8240 = vadd.f32 %v8238, %v8239
        %v8241 = vrot.slane %v8240, 2
        %v8242 = vadd.f32 %v8240, %v8241
        %v8243 = vrot.slane %v8242, 1
        %v8244 = vadd.f32 %v8242, %v8243
        %v8245 = vadd.f32 %v8231, %v8235
        %v8246 = vrot.slane %v8245, 4
        %v8247 = vadd.f32 %v8245, %v8246
        %v8248 = vrot.slane %v8247, 2
        %v8249 = vadd.f32 %v8247, %v8248
        %v8250 = vrot.slane %v8249, 1
        %v8251 = vadd.f32 %v8249, %v8250
        %v8252 = vadd.f32 %v8232, %v8236
        %v8253 = vrot.slane %v8252, 4
        %v8254 = vadd.f32 %v8252, %v8253
        %v8255 = vrot.slane %v8254, 2
        %v8256 = vadd.f32 %v8254, %v8255
        %v8257 = vrot.slane %v8256, 1
        %v8258 = vadd.f32 %v8256, %v8257
        %v8259 = vadd.f32 %v8233, %v8237
        %v8260 = vrot.slane %v8259, 4
        %v8261 = vadd.f32 %v8259, %v8260
        %v8262 = vrot.slane %v8261, 2
        %v8263 = vadd.f32 %v8261, %v8262
        %v8264 = vrot.slane %v8263, 1
        %v8265 = vadd.f32 %v8263, %v8264
        %v8270 = vcombine.low %v8244, %v8251
        %v8271 = vcombine.low %v8258, %v8265
        %v8273 = vunpack.c.l.s4 1966171168
        %v8274 = vunpack.c.0.s8 %v8273
        %v8275 = vlaneseq
        %v8276 = vshrl.u32 %v8275, 7
        %v8277 = vsub.s32 %v8274, %v8276
        %v8278 = vrot.slane %v8270, %v8277
        %v8280 = vunpack.c.l.s4 1966171168
        %v8281 = vunpack.c.0.s8 %v8280
        %v8282 = vlaneseq
        %v8283 = vshrl.u32 %v8282, 7
        %v8284 = vsub.s32 %v8281, %v8283
        %v8285 = vrot.slane %v8271, %v8284
        %v8286 = vcombine.low %v8278, %v8285
        %v8288 = vunpack.c.l.s4 1966171168
        %v8289 = vunpack.c.0.s8 %v8288
        %v8290 = vlaneseq
        %v8291 = vshrl.u32 %v8290, 7
        %v8292 = vsub.s32 %v8289, %v8291
        %v8293 = vrot.slane %v8286, %v8292
        %v8295 = vadd.f32 %v8229, %v8293
        %8296 = vst.msk [vmem:[#allocation3] sm:$0xf] %vm8227, %v8295
      $region44: #{discriminator_forward.7} parent=31 // pred_fallthru
        _
      %s8297 = smul.u32 %s21, 16
      %v8298 = vpack.c.bf16 %v7313, %v7309
      %v8299 = vpack.c.bf16 %v7315, %v7311
      %v8300 = vpack.c.bf16 %v8001, %v7997
      %v8301 = vpack.c.bf16 %v8003, %v7999
      %v8306 = vunpack.c.l.b16 %v8298
      %v8307 = vunpack.c.l.b16 %v8299
      %v8308 = vunpack.c.l.b16 %v8300
      %v8309 = vunpack.c.l.b16 %v8301
      %v8310 = vunpack.c.h.b16 %v8298
      %v8311 = vunpack.c.h.b16 %v8299
      %v8312 = vunpack.c.h.b16 %v8300
      %v8313 = vunpack.c.h.b16 %v8301
      %v8314 = vpack.c.b16 %v8307, %v8306
      %v8315 = vpack.c.b16 %v8309, %v8308
      %v8316 = vpack.c.b16 %v8311, %v8310
      %v8317 = vpack.c.b16 %v8313, %v8312
      %s8322 = sshra.s32 %s8297, 3
      %s8323 = sand.u32 %s8297, 7
      %s8324 = smul.u32 %s8322, 4
      %s8325 = smul.addr %s8324, 4
      %s8326 = scalar_lea.vmem %s259, %s8325
      %8327 = vst [vmem:[%s8326] sm:$0xff] %v8314
      %8328 = vst [vmem:[%s8326 + $0x8] sm:$0xff] %v8315
      %8329 = vst [vmem:[%s8326 + $0x10] sm:$0xff] %v8316
      %8330 = vst [vmem:[%s8326 + $0x18] sm:$0xff] %v8317
      // Predicated region
      $region45: #{discriminator_forward.7} parent=31 // pred_check
        %p8331 = pneg %p261
      $region46: #{discriminator_forward.7} parent=31 // pred_check_branch
        %8333 = sbr.rel (%p8331) target = $region48
      $region47: #{discriminator_forward.7} parent=31 // pred_region
        %v8334 = vld [vmem:[#allocation2] sm:$0xf]
        %v8335 = vmul.f32 %v8334, 0.11111111
        %v8336 = vld [vmem:[#allocation3] sm:$0xf]
        %v8337 = vmul.f32 %v8336, 0.11111111
        %v8338 = vmul.f32 %v8335, %v8335
        %v8339 = vsub.f32 %v8337, %v8338
        %v8340 = vmax.f32 %v8339, 0.0
        %v8341 = vadd.f32 %v8340, 1e-05
        %v8342 = vrsqrt.pop %v8341
        %s8343 = smul.u32 0, 4
        %s8344 = smul.addr %s8343, 4
        %s8345 = scalar_lea.vmem %s259, %s8344
        %v8346 = vld [vmem:[%s8345] sm:$0xff]
        %v8347 = vld [vmem:[%s8345 + $0x8] sm:$0xff]
        %v8348 = vld [vmem:[%s8345 + $0x10] sm:$0xff]
        %v8349 = vld [vmem:[%s8345 + $0x18] sm:$0xff]
        %v8350 = vunpack.c.l.bf16 %v8346
        %v8351 = vunpack.c.h.bf16 %v8346
        %v8352 = vunpack.c.l.bf16 %v8347
        %v8353 = vunpack.c.h.bf16 %v8347
        %v8354 = vunpack.c.l.bf16 %v8348
        %v8355 = vunpack.c.h.bf16 %v8348
        %v8356 = vunpack.c.l.bf16 %v8349
        %v8357 = vunpack.c.h.bf16 %v8349
        %v8359 = vlaneseq
        %v8360 = vshrl.u32 %v8359, 7
        %v8361 = vsub.s32 0, %v8360
        %v8362 = vrot.slane %v8335, %v8361
        %v8363 = vlaneseq
        %v8364 = vshrl.u32 %v8363, 7
        %v8365 = vsub.s32 1, %v8364
        %v8366 = vrot.slane %v8335, %v8365
        %v8367 = vlaneseq
        %v8368 = vshrl.u32 %v8367, 7
        %v8369 = vsub.s32 2, %v8368
        %v8370 = vrot.slane %v8335, %v8369
        %v8371 = vlaneseq
        %v8372 = vshrl.u32 %v8371, 7
        %v8373 = vsub.s32 3, %v8372
        %v8374 = vrot.slane %v8335, %v8373
        %v8379 = vsub.f32 %v8350, %v8362
        %v8380 = vsub.f32 %v8351, %v8366
        %v8381 = vsub.f32 %v8352, %v8370
        %v8382 = vsub.f32 %v8353, %v8374
        %v8383 = vsub.f32 %v8354, %v8362
        %v8384 = vsub.f32 %v8355, %v8366
        %v8385 = vsub.f32 %v8356, %v8370
        %v8386 = vsub.f32 %v8357, %v8374
        %v8388 = vlaneseq
        %v8389 = vshrl.u32 %v8388, 7
        %v8390 = vsub.s32 0, %v8389
        %v8391 = vrot.slane %v8342, %v8390
        %v8392 = vlaneseq
        %v8393 = vshrl.u32 %v8392, 7
        %v8394 = vsub.s32 1, %v8393
        %v8395 = vrot.slane %v8342, %v8394
        %v8396 = vlaneseq
        %v8397 = vshrl.u32 %v8396, 7
        %v8398 = vsub.s32 2, %v8397
        %v8399 = vrot.slane %v8342, %v8398
        %v8400 = vlaneseq
        %v8401 = vshrl.u32 %v8400, 7
        %v8402 = vsub.s32 3, %v8401
        %v8403 = vrot.slane %v8342, %v8402
        %v8408 = vmul.f32 %v8379, %v8391
        %v8409 = vmul.f32 %v8380, %v8395
        %v8410 = vmul.f32 %v8381, %v8399
        %v8411 = vmul.f32 %v8382, %v8403
        %v8412 = vmul.f32 %v8383, %v8391
        %v8413 = vmul.f32 %v8384, %v8395
        %v8414 = vmul.f32 %v8385, %v8399
        %v8415 = vmul.f32 %v8386, %v8403
        %vm8416 = vcmp.ge.f32.partialorder %v8408, 0.0
        %vm8417 = vcmp.ge.f32.partialorder %v8409, 0.0
        %vm8418 = vcmp.ge.f32.partialorder %v8410, 0.0
        %vm8419 = vcmp.ge.f32.partialorder %v8411, 0.0
        %vm8420 = vcmp.ge.f32.partialorder %v8412, 0.0
        %vm8421 = vcmp.ge.f32.partialorder %v8413, 0.0
        %vm8422 = vcmp.ge.f32.partialorder %v8414, 0.0
        %vm8423 = vcmp.ge.f32.partialorder %v8415, 0.0
        %v8424 = vmul.f32 %v8408, 0.2
        %v8425 = vmul.f32 %v8409, 0.2
        %v8426 = vmul.f32 %v8410, 0.2
        %v8427 = vmul.f32 %v8411, 0.2
        %v8428 = vmul.f32 %v8412, 0.2
        %v8429 = vmul.f32 %v8413, 0.2
        %v8430 = vmul.f32 %v8414, 0.2
        %v8431 = vmul.f32 %v8415, 0.2
        %v8432 = vsel %vm8416, %v8408, %v8424
        %v8433 = vsel %vm8417, %v8409, %v8425
        %v8434 = vsel %vm8418, %v8410, %v8426
        %v8435 = vsel %vm8419, %v8411, %v8427
        %v8436 = vsel %vm8420, %v8412, %v8428
        %v8437 = vsel %vm8421, %v8413, %v8429
        %v8438 = vsel %vm8422, %v8414, %v8430
        %v8439 = vsel %vm8423, %v8415, %v8431
        %v8440 = vpack.c.bf16 %v8436, %v8432
        %v8441 = vpack.c.bf16 %v8437, %v8433
        %v8442 = vpack.c.bf16 %v8438, %v8434
        %v8443 = vpack.c.bf16 %v8439, %v8435
        %v8448 = vunpack.c.l.b16 %v8440
        %v8449 = vunpack.c.l.b16 %v8441
        %v8450 = vunpack.c.l.b16 %v8442
        %v8451 = vunpack.c.l.b16 %v8443
        %v8452 = vunpack.c.h.b16 %v8440
        %v8453 = vunpack.c.h.b16 %v8441
        %v8454 = vunpack.c.h.b16 %v8442
        %v8455 = vunpack.c.h.b16 %v8443
        %v8456 = vpack.c.b16 %v8449, %v8448
        %v8457 = vpack.c.b16 %v8451, %v8450
        %v8458 = vpack.c.b16 %v8453, %v8452
        %v8459 = vpack.c.b16 %v8455, %v8454
        %8464 = vst [vmem:[%s8345] sm:$0xff] %v8456
        %8465 = vst [vmem:[%s8345 + $0x8] sm:$0xff] %v8457
        %8466 = vst [vmem:[%s8345 + $0x10] sm:$0xff] %v8458
        %8467 = vst [vmem:[%s8345 + $0x18] sm:$0xff] %v8459
      $region48: #{discriminator_forward.7} parent=31 // pred_fallthru
        _
      %s8468 = smul.u32 4, %s20
      %p8469 = scmp.lt.s32.totalorder %s19, 1
      %s8470 = scalar_select %p8469, %s19, 1
      %p8471 = scmp.lt.s32.totalorder %s8468, 3
      %s8472 = scalar_select %p8471, %s8468, 3
      %s8473 = smul.addr %s8470, 8
      %s8474 = sadd.s32 %s8472, %s8473
      %s8475 = smul.addr %s8474, 4
      %s8476 = scalar_lea.vmem %s3, %s8475
      // Predicated region
      $region49: #{discriminator_forward.7} parent=31 // pred_check
        %p8477 = pneg %p133
      $region50: #{discriminator_forward.7} parent=31 // pred_check_branch
        %8479 = sbr.rel (%p8477) target = $region52
      $region51: #{discriminator_forward.7} parent=31 // pred_region
        %s8480 = smul.u32 4, %s20
      $region52: #{discriminator_forward.7} parent=31 // pred_fallthru
        _
    $region32: #{discriminator_forward.7} parent=5 // pred_fallthru
      _
    %p8481 = scmp.le.s32.totalorder 2, %s9
    // Predicated region
    $region53: #{discriminator_forward.7} parent=5 // pred_check
      %p8482 = pneg %p8481
    $region54: #{discriminator_forward.7} parent=5 // pred_check_branch
      %8484 = sbr.rel (%p8482) target = $region56
    $region55: #{discriminator_forward.7} parent=5 // pred_region
      %s8485 = ssub.s32 %s9, 2
      // Predicated region
      $region57: #{discriminator_forward.7} parent=55 // pred_check
        %p8486 = pneg %p139
      $region58: #{discriminator_forward.7} parent=55 // pred_check_branch
        %8488 = sbr.rel (%p8486) target = $region60
      $region59: #{discriminator_forward.7} parent=55 // pred_region
        %s8489 = smul.u32 4, %s23
        %p8490 = scmp.lt.s32.totalorder %s22, 1
        %s8491 = scalar_select %p8490, %s22, 1
        %p8492 = scmp.lt.s32.totalorder %s8489, 3
        %s8493 = scalar_select %p8492, %s8489, 3
        %s8494 = smul.addr %s8491, 8
        %s8495 = sadd.s32 %s8493, %s8494
        %s8496 = smul.addr %s8495, 4
        %s8497 = scalar_lea.vmem %s3, %s8496
      $region60: #{discriminator_forward.7} parent=55 // pred_fallthru
        _
    $region56: #{discriminator_forward.7} parent=5 // pred_fallthru
      _
  $region6: #{discriminator_forward.7} parent=0 // loop_footer
    %s13 = sadd.s32 1, %s9
  $region7: #{discriminator_forward.7} parent=0 // loop_footer_branch
    %8 = sbr.rel target = $region3
  $region8: #{discriminator_forward.7} parent=0 // loop_exit
    _

</llo_original>
